<compile_context>
chip_gen: v7x
topology: tpu7x:2x2x1
jax: 0.10.0
libtpu: 0.0.40
codegen_flags: <defaults>
</compile_context>

<pallas_src>
import jax
import jax.numpy as jnp
from jax import lax
from jax.experimental import pallas as pl
from jax.experimental.pallas import tpu as pltpu

NGF = 32
LATENT_C = 50
K0 = 15                                   # first ConvTranspose1d kernel size
CHANS = [LATENT_C, NGF * 16, NGF * 8, NGF * 4, NGF * 2, NGF]   # + [nc]
EPS = 1e-5


# --------------------------------------------------------------------------
# In-kernel building blocks.
#
# Representation ("stacked phase form", latent length L == 1):
#   after layer l the length-T_l signal (T_l = 15 * 2**l) is ONE array of
#   shape (P_l * R, C_l) with P_l = 2**l phases and R = N*15 rows per phase
#   slab; row p*R + n*15 + m holds h[n, :, m*P_l + p]  (natural phase order).
# --------------------------------------------------------------------------
def _dot(a, b):
    # bf16 MXU matmul, f32 accumulation (review #3).
    return jnp.dot(a.astype(jnp.bfloat16), b, preferred_element_type=jnp.float32)


def _bn_relu(z, gamma, beta):
    """Training-mode BatchNorm1d (batch stats, biased var, eps=1e-5) + ReLU."""
    inv_cnt = 1.0 / z.shape[0]                       # static python float
    mean = jnp.sum(z, axis=0, keepdims=True) * inv_cnt
    var = jnp.sum(jnp.square(z - mean), axis=0, keepdims=True) * inv_cnt
    scale = gamma * lax.rsqrt(var + EPS)             # (1, C)
    shift = beta - mean * scale
    return jnp.maximum(z * scale + shift, 0.0)


def _conv_t_k4s2p1(z, w_ref, bias, not_m0, not_mlast, num_phase, slab_rows):
    """ConvTranspose1d(K=4, stride=2, padding=1) on the stacked phase array.

    z:       (num_phase * slab_rows, C_in) f32, natural phase order.
    w_ref:   (4, C_in, C_out) bf16 ref, kernel tap leading.
    returns: even, odd — each (num_phase * slab_rows, C_out) f32 where
             even slab p = output phase 2p, odd slab p = output phase 2p+1.
    """
    w0 = w_ref[0]
    w1 = w_ref[1]
    w2 = w_ref[2]
    w3 = w_ref[3]
    c_in = z.shape[-1]
    zero_row = jnp.zeros((1, c_in), z.dtype)

    # Wrap-around phase slabs: phase -1 = m-shift-down of phase P-1 (zero at
    # m==0 of every sample); phase P = m-shift-up of phase 0 (zero at m==K0-1).
    last = z[(num_phase - 1) * slab_rows:]
    first = z[:slab_rows]
    last_dn = jnp.concatenate([zero_row, last[:slab_rows - 1]], axis=0) * not_m0
    first_up = jnp.concatenate([first[1:], zero_row], axis=0) * not_mlast

    if num_phase == 1:
        z_prev = last_dn
        z_next = first_up
    else:
        # slab p of z_prev holds phase p-1; slab p of z_next holds phase p+1.
        z_prev = jnp.concatenate([last_dn, z[:(num_phase - 1) * slab_rows]], axis=0)
        z_next = jnp.concatenate([z[slab_rows:], first_up], axis=0)

    even = _dot(z, w1) + _dot(z_prev, w3) + bias      # output phases 2p
    odd = _dot(z_next, w0) + _dot(z, w2) + bias       # output phases 2p+1
    return even, odd


def _interleave_slabs(even, odd, num_phase, slab_rows):
    """[E_0, O_0, E_1, O_1, ...] -> natural phase order for the next layer."""
    if num_phase == 1:
        return jnp.concatenate([even, odd], axis=0)
    pieces = []
    for p in range(num_phase):
        pieces.append(even[p * slab_rows:(p + 1) * slab_rows])
        pieces.append(odd[p * slab_rows:(p + 1) * slab_rows])
    return jnp.concatenate(pieces, axis=0)


# --------------------------------------------------------------------------
# The fused decoder kernel (single invocation, everything resident in VMEM)
# --------------------------------------------------------------------------
def _decoder_kernel(xbig_ref,
                    w0_ref, b0_ref, g0_ref, be0_ref,
                    w1_ref, b1_ref, g1_ref, be1_ref,
                    w2_ref, b2_ref, g2_ref, be2_ref,
                    w3_ref, b3_ref, g3_ref, be3_ref,
                    w4_ref, b4_ref, g4_ref, be4_ref,
                    w5_ref, b5_ref,
                    out_ref):
    rows = xbig_ref.shape[0]                      # N * K0, row = n*K0 + m
    n_batch = rows // K0

    # (rows, 1) per-sample boundary masks (review #2: no O(N^2) matrices).
    ridx = lax.broadcasted_iota(jnp.int32, (rows, 1), 0)
    is_m0 = (ridx == 0)
    is_mlast = (ridx == K0 - 1)
    for n in range(1, n_batch):
        is_m0 = jnp.logical_or(is_m0, ridx == n * K0)
        is_mlast = jnp.logical_or(is_mlast, ridx == n * K0 + K0 - 1)
    not_m0 = jnp.where(is_m0, 0.0, 1.0).astype(jnp.float32)
    not_mlast = jnp.where(is_mlast, 0.0, 1.0).astype(jnp.float32)

    # layer 0: ConvTranspose1d(50, 512, 15, 1, 0)  == one MXU matmul
    z = _dot(xbig_ref[...], w0_ref[...]) + b0_ref[...]
    z = _bn_relu(z, g0_ref[...], be0_ref[...])

    # layers 1..4: ConvTranspose1d(C, C/2, 4, 2, 1) + BN + ReLU (all fused)
    num_phase = 1
    for w_ref, b_ref, g_ref, be_ref in (
            (w1_ref, b1_ref, g1_ref, be1_ref),
            (w2_ref, b2_ref, g2_ref, be2_ref),
            (w3_ref, b3_ref, g3_ref, be3_ref),
            (w4_ref, b4_ref, g4_ref, be4_ref)):
        even, odd = _conv_t_k4s2p1(z, w_ref, b_ref[...], not_m0, not_mlast,
                                   num_phase, rows)
        z = _interleave_slabs(even, odd, num_phase, rows)
        num_phase *= 2
        z = _bn_relu(z, g_ref[...], be_ref[...])

    # layer 5: ConvTranspose1d(32, nc, 4, 2, 1) + Tanh.  Two big stores
    # (review #4); the wrapper does the final time-order permutation.
    even, odd = _conv_t_k4s2p1(z, w5_ref, b5_ref[...], not_m0, not_mlast,
                               num_phase, rows)
    out_ref[0] = jnp.tanh(even)
    out_ref[1] = jnp.tanh(odd)


# --------------------------------------------------------------------------
# Parameters (PyTorch layout) + one-time repack into MXU-friendly layout
# --------------------------------------------------------------------------
def init_params(nc, key):
    chans = CHANS + [nc]
    kers = [K0, 4, 4, 4, 4, 4]
    params = {}
    keys = jax.random.split(key, 4 * len(kers))
    for li in range(6):
        c_in, c_out, k = chans[li], chans[li + 1], kers[li]
        scale = 1.0 / jnp.sqrt(jnp.float32(c_in * k))
        params[f"w{li}"] = scale * jax.random.normal(
            keys[4 * li], (c_in, c_out, k), jnp.float32)
        params[f"b{li}"] = scale * jax.random.normal(
            keys[4 * li + 1], (c_out,), jnp.float32)
        if li < 5:   # BatchNorm affine params (randomized to exercise the path)
            params[f"g{li}"] = 1.0 + 0.1 * jax.random.normal(
                keys[4 * li + 2], (c_out,), jnp.float32)
            params[f"be{li}"] = 0.1 * jax.random.normal(
                keys[4 * li + 3], (c_out,), jnp.float32)
    return params


def prepare_params(params):
    """Repack weights once (outside the forward) into the kernel layout."""
    kp = {}
    # layer 0: (C_in, C_out, K0) -> (K0*C_in, C_out), row = m*C_in + c; bf16.
    kp["w0"] = jnp.transpose(params["w0"], (2, 0, 1)).reshape(
        K0 * LATENT_C, -1).astype(jnp.bfloat16)
    for li in range(1, 6):
        # (C_in, C_out, 4) -> (4, C_in, C_out): kernel tap leading; bf16.
        kp[f"w{li}"] = jnp.transpose(params[f"w{li}"], (2, 0, 1)).astype(jnp.bfloat16)
    for li in range(6):
        kp[f"b{li}"] = params[f"b{li}"].reshape(1, -1)
    for li in range(5):
        kp[f"g{li}"] = params[f"g{li}"].reshape(1, -1)
        kp[f"be{li}"] = params[f"be{li}"].reshape(1, -1)
    return kp


# --------------------------------------------------------------------------
# Forward
# --------------------------------------------------------------------------
@jax.jit
def decoder1d_forward(x, kp):
    n_batch, c_in, latent_l = x.shape
    # TODO(synk): the fused kernel supports the canonical latent length L == 1
    # (DCGAN usage); general L would need an im2col path for the first layer.
    assert c_in == LATENT_C and latent_l == 1
    nc = kp["w5"].shape[-1]
    rows = n_batch * K0

    # Place the latent vector block-diagonally so layer 0 is a single matmul:
    #   xbig[n*K0 + m, m*C_in + c] = x[n, c, 0]     (bf16, ~45 KB for N=2)
    x2 = x[:, :, 0]                                               # (N, 50)
    eye = jnp.eye(K0, dtype=x.dtype)
    xbig = (eye[None, :, :, None] * x2[:, None, None, :]).reshape(
        rows, K0 * LATENT_C).astype(jnp.bfloat16)

    n_phase = 32                                                  # 2**5
    half = n_phase // 2
    out = pl.pallas_call(
        _decoder_kernel,
        out_shape=jax.ShapeDtypeStruct((2, half * rows, nc), jnp.float32),
        compiler_params=pltpu.CompilerParams(
            vmem_limit_bytes=32 * 1024 * 1024),
    )(xbig,
      kp["w0"], kp["b0"], kp["g0"], kp["be0"],
      kp["w1"], kp["b1"], kp["g1"], kp["be1"],
      kp["w2"], kp["b2"], kp["g2"], kp["be2"],
      kp["w3"], kp["b3"], kp["g3"], kp["be3"],
      kp["w4"], kp["b4"], kp["g4"], kp["be4"],
      kp["w5"], kp["b5"])

    # out[e, p*rows + n*K0 + m, c]  ->  y[n, c, m*32 + 2p + e]
    y = out.reshape(2, half, n_batch, K0, nc).transpose(2, 4, 3, 1, 0)
    return y.reshape(n_batch, nc, K0 * n_phase)


# --------------------------------------------------------------------------
# Pure-XLA reference (PyTorch semantics) for the in-script correctness check
# --------------------------------------------------------------------------
def _reference_forward(x, params):
    def conv_t(h, w, b, stride, padding):
        k = w.shape[-1]
        w_oik = jnp.transpose(jnp.flip(w, axis=2), (1, 0, 2))     # (C_out, C_in, K)
        pad = k - 1 - padding
        y = lax.conv_general_dilated(
            h, w_oik, window_strides=(1,), padding=[(pad, pad)],
            lhs_dilation=(stride,), rhs_dilation=(1,),
            dimension_numbers=("NCH", "OIH", "NCH"),
            precision=lax.Precision.HIGHEST)
        return y + b[None, :, None]

    def bn_relu(h, g, be):
        mean = jnp.mean(h, axis=(0, 2), keepdims=True)
        var = jnp.mean(jnp.square(h - mean), axis=(0, 2), keepdims=True)
        hn = (h - mean) * lax.rsqrt(var + EPS)
        return jnp.maximum(hn * g[None, :, None] + be[None, :, None], 0.0)

    h = bn_relu(conv_t(x, params["w0"], params["b0"], 1, 0),
                params["g0"], params["be0"])
    for li in (1, 2, 3, 4):
        h = bn_relu(conv_t(h, params[f"w{li}"], params[f"b{li}"], 2, 1),
                    params[f"g{li}"], params[f"be{li}"])
    return jnp.tanh(conv_t(h, params["w5"], params["b5"], 2, 1))


if __name__ == "__main__":
    nc = 3
    batch = 2
    key = jax.random.PRNGKey(0)
    kx, kparam = jax.random.split(key)
    x = jax.random.normal(kx, (batch, LATENT_C, 1), jnp.float32)
    params = init_params(nc, kparam)
    kp = prepare_params(params)

    out = decoder1d_forward(x, kp)
    out = jax.block_until_ready(out)

    expected_shape = (batch, nc, 480)     # 1 -> 15 -> 30 -> 60 -> 120 -> 240 -> 480
    assert out.shape == expected_shape, out.shape
    assert bool(jnp.all(jnp.isfinite(out)))
    assert bool(jnp.all(jnp.abs(out) <= 1.0 + 1e-6))          # tanh range

    ref = jax.jit(_reference_forward)(x, params)
    max_err = float(jnp.max(jnp.abs(out - ref)))
    mean_err = float(jnp.mean(jnp.abs(out - ref)))
    # bf16 matmul operands (f32 accumulation / BN / tanh) vs an all-f32 reference.
    assert max_err < 7.5e-2, f"max abs error vs XLA reference: {max_err}"
    assert mean_err < 1e-2, f"mean abs error vs XLA reference: {mean_err}"
    print("KERNEL_OK")
</pallas_src>

<mosaic_0001>
module attributes {stable_mosaic.version = 11 : i64} {
  func.func @_decoder_kernel(%arg0: memref<30x750xbf16, #tpu.memory_space<vmem>>, %arg1: memref<750x512xbf16, #tpu.memory_space<vmem>>, %arg2: memref<1x512xf32, #tpu.memory_space<vmem>>, %arg3: memref<1x512xf32, #tpu.memory_space<vmem>>, %arg4: memref<1x512xf32, #tpu.memory_space<vmem>>, %arg5: memref<4x512x256xbf16, #tpu.memory_space<vmem>>, %arg6: memref<1x256xf32, #tpu.memory_space<vmem>>, %arg7: memref<1x256xf32, #tpu.memory_space<vmem>>, %arg8: memref<1x256xf32, #tpu.memory_space<vmem>>, %arg9: memref<4x256x128xbf16, #tpu.memory_space<vmem>>, %arg10: memref<1x128xf32, #tpu.memory_space<vmem>>, %arg11: memref<1x128xf32, #tpu.memory_space<vmem>>, %arg12: memref<1x128xf32, #tpu.memory_space<vmem>>, %arg13: memref<4x128x64xbf16, #tpu.memory_space<vmem>>, %arg14: memref<1x64xf32, #tpu.memory_space<vmem>>, %arg15: memref<1x64xf32, #tpu.memory_space<vmem>>, %arg16: memref<1x64xf32, #tpu.memory_space<vmem>>, %arg17: memref<4x64x32xbf16, #tpu.memory_space<vmem>>, %arg18: memref<1x32xf32, #tpu.memory_space<vmem>>, %arg19: memref<1x32xf32, #tpu.memory_space<vmem>>, %arg20: memref<1x32xf32, #tpu.memory_space<vmem>>, %arg21: memref<4x32x3xbf16, #tpu.memory_space<vmem>>, %arg22: memref<1x3xf32, #tpu.memory_space<vmem>>, %arg23: memref<2x480x3xf32, #tpu.memory_space<vmem>>) attributes {dimension_semantics = [], scalar_prefetch = 0 : i64, scratch_operands = 0 : i64, tpu.core_type = #tpu.core_type<tc>} {
    %0 = tpu.iota {dimensions = array<i32: 0>} : vector<30x1xi32>
    %c0_i32 = arith.constant 0 : i32
    %1 = vector.broadcast %c0_i32 : i32 to vector<30x1xi32>
    %2 = arith.cmpi eq, %0, %1 : vector<30x1xi32>
    %c14_i32 = arith.constant 14 : i32
    %3 = vector.broadcast %c14_i32 : i32 to vector<30x1xi32>
    %4 = arith.cmpi eq, %0, %3 : vector<30x1xi32>
    %c15_i32 = arith.constant 15 : i32
    %5 = vector.broadcast %c15_i32 : i32 to vector<30x1xi32>
    %6 = arith.cmpi eq, %0, %5 : vector<30x1xi32>
    %7 = arith.ori %2, %6 : vector<30x1xi1>
    %c29_i32 = arith.constant 29 : i32
    %8 = vector.broadcast %c29_i32 : i32 to vector<30x1xi32>
    %9 = arith.cmpi eq, %0, %8 : vector<30x1xi32>
    %10 = arith.ori %4, %9 : vector<30x1xi1>
    %cst = arith.constant 0.000000e+00 : f32
    %cst_0 = arith.constant 1.000000e+00 : f32
    %11 = vector.broadcast %cst : f32 to vector<30x1xf32>
    %12 = vector.broadcast %cst_0 : f32 to vector<30x1xf32>
    %13 = arith.select %7, %11, %12 : vector<30x1xi1>, vector<30x1xf32>
    %cst_1 = arith.constant 0.000000e+00 : f32
    %cst_2 = arith.constant 1.000000e+00 : f32
    %14 = vector.broadcast %cst_1 : f32 to vector<30x1xf32>
    %15 = vector.broadcast %cst_2 : f32 to vector<30x1xf32>
    %16 = arith.select %10, %14, %15 : vector<30x1xi1>, vector<30x1xf32>
    %c0 = arith.constant 0 : index
    %c0_3 = arith.constant 0 : index
    %17 = vector.load %arg0[%c0, %c0_3] : memref<30x750xbf16, #tpu.memory_space<vmem>>, vector<30x750xbf16>
    %c0_4 = arith.constant 0 : index
    %c0_5 = arith.constant 0 : index
    %18 = vector.load %arg1[%c0_4, %c0_5] : memref<750x512xbf16, #tpu.memory_space<vmem>>, vector<750x512xbf16>
    %cst_6 = arith.constant dense<0.000000e+00> : vector<30x512xf32>
    %19 = tpu.matmul %17, %18, %cst_6 {dimension_numbers = #tpu.dot_dimension_numbers<[1], [0], [0], [1], [0, 0, 1, 1], [], []>} : vector<30x750xbf16>, vector<750x512xbf16>, vector<30x512xf32> -> vector<30x512xf32>
    %c0_7 = arith.constant 0 : index
    %c0_8 = arith.constant 0 : index
    %20 = vector.load %arg2[%c0_7, %c0_8] : memref<1x512xf32, #tpu.memory_space<vmem>>, vector<1x512xf32>
    %21 = vector.broadcast %20 : vector<1x512xf32> to vector<30x512xf32>
    %22 = arith.addf %19, %21 : vector<30x512xf32>
    %c0_9 = arith.constant 0 : index
    %c0_10 = arith.constant 0 : index
    %23 = vector.load %arg3[%c0_9, %c0_10] : memref<1x512xf32, #tpu.memory_space<vmem>>, vector<1x512xf32>
    %c0_11 = arith.constant 0 : index
    %c0_12 = arith.constant 0 : index
    %24 = vector.load %arg4[%c0_11, %c0_12] : memref<1x512xf32, #tpu.memory_space<vmem>>, vector<1x512xf32>
    %cst_13 = arith.constant dense<0.000000e+00> : vector<512xf32>
    %25 = vector.multi_reduction <add>, %22, %cst_13 [0] : vector<30x512xf32> to vector<512xf32>
    %26 = vector.shape_cast %25 : vector<512xf32> to vector<1x512xf32>
    %cst_14 = arith.constant 0.0333333351 : f32
    %27 = vector.broadcast %cst_14 : f32 to vector<1x512xf32>
    %28 = arith.mulf %26, %27 : vector<1x512xf32>
    %29 = vector.broadcast %28 : vector<1x512xf32> to vector<30x512xf32>
    %30 = arith.subf %22, %29 : vector<30x512xf32>
    %31 = arith.mulf %30, %30 : vector<30x512xf32>
    %cst_15 = arith.constant dense<0.000000e+00> : vector<512xf32>
    %32 = vector.multi_reduction <add>, %31, %cst_15 [0] : vector<30x512xf32> to vector<512xf32>
    %33 = vector.shape_cast %32 : vector<512xf32> to vector<1x512xf32>
    %cst_16 = arith.constant 0.0333333351 : f32
    %34 = vector.broadcast %cst_16 : f32 to vector<1x512xf32>
    %35 = arith.mulf %33, %34 : vector<1x512xf32>
    %cst_17 = arith.constant 9.99999974E-6 : f32
    %36 = vector.broadcast %cst_17 : f32 to vector<1x512xf32>
    %37 = arith.addf %35, %36 : vector<1x512xf32>
    %38 = math.rsqrt %37 : vector<1x512xf32>
    %39 = arith.mulf %23, %38 : vector<1x512xf32>
    %40 = arith.mulf %28, %39 : vector<1x512xf32>
    %41 = arith.subf %24, %40 : vector<1x512xf32>
    %42 = vector.broadcast %39 : vector<1x512xf32> to vector<30x512xf32>
    %43 = arith.mulf %22, %42 : vector<30x512xf32>
    %44 = vector.broadcast %41 : vector<1x512xf32> to vector<30x512xf32>
    %45 = arith.addf %43, %44 : vector<30x512xf32>
    %cst_18 = arith.constant 0.000000e+00 : f32
    %46 = vector.broadcast %cst_18 : f32 to vector<30x512xf32>
    %47 = arith.maximumf %45, %46 : vector<30x512xf32>
    %c0_19 = arith.constant 0 : index
    %c0_20 = arith.constant 0 : index
    %48 = vector.load %arg6[%c0_19, %c0_20] : memref<1x256xf32, #tpu.memory_space<vmem>>, vector<1x256xf32>
    %c0_21 = arith.constant 0 : index
    %c0_22 = arith.constant 0 : index
    %c0_23 = arith.constant 0 : index
    %49 = vector.load %arg5[%c0_21, %c0_22, %c0_23] : memref<4x512x256xbf16, #tpu.memory_space<vmem>>, vector<1x512x256xbf16>
    %50 = vector.shape_cast %49 : vector<1x512x256xbf16> to vector<512x256xbf16>
    %c1 = arith.constant 1 : index
    %c0_24 = arith.constant 0 : index
    %c0_25 = arith.constant 0 : index
    %51 = vector.load %arg5[%c1, %c0_24, %c0_25] : memref<4x512x256xbf16, #tpu.memory_space<vmem>>, vector<1x512x256xbf16>
    %52 = vector.shape_cast %51 : vector<1x512x256xbf16> to vector<512x256xbf16>
    %c2 = arith.constant 2 : index
    %c0_26 = arith.constant 0 : index
    %c0_27 = arith.constant 0 : index
    %53 = vector.load %arg5[%c2, %c0_26, %c0_27] : memref<4x512x256xbf16, #tpu.memory_space<vmem>>, vector<1x512x256xbf16>
    %54 = vector.shape_cast %53 : vector<1x512x256xbf16> to vector<512x256xbf16>
    %c3 = arith.constant 3 : index
    %c0_28 = arith.constant 0 : index
    %c0_29 = arith.constant 0 : index
    %55 = vector.load %arg5[%c3, %c0_28, %c0_29] : memref<4x512x256xbf16, #tpu.memory_space<vmem>>, vector<1x512x256xbf16>
    %56 = vector.shape_cast %55 : vector<1x512x256xbf16> to vector<512x256xbf16>
    %cst_30 = arith.constant 0.000000e+00 : f32
    %57 = vector.broadcast %cst_30 : f32 to vector<1x512xf32>
    %58 = vector.extract_strided_slice %47 {offsets = [0, 0], sizes = [29, 512], strides = [1, 1]} : vector<30x512xf32> to vector<29x512xf32>
    %59 = tpu.concatenate %57, %58 in 0 : vector<1x512xf32>, vector<29x512xf32> -> vector<30x512xf32>
    %60 = vector.broadcast %13 : vector<30x1xf32> to vector<30x512xf32>
    %61 = arith.mulf %59, %60 : vector<30x512xf32>
    %62 = vector.extract_strided_slice %47 {offsets = [1, 0], sizes = [29, 512], strides = [1, 1]} : vector<30x512xf32> to vector<29x512xf32>
    %63 = tpu.concatenate %62, %57 in 0 : vector<29x512xf32>, vector<1x512xf32> -> vector<30x512xf32>
    %64 = vector.broadcast %16 : vector<30x1xf32> to vector<30x512xf32>
    %65 = arith.mulf %63, %64 : vector<30x512xf32>
    %66 = arith.truncf %47 : vector<30x512xf32> to vector<30x512xbf16>
    %cst_31 = arith.constant dense<0.000000e+00> : vector<30x256xf32>
    %67 = tpu.matmul %66, %52, %cst_31 {dimension_numbers = #tpu.dot_dimension_numbers<[1], [0], [0], [1], [0, 0, 1, 1], [], []>} : vector<30x512xbf16>, vector<512x256xbf16>, vector<30x256xf32> -> vector<30x256xf32>
    %68 = arith.truncf %61 : vector<30x512xf32> to vector<30x512xbf16>
    %cst_32 = arith.constant dense<0.000000e+00> : vector<30x256xf32>
    %69 = tpu.matmul %68, %56, %cst_32 {dimension_numbers = #tpu.dot_dimension_numbers<[1], [0], [0], [1], [0, 0, 1, 1], [], []>} : vector<30x512xbf16>, vector<512x256xbf16>, vector<30x256xf32> -> vector<30x256xf32>
    %70 = arith.addf %67, %69 : vector<30x256xf32>
    %71 = vector.broadcast %48 : vector<1x256xf32> to vector<30x256xf32>
    %72 = arith.addf %70, %71 : vector<30x256xf32>
    %73 = arith.truncf %65 : vector<30x512xf32> to vector<30x512xbf16>
    %cst_33 = arith.constant dense<0.000000e+00> : vector<30x256xf32>
    %74 = tpu.matmul %73, %50, %cst_33 {dimension_numbers = #tpu.dot_dimension_numbers<[1], [0], [0], [1], [0, 0, 1, 1], [], []>} : vector<30x512xbf16>, vector<512x256xbf16>, vector<30x256xf32> -> vector<30x256xf32>
    %75 = arith.truncf %47 : vector<30x512xf32> to vector<30x512xbf16>
    %cst_34 = arith.constant dense<0.000000e+00> : vector<30x256xf32>
    %76 = tpu.matmul %75, %54, %cst_34 {dimension_numbers = #tpu.dot_dimension_numbers<[1], [0], [0], [1], [0, 0, 1, 1], [], []>} : vector<30x512xbf16>, vector<512x256xbf16>, vector<30x256xf32> -> vector<30x256xf32>
    %77 = arith.addf %74, %76 : vector<30x256xf32>
    %78 = vector.broadcast %48 : vector<1x256xf32> to vector<30x256xf32>
    %79 = arith.addf %77, %78 : vector<30x256xf32>
    %80 = tpu.concatenate %72, %79 in 0 : vector<30x256xf32>, vector<30x256xf32> -> vector<60x256xf32>
    %c0_35 = arith.constant 0 : index
    %c0_36 = arith.constant 0 : index
    %81 = vector.load %arg7[%c0_35, %c0_36] : memref<1x256xf32, #tpu.memory_space<vmem>>, vector<1x256xf32>
    %c0_37 = arith.constant 0 : index
    %c0_38 = arith.constant 0 : index
    %82 = vector.load %arg8[%c0_37, %c0_38] : memref<1x256xf32, #tpu.memory_space<vmem>>, vector<1x256xf32>
    %cst_39 = arith.constant dense<0.000000e+00> : vector<256xf32>
    %83 = vector.multi_reduction <add>, %80, %cst_39 [0] : vector<60x256xf32> to vector<256xf32>
    %84 = vector.shape_cast %83 : vector<256xf32> to vector<1x256xf32>
    %cst_40 = arith.constant 0.0166666675 : f32
    %85 = vector.broadcast %cst_40 : f32 to vector<1x256xf32>
    %86 = arith.mulf %84, %85 : vector<1x256xf32>
    %87 = vector.broadcast %86 : vector<1x256xf32> to vector<60x256xf32>
    %88 = arith.subf %80, %87 : vector<60x256xf32>
    %89 = arith.mulf %88, %88 : vector<60x256xf32>
    %cst_41 = arith.constant dense<0.000000e+00> : vector<256xf32>
    %90 = vector.multi_reduction <add>, %89, %cst_41 [0] : vector<60x256xf32> to vector<256xf32>
    %91 = vector.shape_cast %90 : vector<256xf32> to vector<1x256xf32>
    %cst_42 = arith.constant 0.0166666675 : f32
    %92 = vector.broadcast %cst_42 : f32 to vector<1x256xf32>
    %93 = arith.mulf %91, %92 : vector<1x256xf32>
    %cst_43 = arith.constant 9.99999974E-6 : f32
    %94 = vector.broadcast %cst_43 : f32 to vector<1x256xf32>
    %95 = arith.addf %93, %94 : vector<1x256xf32>
    %96 = math.rsqrt %95 : vector<1x256xf32>
    %97 = arith.mulf %81, %96 : vector<1x256xf32>
    %98 = arith.mulf %86, %97 : vector<1x256xf32>
    %99 = arith.subf %82, %98 : vector<1x256xf32>
    %100 = vector.broadcast %97 : vector<1x256xf32> to vector<60x256xf32>
    %101 = arith.mulf %80, %100 : vector<60x256xf32>
    %102 = vector.broadcast %99 : vector<1x256xf32> to vector<60x256xf32>
    %103 = arith.addf %101, %102 : vector<60x256xf32>
    %cst_44 = arith.constant 0.000000e+00 : f32
    %104 = vector.broadcast %cst_44 : f32 to vector<60x256xf32>
    %105 = arith.maximumf %103, %104 : vector<60x256xf32>
    %c0_45 = arith.constant 0 : index
    %c0_46 = arith.constant 0 : index
    %106 = vector.load %arg10[%c0_45, %c0_46] : memref<1x128xf32, #tpu.memory_space<vmem>>, vector<1x128xf32>
    %c0_47 = arith.constant 0 : index
    %c0_48 = arith.constant 0 : index
    %c0_49 = arith.constant 0 : index
    %107 = vector.load %arg9[%c0_47, %c0_48, %c0_49] : memref<4x256x128xbf16, #tpu.memory_space<vmem>>, vector<1x256x128xbf16>
    %108 = vector.shape_cast %107 : vector<1x256x128xbf16> to vector<256x128xbf16>
    %c1_50 = arith.constant 1 : index
    %c0_51 = arith.constant 0 : index
    %c0_52 = arith.constant 0 : index
    %109 = vector.load %arg9[%c1_50, %c0_51, %c0_52] : memref<4x256x128xbf16, #tpu.memory_space<vmem>>, vector<1x256x128xbf16>
    %110 = vector.shape_cast %109 : vector<1x256x128xbf16> to vector<256x128xbf16>
    %c2_53 = arith.constant 2 : index
    %c0_54 = arith.constant 0 : index
    %c0_55 = arith.constant 0 : index
    %111 = vector.load %arg9[%c2_53, %c0_54, %c0_55] : memref<4x256x128xbf16, #tpu.memory_space<vmem>>, vector<1x256x128xbf16>
    %112 = vector.shape_cast %111 : vector<1x256x128xbf16> to vector<256x128xbf16>
    %c3_56 = arith.constant 3 : index
    %c0_57 = arith.constant 0 : index
    %c0_58 = arith.constant 0 : index
    %113 = vector.load %arg9[%c3_56, %c0_57, %c0_58] : memref<4x256x128xbf16, #tpu.memory_space<vmem>>, vector<1x256x128xbf16>
    %114 = vector.shape_cast %113 : vector<1x256x128xbf16> to vector<256x128xbf16>
    %cst_59 = arith.constant 0.000000e+00 : f32
    %115 = vector.broadcast %cst_59 : f32 to vector<1x256xf32>
    %116 = vector.extract_strided_slice %105 {offsets = [30, 0], sizes = [30, 256], strides = [1, 1]} : vector<60x256xf32> to vector<30x256xf32>
    %117 = vector.extract_strided_slice %105 {offsets = [0, 0], sizes = [30, 256], strides = [1, 1]} : vector<60x256xf32> to vector<30x256xf32>
    %118 = vector.extract_strided_slice %116 {offsets = [0, 0], sizes = [29, 256], strides = [1, 1]} : vector<30x256xf32> to vector<29x256xf32>
    %119 = tpu.concatenate %115, %118 in 0 : vector<1x256xf32>, vector<29x256xf32> -> vector<30x256xf32>
    %120 = vector.broadcast %13 : vector<30x1xf32> to vector<30x256xf32>
    %121 = arith.mulf %119, %120 : vector<30x256xf32>
    %122 = vector.extract_strided_slice %117 {offsets = [1, 0], sizes = [29, 256], strides = [1, 1]} : vector<30x256xf32> to vector<29x256xf32>
    %123 = tpu.concatenate %122, %115 in 0 : vector<29x256xf32>, vector<1x256xf32> -> vector<30x256xf32>
    %124 = vector.broadcast %16 : vector<30x1xf32> to vector<30x256xf32>
    %125 = arith.mulf %123, %124 : vector<30x256xf32>
    %126 = vector.extract_strided_slice %105 {offsets = [0, 0], sizes = [30, 256], strides = [1, 1]} : vector<60x256xf32> to vector<30x256xf32>
    %127 = tpu.concatenate %121, %126 in 0 : vector<30x256xf32>, vector<30x256xf32> -> vector<60x256xf32>
    %128 = vector.extract_strided_slice %105 {offsets = [30, 0], sizes = [30, 256], strides = [1, 1]} : vector<60x256xf32> to vector<30x256xf32>
    %129 = tpu.concatenate %128, %125 in 0 : vector<30x256xf32>, vector<30x256xf32> -> vector<60x256xf32>
    %130 = arith.truncf %105 : vector<60x256xf32> to vector<60x256xbf16>
    %cst_60 = arith.constant dense<0.000000e+00> : vector<60x128xf32>
    %131 = tpu.matmul %130, %110, %cst_60 {dimension_numbers = #tpu.dot_dimension_numbers<[1], [0], [0], [1], [0, 0, 1, 1], [], []>} : vector<60x256xbf16>, vector<256x128xbf16>, vector<60x128xf32> -> vector<60x128xf32>
    %132 = arith.truncf %127 : vector<60x256xf32> to vector<60x256xbf16>
    %cst_61 = arith.constant dense<0.000000e+00> : vector<60x128xf32>
    %133 = tpu.matmul %132, %114, %cst_61 {dimension_numbers = #tpu.dot_dimension_numbers<[1], [0], [0], [1], [0, 0, 1, 1], [], []>} : vector<60x256xbf16>, vector<256x128xbf16>, vector<60x128xf32> -> vector<60x128xf32>
    %134 = arith.addf %131, %133 : vector<60x128xf32>
    %135 = vector.broadcast %106 : vector<1x128xf32> to vector<60x128xf32>
    %136 = arith.addf %134, %135 : vector<60x128xf32>
    %137 = arith.truncf %129 : vector<60x256xf32> to vector<60x256xbf16>
    %cst_62 = arith.constant dense<0.000000e+00> : vector<60x128xf32>
    %138 = tpu.matmul %137, %108, %cst_62 {dimension_numbers = #tpu.dot_dimension_numbers<[1], [0], [0], [1], [0, 0, 1, 1], [], []>} : vector<60x256xbf16>, vector<256x128xbf16>, vector<60x128xf32> -> vector<60x128xf32>
    %139 = arith.truncf %105 : vector<60x256xf32> to vector<60x256xbf16>
    %cst_63 = arith.constant dense<0.000000e+00> : vector<60x128xf32>
    %140 = tpu.matmul %139, %112, %cst_63 {dimension_numbers = #tpu.dot_dimension_numbers<[1], [0], [0], [1], [0, 0, 1, 1], [], []>} : vector<60x256xbf16>, vector<256x128xbf16>, vector<60x128xf32> -> vector<60x128xf32>
    %141 = arith.addf %138, %140 : vector<60x128xf32>
    %142 = vector.broadcast %106 : vector<1x128xf32> to vector<60x128xf32>
    %143 = arith.addf %141, %142 : vector<60x128xf32>
    %144 = vector.extract_strided_slice %136 {offsets = [0, 0], sizes = [30, 128], strides = [1, 1]} : vector<60x128xf32> to vector<30x128xf32>
    %145 = vector.extract_strided_slice %143 {offsets = [0, 0], sizes = [30, 128], strides = [1, 1]} : vector<60x128xf32> to vector<30x128xf32>
    %146 = vector.extract_strided_slice %136 {offsets = [30, 0], sizes = [30, 128], strides = [1, 1]} : vector<60x128xf32> to vector<30x128xf32>
    %147 = vector.extract_strided_slice %143 {offsets = [30, 0], sizes = [30, 128], strides = [1, 1]} : vector<60x128xf32> to vector<30x128xf32>
    %148 = tpu.concatenate %144, %145, %146, %147 in 0 : vector<30x128xf32>, vector<30x128xf32>, vector<30x128xf32>, vector<30x128xf32> -> vector<120x128xf32>
    %c0_64 = arith.constant 0 : index
    %c0_65 = arith.constant 0 : index
    %149 = vector.load %arg11[%c0_64, %c0_65] : memref<1x128xf32, #tpu.memory_space<vmem>>, vector<1x128xf32>
    %c0_66 = arith.constant 0 : index
    %c0_67 = arith.constant 0 : index
    %150 = vector.load %arg12[%c0_66, %c0_67] : memref<1x128xf32, #tpu.memory_space<vmem>>, vector<1x128xf32>
    %cst_68 = arith.constant dense<0.000000e+00> : vector<128xf32>
    %151 = vector.multi_reduction <add>, %148, %cst_68 [0] : vector<120x128xf32> to vector<128xf32>
    %152 = vector.shape_cast %151 : vector<128xf32> to vector<1x128xf32>
    %cst_69 = arith.constant 0.00833333377 : f32
    %153 = vector.broadcast %cst_69 : f32 to vector<1x128xf32>
    %154 = arith.mulf %152, %153 : vector<1x128xf32>
    %155 = vector.broadcast %154 : vector<1x128xf32> to vector<120x128xf32>
    %156 = arith.subf %148, %155 : vector<120x128xf32>
    %157 = arith.mulf %156, %156 : vector<120x128xf32>
    %cst_70 = arith.constant dense<0.000000e+00> : vector<128xf32>
    %158 = vector.multi_reduction <add>, %157, %cst_70 [0] : vector<120x128xf32> to vector<128xf32>
    %159 = vector.shape_cast %158 : vector<128xf32> to vector<1x128xf32>
    %cst_71 = arith.constant 0.00833333377 : f32
    %160 = vector.broadcast %cst_71 : f32 to vector<1x128xf32>
    %161 = arith.mulf %159, %160 : vector<1x128xf32>
    %cst_72 = arith.constant 9.99999974E-6 : f32
    %162 = vector.broadcast %cst_72 : f32 to vector<1x128xf32>
    %163 = arith.addf %161, %162 : vector<1x128xf32>
    %164 = math.rsqrt %163 : vector<1x128xf32>
    %165 = arith.mulf %149, %164 : vector<1x128xf32>
    %166 = arith.mulf %154, %165 : vector<1x128xf32>
    %167 = arith.subf %150, %166 : vector<1x128xf32>
    %168 = vector.broadcast %165 : vector<1x128xf32> to vector<120x128xf32>
    %169 = arith.mulf %148, %168 : vector<120x128xf32>
    %170 = vector.broadcast %167 : vector<1x128xf32> to vector<120x128xf32>
    %171 = arith.addf %169, %170 : vector<120x128xf32>
    %cst_73 = arith.constant 0.000000e+00 : f32
    %172 = vector.broadcast %cst_73 : f32 to vector<120x128xf32>
    %173 = arith.maximumf %171, %172 : vector<120x128xf32>
    %c0_74 = arith.constant 0 : index
    %c0_75 = arith.constant 0 : index
    %174 = vector.load %arg14[%c0_74, %c0_75] : memref<1x64xf32, #tpu.memory_space<vmem>>, vector<1x64xf32>
    %c0_76 = arith.constant 0 : index
    %c0_77 = arith.constant 0 : index
    %c0_78 = arith.constant 0 : index
    %175 = vector.load %arg13[%c0_76, %c0_77, %c0_78] : memref<4x128x64xbf16, #tpu.memory_space<vmem>>, vector<1x128x64xbf16>
    %176 = vector.shape_cast %175 : vector<1x128x64xbf16> to vector<128x64xbf16>
    %c1_79 = arith.constant 1 : index
    %c0_80 = arith.constant 0 : index
    %c0_81 = arith.constant 0 : index
    %177 = vector.load %arg13[%c1_79, %c0_80, %c0_81] : memref<4x128x64xbf16, #tpu.memory_space<vmem>>, vector<1x128x64xbf16>
    %178 = vector.shape_cast %177 : vector<1x128x64xbf16> to vector<128x64xbf16>
    %c2_82 = arith.constant 2 : index
    %c0_83 = arith.constant 0 : index
    %c0_84 = arith.constant 0 : index
    %179 = vector.load %arg13[%c2_82, %c0_83, %c0_84] : memref<4x128x64xbf16, #tpu.memory_space<vmem>>, vector<1x128x64xbf16>
    %180 = vector.shape_cast %179 : vector<1x128x64xbf16> to vector<128x64xbf16>
    %c3_85 = arith.constant 3 : index
    %c0_86 = arith.constant 0 : index
    %c0_87 = arith.constant 0 : index
    %181 = vector.load %arg13[%c3_85, %c0_86, %c0_87] : memref<4x128x64xbf16, #tpu.memory_space<vmem>>, vector<1x128x64xbf16>
    %182 = vector.shape_cast %181 : vector<1x128x64xbf16> to vector<128x64xbf16>
    %cst_88 = arith.constant 0.000000e+00 : f32
    %183 = vector.broadcast %cst_88 : f32 to vector<1x128xf32>
    %184 = vector.extract_strided_slice %173 {offsets = [90, 0], sizes = [30, 128], strides = [1, 1]} : vector<120x128xf32> to vector<30x128xf32>
    %185 = vector.extract_strided_slice %173 {offsets = [0, 0], sizes = [30, 128], strides = [1, 1]} : vector<120x128xf32> to vector<30x128xf32>
    %186 = vector.extract_strided_slice %184 {offsets = [0, 0], sizes = [29, 128], strides = [1, 1]} : vector<30x128xf32> to vector<29x128xf32>
    %187 = tpu.concatenate %183, %186 in 0 : vector<1x128xf32>, vector<29x128xf32> -> vector<30x128xf32>
    %188 = vector.broadcast %13 : vector<30x1xf32> to vector<30x128xf32>
    %189 = arith.mulf %187, %188 : vector<30x128xf32>
    %190 = vector.extract_strided_slice %185 {offsets = [1, 0], sizes = [29, 128], strides = [1, 1]} : vector<30x128xf32> to vector<29x128xf32>
    %191 = tpu.concatenate %190, %183 in 0 : vector<29x128xf32>, vector<1x128xf32> -> vector<30x128xf32>
    %192 = vector.broadcast %16 : vector<30x1xf32> to vector<30x128xf32>
    %193 = arith.mulf %191, %192 : vector<30x128xf32>
    %194 = vector.extract_strided_slice %173 {offsets = [0, 0], sizes = [90, 128], strides = [1, 1]} : vector<120x128xf32> to vector<90x128xf32>
    %195 = tpu.concatenate %189, %194 in 0 : vector<30x128xf32>, vector<90x128xf32> -> vector<120x128xf32>
    %196 = vector.extract_strided_slice %173 {offsets = [30, 0], sizes = [90, 128], strides = [1, 1]} : vector<120x128xf32> to vector<90x128xf32>
    %197 = tpu.concatenate %196, %193 in 0 : vector<90x128xf32>, vector<30x128xf32> -> vector<120x128xf32>
    %198 = arith.truncf %173 : vector<120x128xf32> to vector<120x128xbf16>
    %cst_89 = arith.constant dense<0.000000e+00> : vector<120x64xf32>
    %199 = tpu.matmul %198, %178, %cst_89 {dimension_numbers = #tpu.dot_dimension_numbers<[1], [0], [0], [1], [0, 0, 1, 1], [], []>} : vector<120x128xbf16>, vector<128x64xbf16>, vector<120x64xf32> -> vector<120x64xf32>
    %200 = arith.truncf %195 : vector<120x128xf32> to vector<120x128xbf16>
    %cst_90 = arith.constant dense<0.000000e+00> : vector<120x64xf32>
    %201 = tpu.matmul %200, %182, %cst_90 {dimension_numbers = #tpu.dot_dimension_numbers<[1], [0], [0], [1], [0, 0, 1, 1], [], []>} : vector<120x128xbf16>, vector<128x64xbf16>, vector<120x64xf32> -> vector<120x64xf32>
    %202 = arith.addf %199, %201 : vector<120x64xf32>
    %203 = vector.broadcast %174 : vector<1x64xf32> to vector<120x64xf32>
    %204 = arith.addf %202, %203 : vector<120x64xf32>
    %205 = arith.truncf %197 : vector<120x128xf32> to vector<120x128xbf16>
    %cst_91 = arith.constant dense<0.000000e+00> : vector<120x64xf32>
    %206 = tpu.matmul %205, %176, %cst_91 {dimension_numbers = #tpu.dot_dimension_numbers<[1], [0], [0], [1], [0, 0, 1, 1], [], []>} : vector<120x128xbf16>, vector<128x64xbf16>, vector<120x64xf32> -> vector<120x64xf32>
    %207 = arith.truncf %173 : vector<120x128xf32> to vector<120x128xbf16>
    %cst_92 = arith.constant dense<0.000000e+00> : vector<120x64xf32>
    %208 = tpu.matmul %207, %180, %cst_92 {dimension_numbers = #tpu.dot_dimension_numbers<[1], [0], [0], [1], [0, 0, 1, 1], [], []>} : vector<120x128xbf16>, vector<128x64xbf16>, vector<120x64xf32> -> vector<120x64xf32>
    %209 = arith.addf %206, %208 : vector<120x64xf32>
    %210 = vector.broadcast %174 : vector<1x64xf32> to vector<120x64xf32>
    %211 = arith.addf %209, %210 : vector<120x64xf32>
    %212 = vector.extract_strided_slice %204 {offsets = [0, 0], sizes = [30, 64], strides = [1, 1]} : vector<120x64xf32> to vector<30x64xf32>
    %213 = vector.extract_strided_slice %211 {offsets = [0, 0], sizes = [30, 64], strides = [1, 1]} : vector<120x64xf32> to vector<30x64xf32>
    %214 = vector.extract_strided_slice %204 {offsets = [30, 0], sizes = [30, 64], strides = [1, 1]} : vector<120x64xf32> to vector<30x64xf32>
    %215 = vector.extract_strided_slice %211 {offsets = [30, 0], sizes = [30, 64], strides = [1, 1]} : vector<120x64xf32> to vector<30x64xf32>
    %216 = vector.extract_strided_slice %204 {offsets = [60, 0], sizes = [30, 64], strides = [1, 1]} : vector<120x64xf32> to vector<30x64xf32>
    %217 = vector.extract_strided_slice %211 {offsets = [60, 0], sizes = [30, 64], strides = [1, 1]} : vector<120x64xf32> to vector<30x64xf32>
    %218 = vector.extract_strided_slice %204 {offsets = [90, 0], sizes = [30, 64], strides = [1, 1]} : vector<120x64xf32> to vector<30x64xf32>
    %219 = vector.extract_strided_slice %211 {offsets = [90, 0], sizes = [30, 64], strides = [1, 1]} : vector<120x64xf32> to vector<30x64xf32>
    %220 = tpu.concatenate %212, %213, %214, %215, %216, %217, %218, %219 in 0 : vector<30x64xf32>, vector<30x64xf32>, vector<30x64xf32>, vector<30x64xf32>, vector<30x64xf32>, vector<30x64xf32>, vector<30x64xf32>, vector<30x64xf32> -> vector<240x64xf32>
    %c0_93 = arith.constant 0 : index
    %c0_94 = arith.constant 0 : index
    %221 = vector.load %arg15[%c0_93, %c0_94] : memref<1x64xf32, #tpu.memory_space<vmem>>, vector<1x64xf32>
    %c0_95 = arith.constant 0 : index
    %c0_96 = arith.constant 0 : index
    %222 = vector.load %arg16[%c0_95, %c0_96] : memref<1x64xf32, #tpu.memory_space<vmem>>, vector<1x64xf32>
    %cst_97 = arith.constant dense<0.000000e+00> : vector<64xf32>
    %223 = vector.multi_reduction <add>, %220, %cst_97 [0] : vector<240x64xf32> to vector<64xf32>
    %224 = vector.shape_cast %223 : vector<64xf32> to vector<1x64xf32>
    %cst_98 = arith.constant 0.00416666688 : f32
    %225 = vector.broadcast %cst_98 : f32 to vector<1x64xf32>
    %226 = arith.mulf %224, %225 : vector<1x64xf32>
    %227 = vector.broadcast %226 : vector<1x64xf32> to vector<240x64xf32>
    %228 = arith.subf %220, %227 : vector<240x64xf32>
    %229 = arith.mulf %228, %228 : vector<240x64xf32>
    %cst_99 = arith.constant dense<0.000000e+00> : vector<64xf32>
    %230 = vector.multi_reduction <add>, %229, %cst_99 [0] : vector<240x64xf32> to vector<64xf32>
    %231 = vector.shape_cast %230 : vector<64xf32> to vector<1x64xf32>
    %cst_100 = arith.constant 0.00416666688 : f32
    %232 = vector.broadcast %cst_100 : f32 to vector<1x64xf32>
    %233 = arith.mulf %231, %232 : vector<1x64xf32>
    %cst_101 = arith.constant 9.99999974E-6 : f32
    %234 = vector.broadcast %cst_101 : f32 to vector<1x64xf32>
    %235 = arith.addf %233, %234 : vector<1x64xf32>
    %236 = math.rsqrt %235 : vector<1x64xf32>
    %237 = arith.mulf %221, %236 : vector<1x64xf32>
    %238 = arith.mulf %226, %237 : vector<1x64xf32>
    %239 = arith.subf %222, %238 : vector<1x64xf32>
    %240 = vector.broadcast %237 : vector<1x64xf32> to vector<240x64xf32>
    %241 = arith.mulf %220, %240 : vector<240x64xf32>
    %242 = vector.broadcast %239 : vector<1x64xf32> to vector<240x64xf32>
    %243 = arith.addf %241, %242 : vector<240x64xf32>
    %cst_102 = arith.constant 0.000000e+00 : f32
    %244 = vector.broadcast %cst_102 : f32 to vector<240x64xf32>
    %245 = arith.maximumf %243, %244 : vector<240x64xf32>
    %c0_103 = arith.constant 0 : index
    %c0_104 = arith.constant 0 : index
    %246 = vector.load %arg18[%c0_103, %c0_104] : memref<1x32xf32, #tpu.memory_space<vmem>>, vector<1x32xf32>
    %c0_105 = arith.constant 0 : index
    %c0_106 = arith.constant 0 : index
    %c0_107 = arith.constant 0 : index
    %247 = vector.load %arg17[%c0_105, %c0_106, %c0_107] : memref<4x64x32xbf16, #tpu.memory_space<vmem>>, vector<1x64x32xbf16>
    %248 = vector.shape_cast %247 : vector<1x64x32xbf16> to vector<64x32xbf16>
    %c1_108 = arith.constant 1 : index
    %c0_109 = arith.constant 0 : index
    %c0_110 = arith.constant 0 : index
    %249 = vector.load %arg17[%c1_108, %c0_109, %c0_110] : memref<4x64x32xbf16, #tpu.memory_space<vmem>>, vector<1x64x32xbf16>
    %250 = vector.shape_cast %249 : vector<1x64x32xbf16> to vector<64x32xbf16>
    %c2_111 = arith.constant 2 : index
    %c0_112 = arith.constant 0 : index
    %c0_113 = arith.constant 0 : index
    %251 = vector.load %arg17[%c2_111, %c0_112, %c0_113] : memref<4x64x32xbf16, #tpu.memory_space<vmem>>, vector<1x64x32xbf16>
    %252 = vector.shape_cast %251 : vector<1x64x32xbf16> to vector<64x32xbf16>
    %c3_114 = arith.constant 3 : index
    %c0_115 = arith.constant 0 : index
    %c0_116 = arith.constant 0 : index
    %253 = vector.load %arg17[%c3_114, %c0_115, %c0_116] : memref<4x64x32xbf16, #tpu.memory_space<vmem>>, vector<1x64x32xbf16>
    %254 = vector.shape_cast %253 : vector<1x64x32xbf16> to vector<64x32xbf16>
    %cst_117 = arith.constant 0.000000e+00 : f32
    %255 = vector.broadcast %cst_117 : f32 to vector<1x64xf32>
    %256 = vector.extract_strided_slice %245 {offsets = [210, 0], sizes = [30, 64], strides = [1, 1]} : vector<240x64xf32> to vector<30x64xf32>
    %257 = vector.extract_strided_slice %245 {offsets = [0, 0], sizes = [30, 64], strides = [1, 1]} : vector<240x64xf32> to vector<30x64xf32>
    %258 = vector.extract_strided_slice %256 {offsets = [0, 0], sizes = [29, 64], strides = [1, 1]} : vector<30x64xf32> to vector<29x64xf32>
    %259 = tpu.concatenate %255, %258 in 0 : vector<1x64xf32>, vector<29x64xf32> -> vector<30x64xf32>
    %260 = vector.broadcast %13 : vector<30x1xf32> to vector<30x64xf32>
    %261 = arith.mulf %259, %260 : vector<30x64xf32>
    %262 = vector.extract_strided_slice %257 {offsets = [1, 0], sizes = [29, 64], strides = [1, 1]} : vector<30x64xf32> to vector<29x64xf32>
    %263 = tpu.concatenate %262, %255 in 0 : vector<29x64xf32>, vector<1x64xf32> -> vector<30x64xf32>
    %264 = vector.broadcast %16 : vector<30x1xf32> to vector<30x64xf32>
    %265 = arith.mulf %263, %264 : vector<30x64xf32>
    %266 = vector.extract_strided_slice %245 {offsets = [0, 0], sizes = [210, 64], strides = [1, 1]} : vector<240x64xf32> to vector<210x64xf32>
    %267 = tpu.concatenate %261, %266 in 0 : vector<30x64xf32>, vector<210x64xf32> -> vector<240x64xf32>
    %268 = vector.extract_strided_slice %245 {offsets = [30, 0], sizes = [210, 64], strides = [1, 1]} : vector<240x64xf32> to vector<210x64xf32>
    %269 = tpu.concatenate %268, %265 in 0 : vector<210x64xf32>, vector<30x64xf32> -> vector<240x64xf32>
    %270 = arith.truncf %245 : vector<240x64xf32> to vector<240x64xbf16>
    %cst_118 = arith.constant dense<0.000000e+00> : vector<240x32xf32>
    %271 = tpu.matmul %270, %250, %cst_118 {dimension_numbers = #tpu.dot_dimension_numbers<[1], [0], [0], [1], [0, 0, 1, 1], [], []>} : vector<240x64xbf16>, vector<64x32xbf16>, vector<240x32xf32> -> vector<240x32xf32>
    %272 = arith.truncf %267 : vector<240x64xf32> to vector<240x64xbf16>
    %cst_119 = arith.constant dense<0.000000e+00> : vector<240x32xf32>
    %273 = tpu.matmul %272, %254, %cst_119 {dimension_numbers = #tpu.dot_dimension_numbers<[1], [0], [0], [1], [0, 0, 1, 1], [], []>} : vector<240x64xbf16>, vector<64x32xbf16>, vector<240x32xf32> -> vector<240x32xf32>
    %274 = arith.addf %271, %273 : vector<240x32xf32>
    %275 = vector.broadcast %246 : vector<1x32xf32> to vector<240x32xf32>
    %276 = arith.addf %274, %275 : vector<240x32xf32>
    %277 = arith.truncf %269 : vector<240x64xf32> to vector<240x64xbf16>
    %cst_120 = arith.constant dense<0.000000e+00> : vector<240x32xf32>
    %278 = tpu.matmul %277, %248, %cst_120 {dimension_numbers = #tpu.dot_dimension_numbers<[1], [0], [0], [1], [0, 0, 1, 1], [], []>} : vector<240x64xbf16>, vector<64x32xbf16>, vector<240x32xf32> -> vector<240x32xf32>
    %279 = arith.truncf %245 : vector<240x64xf32> to vector<240x64xbf16>
    %cst_121 = arith.constant dense<0.000000e+00> : vector<240x32xf32>
    %280 = tpu.matmul %279, %252, %cst_121 {dimension_numbers = #tpu.dot_dimension_numbers<[1], [0], [0], [1], [0, 0, 1, 1], [], []>} : vector<240x64xbf16>, vector<64x32xbf16>, vector<240x32xf32> -> vector<240x32xf32>
    %281 = arith.addf %278, %280 : vector<240x32xf32>
    %282 = vector.broadcast %246 : vector<1x32xf32> to vector<240x32xf32>
    %283 = arith.addf %281, %282 : vector<240x32xf32>
    %284 = vector.extract_strided_slice %276 {offsets = [0, 0], sizes = [30, 32], strides = [1, 1]} : vector<240x32xf32> to vector<30x32xf32>
    %285 = vector.extract_strided_slice %283 {offsets = [0, 0], sizes = [30, 32], strides = [1, 1]} : vector<240x32xf32> to vector<30x32xf32>
    %286 = vector.extract_strided_slice %276 {offsets = [30, 0], sizes = [30, 32], strides = [1, 1]} : vector<240x32xf32> to vector<30x32xf32>
    %287 = vector.extract_strided_slice %283 {offsets = [30, 0], sizes = [30, 32], strides = [1, 1]} : vector<240x32xf32> to vector<30x32xf32>
    %288 = vector.extract_strided_slice %276 {offsets = [60, 0], sizes = [30, 32], strides = [1, 1]} : vector<240x32xf32> to vector<30x32xf32>
    %289 = vector.extract_strided_slice %283 {offsets = [60, 0], sizes = [30, 32], strides = [1, 1]} : vector<240x32xf32> to vector<30x32xf32>
    %290 = vector.extract_strided_slice %276 {offsets = [90, 0], sizes = [30, 32], strides = [1, 1]} : vector<240x32xf32> to vector<30x32xf32>
    %291 = vector.extract_strided_slice %283 {offsets = [90, 0], sizes = [30, 32], strides = [1, 1]} : vector<240x32xf32> to vector<30x32xf32>
    %292 = vector.extract_strided_slice %276 {offsets = [120, 0], sizes = [30, 32], strides = [1, 1]} : vector<240x32xf32> to vector<30x32xf32>
    %293 = vector.extract_strided_slice %283 {offsets = [120, 0], sizes = [30, 32], strides = [1, 1]} : vector<240x32xf32> to vector<30x32xf32>
    %294 = vector.extract_strided_slice %276 {offsets = [150, 0], sizes = [30, 32], strides = [1, 1]} : vector<240x32xf32> to vector<30x32xf32>
    %295 = vector.extract_strided_slice %283 {offsets = [150, 0], sizes = [30, 32], strides = [1, 1]} : vector<240x32xf32> to vector<30x32xf32>
    %296 = vector.extract_strided_slice %276 {offsets = [180, 0], sizes = [30, 32], strides = [1, 1]} : vector<240x32xf32> to vector<30x32xf32>
    %297 = vector.extract_strided_slice %283 {offsets = [180, 0], sizes = [30, 32], strides = [1, 1]} : vector<240x32xf32> to vector<30x32xf32>
    %298 = vector.extract_strided_slice %276 {offsets = [210, 0], sizes = [30, 32], strides = [1, 1]} : vector<240x32xf32> to vector<30x32xf32>
    %299 = vector.extract_strided_slice %283 {offsets = [210, 0], sizes = [30, 32], strides = [1, 1]} : vector<240x32xf32> to vector<30x32xf32>
    %300 = tpu.concatenate %284, %285, %286, %287, %288, %289, %290, %291, %292, %293, %294, %295, %296, %297, %298, %299 in 0 : vector<30x32xf32>, vector<30x32xf32>, vector<30x32xf32>, vector<30x32xf32>, vector<30x32xf32>, vector<30x32xf32>, vector<30x32xf32>, vector<30x32xf32>, vector<30x32xf32>, vector<30x32xf32>, vector<30x32xf32>, vector<30x32xf32>, vector<30x32xf32>, vector<30x32xf32>, vector<30x32xf32>, vector<30x32xf32> -> vector<480x32xf32>
    %c0_122 = arith.constant 0 : index
    %c0_123 = arith.constant 0 : index
    %301 = vector.load %arg19[%c0_122, %c0_123] : memref<1x32xf32, #tpu.memory_space<vmem>>, vector<1x32xf32>
    %c0_124 = arith.constant 0 : index
    %c0_125 = arith.constant 0 : index
    %302 = vector.load %arg20[%c0_124, %c0_125] : memref<1x32xf32, #tpu.memory_space<vmem>>, vector<1x32xf32>
    %cst_126 = arith.constant dense<0.000000e+00> : vector<32xf32>
    %303 = vector.multi_reduction <add>, %300, %cst_126 [0] : vector<480x32xf32> to vector<32xf32>
    %304 = vector.shape_cast %303 : vector<32xf32> to vector<1x32xf32>
    %cst_127 = arith.constant 0.00208333344 : f32
    %305 = vector.broadcast %cst_127 : f32 to vector<1x32xf32>
    %306 = arith.mulf %304, %305 : vector<1x32xf32>
    %307 = vector.broadcast %306 : vector<1x32xf32> to vector<480x32xf32>
    %308 = arith.subf %300, %307 : vector<480x32xf32>
    %309 = arith.mulf %308, %308 : vector<480x32xf32>
    %cst_128 = arith.constant dense<0.000000e+00> : vector<32xf32>
    %310 = vector.multi_reduction <add>, %309, %cst_128 [0] : vector<480x32xf32> to vector<32xf32>
    %311 = vector.shape_cast %310 : vector<32xf32> to vector<1x32xf32>
    %cst_129 = arith.constant 0.00208333344 : f32
    %312 = vector.broadcast %cst_129 : f32 to vector<1x32xf32>
    %313 = arith.mulf %311, %312 : vector<1x32xf32>
    %cst_130 = arith.constant 9.99999974E-6 : f32
    %314 = vector.broadcast %cst_130 : f32 to vector<1x32xf32>
    %315 = arith.addf %313, %314 : vector<1x32xf32>
    %316 = math.rsqrt %315 : vector<1x32xf32>
    %317 = arith.mulf %301, %316 : vector<1x32xf32>
    %318 = arith.mulf %306, %317 : vector<1x32xf32>
    %319 = arith.subf %302, %318 : vector<1x32xf32>
    %320 = vector.broadcast %317 : vector<1x32xf32> to vector<480x32xf32>
    %321 = arith.mulf %300, %320 : vector<480x32xf32>
    %322 = vector.broadcast %319 : vector<1x32xf32> to vector<480x32xf32>
    %323 = arith.addf %321, %322 : vector<480x32xf32>
    %cst_131 = arith.constant 0.000000e+00 : f32
    %324 = vector.broadcast %cst_131 : f32 to vector<480x32xf32>
    %325 = arith.maximumf %323, %324 : vector<480x32xf32>
    %c0_132 = arith.constant 0 : index
    %c0_133 = arith.constant 0 : index
    %326 = vector.load %arg22[%c0_132, %c0_133] : memref<1x3xf32, #tpu.memory_space<vmem>>, vector<1x3xf32>
    %c0_134 = arith.constant 0 : index
    %c0_135 = arith.constant 0 : index
    %c0_136 = arith.constant 0 : index
    %327 = vector.load %arg21[%c0_134, %c0_135, %c0_136] : memref<4x32x3xbf16, #tpu.memory_space<vmem>>, vector<1x32x3xbf16>
    %328 = vector.shape_cast %327 : vector<1x32x3xbf16> to vector<32x3xbf16>
    %c1_137 = arith.constant 1 : index
    %c0_138 = arith.constant 0 : index
    %c0_139 = arith.constant 0 : index
    %329 = vector.load %arg21[%c1_137, %c0_138, %c0_139] : memref<4x32x3xbf16, #tpu.memory_space<vmem>>, vector<1x32x3xbf16>
    %330 = vector.shape_cast %329 : vector<1x32x3xbf16> to vector<32x3xbf16>
    %c2_140 = arith.constant 2 : index
    %c0_141 = arith.constant 0 : index
    %c0_142 = arith.constant 0 : index
    %331 = vector.load %arg21[%c2_140, %c0_141, %c0_142] : memref<4x32x3xbf16, #tpu.memory_space<vmem>>, vector<1x32x3xbf16>
    %332 = vector.shape_cast %331 : vector<1x32x3xbf16> to vector<32x3xbf16>
    %c3_143 = arith.constant 3 : index
    %c0_144 = arith.constant 0 : index
    %c0_145 = arith.constant 0 : index
    %333 = vector.load %arg21[%c3_143, %c0_144, %c0_145] : memref<4x32x3xbf16, #tpu.memory_space<vmem>>, vector<1x32x3xbf16>
    %334 = vector.shape_cast %333 : vector<1x32x3xbf16> to vector<32x3xbf16>
    %cst_146 = arith.constant 0.000000e+00 : f32
    %335 = vector.broadcast %cst_146 : f32 to vector<1x32xf32>
    %336 = vector.extract_strided_slice %325 {offsets = [450, 0], sizes = [30, 32], strides = [1, 1]} : vector<480x32xf32> to vector<30x32xf32>
    %337 = vector.extract_strided_slice %325 {offsets = [0, 0], sizes = [30, 32], strides = [1, 1]} : vector<480x32xf32> to vector<30x32xf32>
    %338 = vector.extract_strided_slice %336 {offsets = [0, 0], sizes = [29, 32], strides = [1, 1]} : vector<30x32xf32> to vector<29x32xf32>
    %339 = tpu.concatenate %335, %338 in 0 : vector<1x32xf32>, vector<29x32xf32> -> vector<30x32xf32>
    %340 = vector.broadcast %13 : vector<30x1xf32> to vector<30x32xf32>
    %341 = arith.mulf %339, %340 : vector<30x32xf32>
    %342 = vector.extract_strided_slice %337 {offsets = [1, 0], sizes = [29, 32], strides = [1, 1]} : vector<30x32xf32> to vector<29x32xf32>
    %343 = tpu.concatenate %342, %335 in 0 : vector<29x32xf32>, vector<1x32xf32> -> vector<30x32xf32>
    %344 = vector.broadcast %16 : vector<30x1xf32> to vector<30x32xf32>
    %345 = arith.mulf %343, %344 : vector<30x32xf32>
    %346 = vector.extract_strided_slice %325 {offsets = [0, 0], sizes = [450, 32], strides = [1, 1]} : vector<480x32xf32> to vector<450x32xf32>
    %347 = tpu.concatenate %341, %346 in 0 : vector<30x32xf32>, vector<450x32xf32> -> vector<480x32xf32>
    %348 = vector.extract_strided_slice %325 {offsets = [30, 0], sizes = [450, 32], strides = [1, 1]} : vector<480x32xf32> to vector<450x32xf32>
    %349 = tpu.concatenate %348, %345 in 0 : vector<450x32xf32>, vector<30x32xf32> -> vector<480x32xf32>
    %350 = arith.truncf %325 : vector<480x32xf32> to vector<480x32xbf16>
    %cst_147 = arith.constant dense<0.000000e+00> : vector<480x3xf32>
    %351 = tpu.matmul %350, %330, %cst_147 {dimension_numbers = #tpu.dot_dimension_numbers<[1], [0], [0], [1], [0, 0, 1, 1], [], []>} : vector<480x32xbf16>, vector<32x3xbf16>, vector<480x3xf32> -> vector<480x3xf32>
    %352 = arith.truncf %347 : vector<480x32xf32> to vector<480x32xbf16>
    %cst_148 = arith.constant dense<0.000000e+00> : vector<480x3xf32>
    %353 = tpu.matmul %352, %334, %cst_148 {dimension_numbers = #tpu.dot_dimension_numbers<[1], [0], [0], [1], [0, 0, 1, 1], [], []>} : vector<480x32xbf16>, vector<32x3xbf16>, vector<480x3xf32> -> vector<480x3xf32>
    %354 = arith.addf %351, %353 : vector<480x3xf32>
    %355 = vector.broadcast %326 : vector<1x3xf32> to vector<480x3xf32>
    %356 = arith.addf %354, %355 : vector<480x3xf32>
    %357 = arith.truncf %349 : vector<480x32xf32> to vector<480x32xbf16>
    %cst_149 = arith.constant dense<0.000000e+00> : vector<480x3xf32>
    %358 = tpu.matmul %357, %328, %cst_149 {dimension_numbers = #tpu.dot_dimension_numbers<[1], [0], [0], [1], [0, 0, 1, 1], [], []>} : vector<480x32xbf16>, vector<32x3xbf16>, vector<480x3xf32> -> vector<480x3xf32>
    %359 = arith.truncf %325 : vector<480x32xf32> to vector<480x32xbf16>
    %cst_150 = arith.constant dense<0.000000e+00> : vector<480x3xf32>
    %360 = tpu.matmul %359, %332, %cst_150 {dimension_numbers = #tpu.dot_dimension_numbers<[1], [0], [0], [1], [0, 0, 1, 1], [], []>} : vector<480x32xbf16>, vector<32x3xbf16>, vector<480x3xf32> -> vector<480x3xf32>
    %361 = arith.addf %358, %360 : vector<480x3xf32>
    %362 = vector.broadcast %326 : vector<1x3xf32> to vector<480x3xf32>
    %363 = arith.addf %361, %362 : vector<480x3xf32>
    %364 = math.tanh %356 : vector<480x3xf32>
    %c0_151 = arith.constant 0 : index
    %c0_152 = arith.constant 0 : index
    %c0_153 = arith.constant 0 : index
    %365 = vector.load %arg23[%c0_151, %c0_152, %c0_153] : memref<2x480x3xf32, #tpu.memory_space<vmem>>, vector<1x480x3xf32>
    %366 = vector.shape_cast %365 : vector<1x480x3xf32> to vector<480x3xf32>
    %367 = vector.shape_cast %364 : vector<480x3xf32> to vector<1x480x3xf32>
    tpu.vector_store %arg23[%c0_151, %c0_152, %c0_153], %367 {strides = array<i32>} : memref<2x480x3xf32, #tpu.memory_space<vmem>>, vector<1x480x3xf32>,
    %368 = math.tanh %363 : vector<480x3xf32>
    %c1_154 = arith.constant 1 : index
    %c0_155 = arith.constant 0 : index
    %c0_156 = arith.constant 0 : index
    %369 = vector.load %arg23[%c1_154, %c0_155, %c0_156] : memref<2x480x3xf32, #tpu.memory_space<vmem>>, vector<1x480x3xf32>
    %370 = vector.shape_cast %369 : vector<1x480x3xf32> to vector<480x3xf32>
    %371 = vector.shape_cast %368 : vector<480x3xf32> to vector<1x480x3xf32>
    tpu.vector_store %arg23[%c1_154, %c0_155, %c0_156], %371 {strides = array<i32>} : memref<2x480x3xf32, #tpu.memory_space<vmem>>, vector<1x480x3xf32>,
    return
  }
}

</mosaic_0001>

<llo_original>
// kernel: decoder1d_forward.1
$region0: #{decoder1d_forward.1}
  #allocation0 [shape = 'u32[]', space=smem, size = 0x4, offset = 0x4, fixed_abs, tag = 'smem constant byte address 0x4 - core index']
  #allocation1 [shape = 'u32[144,128]{1,0:T(1,128)}', space=vmem, size = 0x12000, scoped, tag = 'internal scratch']
  %s0 = inlined_call_operand.vmem [shape: bf16[30,750], index: 0, kind: input, shape index: {}]
  %s1 = inlined_call_operand.hbm [shape: bf16[750,512], index: 1, kind: input, shape index: {}]
  %s2 = inlined_call_operand.vmem [shape: f32[1,512], index: 2, kind: input, shape index: {}]
  %s3 = inlined_call_operand.vmem [shape: f32[1,512], index: 3, kind: input, shape index: {}]
  %s4 = inlined_call_operand.vmem [shape: f32[1,512], index: 4, kind: input, shape index: {}]
  %s5 = inlined_call_operand.hbm [shape: bf16[4,512,256], index: 5, kind: input, shape index: {}]
  %s6 = inlined_call_operand.vmem [shape: f32[1,256], index: 6, kind: input, shape index: {}]
  %s7 = inlined_call_operand.vmem [shape: f32[1,256], index: 7, kind: input, shape index: {}]
  %s8 = inlined_call_operand.vmem [shape: f32[1,256], index: 8, kind: input, shape index: {}]
  %s9 = inlined_call_operand.vmem [shape: bf16[4,256,128], index: 9, kind: input, shape index: {}]
  %s10 = inlined_call_operand.vmem [shape: f32[1,128], index: 10, kind: input, shape index: {}]
  %s11 = inlined_call_operand.vmem [shape: f32[1,128], index: 11, kind: input, shape index: {}]
  %s12 = inlined_call_operand.vmem [shape: f32[1,128], index: 12, kind: input, shape index: {}]
  %s13 = inlined_call_operand.vmem [shape: bf16[4,128,64], index: 13, kind: input, shape index: {}]
  %s14 = inlined_call_operand.vmem [shape: f32[1,64], index: 14, kind: input, shape index: {}]
  %s15 = inlined_call_operand.vmem [shape: f32[1,64], index: 15, kind: input, shape index: {}]
  %s16 = inlined_call_operand.vmem [shape: f32[1,64], index: 16, kind: input, shape index: {}]
  %s17 = inlined_call_operand.vmem [shape: bf16[4,64,32], index: 17, kind: input, shape index: {}]
  %s18 = inlined_call_operand.vmem [shape: f32[1,32], index: 18, kind: input, shape index: {}]
  %s19 = inlined_call_operand.vmem [shape: f32[1,32], index: 19, kind: input, shape index: {}]
  %s20 = inlined_call_operand.vmem [shape: f32[1,32], index: 20, kind: input, shape index: {}]
  %s21 = inlined_call_operand.vmem [shape: bf16[4,32,3], index: 21, kind: input, shape index: {}]
  %s22 = inlined_call_operand.vmem [shape: f32[1,3], index: 22, kind: input, shape index: {}]
  %s23 = inlined_call_operand.vmem [shape: f32[2,480,3], index: 23, kind: output, shape index: {}]
  %s24 = sld [smem:[#allocation0]]
  $region110: #{decoder1d_forward.1} parent=0
    _
  %s26 = ssub.s32 1, %s24
  %s27 = scalar_select 0, %s26, %s24
  $region1: #{decoder1d_forward.1} parent=0
    #allocation2 [shape = 'u8[770048]{0}', space=vmem, size = 0xbc000, scoped, tag = 'input window, operand 1, single buffered']
    #allocation3 [shape = 's32[1]{0}', space=sflag, size = 0x4, scoped, tag = 'scoped memory for decoder1d_forward.1']
    #allocation4 [shape = 'u8[1048576]{0}', space=vmem, size = 0x100000, scoped, tag = 'input window, operand 5, single buffered']
    #allocation5 [shape = 's32[1]{0}', space=sflag, size = 0x4, scoped, tag = 'scoped memory for decoder1d_forward.1']
    %28 = vsyncpa [#allocation3], 0
    %29 = vsyncpa [#allocation5], 0
    // Predicated region
    $region2: #{decoder1d_forward.1} parent=1 // pred_check
      _
    $region3: #{decoder1d_forward.1} parent=1 // pred_check_branch
      %31 = sbr.rel (0) target = $region5
    $region4: #{decoder1d_forward.1} parent=1 // pred_region
      _
    $region5: #{decoder1d_forward.1} parent=1 // pred_fallthru
      _
    // Predicated region
    $region6: #{decoder1d_forward.1} parent=1 // pred_check
      _
    $region7: #{decoder1d_forward.1} parent=1 // pred_check_branch
      %33 = sbr.rel (0) target = $region9
    $region8: #{decoder1d_forward.1} parent=1 // pred_region
      %s35 = ssub.s32 24064, 24064
      %36 = vsyncadd [#allocation3], %s35
      %s37 = sshll.u32 [#allocation2], 4
      %s38 = int_to_ptr.vmem [resolvable:$true] %s37
      %43 = dma.hbm_to_vmem [thread:$0]  %s1, 24064, %s38, [#allocation3], 256, 256, 16
    $region9: #{decoder1d_forward.1} parent=1 // pred_fallthru
      _
    // Predicated region
    $region10: #{decoder1d_forward.1} parent=1 // pred_check
      _
    $region11: #{decoder1d_forward.1} parent=1 // pred_check_branch
      %45 = sbr.rel (0) target = $region13
    $region12: #{decoder1d_forward.1} parent=1 // pred_region
      _
    $region13: #{decoder1d_forward.1} parent=1 // pred_fallthru
      _
    // Predicated region
    $region14: #{decoder1d_forward.1} parent=1 // pred_check
      _
    $region15: #{decoder1d_forward.1} parent=1 // pred_check_branch
      %47 = sbr.rel (0) target = $region17
    $region16: #{decoder1d_forward.1} parent=1 // pred_region
      _
    $region17: #{decoder1d_forward.1} parent=1 // pred_fallthru
      _
    // Predicated region
    $region18: #{decoder1d_forward.1} parent=1 // pred_check
      _
    $region19: #{decoder1d_forward.1} parent=1 // pred_check_branch
      %49 = sbr.rel (0) target = $region21
    $region20: #{decoder1d_forward.1} parent=1 // pred_region
      _
    $region21: #{decoder1d_forward.1} parent=1 // pred_fallthru
      _
    // Predicated region
    $region22: #{decoder1d_forward.1} parent=1 // pred_check
      _
    $region23: #{decoder1d_forward.1} parent=1 // pred_check_branch
      %51 = sbr.rel (0) target = $region25
    $region24: #{decoder1d_forward.1} parent=1 // pred_region
      %s53 = ssub.s32 32768, 32768
      %54 = vsyncadd [#allocation5], %s53
      %s55 = sshll.u32 [#allocation4], 4
      %s56 = int_to_ptr.vmem [resolvable:$true] %s55
      %61 = dma.hbm_to_vmem [thread:$0]  %s5, 32768, %s56, [#allocation5], 128, 128, 8
    $region25: #{decoder1d_forward.1} parent=1 // pred_fallthru
      _
    // Predicated region
    $region26: #{decoder1d_forward.1} parent=1 // pred_check
      _
    $region27: #{decoder1d_forward.1} parent=1 // pred_check_branch
      %63 = sbr.rel (0) target = $region29
    $region28: #{decoder1d_forward.1} parent=1 // pred_region
      _
    $region29: #{decoder1d_forward.1} parent=1 // pred_fallthru
      _
    // Predicated region
    $region30: #{decoder1d_forward.1} parent=1 // pred_check
      _
    $region31: #{decoder1d_forward.1} parent=1 // pred_check_branch
      %65 = sbr.rel (0) target = $region33
    $region32: #{decoder1d_forward.1} parent=1 // pred_region
      _
    $region33: #{decoder1d_forward.1} parent=1 // pred_fallthru
      _
    // Predicated region
    $region34: #{decoder1d_forward.1} parent=1 // pred_check
      _
    $region35: #{decoder1d_forward.1} parent=1 // pred_check_branch
      %67 = sbr.rel (0) target = $region37
    $region36: #{decoder1d_forward.1} parent=1 // pred_region
      _
    $region37: #{decoder1d_forward.1} parent=1 // pred_fallthru
      _
    // Predicated region
    $region38: #{decoder1d_forward.1} parent=1 // pred_check
      _
    $region39: #{decoder1d_forward.1} parent=1 // pred_check_branch
      %69 = sbr.rel (0) target = $region41
    $region40: #{decoder1d_forward.1} parent=1 // pred_region
      _
    $region41: #{decoder1d_forward.1} parent=1 // pred_fallthru
      _
    // Predicated region
    $region42: #{decoder1d_forward.1} parent=1 // pred_check
      _
    $region43: #{decoder1d_forward.1} parent=1 // pred_check_branch
      %71 = sbr.rel (0) target = $region45
    $region44: #{decoder1d_forward.1} parent=1 // pred_region
      _
    $region45: #{decoder1d_forward.1} parent=1 // pred_fallthru
      _
    // Predicated region
    $region46: #{decoder1d_forward.1} parent=1 // pred_check
      _
    $region47: #{decoder1d_forward.1} parent=1 // pred_check_branch
      %73 = sbr.rel (0) target = $region49
    $region48: #{decoder1d_forward.1} parent=1 // pred_region
      _
    $region49: #{decoder1d_forward.1} parent=1 // pred_fallthru
      _
    // Predicated region
    $region50: #{decoder1d_forward.1} parent=1 // pred_check
      _
    $region51: #{decoder1d_forward.1} parent=1 // pred_check_branch
      %75 = sbr.rel (0) target = $region53
    $region52: #{decoder1d_forward.1} parent=1 // pred_region
      _
    $region53: #{decoder1d_forward.1} parent=1 // pred_fallthru
      _
    // Predicated region
    $region54: #{decoder1d_forward.1} parent=1 // pred_check
      _
    $region55: #{decoder1d_forward.1} parent=1 // pred_check_branch
      %77 = sbr.rel (0) target = $region57
    $region56: #{decoder1d_forward.1} parent=1 // pred_region
      _
    $region57: #{decoder1d_forward.1} parent=1 // pred_fallthru
      _
    // Predicated region
    $region58: #{decoder1d_forward.1} parent=1 // pred_check
      _
    $region59: #{decoder1d_forward.1} parent=1 // pred_check_branch
      %79 = sbr.rel (0) target = $region61
    $region60: #{decoder1d_forward.1} parent=1 // pred_region
      _
    $region61: #{decoder1d_forward.1} parent=1 // pred_fallthru
      _
    // Predicated region
    $region62: #{decoder1d_forward.1} parent=1 // pred_check
      _
    $region63: #{decoder1d_forward.1} parent=1 // pred_check_branch
      %81 = sbr.rel (0) target = $region65
    $region64: #{decoder1d_forward.1} parent=1 // pred_region
      _
    $region65: #{decoder1d_forward.1} parent=1 // pred_fallthru
      _
    // Predicated region
    $region66: #{decoder1d_forward.1} parent=1 // pred_check
      _
    $region67: #{decoder1d_forward.1} parent=1 // pred_check_branch
      %83 = sbr.rel (0) target = $region69
    $region68: #{decoder1d_forward.1} parent=1 // pred_region
      _
    $region69: #{decoder1d_forward.1} parent=1 // pred_fallthru
      _
    // Predicated region
    $region70: #{decoder1d_forward.1} parent=1 // pred_check
      _
    $region71: #{decoder1d_forward.1} parent=1 // pred_check_branch
      %85 = sbr.rel (0) target = $region73
    $region72: #{decoder1d_forward.1} parent=1 // pred_region
      _
    $region73: #{decoder1d_forward.1} parent=1 // pred_fallthru
      _
    // Predicated region
    $region74: #{decoder1d_forward.1} parent=1 // pred_check
      _
    $region75: #{decoder1d_forward.1} parent=1 // pred_check_branch
      %87 = sbr.rel (0) target = $region77
    $region76: #{decoder1d_forward.1} parent=1 // pred_region
      _
    $region77: #{decoder1d_forward.1} parent=1 // pred_fallthru
      _
    // Predicated region
    $region78: #{decoder1d_forward.1} parent=1 // pred_check
      _
    $region79: #{decoder1d_forward.1} parent=1 // pred_check_branch
      %89 = sbr.rel (0) target = $region81
    $region80: #{decoder1d_forward.1} parent=1 // pred_region
      _
    $region81: #{decoder1d_forward.1} parent=1 // pred_fallthru
      _
    // Predicated region
    $region82: #{decoder1d_forward.1} parent=1 // pred_check
      _
    $region83: #{decoder1d_forward.1} parent=1 // pred_check_branch
      %91 = sbr.rel (0) target = $region85
    $region84: #{decoder1d_forward.1} parent=1 // pred_region
      _
    $region85: #{decoder1d_forward.1} parent=1 // pred_fallthru
      _
    // Predicated region
    $region86: #{decoder1d_forward.1} parent=1 // pred_check
      _
    $region87: #{decoder1d_forward.1} parent=1 // pred_check_branch
      %93 = sbr.rel (0) target = $region89
    $region88: #{decoder1d_forward.1} parent=1 // pred_region
      _
    $region89: #{decoder1d_forward.1} parent=1 // pred_fallthru
      _
    // Predicated region
    $region90: #{decoder1d_forward.1} parent=1 // pred_check
      _
    $region91: #{decoder1d_forward.1} parent=1 // pred_check_branch
      %95 = sbr.rel (0) target = $region93
    $region92: #{decoder1d_forward.1} parent=1 // pred_region
      _
    $region93: #{decoder1d_forward.1} parent=1 // pred_fallthru
      _
    // Predicated region
    $region94: #{decoder1d_forward.1} parent=1 // pred_check
      _
    $region95: #{decoder1d_forward.1} parent=1 // pred_check_branch
      %97 = sbr.rel (0) target = $region97
    $region96: #{decoder1d_forward.1} parent=1 // pred_region
      %98 = dma.done [#allocation3], 24064
    $region97: #{decoder1d_forward.1} parent=1 // pred_fallthru
      _
    // Predicated region
    $region98: #{decoder1d_forward.1} parent=1 // pred_check
      _
    $region99: #{decoder1d_forward.1} parent=1 // pred_check_branch
      %100 = sbr.rel (0) target = $region101
    $region100: #{decoder1d_forward.1} parent=1 // pred_region
      %101 = dma.done [#allocation5], 32768
    $region101: #{decoder1d_forward.1} parent=1 // pred_fallthru
      _
    %v103 = vlaneseq
    %v104 = vshrl.u32 %v103, 7
    %v105 = vadd.s32 %v104, 8
    %v106 = vadd.s32 %v104, 16
    %v107 = vadd.s32 %v104, 24
    %vm108 = vcmp.eq.s32.totalorder %v104, 0
    %vm109 = vcmp.eq.s32.totalorder %v105, 0
    %vm110 = vcmp.eq.s32.totalorder %v106, 0
    %vm111 = vcmp.eq.s32.totalorder %v107, 0
    %vm112 = vcmp.eq.s32.totalorder %v104, 14
    %vm113 = vcmp.eq.s32.totalorder %v105, 14
    %vm114 = vcmp.eq.s32.totalorder %v106, 14
    %vm115 = vcmp.eq.s32.totalorder %v107, 14
    %vm116 = vcmp.eq.s32.totalorder %v104, 15
    %vm117 = vcmp.eq.s32.totalorder %v105, 15
    %vm118 = vcmp.eq.s32.totalorder %v106, 15
    %vm119 = vcmp.eq.s32.totalorder %v107, 15
    %vm120 = vmor %vm108, %vm116
    %vm121 = vmor %vm109, %vm117
    %vm122 = vmor %vm110, %vm118
    %vm123 = vmor %vm111, %vm119
    %vm124 = vcmp.eq.s32.totalorder %v104, 29
    %vm125 = vcmp.eq.s32.totalorder %v105, 29
    %vm126 = vcmp.eq.s32.totalorder %v106, 29
    %vm127 = vcmp.eq.s32.totalorder %v107, 29
    %vm128 = vmor %vm112, %vm124
    %vm129 = vmor %vm113, %vm125
    %vm130 = vmor %vm114, %vm126
    %vm131 = vmor %vm115, %vm127
    %v132 = vsel %vm120, 0.0, 1.0
    %v133 = vsel %vm121, 0.0, 1.0
    %v134 = vsel %vm122, 0.0, 1.0
    %v135 = vsel %vm123, 0.0, 1.0
    %v136 = vsel %vm128, 0.0, 1.0
    %v137 = vsel %vm129, 0.0, 1.0
    %v138 = vsel %vm130, 0.0, 1.0
    %v139 = vsel %vm131, 0.0, 1.0
    %v140 = vld [vmem:[%s0] sm:$0xff]
    %v141 = vld [vmem:[%s0 + $0x8] sm:$0xff]
    %v142 = vld [vmem:[%s0 + $0x10] sm:$0xff]
    %v143 = vld [vmem:[%s0 + $0x18] sm:$0xff]
    %v144 = vld [vmem:[%s0 + $0x20] sm:$0xff]
    %v145 = vld [vmem:[%s0 + $0x28] sm:$0xff]
    %v146 = vld [vmem:[%s0 + $0x30] sm:$0xff]
    %v147 = vld [vmem:[%s0 + $0x38] sm:$0xff]
    %v148 = vld [vmem:[%s0 + $0x40] sm:$0xff]
    %v149 = vld [vmem:[%s0 + $0x48] sm:$0x77]
    %v150 = vld [vmem:[%s0 + $0x50] sm:$0x77]
    %v151 = vld [vmem:[%s0 + $0x58] sm:$0x77]
    %v152 = vld [vmem:[#allocation2] sm:$0xff]
    %v153 = vld [vmem:[#allocation2 + $0x8] sm:$0xff]
    %v154 = vld [vmem:[#allocation2 + $0x10] sm:$0xff]
    %v155 = vld [vmem:[#allocation2 + $0x18] sm:$0xff]
    %v156 = vld [vmem:[#allocation2 + $0x20] sm:$0xff]
    %v157 = vld [vmem:[#allocation2 + $0x28] sm:$0xff]
    %v158 = vld [vmem:[#allocation2 + $0x30] sm:$0xff]
    %v159 = vld [vmem:[#allocation2 + $0x38] sm:$0xff]
    %v160 = vld [vmem:[#allocation2 + $0x40] sm:$0xff]
    %v161 = vld [vmem:[#allocation2 + $0x48] sm:$0xff]
    %v162 = vld [vmem:[#allocation2 + $0x50] sm:$0xff]
    %v163 = vld [vmem:[#allocation2 + $0x58] sm:$0xff]
    %v164 = vld [vmem:[#allocation2 + $0x60] sm:$0xff]
    %v165 = vld [vmem:[#allocation2 + $0x68] sm:$0xff]
    %v166 = vld [vmem:[#allocation2 + $0x70] sm:$0xff]
    %v167 = vld [vmem:[#allocation2 + $0x78] sm:$0xff]
    %v168 = vld [vmem:[#allocation2 + $0x80] sm:$0xff]
    %v169 = vld [vmem:[#allocation2 + $0x88] sm:$0xff]
    %v170 = vld [vmem:[#allocation2 + $0x90] sm:$0xff]
    %v171 = vld [vmem:[#allocation2 + $0x98] sm:$0xff]
    %v172 = vld [vmem:[#allocation2 + $0xa0] sm:$0xff]
    %v173 = vld [vmem:[#allocation2 + $0xa8] sm:$0xff]
    %v174 = vld [vmem:[#allocation2 + $0xb0] sm:$0xff]
    %v175 = vld [vmem:[#allocation2 + $0xb8] sm:$0xff]
    %v176 = vld [vmem:[#allocation2 + $0xc0] sm:$0xff]
    %v177 = vld [vmem:[#allocation2 + $0xc8] sm:$0xff]
    %v178 = vld [vmem:[#allocation2 + $0xd0] sm:$0xff]
    %v179 = vld [vmem:[#allocation2 + $0xd8] sm:$0xff]
    %v180 = vld [vmem:[#allocation2 + $0xe0] sm:$0xff]
    %v181 = vld [vmem:[#allocation2 + $0xe8] sm:$0xff]
    %v182 = vld [vmem:[#allocation2 + $0xf0] sm:$0xff]
    %v183 = vld [vmem:[#allocation2 + $0xf8] sm:$0xff]
    %v184 = vld [vmem:[#allocation2 + $0x100] sm:$0xff]
    %v185 = vld [vmem:[#allocation2 + $0x108] sm:$0xff]
    %v186 = vld [vmem:[#allocation2 + $0x110] sm:$0xff]
    %v187 = vld [vmem:[#allocation2 + $0x118] sm:$0xff]
    %v188 = vld [vmem:[#allocation2 + $0x120] sm:$0xff]
    %v189 = vld [vmem:[#allocation2 + $0x128] sm:$0xff]
    %v190 = vld [vmem:[#allocation2 + $0x130] sm:$0xff]
    %v191 = vld [vmem:[#allocation2 + $0x138] sm:$0xff]
    %v192 = vld [vmem:[#allocation2 + $0x140] sm:$0xff]
    %v193 = vld [vmem:[#allocation2 + $0x148] sm:$0xff]
    %v194 = vld [vmem:[#allocation2 + $0x150] sm:$0xff]
    %v195 = vld [vmem:[#allocation2 + $0x158] sm:$0xff]
    %v196 = vld [vmem:[#allocation2 + $0x160] sm:$0xff]
    %v197 = vld [vmem:[#allocation2 + $0x168] sm:$0xff]
    %v198 = vld [vmem:[#allocation2 + $0x170] sm:$0xff]
    %v199 = vld [vmem:[#allocation2 + $0x178] sm:$0xff]
    %v200 = vld [vmem:[#allocation2 + $0x180] sm:$0xff]
    %v201 = vld [vmem:[#allocation2 + $0x188] sm:$0xff]
    %v202 = vld [vmem:[#allocation2 + $0x190] sm:$0xff]
    %v203 = vld [vmem:[#allocation2 + $0x198] sm:$0xff]
    %v204 = vld [vmem:[#allocation2 + $0x1a0] sm:$0xff]
    %v205 = vld [vmem:[#allocation2 + $0x1a8] sm:$0xff]
    %v206 = vld [vmem:[#allocation2 + $0x1b0] sm:$0xff]
    %v207 = vld [vmem:[#allocation2 + $0x1b8] sm:$0xff]
    %v208 = vld [vmem:[#allocation2 + $0x1c0] sm:$0xff]
    %v209 = vld [vmem:[#allocation2 + $0x1c8] sm:$0xff]
    %v210 = vld [vmem:[#allocation2 + $0x1d0] sm:$0xff]
    %v211 = vld [vmem:[#allocation2 + $0x1d8] sm:$0xff]
    %v212 = vld [vmem:[#allocation2 + $0x1e0] sm:$0xff]
    %v213 = vld [vmem:[#allocation2 + $0x1e8] sm:$0xff]
    %v214 = vld [vmem:[#allocation2 + $0x1f0] sm:$0xff]
    %v215 = vld [vmem:[#allocation2 + $0x1f8] sm:$0xff]
    %v216 = vld [vmem:[#allocation2 + $0x200] sm:$0xff]
    %v217 = vld [vmem:[#allocation2 + $0x208] sm:$0xff]
    %v218 = vld [vmem:[#allocation2 + $0x210] sm:$0xff]
    %v219 = vld [vmem:[#allocation2 + $0x218] sm:$0xff]
    %v220 = vld [vmem:[#allocation2 + $0x220] sm:$0xff]
    %v221 = vld [vmem:[#allocation2 + $0x228] sm:$0xff]
    %v222 = vld [vmem:[#allocation2 + $0x230] sm:$0xff]
    %v223 = vld [vmem:[#allocation2 + $0x238] sm:$0xff]
    %v224 = vld [vmem:[#allocation2 + $0x240] sm:$0xff]
    %v225 = vld [vmem:[#allocation2 + $0x248] sm:$0xff]
    %v226 = vld [vmem:[#allocation2 + $0x250] sm:$0xff]
    %v227 = vld [vmem:[#allocation2 + $0x258] sm:$0xff]
    %v228 = vld [vmem:[#allocation2 + $0x260] sm:$0xff]
    %v229 = vld [vmem:[#allocation2 + $0x268] sm:$0xff]
    %v230 = vld [vmem:[#allocation2 + $0x270] sm:$0xff]
    %v231 = vld [vmem:[#allocation2 + $0x278] sm:$0xff]
    %v232 = vld [vmem:[#allocation2 + $0x280] sm:$0xff]
    %v233 = vld [vmem:[#allocation2 + $0x288] sm:$0xff]
    %v234 = vld [vmem:[#allocation2 + $0x290] sm:$0xff]
    %v235 = vld [vmem:[#allocation2 + $0x298] sm:$0xff]
    %v236 = vld [vmem:[#allocation2 + $0x2a0] sm:$0xff]
    %v237 = vld [vmem:[#allocation2 + $0x2a8] sm:$0xff]
    %v238 = vld [vmem:[#allocation2 + $0x2b0] sm:$0xff]
    %v239 = vld [vmem:[#allocation2 + $0x2b8] sm:$0xff]
    %v240 = vld [vmem:[#allocation2 + $0x2c0] sm:$0xff]
    %v241 = vld [vmem:[#allocation2 + $0x2c8] sm:$0xff]
    %v242 = vld [vmem:[#allocation2 + $0x2d0] sm:$0xff]
    %v243 = vld [vmem:[#allocation2 + $0x2d8] sm:$0xff]
    %v244 = vld [vmem:[#allocation2 + $0x2e0] sm:$0xff]
    %v245 = vld [vmem:[#allocation2 + $0x2e8] sm:$0xff]
    %v246 = vld [vmem:[#allocation2 + $0x2f0] sm:$0xff]
    %v247 = vld [vmem:[#allocation2 + $0x2f8] sm:$0xff]
    %v248 = vld [vmem:[#allocation2 + $0x300] sm:$0xff]
    %v249 = vld [vmem:[#allocation2 + $0x308] sm:$0xff]
    %v250 = vld [vmem:[#allocation2 + $0x310] sm:$0xff]
    %v251 = vld [vmem:[#allocation2 + $0x318] sm:$0xff]
    %v252 = vld [vmem:[#allocation2 + $0x320] sm:$0xff]
    %v253 = vld [vmem:[#allocation2 + $0x328] sm:$0xff]
    %v254 = vld [vmem:[#allocation2 + $0x330] sm:$0xff]
    %v255 = vld [vmem:[#allocation2 + $0x338] sm:$0xff]
    %v256 = vld [vmem:[#allocation2 + $0x340] sm:$0xff]
    %v257 = vld [vmem:[#allocation2 + $0x348] sm:$0xff]
    %v258 = vld [vmem:[#allocation2 + $0x350] sm:$0xff]
    %v259 = vld [vmem:[#allocation2 + $0x358] sm:$0xff]
    %v260 = vld [vmem:[#allocation2 + $0x360] sm:$0xff]
    %v261 = vld [vmem:[#allocation2 + $0x368] sm:$0xff]
    %v262 = vld [vmem:[#allocation2 + $0x370] sm:$0xff]
    %v263 = vld [vmem:[#allocation2 + $0x378] sm:$0xff]
    %v264 = vld [vmem:[#allocation2 + $0x380] sm:$0xff]
    %v265 = vld [vmem:[#allocation2 + $0x388] sm:$0xff]
    %v266 = vld [vmem:[#allocation2 + $0x390] sm:$0xff]
    %v267 = vld [vmem:[#allocation2 + $0x398] sm:$0xff]
    %v268 = vld [vmem:[#allocation2 + $0x3a0] sm:$0xff]
    %v269 = vld [vmem:[#allocation2 + $0x3a8] sm:$0xff]
    %v270 = vld [vmem:[#allocation2 + $0x3b0] sm:$0xff]
    %v271 = vld [vmem:[#allocation2 + $0x3b8] sm:$0xff]
    %v272 = vld [vmem:[#allocation2 + $0x3c0] sm:$0xff]
    %v273 = vld [vmem:[#allocation2 + $0x3c8] sm:$0xff]
    %v274 = vld [vmem:[#allocation2 + $0x3d0] sm:$0xff]
    %v275 = vld [vmem:[#allocation2 + $0x3d8] sm:$0xff]
    %v276 = vld [vmem:[#allocation2 + $0x3e0] sm:$0xff]
    %v277 = vld [vmem:[#allocation2 + $0x3e8] sm:$0xff]
    %v278 = vld [vmem:[#allocation2 + $0x3f0] sm:$0xff]
    %v279 = vld [vmem:[#allocation2 + $0x3f8] sm:$0xff]
    %v280 = vld [vmem:[#allocation2 + $0x400] sm:$0xff]
    %v281 = vld [vmem:[#allocation2 + $0x408] sm:$0xff]
    %v282 = vld [vmem:[#allocation2 + $0x410] sm:$0xff]
    %v283 = vld [vmem:[#allocation2 + $0x418] sm:$0xff]
    %v284 = vld [vmem:[#allocation2 + $0x420] sm:$0xff]
    %v285 = vld [vmem:[#allocation2 + $0x428] sm:$0xff]
    %v286 = vld [vmem:[#allocation2 + $0x430] sm:$0xff]
    %v287 = vld [vmem:[#allocation2 + $0x438] sm:$0xff]
    %v288 = vld [vmem:[#allocation2 + $0x440] sm:$0xff]
    %v289 = vld [vmem:[#allocation2 + $0x448] sm:$0xff]
    %v290 = vld [vmem:[#allocation2 + $0x450] sm:$0xff]
    %v291 = vld [vmem:[#allocation2 + $0x458] sm:$0xff]
    %v292 = vld [vmem:[#allocation2 + $0x460] sm:$0xff]
    %v293 = vld [vmem:[#allocation2 + $0x468] sm:$0xff]
    %v294 = vld [vmem:[#allocation2 + $0x470] sm:$0xff]
    %v295 = vld [vmem:[#allocation2 + $0x478] sm:$0xff]
    %v296 = vld [vmem:[#allocation2 + $0x480] sm:$0xff]
    %v297 = vld [vmem:[#allocation2 + $0x488] sm:$0xff]
    %v298 = vld [vmem:[#allocation2 + $0x490] sm:$0xff]
    %v299 = vld [vmem:[#allocation2 + $0x498] sm:$0xff]
    %v300 = vld [vmem:[#allocation2 + $0x4a0] sm:$0xff]
    %v301 = vld [vmem:[#allocation2 + $0x4a8] sm:$0xff]
    %v302 = vld [vmem:[#allocation2 + $0x4b0] sm:$0xff]
    %v303 = vld [vmem:[#allocation2 + $0x4b8] sm:$0xff]
    %v304 = vld [vmem:[#allocation2 + $0x4c0] sm:$0xff]
    %v305 = vld [vmem:[#allocation2 + $0x4c8] sm:$0xff]
    %v306 = vld [vmem:[#allocation2 + $0x4d0] sm:$0xff]
    %v307 = vld [vmem:[#allocation2 + $0x4d8] sm:$0xff]
    %v308 = vld [vmem:[#allocation2 + $0x4e0] sm:$0xff]
    %v309 = vld [vmem:[#allocation2 + $0x4e8] sm:$0xff]
    %v310 = vld [vmem:[#allocation2 + $0x4f0] sm:$0xff]
    %v311 = vld [vmem:[#allocation2 + $0x4f8] sm:$0xff]
    %v312 = vld [vmem:[#allocation2 + $0x500] sm:$0xff]
    %v313 = vld [vmem:[#allocation2 + $0x508] sm:$0xff]
    %v314 = vld [vmem:[#allocation2 + $0x510] sm:$0xff]
    %v315 = vld [vmem:[#allocation2 + $0x518] sm:$0xff]
    %v316 = vld [vmem:[#allocation2 + $0x520] sm:$0xff]
    %v317 = vld [vmem:[#allocation2 + $0x528] sm:$0xff]
    %v318 = vld [vmem:[#allocation2 + $0x530] sm:$0xff]
    %v319 = vld [vmem:[#allocation2 + $0x538] sm:$0xff]
    %v320 = vld [vmem:[#allocation2 + $0x540] sm:$0xff]
    %v321 = vld [vmem:[#allocation2 + $0x548] sm:$0xff]
    %v322 = vld [vmem:[#allocation2 + $0x550] sm:$0xff]
    %v323 = vld [vmem:[#allocation2 + $0x558] sm:$0xff]
    %v324 = vld [vmem:[#allocation2 + $0x560] sm:$0xff]
    %v325 = vld [vmem:[#allocation2 + $0x568] sm:$0xff]
    %v326 = vld [vmem:[#allocation2 + $0x570] sm:$0xff]
    %v327 = vld [vmem:[#allocation2 + $0x578] sm:$0xff]
    %v328 = vld [vmem:[#allocation2 + $0x580] sm:$0xff]
    %v329 = vld [vmem:[#allocation2 + $0x588] sm:$0xff]
    %v330 = vld [vmem:[#allocation2 + $0x590] sm:$0xff]
    %v331 = vld [vmem:[#allocation2 + $0x598] sm:$0xff]
    %v332 = vld [vmem:[#allocation2 + $0x5a0] sm:$0xff]
    %v333 = vld [vmem:[#allocation2 + $0x5a8] sm:$0xff]
    %v334 = vld [vmem:[#allocation2 + $0x5b0] sm:$0xff]
    %v335 = vld [vmem:[#allocation2 + $0x5b8] sm:$0xff]
    %v336 = vld [vmem:[#allocation2 + $0x5c0] sm:$0xff]
    %v337 = vld [vmem:[#allocation2 + $0x5c8] sm:$0xff]
    %v338 = vld [vmem:[#allocation2 + $0x5d0] sm:$0x77]
    %v339 = vld [vmem:[#allocation2 + $0x5d8] sm:$0x77]
    %v340 = vld [vmem:[%s2] sm:$0xf]
    %v342 = vlaneseq
    %v343 = vshrl.u32 %v342, 7
    %v344 = vsub.s32 0, %v343
    %v345 = vrot.slane %v340, %v344
    %v346 = vlaneseq
    %v347 = vshrl.u32 %v346, 7
    %v348 = vsub.s32 1, %v347
    %v349 = vrot.slane %v340, %v348
    %v350 = vlaneseq
    %v351 = vshrl.u32 %v350, 7
    %v352 = vsub.s32 2, %v351
    %v353 = vrot.slane %v340, %v352
    %v354 = vlaneseq
    %v355 = vshrl.u32 %v354, 7
    %v356 = vsub.s32 3, %v355
    %v357 = vrot.slane %v340, %v356
    %v374 = vunpack.c.l.b16 %v140
    %v375 = vunpack.c.h.b16 %v140
    %v376 = vunpack.c.l.b16 %v141
    %v377 = vunpack.c.h.b16 %v141
    %v378 = vunpack.c.l.b16 %v142
    %v379 = vunpack.c.h.b16 %v142
    %v380 = vunpack.c.l.b16 %v143
    %v381 = vunpack.c.h.b16 %v143
    %v382 = vunpack.c.l.b16 %v144
    %v383 = vunpack.c.h.b16 %v144
    %v384 = vunpack.c.l.b16 %v145
    %v385 = vunpack.c.h.b16 %v145
    %v386 = vunpack.c.l.b16 %v146
    %v387 = vunpack.c.h.b16 %v146
    %v388 = vunpack.c.l.b16 %v147
    %v389 = vunpack.c.h.b16 %v147
    %v390 = vunpack.c.l.b16 %v148
    %v391 = vunpack.c.h.b16 %v148
    %v392 = vunpack.c.l.b16 %v149
    %v393 = vunpack.c.h.b16 %v149
    %v394 = vunpack.c.l.b16 %v150
    %v395 = vunpack.c.h.b16 %v150
    %v396 = vunpack.c.l.b16 %v151
    %v397 = vunpack.c.h.b16 %v151
    %v398 = vpack.c.b16 %v380, %v374
    %v399 = vpack.c.b16 %v381, %v375
    %v400 = vpack.c.b16 %v382, %v376
    %v401 = vpack.c.b16 %v383, %v377
    %v402 = vpack.c.b16 %v384, %v378
    %v403 = vpack.c.b16 %v385, %v379
    %v404 = vpack.c.b16 %v392, %v386
    %v405 = vpack.c.b16 %v393, %v387
    %v406 = vpack.c.b16 %v394, %v388
    %v407 = vpack.c.b16 %v395, %v389
    %v408 = vpack.c.b16 %v396, %v390
    %v409 = vpack.c.b16 %v397, %v391
    %v608 = vunpack.c.l.b16 %v152
    %v609 = vunpack.c.h.b16 %v152
    %v610 = vunpack.c.l.b16 %v153
    %v611 = vunpack.c.h.b16 %v153
    %v612 = vunpack.c.l.b16 %v154
    %v613 = vunpack.c.h.b16 %v154
    %v614 = vunpack.c.l.b16 %v155
    %v615 = vunpack.c.h.b16 %v155
    %v616 = vunpack.c.l.b16 %v156
    %v617 = vunpack.c.h.b16 %v156
    %v618 = vunpack.c.l.b16 %v157
    %v619 = vunpack.c.h.b16 %v157
    %v620 = vunpack.c.l.b16 %v158
    %v621 = vunpack.c.h.b16 %v158
    %v622 = vunpack.c.l.b16 %v159
    %v623 = vunpack.c.h.b16 %v159
    %v624 = vunpack.c.l.b16 %v160
    %v625 = vunpack.c.h.b16 %v160
    %v626 = vunpack.c.l.b16 %v161
    %v627 = vunpack.c.h.b16 %v161
    %v628 = vunpack.c.l.b16 %v162
    %v629 = vunpack.c.h.b16 %v162
    %v630 = vunpack.c.l.b16 %v163
    %v631 = vunpack.c.h.b16 %v163
    %v632 = vunpack.c.l.b16 %v164
    %v633 = vunpack.c.h.b16 %v164
    %v634 = vunpack.c.l.b16 %v165
    %v635 = vunpack.c.h.b16 %v165
    %v636 = vunpack.c.l.b16 %v166
    %v637 = vunpack.c.h.b16 %v166
    %v638 = vunpack.c.l.b16 %v167
    %v639 = vunpack.c.h.b16 %v167
    %v640 = vunpack.c.l.b16 %v168
    %v641 = vunpack.c.h.b16 %v168
    %v642 = vunpack.c.l.b16 %v169
    %v643 = vunpack.c.h.b16 %v169
    %v644 = vunpack.c.l.b16 %v170
    %v645 = vunpack.c.h.b16 %v170
    %v646 = vunpack.c.l.b16 %v171
    %v647 = vunpack.c.h.b16 %v171
    %v648 = vunpack.c.l.b16 %v172
    %v649 = vunpack.c.h.b16 %v172
    %v650 = vunpack.c.l.b16 %v173
    %v651 = vunpack.c.h.b16 %v173
    %v652 = vunpack.c.l.b16 %v174
    %v653 = vunpack.c.h.b16 %v174
    %v654 = vunpack.c.l.b16 %v175
    %v655 = vunpack.c.h.b16 %v175
    %v656 = vunpack.c.l.b16 %v176
    %v657 = vunpack.c.h.b16 %v176
    %v658 = vunpack.c.l.b16 %v177
    %v659 = vunpack.c.h.b16 %v177
    %v660 = vunpack.c.l.b16 %v178
    %v661 = vunpack.c.h.b16 %v178
    %v662 = vunpack.c.l.b16 %v179
    %v663 = vunpack.c.h.b16 %v179
    %v664 = vunpack.c.l.b16 %v180
    %v665 = vunpack.c.h.b16 %v180
    %v666 = vunpack.c.l.b16 %v181
    %v667 = vunpack.c.h.b16 %v181
    %v668 = vunpack.c.l.b16 %v182
    %v669 = vunpack.c.h.b16 %v182
    %v670 = vunpack.c.l.b16 %v183
    %v671 = vunpack.c.h.b16 %v183
    %v672 = vunpack.c.l.b16 %v184
    %v673 = vunpack.c.h.b16 %v184
    %v674 = vunpack.c.l.b16 %v185
    %v675 = vunpack.c.h.b16 %v185
    %v676 = vunpack.c.l.b16 %v186
    %v677 = vunpack.c.h.b16 %v186
    %v678 = vunpack.c.l.b16 %v187
    %v679 = vunpack.c.h.b16 %v187
    %v680 = vunpack.c.l.b16 %v188
    %v681 = vunpack.c.h.b16 %v188
    %v682 = vunpack.c.l.b16 %v189
    %v683 = vunpack.c.h.b16 %v189
    %v684 = vunpack.c.l.b16 %v190
    %v685 = vunpack.c.h.b16 %v190
    %v686 = vunpack.c.l.b16 %v191
    %v687 = vunpack.c.h.b16 %v191
    %v688 = vunpack.c.l.b16 %v192
    %v689 = vunpack.c.h.b16 %v192
    %v690 = vunpack.c.l.b16 %v193
    %v691 = vunpack.c.h.b16 %v193
    %v692 = vunpack.c.l.b16 %v194
    %v693 = vunpack.c.h.b16 %v194
    %v694 = vunpack.c.l.b16 %v195
    %v695 = vunpack.c.h.b16 %v195
    %v696 = vunpack.c.l.b16 %v196
    %v697 = vunpack.c.h.b16 %v196
    %v698 = vunpack.c.l.b16 %v197
    %v699 = vunpack.c.h.b16 %v197
    %v700 = vunpack.c.l.b16 %v198
    %v701 = vunpack.c.h.b16 %v198
    %v702 = vunpack.c.l.b16 %v199
    %v703 = vunpack.c.h.b16 %v199
    %v704 = vunpack.c.l.b16 %v200
    %v705 = vunpack.c.h.b16 %v200
    %v706 = vunpack.c.l.b16 %v201
    %v707 = vunpack.c.h.b16 %v201
    %v708 = vunpack.c.l.b16 %v202
    %v709 = vunpack.c.h.b16 %v202
    %v710 = vunpack.c.l.b16 %v203
    %v711 = vunpack.c.h.b16 %v203
    %v712 = vunpack.c.l.b16 %v204
    %v713 = vunpack.c.h.b16 %v204
    %v714 = vunpack.c.l.b16 %v205
    %v715 = vunpack.c.h.b16 %v205
    %v716 = vunpack.c.l.b16 %v206
    %v717 = vunpack.c.h.b16 %v206
    %v718 = vunpack.c.l.b16 %v207
    %v719 = vunpack.c.h.b16 %v207
    %v720 = vunpack.c.l.b16 %v208
    %v721 = vunpack.c.h.b16 %v208
    %v722 = vunpack.c.l.b16 %v209
    %v723 = vunpack.c.h.b16 %v209
    %v724 = vunpack.c.l.b16 %v210
    %v725 = vunpack.c.h.b16 %v210
    %v726 = vunpack.c.l.b16 %v211
    %v727 = vunpack.c.h.b16 %v211
    %v728 = vunpack.c.l.b16 %v212
    %v729 = vunpack.c.h.b16 %v212
    %v730 = vunpack.c.l.b16 %v213
    %v731 = vunpack.c.h.b16 %v213
    %v732 = vunpack.c.l.b16 %v214
    %v733 = vunpack.c.h.b16 %v214
    %v734 = vunpack.c.l.b16 %v215
    %v735 = vunpack.c.h.b16 %v215
    %v736 = vunpack.c.l.b16 %v216
    %v737 = vunpack.c.h.b16 %v216
    %v738 = vunpack.c.l.b16 %v217
    %v739 = vunpack.c.h.b16 %v217
    %v740 = vunpack.c.l.b16 %v218
    %v741 = vunpack.c.h.b16 %v218
    %v742 = vunpack.c.l.b16 %v219
    %v743 = vunpack.c.h.b16 %v219
    %v744 = vunpack.c.l.b16 %v220
    %v745 = vunpack.c.h.b16 %v220
    %v746 = vunpack.c.l.b16 %v221
    %v747 = vunpack.c.h.b16 %v221
    %v748 = vunpack.c.l.b16 %v222
    %v749 = vunpack.c.h.b16 %v222
    %v750 = vunpack.c.l.b16 %v223
    %v751 = vunpack.c.h.b16 %v223
    %v752 = vunpack.c.l.b16 %v224
    %v753 = vunpack.c.h.b16 %v224
    %v754 = vunpack.c.l.b16 %v225
    %v755 = vunpack.c.h.b16 %v225
    %v756 = vunpack.c.l.b16 %v226
    %v757 = vunpack.c.h.b16 %v226
    %v758 = vunpack.c.l.b16 %v227
    %v759 = vunpack.c.h.b16 %v227
    %v760 = vunpack.c.l.b16 %v228
    %v761 = vunpack.c.h.b16 %v228
    %v762 = vunpack.c.l.b16 %v229
    %v763 = vunpack.c.h.b16 %v229
    %v764 = vunpack.c.l.b16 %v230
    %v765 = vunpack.c.h.b16 %v230
    %v766 = vunpack.c.l.b16 %v231
    %v767 = vunpack.c.h.b16 %v231
    %v768 = vunpack.c.l.b16 %v232
    %v769 = vunpack.c.h.b16 %v232
    %v770 = vunpack.c.l.b16 %v233
    %v771 = vunpack.c.h.b16 %v233
    %v772 = vunpack.c.l.b16 %v234
    %v773 = vunpack.c.h.b16 %v234
    %v774 = vunpack.c.l.b16 %v235
    %v775 = vunpack.c.h.b16 %v235
    %v776 = vunpack.c.l.b16 %v236
    %v777 = vunpack.c.h.b16 %v236
    %v778 = vunpack.c.l.b16 %v237
    %v779 = vunpack.c.h.b16 %v237
    %v780 = vunpack.c.l.b16 %v238
    %v781 = vunpack.c.h.b16 %v238
    %v782 = vunpack.c.l.b16 %v239
    %v783 = vunpack.c.h.b16 %v239
    %v784 = vunpack.c.l.b16 %v240
    %v785 = vunpack.c.h.b16 %v240
    %v786 = vunpack.c.l.b16 %v241
    %v787 = vunpack.c.h.b16 %v241
    %v788 = vunpack.c.l.b16 %v242
    %v789 = vunpack.c.h.b16 %v242
    %v790 = vunpack.c.l.b16 %v243
    %v791 = vunpack.c.h.b16 %v243
    %v792 = vunpack.c.l.b16 %v244
    %v793 = vunpack.c.h.b16 %v244
    %v794 = vunpack.c.l.b16 %v245
    %v795 = vunpack.c.h.b16 %v245
    %v796 = vunpack.c.l.b16 %v246
    %v797 = vunpack.c.h.b16 %v246
    %v798 = vunpack.c.l.b16 %v247
    %v799 = vunpack.c.h.b16 %v247
    %v800 = vunpack.c.l.b16 %v248
    %v801 = vunpack.c.h.b16 %v248
    %v802 = vunpack.c.l.b16 %v249
    %v803 = vunpack.c.h.b16 %v249
    %v804 = vunpack.c.l.b16 %v250
    %v805 = vunpack.c.h.b16 %v250
    %v806 = vunpack.c.l.b16 %v251
    %v807 = vunpack.c.h.b16 %v251
    %v808 = vunpack.c.l.b16 %v252
    %v809 = vunpack.c.h.b16 %v252
    %v810 = vunpack.c.l.b16 %v253
    %v811 = vunpack.c.h.b16 %v253
    %v812 = vunpack.c.l.b16 %v254
    %v813 = vunpack.c.h.b16 %v254
    %v814 = vunpack.c.l.b16 %v255
    %v815 = vunpack.c.h.b16 %v255
    %v816 = vunpack.c.l.b16 %v256
    %v817 = vunpack.c.h.b16 %v256
    %v818 = vunpack.c.l.b16 %v257
    %v819 = vunpack.c.h.b16 %v257
    %v820 = vunpack.c.l.b16 %v258
    %v821 = vunpack.c.h.b16 %v258
    %v822 = vunpack.c.l.b16 %v259
    %v823 = vunpack.c.h.b16 %v259
    %v824 = vunpack.c.l.b16 %v260
    %v825 = vunpack.c.h.b16 %v260
    %v826 = vunpack.c.l.b16 %v261
    %v827 = vunpack.c.h.b16 %v261
    %v828 = vunpack.c.l.b16 %v262
    %v829 = vunpack.c.h.b16 %v262
    %v830 = vunpack.c.l.b16 %v263
    %v831 = vunpack.c.h.b16 %v263
    %v832 = vunpack.c.l.b16 %v264
    %v833 = vunpack.c.h.b16 %v264
    %v834 = vunpack.c.l.b16 %v265
    %v835 = vunpack.c.h.b16 %v265
    %v836 = vunpack.c.l.b16 %v266
    %v837 = vunpack.c.h.b16 %v266
    %v838 = vunpack.c.l.b16 %v267
    %v839 = vunpack.c.h.b16 %v267
    %v840 = vunpack.c.l.b16 %v268
    %v841 = vunpack.c.h.b16 %v268
    %v842 = vunpack.c.l.b16 %v269
    %v843 = vunpack.c.h.b16 %v269
    %v844 = vunpack.c.l.b16 %v270
    %v845 = vunpack.c.h.b16 %v270
    %v846 = vunpack.c.l.b16 %v271
    %v847 = vunpack.c.h.b16 %v271
    %v848 = vunpack.c.l.b16 %v272
    %v849 = vunpack.c.h.b16 %v272
    %v850 = vunpack.c.l.b16 %v273
    %v851 = vunpack.c.h.b16 %v273
    %v852 = vunpack.c.l.b16 %v274
    %v853 = vunpack.c.h.b16 %v274
    %v854 = vunpack.c.l.b16 %v275
    %v855 = vunpack.c.h.b16 %v275
    %v856 = vunpack.c.l.b16 %v276
    %v857 = vunpack.c.h.b16 %v276
    %v858 = vunpack.c.l.b16 %v277
    %v859 = vunpack.c.h.b16 %v277
    %v860 = vunpack.c.l.b16 %v278
    %v861 = vunpack.c.h.b16 %v278
    %v862 = vunpack.c.l.b16 %v279
    %v863 = vunpack.c.h.b16 %v279
    %v864 = vunpack.c.l.b16 %v280
    %v865 = vunpack.c.h.b16 %v280
    %v866 = vunpack.c.l.b16 %v281
    %v867 = vunpack.c.h.b16 %v281
    %v868 = vunpack.c.l.b16 %v282
    %v869 = vunpack.c.h.b16 %v282
    %v870 = vunpack.c.l.b16 %v283
    %v871 = vunpack.c.h.b16 %v283
    %v872 = vunpack.c.l.b16 %v284
    %v873 = vunpack.c.h.b16 %v284
    %v874 = vunpack.c.l.b16 %v285
    %v875 = vunpack.c.h.b16 %v285
    %v876 = vunpack.c.l.b16 %v286
    %v877 = vunpack.c.h.b16 %v286
    %v878 = vunpack.c.l.b16 %v287
    %v879 = vunpack.c.h.b16 %v287
    %v880 = vunpack.c.l.b16 %v288
    %v881 = vunpack.c.h.b16 %v288
    %v882 = vunpack.c.l.b16 %v289
    %v883 = vunpack.c.h.b16 %v289
    %v884 = vunpack.c.l.b16 %v290
    %v885 = vunpack.c.h.b16 %v290
    %v886 = vunpack.c.l.b16 %v291
    %v887 = vunpack.c.h.b16 %v291
    %v888 = vunpack.c.l.b16 %v292
    %v889 = vunpack.c.h.b16 %v292
    %v890 = vunpack.c.l.b16 %v293
    %v891 = vunpack.c.h.b16 %v293
    %v892 = vunpack.c.l.b16 %v294
    %v893 = vunpack.c.h.b16 %v294
    %v894 = vunpack.c.l.b16 %v295
    %v895 = vunpack.c.h.b16 %v295
    %v896 = vunpack.c.l.b16 %v296
    %v897 = vunpack.c.h.b16 %v296
    %v898 = vunpack.c.l.b16 %v297
    %v899 = vunpack.c.h.b16 %v297
    %v900 = vunpack.c.l.b16 %v298
    %v901 = vunpack.c.h.b16 %v298
    %v902 = vunpack.c.l.b16 %v299
    %v903 = vunpack.c.h.b16 %v299
    %v904 = vunpack.c.l.b16 %v300
    %v905 = vunpack.c.h.b16 %v300
    %v906 = vunpack.c.l.b16 %v301
    %v907 = vunpack.c.h.b16 %v301
    %v908 = vunpack.c.l.b16 %v302
    %v909 = vunpack.c.h.b16 %v302
    %v910 = vunpack.c.l.b16 %v303
    %v911 = vunpack.c.h.b16 %v303
    %v912 = vunpack.c.l.b16 %v304
    %v913 = vunpack.c.h.b16 %v304
    %v914 = vunpack.c.l.b16 %v305
    %v915 = vunpack.c.h.b16 %v305
    %v916 = vunpack.c.l.b16 %v306
    %v917 = vunpack.c.h.b16 %v306
    %v918 = vunpack.c.l.b16 %v307
    %v919 = vunpack.c.h.b16 %v307
    %v920 = vunpack.c.l.b16 %v308
    %v921 = vunpack.c.h.b16 %v308
    %v922 = vunpack.c.l.b16 %v309
    %v923 = vunpack.c.h.b16 %v309
    %v924 = vunpack.c.l.b16 %v310
    %v925 = vunpack.c.h.b16 %v310
    %v926 = vunpack.c.l.b16 %v311
    %v927 = vunpack.c.h.b16 %v311
    %v928 = vunpack.c.l.b16 %v312
    %v929 = vunpack.c.h.b16 %v312
    %v930 = vunpack.c.l.b16 %v313
    %v931 = vunpack.c.h.b16 %v313
    %v932 = vunpack.c.l.b16 %v314
    %v933 = vunpack.c.h.b16 %v314
    %v934 = vunpack.c.l.b16 %v315
    %v935 = vunpack.c.h.b16 %v315
    %v936 = vunpack.c.l.b16 %v316
    %v937 = vunpack.c.h.b16 %v316
    %v938 = vunpack.c.l.b16 %v317
    %v939 = vunpack.c.h.b16 %v317
    %v940 = vunpack.c.l.b16 %v318
    %v941 = vunpack.c.h.b16 %v318
    %v942 = vunpack.c.l.b16 %v319
    %v943 = vunpack.c.h.b16 %v319
    %v944 = vunpack.c.l.b16 %v320
    %v945 = vunpack.c.h.b16 %v320
    %v946 = vunpack.c.l.b16 %v321
    %v947 = vunpack.c.h.b16 %v321
    %v948 = vunpack.c.l.b16 %v322
    %v949 = vunpack.c.h.b16 %v322
    %v950 = vunpack.c.l.b16 %v323
    %v951 = vunpack.c.h.b16 %v323
    %v952 = vunpack.c.l.b16 %v324
    %v953 = vunpack.c.h.b16 %v324
    %v954 = vunpack.c.l.b16 %v325
    %v955 = vunpack.c.h.b16 %v325
    %v956 = vunpack.c.l.b16 %v326
    %v957 = vunpack.c.h.b16 %v326
    %v958 = vunpack.c.l.b16 %v327
    %v959 = vunpack.c.h.b16 %v327
    %v960 = vunpack.c.l.b16 %v328
    %v961 = vunpack.c.h.b16 %v328
    %v962 = vunpack.c.l.b16 %v329
    %v963 = vunpack.c.h.b16 %v329
    %v964 = vunpack.c.l.b16 %v330
    %v965 = vunpack.c.h.b16 %v330
    %v966 = vunpack.c.l.b16 %v331
    %v967 = vunpack.c.h.b16 %v331
    %v968 = vunpack.c.l.b16 %v332
    %v969 = vunpack.c.h.b16 %v332
    %v970 = vunpack.c.l.b16 %v333
    %v971 = vunpack.c.h.b16 %v333
    %v972 = vunpack.c.l.b16 %v334
    %v973 = vunpack.c.h.b16 %v334
    %v974 = vunpack.c.l.b16 %v335
    %v975 = vunpack.c.h.b16 %v335
    %v976 = vunpack.c.l.b16 %v336
    %v977 = vunpack.c.h.b16 %v336
    %v978 = vunpack.c.l.b16 %v337
    %v979 = vunpack.c.h.b16 %v337
    %v980 = vunpack.c.l.b16 %v338
    %v981 = vunpack.c.h.b16 %v338
    %v982 = vunpack.c.l.b16 %v339
    %v983 = vunpack.c.h.b16 %v339
    %v984 = vpack.c.b16 %v612, %v608
    %v985 = vpack.c.b16 %v613, %v609
    %v986 = vpack.c.b16 %v614, %v610
    %v987 = vpack.c.b16 %v615, %v611
    %v988 = vpack.c.b16 %v620, %v616
    %v989 = vpack.c.b16 %v621, %v617
    %v990 = vpack.c.b16 %v622, %v618
    %v991 = vpack.c.b16 %v623, %v619
    %v992 = vpack.c.b16 %v628, %v624
    %v993 = vpack.c.b16 %v629, %v625
    %v994 = vpack.c.b16 %v630, %v626
    %v995 = vpack.c.b16 %v631, %v627
    %v996 = vpack.c.b16 %v636, %v632
    %v997 = vpack.c.b16 %v637, %v633
    %v998 = vpack.c.b16 %v638, %v634
    %v999 = vpack.c.b16 %v639, %v635
    %v1000 = vpack.c.b16 %v644, %v640
    %v1001 = vpack.c.b16 %v645, %v641
    %v1002 = vpack.c.b16 %v646, %v642
    %v1003 = vpack.c.b16 %v647, %v643
    %v1004 = vpack.c.b16 %v652, %v648
    %v1005 = vpack.c.b16 %v653, %v649
    %v1006 = vpack.c.b16 %v654, %v650
    %v1007 = vpack.c.b16 %v655, %v651
    %v1008 = vpack.c.b16 %v660, %v656
    %v1009 = vpack.c.b16 %v661, %v657
    %v1010 = vpack.c.b16 %v662, %v658
    %v1011 = vpack.c.b16 %v663, %v659
    %v1012 = vpack.c.b16 %v668, %v664
    %v1013 = vpack.c.b16 %v669, %v665
    %v1014 = vpack.c.b16 %v670, %v666
    %v1015 = vpack.c.b16 %v671, %v667
    %v1016 = vpack.c.b16 %v676, %v672
    %v1017 = vpack.c.b16 %v677, %v673
    %v1018 = vpack.c.b16 %v678, %v674
    %v1019 = vpack.c.b16 %v679, %v675
    %v1020 = vpack.c.b16 %v684, %v680
    %v1021 = vpack.c.b16 %v685, %v681
    %v1022 = vpack.c.b16 %v686, %v682
    %v1023 = vpack.c.b16 %v687, %v683
    %v1024 = vpack.c.b16 %v692, %v688
    %v1025 = vpack.c.b16 %v693, %v689
    %v1026 = vpack.c.b16 %v694, %v690
    %v1027 = vpack.c.b16 %v695, %v691
    %v1028 = vpack.c.b16 %v700, %v696
    %v1029 = vpack.c.b16 %v701, %v697
    %v1030 = vpack.c.b16 %v702, %v698
    %v1031 = vpack.c.b16 %v703, %v699
    %v1032 = vpack.c.b16 %v708, %v704
    %v1033 = vpack.c.b16 %v709, %v705
    %v1034 = vpack.c.b16 %v710, %v706
    %v1035 = vpack.c.b16 %v711, %v707
    %v1036 = vpack.c.b16 %v716, %v712
    %v1037 = vpack.c.b16 %v717, %v713
    %v1038 = vpack.c.b16 %v718, %v714
    %v1039 = vpack.c.b16 %v719, %v715
    %v1040 = vpack.c.b16 %v724, %v720
    %v1041 = vpack.c.b16 %v725, %v721
    %v1042 = vpack.c.b16 %v726, %v722
    %v1043 = vpack.c.b16 %v727, %v723
    %v1044 = vpack.c.b16 %v732, %v728
    %v1045 = vpack.c.b16 %v733, %v729
    %v1046 = vpack.c.b16 %v734, %v730
    %v1047 = vpack.c.b16 %v735, %v731
    %v1048 = vpack.c.b16 %v740, %v736
    %v1049 = vpack.c.b16 %v741, %v737
    %v1050 = vpack.c.b16 %v742, %v738
    %v1051 = vpack.c.b16 %v743, %v739
    %v1052 = vpack.c.b16 %v748, %v744
    %v1053 = vpack.c.b16 %v749, %v745
    %v1054 = vpack.c.b16 %v750, %v746
    %v1055 = vpack.c.b16 %v751, %v747
    %v1056 = vpack.c.b16 %v756, %v752
    %v1057 = vpack.c.b16 %v757, %v753
    %v1058 = vpack.c.b16 %v758, %v754
    %v1059 = vpack.c.b16 %v759, %v755
    %v1060 = vpack.c.b16 %v764, %v760
    %v1061 = vpack.c.b16 %v765, %v761
    %v1062 = vpack.c.b16 %v766, %v762
    %v1063 = vpack.c.b16 %v767, %v763
    %v1064 = vpack.c.b16 %v772, %v768
    %v1065 = vpack.c.b16 %v773, %v769
    %v1066 = vpack.c.b16 %v774, %v770
    %v1067 = vpack.c.b16 %v775, %v771
    %v1068 = vpack.c.b16 %v780, %v776
    %v1069 = vpack.c.b16 %v781, %v777
    %v1070 = vpack.c.b16 %v782, %v778
    %v1071 = vpack.c.b16 %v783, %v779
    %v1072 = vpack.c.b16 %v788, %v784
    %v1073 = vpack.c.b16 %v789, %v785
    %v1074 = vpack.c.b16 %v790, %v786
    %v1075 = vpack.c.b16 %v791, %v787
    %v1076 = vpack.c.b16 %v796, %v792
    %v1077 = vpack.c.b16 %v797, %v793
    %v1078 = vpack.c.b16 %v798, %v794
    %v1079 = vpack.c.b16 %v799, %v795
    %v1080 = vpack.c.b16 %v804, %v800
    %v1081 = vpack.c.b16 %v805, %v801
    %v1082 = vpack.c.b16 %v806, %v802
    %v1083 = vpack.c.b16 %v807, %v803
    %v1084 = vpack.c.b16 %v812, %v808
    %v1085 = vpack.c.b16 %v813, %v809
    %v1086 = vpack.c.b16 %v814, %v810
    %v1087 = vpack.c.b16 %v815, %v811
    %v1088 = vpack.c.b16 %v820, %v816
    %v1089 = vpack.c.b16 %v821, %v817
    %v1090 = vpack.c.b16 %v822, %v818
    %v1091 = vpack.c.b16 %v823, %v819
    %v1092 = vpack.c.b16 %v828, %v824
    %v1093 = vpack.c.b16 %v829, %v825
    %v1094 = vpack.c.b16 %v830, %v826
    %v1095 = vpack.c.b16 %v831, %v827
    %v1096 = vpack.c.b16 %v836, %v832
    %v1097 = vpack.c.b16 %v837, %v833
    %v1098 = vpack.c.b16 %v838, %v834
    %v1099 = vpack.c.b16 %v839, %v835
    %v1100 = vpack.c.b16 %v844, %v840
    %v1101 = vpack.c.b16 %v845, %v841
    %v1102 = vpack.c.b16 %v846, %v842
    %v1103 = vpack.c.b16 %v847, %v843
    %v1104 = vpack.c.b16 %v852, %v848
    %v1105 = vpack.c.b16 %v853, %v849
    %v1106 = vpack.c.b16 %v854, %v850
    %v1107 = vpack.c.b16 %v855, %v851
    %v1108 = vpack.c.b16 %v860, %v856
    %v1109 = vpack.c.b16 %v861, %v857
    %v1110 = vpack.c.b16 %v862, %v858
    %v1111 = vpack.c.b16 %v863, %v859
    %v1112 = vpack.c.b16 %v868, %v864
    %v1113 = vpack.c.b16 %v869, %v865
    %v1114 = vpack.c.b16 %v870, %v866
    %v1115 = vpack.c.b16 %v871, %v867
    %v1116 = vpack.c.b16 %v876, %v872
    %v1117 = vpack.c.b16 %v877, %v873
    %v1118 = vpack.c.b16 %v878, %v874
    %v1119 = vpack.c.b16 %v879, %v875
    %v1120 = vpack.c.b16 %v884, %v880
    %v1121 = vpack.c.b16 %v885, %v881
    %v1122 = vpack.c.b16 %v886, %v882
    %v1123 = vpack.c.b16 %v887, %v883
    %v1124 = vpack.c.b16 %v892, %v888
    %v1125 = vpack.c.b16 %v893, %v889
    %v1126 = vpack.c.b16 %v894, %v890
    %v1127 = vpack.c.b16 %v895, %v891
    %v1128 = vpack.c.b16 %v900, %v896
    %v1129 = vpack.c.b16 %v901, %v897
    %v1130 = vpack.c.b16 %v902, %v898
    %v1131 = vpack.c.b16 %v903, %v899
    %v1132 = vpack.c.b16 %v908, %v904
    %v1133 = vpack.c.b16 %v909, %v905
    %v1134 = vpack.c.b16 %v910, %v906
    %v1135 = vpack.c.b16 %v911, %v907
    %v1136 = vpack.c.b16 %v916, %v912
    %v1137 = vpack.c.b16 %v917, %v913
    %v1138 = vpack.c.b16 %v918, %v914
    %v1139 = vpack.c.b16 %v919, %v915
    %v1140 = vpack.c.b16 %v924, %v920
    %v1141 = vpack.c.b16 %v925, %v921
    %v1142 = vpack.c.b16 %v926, %v922
    %v1143 = vpack.c.b16 %v927, %v923
    %v1144 = vpack.c.b16 %v932, %v928
    %v1145 = vpack.c.b16 %v933, %v929
    %v1146 = vpack.c.b16 %v934, %v930
    %v1147 = vpack.c.b16 %v935, %v931
    %v1148 = vpack.c.b16 %v940, %v936
    %v1149 = vpack.c.b16 %v941, %v937
    %v1150 = vpack.c.b16 %v942, %v938
    %v1151 = vpack.c.b16 %v943, %v939
    %v1152 = vpack.c.b16 %v948, %v944
    %v1153 = vpack.c.b16 %v949, %v945
    %v1154 = vpack.c.b16 %v950, %v946
    %v1155 = vpack.c.b16 %v951, %v947
    %v1156 = vpack.c.b16 %v956, %v952
    %v1157 = vpack.c.b16 %v957, %v953
    %v1158 = vpack.c.b16 %v958, %v954
    %v1159 = vpack.c.b16 %v959, %v955
    %v1160 = vpack.c.b16 %v964, %v960
    %v1161 = vpack.c.b16 %v965, %v961
    %v1162 = vpack.c.b16 %v966, %v962
    %v1163 = vpack.c.b16 %v967, %v963
    %v1164 = vpack.c.b16 %v972, %v968
    %v1165 = vpack.c.b16 %v973, %v969
    %v1166 = vpack.c.b16 %v974, %v970
    %v1167 = vpack.c.b16 %v975, %v971
    %v1168 = vpack.c.b16 %v980, %v976
    %v1169 = vpack.c.b16 %v981, %v977
    %v1170 = vpack.c.b16 %v982, %v978
    %v1171 = vpack.c.b16 %v983, %v979
    %vm1356 = vcmask 900096
    %v1358 = vsel %vm1356, %v403, 0
    %v1361 = vsel %vm1356, %v409, 0
    %vm1363 = vcmask 1046528
    %v1365 = vsel %vm1363, %v1168, 0
    %v1368 = vsel %vm1363, %v1169, 0
    %v1371 = vsel %vm1363, %v1170, 0
    %v1374 = vsel %vm1363, %v1171, 0
    %1376 = vmatprep.subr.bf16.mxu0 %v985
    %1377 = vmatpush1.bf16.msra.mxu0 %v984
    %1378 = vmatprep.subr.bf16.mxu0 %v989
    %1379 = vmatpush1.bf16.msra.mxu0 %v988
    %1380 = vmatprep.subr.bf16.mxu0 %v993
    %1381 = vmatpush1.bf16.msra.mxu0 %v992
    %1382 = vmatprep.subr.bf16.mxu0 %v997
    %1383 = vmatpush1.bf16.msra.mxu0 %v996
    %1384 = vmatprep.subr.bf16.mxu0 %v1001
    %1385 = vmatpush1.bf16.msra.mxu0 %v1000
    %1386 = vmatprep.subr.bf16.mxu0 %v1005
    %1387 = vmatpush1.bf16.msra.mxu0 %v1004
    %1388 = vmatprep.subr.bf16.mxu0 %v1009
    %1389 = vmatpush1.bf16.msra.mxu0 %v1008
    %1390 = vmatprep.subr.bf16.mxu0 %v1013
    %1391 = vmatpush1.bf16.msra.mxu0 %v1012
    %1392 = vmatprep.subr.bf16.mxu0 %v1017
    %1393 = vmatpush1.bf16.msra.mxu0 %v1016
    %1394 = vmatprep.subr.bf16.mxu0 %v1021
    %1395 = vmatpush1.bf16.msra.mxu0 %v1020
    %1396 = vmatprep.subr.bf16.mxu0 %v1025
    %1397 = vmatpush1.bf16.msra.mxu0 %v1024
    %1398 = vmatprep.subr.bf16.mxu0 %v1029
    %1399 = vmatpush1.bf16.msra.mxu0 %v1028
    %1400 = vmatprep.subr.bf16.mxu0 %v1033
    %1401 = vmatpush1.bf16.msra.mxu0 %v1032
    %1402 = vmatprep.subr.bf16.mxu0 %v1037
    %1403 = vmatpush1.bf16.msra.mxu0 %v1036
    %1404 = vmatprep.subr.bf16.mxu0 %v1041
    %1405 = vmatpush1.bf16.msra.mxu0 %v1040
    %1406 = vmatprep.subr.bf16.mxu0 %v1045
    %1407 = vmatpush1.bf16.msra.mxu0 %v1044
    %1408 = vmatprep.mubr.bf16.mxu0 %v399
    %1409 = vmatmul.mubr.bf16.gmra.mrb[0].mxu0 %v398
    %v1410 = vpop.f32.mrb[0].mxu0
    %v1411 = vadd.f32 %v345, %v1410
    %v1412 = vpop.f32.mrb[0].mxu0
    %v1413 = vadd.f32 %v349, %v1412
    %v1414 = vpop.f32.mrb[0].mxu0
    %v1415 = vadd.f32 %v345, %v1414
    %v1416 = vpop.f32.mrb[0].mxu0
    %v1417 = vadd.f32 %v349, %v1416
    %1418 = vmatprep.mubr.bf16.mxu0 %v405
    %1419 = vmatmul.mubr.bf16.gmra.mrb[0].mxu0 %v404
    %v1420 = vpop.f32.mrb[0].mxu0
    %v1421 = vadd.f32 %v345, %v1420
    %v1422 = vpop.f32.mrb[0].mxu0
    %v1423 = vadd.f32 %v349, %v1422
    %v1424 = vpop.f32.mrb[0].mxu0
    %v1425 = vadd.f32 %v345, %v1424
    %v1426 = vpop.f32.mrb[0].mxu0
    %v1427 = vadd.f32 %v349, %v1426
    %1428 = vdwg.mxu0
    %1429 = vmatprep.subr.bf16.mxu0 %v1049
    %1430 = vmatpush1.bf16.msra.mxu0 %v1048
    %1431 = vmatprep.subr.bf16.mxu0 %v1053
    %1432 = vmatpush1.bf16.msra.mxu0 %v1052
    %1433 = vmatprep.subr.bf16.mxu0 %v1057
    %1434 = vmatpush1.bf16.msra.mxu0 %v1056
    %1435 = vmatprep.subr.bf16.mxu0 %v1061
    %1436 = vmatpush1.bf16.msra.mxu0 %v1060
    %1437 = vmatprep.subr.bf16.mxu0 %v1065
    %1438 = vmatpush1.bf16.msra.mxu0 %v1064
    %1439 = vmatprep.subr.bf16.mxu0 %v1069
    %1440 = vmatpush1.bf16.msra.mxu0 %v1068
    %1441 = vmatprep.subr.bf16.mxu0 %v1073
    %1442 = vmatpush1.bf16.msra.mxu0 %v1072
    %1443 = vmatprep.subr.bf16.mxu0 %v1077
    %1444 = vmatpush1.bf16.msra.mxu0 %v1076
    %1445 = vmatprep.subr.bf16.mxu0 %v1081
    %1446 = vmatpush1.bf16.msra.mxu0 %v1080
    %1447 = vmatprep.subr.bf16.mxu0 %v1085
    %1448 = vmatpush1.bf16.msra.mxu0 %v1084
    %1449 = vmatprep.subr.bf16.mxu0 %v1089
    %1450 = vmatpush1.bf16.msra.mxu0 %v1088
    %1451 = vmatprep.subr.bf16.mxu0 %v1093
    %1452 = vmatpush1.bf16.msra.mxu0 %v1092
    %1453 = vmatprep.subr.bf16.mxu0 %v1097
    %1454 = vmatpush1.bf16.msra.mxu0 %v1096
    %1455 = vmatprep.subr.bf16.mxu0 %v1101
    %1456 = vmatpush1.bf16.msra.mxu0 %v1100
    %1457 = vmatprep.subr.bf16.mxu0 %v1105
    %1458 = vmatpush1.bf16.msra.mxu0 %v1104
    %1459 = vmatprep.subr.bf16.mxu0 %v1109
    %1460 = vmatpush1.bf16.msra.mxu0 %v1108
    %1461 = vmatprep.mubr.bf16.mxu0 %v401
    %1462 = vmatmul.mubr.bf16.gmra.mrb[0].mxu0 %v400
    %v1463 = vpop.f32.mrb[0].mxu0
    %v1464 = vadd.f32 %v1411, %v1463
    %v1465 = vpop.f32.mrb[0].mxu0
    %v1466 = vadd.f32 %v1413, %v1465
    %v1467 = vpop.f32.mrb[0].mxu0
    %v1468 = vadd.f32 %v1415, %v1467
    %v1469 = vpop.f32.mrb[0].mxu0
    %v1470 = vadd.f32 %v1417, %v1469
    %1471 = vmatprep.mubr.bf16.mxu0 %v407
    %1472 = vmatmul.mubr.bf16.gmra.mrb[0].mxu0 %v406
    %v1473 = vpop.f32.mrb[0].mxu0
    %v1474 = vadd.f32 %v1421, %v1473
    %v1475 = vpop.f32.mrb[0].mxu0
    %v1476 = vadd.f32 %v1423, %v1475
    %v1477 = vpop.f32.mrb[0].mxu0
    %v1478 = vadd.f32 %v1425, %v1477
    %v1479 = vpop.f32.mrb[0].mxu0
    %v1480 = vadd.f32 %v1427, %v1479
    %1481 = vdwg.mxu0
    %1482 = vmatprep.subr.bf16.mxu0 %v1113
    %1483 = vmatpush1.bf16.msra.mxu0 %v1112
    %1484 = vmatprep.subr.bf16.mxu0 %v1117
    %1485 = vmatpush1.bf16.msra.mxu0 %v1116
    %1486 = vmatprep.subr.bf16.mxu0 %v1121
    %1487 = vmatpush1.bf16.msra.mxu0 %v1120
    %1488 = vmatprep.subr.bf16.mxu0 %v1125
    %1489 = vmatpush1.bf16.msra.mxu0 %v1124
    %1490 = vmatprep.subr.bf16.mxu0 %v1129
    %1491 = vmatpush1.bf16.msra.mxu0 %v1128
    %1492 = vmatprep.subr.bf16.mxu0 %v1133
    %1493 = vmatpush1.bf16.msra.mxu0 %v1132
    %1494 = vmatprep.subr.bf16.mxu0 %v1137
    %1495 = vmatpush1.bf16.msra.mxu0 %v1136
    %1496 = vmatprep.subr.bf16.mxu0 %v1141
    %1497 = vmatpush1.bf16.msra.mxu0 %v1140
    %1498 = vmatprep.subr.bf16.mxu0 %v1145
    %1499 = vmatpush1.bf16.msra.mxu0 %v1144
    %1500 = vmatprep.subr.bf16.mxu0 %v1149
    %1501 = vmatpush1.bf16.msra.mxu0 %v1148
    %1502 = vmatprep.subr.bf16.mxu0 %v1153
    %1503 = vmatpush1.bf16.msra.mxu0 %v1152
    %1504 = vmatprep.subr.bf16.mxu0 %v1157
    %1505 = vmatpush1.bf16.msra.mxu0 %v1156
    %1506 = vmatprep.subr.bf16.mxu0 %v1161
    %1507 = vmatpush1.bf16.msra.mxu0 %v1160
    %1508 = vmatprep.subr.bf16.mxu0 %v1165
    %1509 = vmatpush1.bf16.msra.mxu0 %v1164
    %1510 = vmatprep.subr.bf16.mxu0 %v1368
    %1511 = vmatpush1.bf16.msra.mxu0 %v1365
    %1512 = vmatprep.subr.bf16.mxu0 0
    %1513 = vmatpush1.bf16.msra.mxu0 0
    %1514 = vmatprep.mubr.bf16.mxu0 %v1358
    %1515 = vmatmul.mubr.bf16.gmra.mrb[0].mxu0 %v402
    %v1516 = vpop.f32.mrb[0].mxu0
    %v1517 = vadd.f32 %v1464, %v1516
    %v1518 = vpop.f32.mrb[0].mxu0
    %v1519 = vadd.f32 %v1466, %v1518
    %v1520 = vpop.f32.mrb[0].mxu0
    %v1521 = vadd.f32 %v1468, %v1520
    %v1522 = vpop.f32.mrb[0].mxu0
    %v1523 = vadd.f32 %v1470, %v1522
    %1524 = vmatprep.mubr.bf16.mxu0 %v1361
    %1525 = vmatmul.mubr.bf16.gmra.mrb[0].mxu0 %v408
    %v1526 = vpop.f32.mrb[0].mxu0
    %v1527 = vadd.f32 %v1474, %v1526
    %v1528 = vpop.f32.mrb[0].mxu0
    %v1529 = vadd.f32 %v1476, %v1528
    %v1530 = vpop.f32.mrb[0].mxu0
    %v1531 = vadd.f32 %v1478, %v1530
    %v1532 = vpop.f32.mrb[0].mxu0
    %v1533 = vadd.f32 %v1480, %v1532
    %1534 = vdwg.mxu0
    %1535 = vmatprep.subr.bf16.mxu0 %v987
    %1536 = vmatpush1.bf16.msra.mxu0 %v986
    %1537 = vmatprep.subr.bf16.mxu0 %v991
    %1538 = vmatpush1.bf16.msra.mxu0 %v990
    %1539 = vmatprep.subr.bf16.mxu0 %v995
    %1540 = vmatpush1.bf16.msra.mxu0 %v994
    %1541 = vmatprep.subr.bf16.mxu0 %v999
    %1542 = vmatpush1.bf16.msra.mxu0 %v998
    %1543 = vmatprep.subr.bf16.mxu0 %v1003
    %1544 = vmatpush1.bf16.msra.mxu0 %v1002
    %1545 = vmatprep.subr.bf16.mxu0 %v1007
    %1546 = vmatpush1.bf16.msra.mxu0 %v1006
    %1547 = vmatprep.subr.bf16.mxu0 %v1011
    %1548 = vmatpush1.bf16.msra.mxu0 %v1010
    %1549 = vmatprep.subr.bf16.mxu0 %v1015
    %1550 = vmatpush1.bf16.msra.mxu0 %v1014
    %1551 = vmatprep.subr.bf16.mxu0 %v1019
    %1552 = vmatpush1.bf16.msra.mxu0 %v1018
    %1553 = vmatprep.subr.bf16.mxu0 %v1023
    %1554 = vmatpush1.bf16.msra.mxu0 %v1022
    %1555 = vmatprep.subr.bf16.mxu0 %v1027
    %1556 = vmatpush1.bf16.msra.mxu0 %v1026
    %1557 = vmatprep.subr.bf16.mxu0 %v1031
    %1558 = vmatpush1.bf16.msra.mxu0 %v1030
    %1559 = vmatprep.subr.bf16.mxu0 %v1035
    %1560 = vmatpush1.bf16.msra.mxu0 %v1034
    %1561 = vmatprep.subr.bf16.mxu0 %v1039
    %1562 = vmatpush1.bf16.msra.mxu0 %v1038
    %1563 = vmatprep.subr.bf16.mxu0 %v1043
    %1564 = vmatpush1.bf16.msra.mxu0 %v1042
    %1565 = vmatprep.subr.bf16.mxu0 %v1047
    %1566 = vmatpush1.bf16.msra.mxu0 %v1046
    %1567 = vmatprep.mubr.bf16.mxu0 %v399
    %1568 = vmatmul.mubr.bf16.gmra.mrb[0].mxu0 %v398
    %v1569 = vpop.f32.mrb[0].mxu0
    %v1570 = vadd.f32 %v353, %v1569
    %v1571 = vpop.f32.mrb[0].mxu0
    %v1572 = vadd.f32 %v357, %v1571
    %v1573 = vpop.f32.mrb[0].mxu0
    %v1574 = vadd.f32 %v353, %v1573
    %v1575 = vpop.f32.mrb[0].mxu0
    %v1576 = vadd.f32 %v357, %v1575
    %1577 = vmatprep.mubr.bf16.mxu0 %v405
    %1578 = vmatmul.mubr.bf16.gmra.mrb[0].mxu0 %v404
    %v1579 = vpop.f32.mrb[0].mxu0
    %v1580 = vadd.f32 %v353, %v1579
    %v1581 = vpop.f32.mrb[0].mxu0
    %v1582 = vadd.f32 %v357, %v1581
    %v1583 = vpop.f32.mrb[0].mxu0
    %v1584 = vadd.f32 %v353, %v1583
    %v1585 = vpop.f32.mrb[0].mxu0
    %v1586 = vadd.f32 %v357, %v1585
    %1587 = vdwg.mxu0
    %1588 = vmatprep.subr.bf16.mxu0 %v1051
    %1589 = vmatpush1.bf16.msra.mxu0 %v1050
    %1590 = vmatprep.subr.bf16.mxu0 %v1055
    %1591 = vmatpush1.bf16.msra.mxu0 %v1054
    %1592 = vmatprep.subr.bf16.mxu0 %v1059
    %1593 = vmatpush1.bf16.msra.mxu0 %v1058
    %1594 = vmatprep.subr.bf16.mxu0 %v1063
    %1595 = vmatpush1.bf16.msra.mxu0 %v1062
    %1596 = vmatprep.subr.bf16.mxu0 %v1067
    %1597 = vmatpush1.bf16.msra.mxu0 %v1066
    %1598 = vmatprep.subr.bf16.mxu0 %v1071
    %1599 = vmatpush1.bf16.msra.mxu0 %v1070
    %1600 = vmatprep.subr.bf16.mxu0 %v1075
    %1601 = vmatpush1.bf16.msra.mxu0 %v1074
    %1602 = vmatprep.subr.bf16.mxu0 %v1079
    %1603 = vmatpush1.bf16.msra.mxu0 %v1078
    %1604 = vmatprep.subr.bf16.mxu0 %v1083
    %1605 = vmatpush1.bf16.msra.mxu0 %v1082
    %1606 = vmatprep.subr.bf16.mxu0 %v1087
    %1607 = vmatpush1.bf16.msra.mxu0 %v1086
    %1608 = vmatprep.subr.bf16.mxu0 %v1091
    %1609 = vmatpush1.bf16.msra.mxu0 %v1090
    %1610 = vmatprep.subr.bf16.mxu0 %v1095
    %1611 = vmatpush1.bf16.msra.mxu0 %v1094
    %1612 = vmatprep.subr.bf16.mxu0 %v1099
    %1613 = vmatpush1.bf16.msra.mxu0 %v1098
    %1614 = vmatprep.subr.bf16.mxu0 %v1103
    %1615 = vmatpush1.bf16.msra.mxu0 %v1102
    %1616 = vmatprep.subr.bf16.mxu0 %v1107
    %1617 = vmatpush1.bf16.msra.mxu0 %v1106
    %1618 = vmatprep.subr.bf16.mxu0 %v1111
    %1619 = vmatpush1.bf16.msra.mxu0 %v1110
    %1620 = vmatprep.mubr.bf16.mxu0 %v401
    %1621 = vmatmul.mubr.bf16.gmra.mrb[0].mxu0 %v400
    %v1622 = vpop.f32.mrb[0].mxu0
    %v1623 = vadd.f32 %v1570, %v1622
    %v1624 = vpop.f32.mrb[0].mxu0
    %v1625 = vadd.f32 %v1572, %v1624
    %v1626 = vpop.f32.mrb[0].mxu0
    %v1627 = vadd.f32 %v1574, %v1626
    %v1628 = vpop.f32.mrb[0].mxu0
    %v1629 = vadd.f32 %v1576, %v1628
    %1630 = vmatprep.mubr.bf16.mxu0 %v407
    %1631 = vmatmul.mubr.bf16.gmra.mrb[0].mxu0 %v406
    %v1632 = vpop.f32.mrb[0].mxu0
    %v1633 = vadd.f32 %v1580, %v1632
    %v1634 = vpop.f32.mrb[0].mxu0
    %v1635 = vadd.f32 %v1582, %v1634
    %v1636 = vpop.f32.mrb[0].mxu0
    %v1637 = vadd.f32 %v1584, %v1636
    %v1638 = vpop.f32.mrb[0].mxu0
    %v1639 = vadd.f32 %v1586, %v1638
    %1640 = vdwg.mxu0
    %1641 = vmatprep.subr.bf16.mxu0 %v1115
    %1642 = vmatpush1.bf16.msra.mxu0 %v1114
    %1643 = vmatprep.subr.bf16.mxu0 %v1119
    %1644 = vmatpush1.bf16.msra.mxu0 %v1118
    %1645 = vmatprep.subr.bf16.mxu0 %v1123
    %1646 = vmatpush1.bf16.msra.mxu0 %v1122
    %1647 = vmatprep.subr.bf16.mxu0 %v1127
    %1648 = vmatpush1.bf16.msra.mxu0 %v1126
    %1649 = vmatprep.subr.bf16.mxu0 %v1131
    %1650 = vmatpush1.bf16.msra.mxu0 %v1130
    %1651 = vmatprep.subr.bf16.mxu0 %v1135
    %1652 = vmatpush1.bf16.msra.mxu0 %v1134
    %1653 = vmatprep.subr.bf16.mxu0 %v1139
    %1654 = vmatpush1.bf16.msra.mxu0 %v1138
    %1655 = vmatprep.subr.bf16.mxu0 %v1143
    %1656 = vmatpush1.bf16.msra.mxu0 %v1142
    %1657 = vmatprep.subr.bf16.mxu0 %v1147
    %1658 = vmatpush1.bf16.msra.mxu0 %v1146
    %1659 = vmatprep.subr.bf16.mxu0 %v1151
    %1660 = vmatpush1.bf16.msra.mxu0 %v1150
    %1661 = vmatprep.subr.bf16.mxu0 %v1155
    %1662 = vmatpush1.bf16.msra.mxu0 %v1154
    %1663 = vmatprep.subr.bf16.mxu0 %v1159
    %1664 = vmatpush1.bf16.msra.mxu0 %v1158
    %1665 = vmatprep.subr.bf16.mxu0 %v1163
    %1666 = vmatpush1.bf16.msra.mxu0 %v1162
    %1667 = vmatprep.subr.bf16.mxu0 %v1167
    %1668 = vmatpush1.bf16.msra.mxu0 %v1166
    %1669 = vmatprep.subr.bf16.mxu0 %v1374
    %1670 = vmatpush1.bf16.msra.mxu0 %v1371
    %1671 = vmatprep.subr.bf16.mxu0 0
    %1672 = vmatpush1.bf16.msra.mxu0 0
    %1673 = vmatprep.mubr.bf16.mxu0 %v1358
    %1674 = vmatmul.mubr.bf16.gmra.mrb[0].mxu0 %v402
    %v1675 = vpop.f32.mrb[0].mxu0
    %v1676 = vadd.f32 %v1623, %v1675
    %v1677 = vpop.f32.mrb[0].mxu0
    %v1678 = vadd.f32 %v1625, %v1677
    %v1679 = vpop.f32.mrb[0].mxu0
    %v1680 = vadd.f32 %v1627, %v1679
    %v1681 = vpop.f32.mrb[0].mxu0
    %v1682 = vadd.f32 %v1629, %v1681
    %1683 = vmatprep.mubr.bf16.mxu0 %v1361
    %1684 = vmatmul.mubr.bf16.gmra.mrb[0].mxu0 %v408
    %v1685 = vpop.f32.mrb[0].mxu0
    %v1686 = vadd.f32 %v1633, %v1685
    %v1687 = vpop.f32.mrb[0].mxu0
    %v1688 = vadd.f32 %v1635, %v1687
    %v1689 = vpop.f32.mrb[0].mxu0
    %v1690 = vadd.f32 %v1637, %v1689
    %v1691 = vpop.f32.mrb[0].mxu0
    %v1692 = vadd.f32 %v1639, %v1691
    %1693 = vdwg.mxu0
    %v1694 = vld [vmem:[%s3] sm:$0xf]
    %v1695 = vld [vmem:[%s4] sm:$0xf]
    %v1696 = vadd.f32 %v1517, %v1521
    %v1697 = vadd.f32 %v1696, %v1527
    %vm1698 = vcmask 1045504
    %v1699 = vsel %vm1698, %v1531, 0.0
    %v1700 = vadd.f32 %v1697, %v1699
    %v1701 = vrot.slane %v1700, 4
    %v1702 = vadd.f32 %v1700, %v1701
    %v1703 = vrot.slane %v1702, 2
    %v1704 = vadd.f32 %v1702, %v1703
    %v1705 = vrot.slane %v1704, 1
    %v1706 = vadd.f32 %v1704, %v1705
    %v1707 = vadd.f32 %v1519, %v1523
    %v1708 = vadd.f32 %v1707, %v1529
    %v1709 = vsel %vm1698, %v1533, 0.0
    %v1710 = vadd.f32 %v1708, %v1709
    %v1711 = vrot.slane %v1710, 4
    %v1712 = vadd.f32 %v1710, %v1711
    %v1713 = vrot.slane %v1712, 2
    %v1714 = vadd.f32 %v1712, %v1713
    %v1715 = vrot.slane %v1714, 1
    %v1716 = vadd.f32 %v1714, %v1715
    %v1717 = vadd.f32 %v1676, %v1680
    %v1718 = vadd.f32 %v1717, %v1686
    %v1719 = vsel %vm1698, %v1690, 0.0
    %v1720 = vadd.f32 %v1718, %v1719
    %v1721 = vrot.slane %v1720, 4
    %v1722 = vadd.f32 %v1720, %v1721
    %v1723 = vrot.slane %v1722, 2
    %v1724 = vadd.f32 %v1722, %v1723
    %v1725 = vrot.slane %v1724, 1
    %v1726 = vadd.f32 %v1724, %v1725
    %v1727 = vadd.f32 %v1678, %v1682
    %v1728 = vadd.f32 %v1727, %v1688
    %v1729 = vsel %vm1698, %v1692, 0.0
    %v1730 = vadd.f32 %v1728, %v1729
    %v1731 = vrot.slane %v1730, 4
    %v1732 = vadd.f32 %v1730, %v1731
    %v1733 = vrot.slane %v1732, 2
    %v1734 = vadd.f32 %v1732, %v1733
    %v1735 = vrot.slane %v1734, 1
    %v1736 = vadd.f32 %v1734, %v1735
    %v1737 = vmul.f32 %v1706, 0.033333335
    %v1738 = vmul.f32 %v1716, 0.033333335
    %v1739 = vmul.f32 %v1726, 0.033333335
    %v1740 = vmul.f32 %v1736, 0.033333335
    %v1741 = vsub.f32 %v1517, %v1737
    %v1742 = vsub.f32 %v1519, %v1738
    %v1743 = vsub.f32 %v1676, %v1739
    %v1744 = vsub.f32 %v1678, %v1740
    %v1745 = vsub.f32 %v1521, %v1737
    %v1746 = vsub.f32 %v1523, %v1738
    %v1747 = vsub.f32 %v1680, %v1739
    %v1748 = vsub.f32 %v1682, %v1740
    %v1749 = vsub.f32 %v1527, %v1737
    %v1750 = vsub.f32 %v1529, %v1738
    %v1751 = vsub.f32 %v1686, %v1739
    %v1752 = vsub.f32 %v1688, %v1740
    %v1753 = vsub.f32 %v1531, %v1737
    %v1754 = vsub.f32 %v1533, %v1738
    %v1755 = vsub.f32 %v1690, %v1739
    %v1756 = vsub.f32 %v1692, %v1740
    %v1757 = vmul.f32 %v1741, %v1741
    %v1758 = vmul.f32 %v1742, %v1742
    %v1759 = vmul.f32 %v1743, %v1743
    %v1760 = vmul.f32 %v1744, %v1744
    %v1761 = vmul.f32 %v1745, %v1745
    %v1762 = vmul.f32 %v1746, %v1746
    %v1763 = vmul.f32 %v1747, %v1747
    %v1764 = vmul.f32 %v1748, %v1748
    %v1765 = vmul.f32 %v1749, %v1749
    %v1766 = vmul.f32 %v1750, %v1750
    %v1767 = vmul.f32 %v1751, %v1751
    %v1768 = vmul.f32 %v1752, %v1752
    %v1769 = vmul.f32 %v1753, %v1753
    %v1770 = vmul.f32 %v1754, %v1754
    %v1771 = vmul.f32 %v1755, %v1755
    %v1772 = vmul.f32 %v1756, %v1756
    %v1773 = vadd.f32 %v1757, %v1761
    %v1774 = vadd.f32 %v1773, %v1765
    %v1775 = vsel %vm1698, %v1769, 0.0
    %v1776 = vadd.f32 %v1774, %v1775
    %v1777 = vrot.slane %v1776, 4
    %v1778 = vadd.f32 %v1776, %v1777
    %v1779 = vrot.slane %v1778, 2
    %v1780 = vadd.f32 %v1778, %v1779
    %v1781 = vrot.slane %v1780, 1
    %v1782 = vadd.f32 %v1780, %v1781
    %v1783 = vadd.f32 %v1758, %v1762
    %v1784 = vadd.f32 %v1783, %v1766
    %v1785 = vsel %vm1698, %v1770, 0.0
    %v1786 = vadd.f32 %v1784, %v1785
    %v1787 = vrot.slane %v1786, 4
    %v1788 = vadd.f32 %v1786, %v1787
    %v1789 = vrot.slane %v1788, 2
    %v1790 = vadd.f32 %v1788, %v1789
    %v1791 = vrot.slane %v1790, 1
    %v1792 = vadd.f32 %v1790, %v1791
    %v1793 = vadd.f32 %v1759, %v1763
    %v1794 = vadd.f32 %v1793, %v1767
    %v1795 = vsel %vm1698, %v1771, 0.0
    %v1796 = vadd.f32 %v1794, %v1795
    %v1797 = vrot.slane %v1796, 4
    %v1798 = vadd.f32 %v1796, %v1797
    %v1799 = vrot.slane %v1798, 2
    %v1800 = vadd.f32 %v1798, %v1799
    %v1801 = vrot.slane %v1800, 1
    %v1802 = vadd.f32 %v1800, %v1801
    %v1803 = vadd.f32 %v1760, %v1764
    %v1804 = vadd.f32 %v1803, %v1768
    %v1805 = vsel %vm1698, %v1772, 0.0
    %v1806 = vadd.f32 %v1804, %v1805
    %v1807 = vrot.slane %v1806, 4
    %v1808 = vadd.f32 %v1806, %v1807
    %v1809 = vrot.slane %v1808, 2
    %v1810 = vadd.f32 %v1808, %v1809
    %v1811 = vrot.slane %v1810, 1
    %v1812 = vadd.f32 %v1810, %v1811
    %v1813 = vmul.f32 %v1782, 0.033333335
    %v1814 = vmul.f32 %v1792, 0.033333335
    %v1815 = vmul.f32 %v1802, 0.033333335
    %v1816 = vmul.f32 %v1812, 0.033333335
    %v1817 = vadd.f32 %v1813, 1e-05
    %v1818 = vadd.f32 %v1814, 1e-05
    %v1819 = vadd.f32 %v1815, 1e-05
    %v1820 = vadd.f32 %v1816, 1e-05
    %v1821 = vrsqrt.pop %v1817
    %v1822 = vrsqrt.pop %v1818
    %v1823 = vrsqrt.pop %v1819
    %v1824 = vrsqrt.pop %v1820
    %v1829 = vcombine.low %v1821, %v1822
    %v1830 = vcombine.low %v1823, %v1824
    %v1832 = vunpack.c.l.s4 1966171168
    %v1833 = vunpack.c.0.s8 %v1832
    %v1834 = vlaneseq
    %v1835 = vshrl.u32 %v1834, 7
    %v1836 = vsub.s32 %v1833, %v1835
    %v1837 = vrot.slane %v1829, %v1836
    %v1839 = vunpack.c.l.s4 1966171168
    %v1840 = vunpack.c.0.s8 %v1839
    %v1841 = vlaneseq
    %v1842 = vshrl.u32 %v1841, 7
    %v1843 = vsub.s32 %v1840, %v1842
    %v1844 = vrot.slane %v1830, %v1843
    %v1845 = vcombine.low %v1837, %v1844
    %v1847 = vunpack.c.l.s4 1966171168
    %v1848 = vunpack.c.0.s8 %v1847
    %v1849 = vlaneseq
    %v1850 = vshrl.u32 %v1849, 7
    %v1851 = vsub.s32 %v1848, %v1850
    %v1852 = vrot.slane %v1845, %v1851
    %v1854 = vmul.f32 %v1694, %v1852
    %v1856 = vlaneseq
    %v1857 = vshrl.u32 %v1856, 7
    %v1858 = vsub.s32 0, %v1857
    %v1859 = vrot.slane %v1854, %v1858
    %v1860 = vlaneseq
    %v1861 = vshrl.u32 %v1860, 7
    %v1862 = vsub.s32 1, %v1861
    %v1863 = vrot.slane %v1854, %v1862
    %v1864 = vlaneseq
    %v1865 = vshrl.u32 %v1864, 7
    %v1866 = vsub.s32 2, %v1865
    %v1867 = vrot.slane %v1854, %v1866
    %v1868 = vlaneseq
    %v1869 = vshrl.u32 %v1868, 7
    %v1870 = vsub.s32 3, %v1869
    %v1871 = vrot.slane %v1854, %v1870
    %v1876 = vmul.f32 %v1737, %v1859
    %v1877 = vmul.f32 %v1738, %v1863
    %v1878 = vmul.f32 %v1739, %v1867
    %v1879 = vmul.f32 %v1740, %v1871
    %v1884 = vcombine.low %v1876, %v1877
    %v1885 = vcombine.low %v1878, %v1879
    %v1887 = vunpack.c.l.s4 1966171168
    %v1888 = vunpack.c.0.s8 %v1887
    %v1889 = vlaneseq
    %v1890 = vshrl.u32 %v1889, 7
    %v1891 = vsub.s32 %v1888, %v1890
    %v1892 = vrot.slane %v1884, %v1891
    %v1894 = vunpack.c.l.s4 1966171168
    %v1895 = vunpack.c.0.s8 %v1894
    %v1896 = vlaneseq
    %v1897 = vshrl.u32 %v1896, 7
    %v1898 = vsub.s32 %v1895, %v1897
    %v1899 = vrot.slane %v1885, %v1898
    %v1900 = vcombine.low %v1892, %v1899
    %v1902 = vunpack.c.l.s4 1966171168
    %v1903 = vunpack.c.0.s8 %v1902
    %v1904 = vlaneseq
    %v1905 = vshrl.u32 %v1904, 7
    %v1906 = vsub.s32 %v1903, %v1905
    %v1907 = vrot.slane %v1900, %v1906
    %v1909 = vsub.f32 %v1695, %v1907
    %v1910 = vmul.f32 %v1517, %v1859
    %v1911 = vmul.f32 %v1519, %v1863
    %v1912 = vmul.f32 %v1676, %v1867
    %v1913 = vmul.f32 %v1678, %v1871
    %v1914 = vmul.f32 %v1521, %v1859
    %v1915 = vmul.f32 %v1523, %v1863
    %v1916 = vmul.f32 %v1680, %v1867
    %v1917 = vmul.f32 %v1682, %v1871
    %v1918 = vmul.f32 %v1527, %v1859
    %v1919 = vmul.f32 %v1529, %v1863
    %v1920 = vmul.f32 %v1686, %v1867
    %v1921 = vmul.f32 %v1688, %v1871
    %v1922 = vmul.f32 %v1531, %v1859
    %v1923 = vmul.f32 %v1533, %v1863
    %v1924 = vmul.f32 %v1690, %v1867
    %v1925 = vmul.f32 %v1692, %v1871
    %v1927 = vlaneseq
    %v1928 = vshrl.u32 %v1927, 7
    %v1929 = vsub.s32 0, %v1928
    %v1930 = vrot.slane %v1909, %v1929
    %v1931 = vlaneseq
    %v1932 = vshrl.u32 %v1931, 7
    %v1933 = vsub.s32 1, %v1932
    %v1934 = vrot.slane %v1909, %v1933
    %v1935 = vlaneseq
    %v1936 = vshrl.u32 %v1935, 7
    %v1937 = vsub.s32 2, %v1936
    %v1938 = vrot.slane %v1909, %v1937
    %v1939 = vlaneseq
    %v1940 = vshrl.u32 %v1939, 7
    %v1941 = vsub.s32 3, %v1940
    %v1942 = vrot.slane %v1909, %v1941
    %v1947 = vadd.f32 %v1910, %v1930
    %v1948 = vadd.f32 %v1911, %v1934
    %v1949 = vadd.f32 %v1912, %v1938
    %v1950 = vadd.f32 %v1913, %v1942
    %v1951 = vadd.f32 %v1914, %v1930
    %v1952 = vadd.f32 %v1915, %v1934
    %v1953 = vadd.f32 %v1916, %v1938
    %v1954 = vadd.f32 %v1917, %v1942
    %v1955 = vadd.f32 %v1918, %v1930
    %v1956 = vadd.f32 %v1919, %v1934
    %v1957 = vadd.f32 %v1920, %v1938
    %v1958 = vadd.f32 %v1921, %v1942
    %v1959 = vadd.f32 %v1922, %v1930
    %v1960 = vadd.f32 %v1923, %v1934
    %v1961 = vadd.f32 %v1924, %v1938
    %v1962 = vadd.f32 %v1925, %v1942
    %v1963 = vmax.f32 %v1947, 0.0
    %v1964 = vmax.f32 %v1948, 0.0
    %v1965 = vmax.f32 %v1949, 0.0
    %v1966 = vmax.f32 %v1950, 0.0
    %v1967 = vmax.f32 %v1951, 0.0
    %v1968 = vmax.f32 %v1952, 0.0
    %v1969 = vmax.f32 %v1953, 0.0
    %v1970 = vmax.f32 %v1954, 0.0
    %v1971 = vmax.f32 %v1955, 0.0
    %v1972 = vmax.f32 %v1956, 0.0
    %v1973 = vmax.f32 %v1957, 0.0
    %v1974 = vmax.f32 %v1958, 0.0
    %v1975 = vmax.f32 %v1959, 0.0
    %v1976 = vmax.f32 %v1960, 0.0
    %v1977 = vmax.f32 %v1961, 0.0
    %v1978 = vmax.f32 %v1962, 0.0
    %v1979 = vld [vmem:[%s6] sm:$0x3]
    %v1980 = vld [vmem:[#allocation4] sm:$0xff]
    %v1981 = vld [vmem:[#allocation4 + $0x8] sm:$0xff]
    %v1982 = vld [vmem:[#allocation4 + $0x10] sm:$0xff]
    %v1983 = vld [vmem:[#allocation4 + $0x18] sm:$0xff]
    %v1984 = vld [vmem:[#allocation4 + $0x20] sm:$0xff]
    %v1985 = vld [vmem:[#allocation4 + $0x28] sm:$0xff]
    %v1986 = vld [vmem:[#allocation4 + $0x30] sm:$0xff]
    %v1987 = vld [vmem:[#allocation4 + $0x38] sm:$0xff]
    %v1988 = vld [vmem:[#allocation4 + $0x40] sm:$0xff]
    %v1989 = vld [vmem:[#allocation4 + $0x48] sm:$0xff]
    %v1990 = vld [vmem:[#allocation4 + $0x50] sm:$0xff]
    %v1991 = vld [vmem:[#allocation4 + $0x58] sm:$0xff]
    %v1992 = vld [vmem:[#allocation4 + $0x60] sm:$0xff]
    %v1993 = vld [vmem:[#allocation4 + $0x68] sm:$0xff]
    %v1994 = vld [vmem:[#allocation4 + $0x70] sm:$0xff]
    %v1995 = vld [vmem:[#allocation4 + $0x78] sm:$0xff]
    %v1996 = vld [vmem:[#allocation4 + $0x80] sm:$0xff]
    %v1997 = vld [vmem:[#allocation4 + $0x88] sm:$0xff]
    %v1998 = vld [vmem:[#allocation4 + $0x90] sm:$0xff]
    %v1999 = vld [vmem:[#allocation4 + $0x98] sm:$0xff]
    %v2000 = vld [vmem:[#allocation4 + $0xa0] sm:$0xff]
    %v2001 = vld [vmem:[#allocation4 + $0xa8] sm:$0xff]
    %v2002 = vld [vmem:[#allocation4 + $0xb0] sm:$0xff]
    %v2003 = vld [vmem:[#allocation4 + $0xb8] sm:$0xff]
    %v2004 = vld [vmem:[#allocation4 + $0xc0] sm:$0xff]
    %v2005 = vld [vmem:[#allocation4 + $0xc8] sm:$0xff]
    %v2006 = vld [vmem:[#allocation4 + $0xd0] sm:$0xff]
    %v2007 = vld [vmem:[#allocation4 + $0xd8] sm:$0xff]
    %v2008 = vld [vmem:[#allocation4 + $0xe0] sm:$0xff]
    %v2009 = vld [vmem:[#allocation4 + $0xe8] sm:$0xff]
    %v2010 = vld [vmem:[#allocation4 + $0xf0] sm:$0xff]
    %v2011 = vld [vmem:[#allocation4 + $0xf8] sm:$0xff]
    %v2012 = vld [vmem:[#allocation4 + $0x100] sm:$0xff]
    %v2013 = vld [vmem:[#allocation4 + $0x108] sm:$0xff]
    %v2014 = vld [vmem:[#allocation4 + $0x110] sm:$0xff]
    %v2015 = vld [vmem:[#allocation4 + $0x118] sm:$0xff]
    %v2016 = vld [vmem:[#allocation4 + $0x120] sm:$0xff]
    %v2017 = vld [vmem:[#allocation4 + $0x128] sm:$0xff]
    %v2018 = vld [vmem:[#allocation4 + $0x130] sm:$0xff]
    %v2019 = vld [vmem:[#allocation4 + $0x138] sm:$0xff]
    %v2020 = vld [vmem:[#allocation4 + $0x140] sm:$0xff]
    %v2021 = vld [vmem:[#allocation4 + $0x148] sm:$0xff]
    %v2022 = vld [vmem:[#allocation4 + $0x150] sm:$0xff]
    %v2023 = vld [vmem:[#allocation4 + $0x158] sm:$0xff]
    %v2024 = vld [vmem:[#allocation4 + $0x160] sm:$0xff]
    %v2025 = vld [vmem:[#allocation4 + $0x168] sm:$0xff]
    %v2026 = vld [vmem:[#allocation4 + $0x170] sm:$0xff]
    %v2027 = vld [vmem:[#allocation4 + $0x178] sm:$0xff]
    %v2028 = vld [vmem:[#allocation4 + $0x180] sm:$0xff]
    %v2029 = vld [vmem:[#allocation4 + $0x188] sm:$0xff]
    %v2030 = vld [vmem:[#allocation4 + $0x190] sm:$0xff]
    %v2031 = vld [vmem:[#allocation4 + $0x198] sm:$0xff]
    %v2032 = vld [vmem:[#allocation4 + $0x1a0] sm:$0xff]
    %v2033 = vld [vmem:[#allocation4 + $0x1a8] sm:$0xff]
    %v2034 = vld [vmem:[#allocation4 + $0x1b0] sm:$0xff]
    %v2035 = vld [vmem:[#allocation4 + $0x1b8] sm:$0xff]
    %v2036 = vld [vmem:[#allocation4 + $0x1c0] sm:$0xff]
    %v2037 = vld [vmem:[#allocation4 + $0x1c8] sm:$0xff]
    %v2038 = vld [vmem:[#allocation4 + $0x1d0] sm:$0xff]
    %v2039 = vld [vmem:[#allocation4 + $0x1d8] sm:$0xff]
    %v2040 = vld [vmem:[#allocation4 + $0x1e0] sm:$0xff]
    %v2041 = vld [vmem:[#allocation4 + $0x1e8] sm:$0xff]
    %v2042 = vld [vmem:[#allocation4 + $0x1f0] sm:$0xff]
    %v2043 = vld [vmem:[#allocation4 + $0x1f8] sm:$0xff]
    %s2044 = scalar_lea.vmem [#allocation4], 512
    %v2045 = vld [vmem:[%s2044] sm:$0xff]
    %v2046 = vld [vmem:[%s2044 + $0x8] sm:$0xff]
    %v2047 = vld [vmem:[%s2044 + $0x10] sm:$0xff]
    %v2048 = vld [vmem:[%s2044 + $0x18] sm:$0xff]
    %v2049 = vld [vmem:[%s2044 + $0x20] sm:$0xff]
    %v2050 = vld [vmem:[%s2044 + $0x28] sm:$0xff]
    %v2051 = vld [vmem:[%s2044 + $0x30] sm:$0xff]
    %v2052 = vld [vmem:[%s2044 + $0x38] sm:$0xff]
    %v2053 = vld [vmem:[%s2044 + $0x40] sm:$0xff]
    %v2054 = vld [vmem:[%s2044 + $0x48] sm:$0xff]
    %v2055 = vld [vmem:[%s2044 + $0x50] sm:$0xff]
    %v2056 = vld [vmem:[%s2044 + $0x58] sm:$0xff]
    %v2057 = vld [vmem:[%s2044 + $0x60] sm:$0xff]
    %v2058 = vld [vmem:[%s2044 + $0x68] sm:$0xff]
    %v2059 = vld [vmem:[%s2044 + $0x70] sm:$0xff]
    %v2060 = vld [vmem:[%s2044 + $0x78] sm:$0xff]
    %v2061 = vld [vmem:[%s2044 + $0x80] sm:$0xff]
    %v2062 = vld [vmem:[%s2044 + $0x88] sm:$0xff]
    %v2063 = vld [vmem:[%s2044 + $0x90] sm:$0xff]
    %v2064 = vld [vmem:[%s2044 + $0x98] sm:$0xff]
    %v2065 = vld [vmem:[%s2044 + $0xa0] sm:$0xff]
    %v2066 = vld [vmem:[%s2044 + $0xa8] sm:$0xff]
    %v2067 = vld [vmem:[%s2044 + $0xb0] sm:$0xff]
    %v2068 = vld [vmem:[%s2044 + $0xb8] sm:$0xff]
    %v2069 = vld [vmem:[%s2044 + $0xc0] sm:$0xff]
    %v2070 = vld [vmem:[%s2044 + $0xc8] sm:$0xff]
    %v2071 = vld [vmem:[%s2044 + $0xd0] sm:$0xff]
    %v2072 = vld [vmem:[%s2044 + $0xd8] sm:$0xff]
    %v2073 = vld [vmem:[%s2044 + $0xe0] sm:$0xff]
    %v2074 = vld [vmem:[%s2044 + $0xe8] sm:$0xff]
    %v2075 = vld [vmem:[%s2044 + $0xf0] sm:$0xff]
    %v2076 = vld [vmem:[%s2044 + $0xf8] sm:$0xff]
    %v2077 = vld [vmem:[%s2044 + $0x100] sm:$0xff]
    %v2078 = vld [vmem:[%s2044 + $0x108] sm:$0xff]
    %v2079 = vld [vmem:[%s2044 + $0x110] sm:$0xff]
    %v2080 = vld [vmem:[%s2044 + $0x118] sm:$0xff]
    %v2081 = vld [vmem:[%s2044 + $0x120] sm:$0xff]
    %v2082 = vld [vmem:[%s2044 + $0x128] sm:$0xff]
    %v2083 = vld [vmem:[%s2044 + $0x130] sm:$0xff]
    %v2084 = vld [vmem:[%s2044 + $0x138] sm:$0xff]
    %v2085 = vld [vmem:[%s2044 + $0x140] sm:$0xff]
    %v2086 = vld [vmem:[%s2044 + $0x148] sm:$0xff]
    %v2087 = vld [vmem:[%s2044 + $0x150] sm:$0xff]
    %v2088 = vld [vmem:[%s2044 + $0x158] sm:$0xff]
    %v2089 = vld [vmem:[%s2044 + $0x160] sm:$0xff]
    %v2090 = vld [vmem:[%s2044 + $0x168] sm:$0xff]
    %v2091 = vld [vmem:[%s2044 + $0x170] sm:$0xff]
    %v2092 = vld [vmem:[%s2044 + $0x178] sm:$0xff]
    %v2093 = vld [vmem:[%s2044 + $0x180] sm:$0xff]
    %v2094 = vld [vmem:[%s2044 + $0x188] sm:$0xff]
    %v2095 = vld [vmem:[%s2044 + $0x190] sm:$0xff]
    %v2096 = vld [vmem:[%s2044 + $0x198] sm:$0xff]
    %v2097 = vld [vmem:[%s2044 + $0x1a0] sm:$0xff]
    %v2098 = vld [vmem:[%s2044 + $0x1a8] sm:$0xff]
    %v2099 = vld [vmem:[%s2044 + $0x1b0] sm:$0xff]
    %v2100 = vld [vmem:[%s2044 + $0x1b8] sm:$0xff]
    %v2101 = vld [vmem:[%s2044 + $0x1c0] sm:$0xff]
    %v2102 = vld [vmem:[%s2044 + $0x1c8] sm:$0xff]
    %v2103 = vld [vmem:[%s2044 + $0x1d0] sm:$0xff]
    %v2104 = vld [vmem:[%s2044 + $0x1d8] sm:$0xff]
    %v2105 = vld [vmem:[%s2044 + $0x1e0] sm:$0xff]
    %v2106 = vld [vmem:[%s2044 + $0x1e8] sm:$0xff]
    %v2107 = vld [vmem:[%s2044 + $0x1f0] sm:$0xff]
    %v2108 = vld [vmem:[%s2044 + $0x1f8] sm:$0xff]
    %s2109 = scalar_lea.vmem [#allocation4], 1024
    %v2110 = vld [vmem:[%s2109] sm:$0xff]
    %v2111 = vld [vmem:[%s2109 + $0x8] sm:$0xff]
    %v2112 = vld [vmem:[%s2109 + $0x10] sm:$0xff]
    %v2113 = vld [vmem:[%s2109 + $0x18] sm:$0xff]
    %v2114 = vld [vmem:[%s2109 + $0x20] sm:$0xff]
    %v2115 = vld [vmem:[%s2109 + $0x28] sm:$0xff]
    %v2116 = vld [vmem:[%s2109 + $0x30] sm:$0xff]
    %v2117 = vld [vmem:[%s2109 + $0x38] sm:$0xff]
    %v2118 = vld [vmem:[%s2109 + $0x40] sm:$0xff]
    %v2119 = vld [vmem:[%s2109 + $0x48] sm:$0xff]
    %v2120 = vld [vmem:[%s2109 + $0x50] sm:$0xff]
    %v2121 = vld [vmem:[%s2109 + $0x58] sm:$0xff]
    %v2122 = vld [vmem:[%s2109 + $0x60] sm:$0xff]
    %v2123 = vld [vmem:[%s2109 + $0x68] sm:$0xff]
    %v2124 = vld [vmem:[%s2109 + $0x70] sm:$0xff]
    %v2125 = vld [vmem:[%s2109 + $0x78] sm:$0xff]
    %v2126 = vld [vmem:[%s2109 + $0x80] sm:$0xff]
    %v2127 = vld [vmem:[%s2109 + $0x88] sm:$0xff]
    %v2128 = vld [vmem:[%s2109 + $0x90] sm:$0xff]
    %v2129 = vld [vmem:[%s2109 + $0x98] sm:$0xff]
    %v2130 = vld [vmem:[%s2109 + $0xa0] sm:$0xff]
    %v2131 = vld [vmem:[%s2109 + $0xa8] sm:$0xff]
    %v2132 = vld [vmem:[%s2109 + $0xb0] sm:$0xff]
    %v2133 = vld [vmem:[%s2109 + $0xb8] sm:$0xff]
    %v2134 = vld [vmem:[%s2109 + $0xc0] sm:$0xff]
    %v2135 = vld [vmem:[%s2109 + $0xc8] sm:$0xff]
    %v2136 = vld [vmem:[%s2109 + $0xd0] sm:$0xff]
    %v2137 = vld [vmem:[%s2109 + $0xd8] sm:$0xff]
    %v2138 = vld [vmem:[%s2109 + $0xe0] sm:$0xff]
    %v2139 = vld [vmem:[%s2109 + $0xe8] sm:$0xff]
    %v2140 = vld [vmem:[%s2109 + $0xf0] sm:$0xff]
    %v2141 = vld [vmem:[%s2109 + $0xf8] sm:$0xff]
    %v2142 = vld [vmem:[%s2109 + $0x100] sm:$0xff]
    %v2143 = vld [vmem:[%s2109 + $0x108] sm:$0xff]
    %v2144 = vld [vmem:[%s2109 + $0x110] sm:$0xff]
    %v2145 = vld [vmem:[%s2109 + $0x118] sm:$0xff]
    %v2146 = vld [vmem:[%s2109 + $0x120] sm:$0xff]
    %v2147 = vld [vmem:[%s2109 + $0x128] sm:$0xff]
    %v2148 = vld [vmem:[%s2109 + $0x130] sm:$0xff]
    %v2149 = vld [vmem:[%s2109 + $0x138] sm:$0xff]
    %v2150 = vld [vmem:[%s2109 + $0x140] sm:$0xff]
    %v2151 = vld [vmem:[%s2109 + $0x148] sm:$0xff]
    %v2152 = vld [vmem:[%s2109 + $0x150] sm:$0xff]
    %v2153 = vld [vmem:[%s2109 + $0x158] sm:$0xff]
    %v2154 = vld [vmem:[%s2109 + $0x160] sm:$0xff]
    %v2155 = vld [vmem:[%s2109 + $0x168] sm:$0xff]
    %v2156 = vld [vmem:[%s2109 + $0x170] sm:$0xff]
    %v2157 = vld [vmem:[%s2109 + $0x178] sm:$0xff]
    %v2158 = vld [vmem:[%s2109 + $0x180] sm:$0xff]
    %v2159 = vld [vmem:[%s2109 + $0x188] sm:$0xff]
    %v2160 = vld [vmem:[%s2109 + $0x190] sm:$0xff]
    %v2161 = vld [vmem:[%s2109 + $0x198] sm:$0xff]
    %v2162 = vld [vmem:[%s2109 + $0x1a0] sm:$0xff]
    %v2163 = vld [vmem:[%s2109 + $0x1a8] sm:$0xff]
    %v2164 = vld [vmem:[%s2109 + $0x1b0] sm:$0xff]
    %v2165 = vld [vmem:[%s2109 + $0x1b8] sm:$0xff]
    %v2166 = vld [vmem:[%s2109 + $0x1c0] sm:$0xff]
    %v2167 = vld [vmem:[%s2109 + $0x1c8] sm:$0xff]
    %v2168 = vld [vmem:[%s2109 + $0x1d0] sm:$0xff]
    %v2169 = vld [vmem:[%s2109 + $0x1d8] sm:$0xff]
    %v2170 = vld [vmem:[%s2109 + $0x1e0] sm:$0xff]
    %v2171 = vld [vmem:[%s2109 + $0x1e8] sm:$0xff]
    %v2172 = vld [vmem:[%s2109 + $0x1f0] sm:$0xff]
    %v2173 = vld [vmem:[%s2109 + $0x1f8] sm:$0xff]
    %s2174 = scalar_lea.vmem [#allocation4], 1536
    %v2175 = vld [vmem:[%s2174] sm:$0xff]
    %v2176 = vld [vmem:[%s2174 + $0x8] sm:$0xff]
    %v2177 = vld [vmem:[%s2174 + $0x10] sm:$0xff]
    %v2178 = vld [vmem:[%s2174 + $0x18] sm:$0xff]
    %v2179 = vld [vmem:[%s2174 + $0x20] sm:$0xff]
    %v2180 = vld [vmem:[%s2174 + $0x28] sm:$0xff]
    %v2181 = vld [vmem:[%s2174 + $0x30] sm:$0xff]
    %v2182 = vld [vmem:[%s2174 + $0x38] sm:$0xff]
    %v2183 = vld [vmem:[%s2174 + $0x40] sm:$0xff]
    %v2184 = vld [vmem:[%s2174 + $0x48] sm:$0xff]
    %v2185 = vld [vmem:[%s2174 + $0x50] sm:$0xff]
    %v2186 = vld [vmem:[%s2174 + $0x58] sm:$0xff]
    %v2187 = vld [vmem:[%s2174 + $0x60] sm:$0xff]
    %v2188 = vld [vmem:[%s2174 + $0x68] sm:$0xff]
    %v2189 = vld [vmem:[%s2174 + $0x70] sm:$0xff]
    %v2190 = vld [vmem:[%s2174 + $0x78] sm:$0xff]
    %v2191 = vld [vmem:[%s2174 + $0x80] sm:$0xff]
    %v2192 = vld [vmem:[%s2174 + $0x88] sm:$0xff]
    %v2193 = vld [vmem:[%s2174 + $0x90] sm:$0xff]
    %v2194 = vld [vmem:[%s2174 + $0x98] sm:$0xff]
    %v2195 = vld [vmem:[%s2174 + $0xa0] sm:$0xff]
    %v2196 = vld [vmem:[%s2174 + $0xa8] sm:$0xff]
    %v2197 = vld [vmem:[%s2174 + $0xb0] sm:$0xff]
    %v2198 = vld [vmem:[%s2174 + $0xb8] sm:$0xff]
    %v2199 = vld [vmem:[%s2174 + $0xc0] sm:$0xff]
    %v2200 = vld [vmem:[%s2174 + $0xc8] sm:$0xff]
    %v2201 = vld [vmem:[%s2174 + $0xd0] sm:$0xff]
    %v2202 = vld [vmem:[%s2174 + $0xd8] sm:$0xff]
    %v2203 = vld [vmem:[%s2174 + $0xe0] sm:$0xff]
    %v2204 = vld [vmem:[%s2174 + $0xe8] sm:$0xff]
    %v2205 = vld [vmem:[%s2174 + $0xf0] sm:$0xff]
    %v2206 = vld [vmem:[%s2174 + $0xf8] sm:$0xff]
    %v2207 = vld [vmem:[%s2174 + $0x100] sm:$0xff]
    %v2208 = vld [vmem:[%s2174 + $0x108] sm:$0xff]
    %v2209 = vld [vmem:[%s2174 + $0x110] sm:$0xff]
    %v2210 = vld [vmem:[%s2174 + $0x118] sm:$0xff]
    %v2211 = vld [vmem:[%s2174 + $0x120] sm:$0xff]
    %v2212 = vld [vmem:[%s2174 + $0x128] sm:$0xff]
    %v2213 = vld [vmem:[%s2174 + $0x130] sm:$0xff]
    %v2214 = vld [vmem:[%s2174 + $0x138] sm:$0xff]
    %v2215 = vld [vmem:[%s2174 + $0x140] sm:$0xff]
    %v2216 = vld [vmem:[%s2174 + $0x148] sm:$0xff]
    %v2217 = vld [vmem:[%s2174 + $0x150] sm:$0xff]
    %v2218 = vld [vmem:[%s2174 + $0x158] sm:$0xff]
    %v2219 = vld [vmem:[%s2174 + $0x160] sm:$0xff]
    %v2220 = vld [vmem:[%s2174 + $0x168] sm:$0xff]
    %v2221 = vld [vmem:[%s2174 + $0x170] sm:$0xff]
    %v2222 = vld [vmem:[%s2174 + $0x178] sm:$0xff]
    %v2223 = vld [vmem:[%s2174 + $0x180] sm:$0xff]
    %v2224 = vld [vmem:[%s2174 + $0x188] sm:$0xff]
    %v2225 = vld [vmem:[%s2174 + $0x190] sm:$0xff]
    %v2226 = vld [vmem:[%s2174 + $0x198] sm:$0xff]
    %v2227 = vld [vmem:[%s2174 + $0x1a0] sm:$0xff]
    %v2228 = vld [vmem:[%s2174 + $0x1a8] sm:$0xff]
    %v2229 = vld [vmem:[%s2174 + $0x1b0] sm:$0xff]
    %v2230 = vld [vmem:[%s2174 + $0x1b8] sm:$0xff]
    %v2231 = vld [vmem:[%s2174 + $0x1c0] sm:$0xff]
    %v2232 = vld [vmem:[%s2174 + $0x1c8] sm:$0xff]
    %v2233 = vld [vmem:[%s2174 + $0x1d0] sm:$0xff]
    %v2234 = vld [vmem:[%s2174 + $0x1d8] sm:$0xff]
    %v2235 = vld [vmem:[%s2174 + $0x1e0] sm:$0xff]
    %v2236 = vld [vmem:[%s2174 + $0x1e8] sm:$0xff]
    %v2237 = vld [vmem:[%s2174 + $0x1f0] sm:$0xff]
    %v2238 = vld [vmem:[%s2174 + $0x1f8] sm:$0xff]
    %vm2255 = vcmask 1040384
    %v2256 = vrot.slane %v1963, 7
    %v2257 = vrot.slane %v1964, 7
    %v2258 = vrot.slane %v1965, 7
    %v2259 = vrot.slane %v1966, 7
    %v2260 = vrot.slane %v1967, 7
    %v2261 = vsel %vm2255, %v2256, %v2260
    %v2262 = vrot.slane %v1968, 7
    %v2263 = vsel %vm2255, %v2257, %v2262
    %v2264 = vrot.slane %v1969, 7
    %v2265 = vsel %vm2255, %v2258, %v2264
    %v2266 = vrot.slane %v1970, 7
    %v2267 = vsel %vm2255, %v2259, %v2266
    %v2268 = vrot.slane %v1971, 7
    %v2269 = vsel %vm2255, %v2260, %v2268
    %v2270 = vrot.slane %v1972, 7
    %v2271 = vsel %vm2255, %v2262, %v2270
    %v2272 = vrot.slane %v1973, 7
    %v2273 = vsel %vm2255, %v2264, %v2272
    %v2274 = vrot.slane %v1974, 7
    %v2275 = vsel %vm2255, %v2266, %v2274
    %v2276 = vrot.slane %v1975, 7
    %v2277 = vsel %vm2255, %v2268, %v2276
    %v2278 = vrot.slane %v1976, 7
    %v2279 = vsel %vm2255, %v2270, %v2278
    %v2280 = vrot.slane %v1977, 7
    %v2281 = vsel %vm2255, %v2272, %v2280
    %v2282 = vrot.slane %v1978, 7
    %v2283 = vsel %vm2255, %v2274, %v2282
    %v2300 = vsel %vm2255, 0.0, %v2256
    %v2301 = vsel %vm2255, 0.0, %v2257
    %v2302 = vsel %vm2255, 0.0, %v2258
    %v2303 = vsel %vm2255, 0.0, %v2259
    %v2304 = vmul.f32 %v2300, %v132
    %v2305 = vmul.f32 %v2301, %v132
    %v2306 = vmul.f32 %v2302, %v132
    %v2307 = vmul.f32 %v2303, %v132
    %v2308 = vmul.f32 %v2261, %v133
    %v2309 = vmul.f32 %v2263, %v133
    %v2310 = vmul.f32 %v2265, %v133
    %v2311 = vmul.f32 %v2267, %v133
    %v2312 = vmul.f32 %v2269, %v134
    %v2313 = vmul.f32 %v2271, %v134
    %v2314 = vmul.f32 %v2273, %v134
    %v2315 = vmul.f32 %v2275, %v134
    %v2316 = vmul.f32 %v2277, %v135
    %v2317 = vmul.f32 %v2279, %v135
    %v2318 = vmul.f32 %v2281, %v135
    %v2319 = vmul.f32 %v2283, %v135
    %v2320 = vrot.slane %v1963, 1
    %v2321 = vrot.slane %v1967, 1
    %v2322 = vsel %vm1363, %v2320, %v2321
    %v2323 = vrot.slane %v1964, 1
    %v2324 = vrot.slane %v1968, 1
    %v2325 = vsel %vm1363, %v2323, %v2324
    %v2326 = vrot.slane %v1965, 1
    %v2327 = vrot.slane %v1969, 1
    %v2328 = vsel %vm1363, %v2326, %v2327
    %v2329 = vrot.slane %v1966, 1
    %v2330 = vrot.slane %v1970, 1
    %v2331 = vsel %vm1363, %v2329, %v2330
    %v2332 = vrot.slane %v1971, 1
    %v2333 = vsel %vm1363, %v2321, %v2332
    %v2334 = vrot.slane %v1972, 1
    %v2335 = vsel %vm1363, %v2324, %v2334
    %v2336 = vrot.slane %v1973, 1
    %v2337 = vsel %vm1363, %v2327, %v2336
    %v2338 = vrot.slane %v1974, 1
    %v2339 = vsel %vm1363, %v2330, %v2338
    %v2340 = vrot.slane %v1975, 1
    %v2341 = vsel %vm1363, %v2332, %v2340
    %v2342 = vrot.slane %v1976, 1
    %v2343 = vsel %vm1363, %v2334, %v2342
    %v2344 = vrot.slane %v1977, 1
    %v2345 = vsel %vm1363, %v2336, %v2344
    %v2346 = vrot.slane %v1978, 1
    %v2347 = vsel %vm1363, %v2338, %v2346
    %vm2364 = vcmask 1044480
    %v2365 = vsel %vm2364, %v2340, 0.0
    %v2366 = vsel %vm2364, %v2342, 0.0
    %v2367 = vsel %vm2364, %v2344, 0.0
    %v2368 = vsel %vm2364, %v2346, 0.0
    %v2369 = vmul.f32 %v2322, %v136
    %v2370 = vmul.f32 %v2325, %v136
    %v2371 = vmul.f32 %v2328, %v136
    %v2372 = vmul.f32 %v2331, %v136
    %v2373 = vmul.f32 %v2333, %v137
    %v2374 = vmul.f32 %v2335, %v137
    %v2375 = vmul.f32 %v2337, %v137
    %v2376 = vmul.f32 %v2339, %v137
    %v2377 = vmul.f32 %v2341, %v138
    %v2378 = vmul.f32 %v2343, %v138
    %v2379 = vmul.f32 %v2345, %v138
    %v2380 = vmul.f32 %v2347, %v138
    %v2381 = vmul.f32 %v2365, %v139
    %v2382 = vmul.f32 %v2366, %v139
    %v2383 = vmul.f32 %v2367, %v139
    %v2384 = vmul.f32 %v2368, %v139
    %v2385 = vpack.c.bf16 %v1967, %v1963
    %v2386 = vpack.c.bf16 %v1968, %v1964
    %v2387 = vpack.c.bf16 %v1969, %v1965
    %v2388 = vpack.c.bf16 %v1970, %v1966
    %v2389 = vpack.c.bf16 %v1975, %v1971
    %v2390 = vpack.c.bf16 %v1976, %v1972
    %v2391 = vpack.c.bf16 %v1977, %v1973
    %v2392 = vpack.c.bf16 %v1978, %v1974
    %v2393 = vpack.c.bf16 %v2308, %v2304
    %v2394 = vpack.c.bf16 %v2309, %v2305
    %v2395 = vpack.c.bf16 %v2310, %v2306
    %v2396 = vpack.c.bf16 %v2311, %v2307
    %v2397 = vpack.c.bf16 %v2316, %v2312
    %v2398 = vpack.c.bf16 %v2317, %v2313
    %v2399 = vpack.c.bf16 %v2318, %v2314
    %v2400 = vpack.c.bf16 %v2319, %v2315
    %v2465 = vunpack.c.l.b16 %v2175
    %v2466 = vunpack.c.h.b16 %v2175
    %v2467 = vunpack.c.l.b16 %v2176
    %v2468 = vunpack.c.h.b16 %v2176
    %v2469 = vunpack.c.l.b16 %v2177
    %v2470 = vunpack.c.h.b16 %v2177
    %v2471 = vunpack.c.l.b16 %v2178
    %v2472 = vunpack.c.h.b16 %v2178
    %v2473 = vunpack.c.l.b16 %v2179
    %v2474 = vunpack.c.h.b16 %v2179
    %v2475 = vunpack.c.l.b16 %v2180
    %v2476 = vunpack.c.h.b16 %v2180
    %v2477 = vunpack.c.l.b16 %v2181
    %v2478 = vunpack.c.h.b16 %v2181
    %v2479 = vunpack.c.l.b16 %v2182
    %v2480 = vunpack.c.h.b16 %v2182
    %v2481 = vunpack.c.l.b16 %v2183
    %v2482 = vunpack.c.h.b16 %v2183
    %v2483 = vunpack.c.l.b16 %v2184
    %v2484 = vunpack.c.h.b16 %v2184
    %v2485 = vunpack.c.l.b16 %v2185
    %v2486 = vunpack.c.h.b16 %v2185
    %v2487 = vunpack.c.l.b16 %v2186
    %v2488 = vunpack.c.h.b16 %v2186
    %v2489 = vunpack.c.l.b16 %v2187
    %v2490 = vunpack.c.h.b16 %v2187
    %v2491 = vunpack.c.l.b16 %v2188
    %v2492 = vunpack.c.h.b16 %v2188
    %v2493 = vunpack.c.l.b16 %v2189
    %v2494 = vunpack.c.h.b16 %v2189
    %v2495 = vunpack.c.l.b16 %v2190
    %v2496 = vunpack.c.h.b16 %v2190
    %v2497 = vunpack.c.l.b16 %v2191
    %v2498 = vunpack.c.h.b16 %v2191
    %v2499 = vunpack.c.l.b16 %v2192
    %v2500 = vunpack.c.h.b16 %v2192
    %v2501 = vunpack.c.l.b16 %v2193
    %v2502 = vunpack.c.h.b16 %v2193
    %v2503 = vunpack.c.l.b16 %v2194
    %v2504 = vunpack.c.h.b16 %v2194
    %v2505 = vunpack.c.l.b16 %v2195
    %v2506 = vunpack.c.h.b16 %v2195
    %v2507 = vunpack.c.l.b16 %v2196
    %v2508 = vunpack.c.h.b16 %v2196
    %v2509 = vunpack.c.l.b16 %v2197
    %v2510 = vunpack.c.h.b16 %v2197
    %v2511 = vunpack.c.l.b16 %v2198
    %v2512 = vunpack.c.h.b16 %v2198
    %v2513 = vunpack.c.l.b16 %v2199
    %v2514 = vunpack.c.h.b16 %v2199
    %v2515 = vunpack.c.l.b16 %v2200
    %v2516 = vunpack.c.h.b16 %v2200
    %v2517 = vunpack.c.l.b16 %v2201
    %v2518 = vunpack.c.h.b16 %v2201
    %v2519 = vunpack.c.l.b16 %v2202
    %v2520 = vunpack.c.h.b16 %v2202
    %v2521 = vunpack.c.l.b16 %v2203
    %v2522 = vunpack.c.h.b16 %v2203
    %v2523 = vunpack.c.l.b16 %v2204
    %v2524 = vunpack.c.h.b16 %v2204
    %v2525 = vunpack.c.l.b16 %v2205
    %v2526 = vunpack.c.h.b16 %v2205
    %v2527 = vunpack.c.l.b16 %v2206
    %v2528 = vunpack.c.h.b16 %v2206
    %v2529 = vunpack.c.l.b16 %v2207
    %v2530 = vunpack.c.h.b16 %v2207
    %v2531 = vunpack.c.l.b16 %v2208
    %v2532 = vunpack.c.h.b16 %v2208
    %v2533 = vunpack.c.l.b16 %v2209
    %v2534 = vunpack.c.h.b16 %v2209
    %v2535 = vunpack.c.l.b16 %v2210
    %v2536 = vunpack.c.h.b16 %v2210
    %v2537 = vunpack.c.l.b16 %v2211
    %v2538 = vunpack.c.h.b16 %v2211
    %v2539 = vunpack.c.l.b16 %v2212
    %v2540 = vunpack.c.h.b16 %v2212
    %v2541 = vunpack.c.l.b16 %v2213
    %v2542 = vunpack.c.h.b16 %v2213
    %v2543 = vunpack.c.l.b16 %v2214
    %v2544 = vunpack.c.h.b16 %v2214
    %v2545 = vunpack.c.l.b16 %v2215
    %v2546 = vunpack.c.h.b16 %v2215
    %v2547 = vunpack.c.l.b16 %v2216
    %v2548 = vunpack.c.h.b16 %v2216
    %v2549 = vunpack.c.l.b16 %v2217
    %v2550 = vunpack.c.h.b16 %v2217
    %v2551 = vunpack.c.l.b16 %v2218
    %v2552 = vunpack.c.h.b16 %v2218
    %v2553 = vunpack.c.l.b16 %v2219
    %v2554 = vunpack.c.h.b16 %v2219
    %v2555 = vunpack.c.l.b16 %v2220
    %v2556 = vunpack.c.h.b16 %v2220
    %v2557 = vunpack.c.l.b16 %v2221
    %v2558 = vunpack.c.h.b16 %v2221
    %v2559 = vunpack.c.l.b16 %v2222
    %v2560 = vunpack.c.h.b16 %v2222
    %v2561 = vunpack.c.l.b16 %v2223
    %v2562 = vunpack.c.h.b16 %v2223
    %v2563 = vunpack.c.l.b16 %v2224
    %v2564 = vunpack.c.h.b16 %v2224
    %v2565 = vunpack.c.l.b16 %v2225
    %v2566 = vunpack.c.h.b16 %v2225
    %v2567 = vunpack.c.l.b16 %v2226
    %v2568 = vunpack.c.h.b16 %v2226
    %v2569 = vunpack.c.l.b16 %v2227
    %v2570 = vunpack.c.h.b16 %v2227
    %v2571 = vunpack.c.l.b16 %v2228
    %v2572 = vunpack.c.h.b16 %v2228
    %v2573 = vunpack.c.l.b16 %v2229
    %v2574 = vunpack.c.h.b16 %v2229
    %v2575 = vunpack.c.l.b16 %v2230
    %v2576 = vunpack.c.h.b16 %v2230
    %v2577 = vunpack.c.l.b16 %v2231
    %v2578 = vunpack.c.h.b16 %v2231
    %v2579 = vunpack.c.l.b16 %v2232
    %v2580 = vunpack.c.h.b16 %v2232
    %v2581 = vunpack.c.l.b16 %v2233
    %v2582 = vunpack.c.h.b16 %v2233
    %v2583 = vunpack.c.l.b16 %v2234
    %v2584 = vunpack.c.h.b16 %v2234
    %v2585 = vunpack.c.l.b16 %v2235
    %v2586 = vunpack.c.h.b16 %v2235
    %v2587 = vunpack.c.l.b16 %v2236
    %v2588 = vunpack.c.h.b16 %v2236
    %v2589 = vunpack.c.l.b16 %v2237
    %v2590 = vunpack.c.h.b16 %v2237
    %v2591 = vunpack.c.l.b16 %v2238
    %v2592 = vunpack.c.h.b16 %v2238
    %v2593 = vpack.c.b16 %v2467, %v2465
    %v2594 = vpack.c.b16 %v2468, %v2466
    %v2595 = vpack.c.b16 %v2471, %v2469
    %v2596 = vpack.c.b16 %v2472, %v2470
    %v2597 = vpack.c.b16 %v2475, %v2473
    %v2598 = vpack.c.b16 %v2476, %v2474
    %v2599 = vpack.c.b16 %v2479, %v2477
    %v2600 = vpack.c.b16 %v2480, %v2478
    %v2601 = vpack.c.b16 %v2483, %v2481
    %v2602 = vpack.c.b16 %v2484, %v2482
    %v2603 = vpack.c.b16 %v2487, %v2485
    %v2604 = vpack.c.b16 %v2488, %v2486
    %v2605 = vpack.c.b16 %v2491, %v2489
    %v2606 = vpack.c.b16 %v2492, %v2490
    %v2607 = vpack.c.b16 %v2495, %v2493
    %v2608 = vpack.c.b16 %v2496, %v2494
    %v2609 = vpack.c.b16 %v2499, %v2497
    %v2610 = vpack.c.b16 %v2500, %v2498
    %v2611 = vpack.c.b16 %v2503, %v2501
    %v2612 = vpack.c.b16 %v2504, %v2502
    %v2613 = vpack.c.b16 %v2507, %v2505
    %v2614 = vpack.c.b16 %v2508, %v2506
    %v2615 = vpack.c.b16 %v2511, %v2509
    %v2616 = vpack.c.b16 %v2512, %v2510
    %v2617 = vpack.c.b16 %v2515, %v2513
    %v2618 = vpack.c.b16 %v2516, %v2514
    %v2619 = vpack.c.b16 %v2519, %v2517
    %v2620 = vpack.c.b16 %v2520, %v2518
    %v2621 = vpack.c.b16 %v2523, %v2521
    %v2622 = vpack.c.b16 %v2524, %v2522
    %v2623 = vpack.c.b16 %v2527, %v2525
    %v2624 = vpack.c.b16 %v2528, %v2526
    %v2625 = vpack.c.b16 %v2531, %v2529
    %v2626 = vpack.c.b16 %v2532, %v2530
    %v2627 = vpack.c.b16 %v2535, %v2533
    %v2628 = vpack.c.b16 %v2536, %v2534
    %v2629 = vpack.c.b16 %v2539, %v2537
    %v2630 = vpack.c.b16 %v2540, %v2538
    %v2631 = vpack.c.b16 %v2543, %v2541
    %v2632 = vpack.c.b16 %v2544, %v2542
    %v2633 = vpack.c.b16 %v2547, %v2545
    %v2634 = vpack.c.b16 %v2548, %v2546
    %v2635 = vpack.c.b16 %v2551, %v2549
    %v2636 = vpack.c.b16 %v2552, %v2550
    %v2637 = vpack.c.b16 %v2555, %v2553
    %v2638 = vpack.c.b16 %v2556, %v2554
    %v2639 = vpack.c.b16 %v2559, %v2557
    %v2640 = vpack.c.b16 %v2560, %v2558
    %v2641 = vpack.c.b16 %v2563, %v2561
    %v2642 = vpack.c.b16 %v2564, %v2562
    %v2643 = vpack.c.b16 %v2567, %v2565
    %v2644 = vpack.c.b16 %v2568, %v2566
    %v2645 = vpack.c.b16 %v2571, %v2569
    %v2646 = vpack.c.b16 %v2572, %v2570
    %v2647 = vpack.c.b16 %v2575, %v2573
    %v2648 = vpack.c.b16 %v2576, %v2574
    %v2649 = vpack.c.b16 %v2579, %v2577
    %v2650 = vpack.c.b16 %v2580, %v2578
    %v2651 = vpack.c.b16 %v2583, %v2581
    %v2652 = vpack.c.b16 %v2584, %v2582
    %v2653 = vpack.c.b16 %v2587, %v2585
    %v2654 = vpack.c.b16 %v2588, %v2586
    %v2655 = vpack.c.b16 %v2591, %v2589
    %v2656 = vpack.c.b16 %v2592, %v2590
    %2721 = vmatprep.subr.bf16.mxu0 %v2594
    %2722 = vmatpush1.bf16.msra.mxu0 %v2593
    %2723 = vmatprep.subr.bf16.mxu0 %v2596
    %2724 = vmatpush1.bf16.msra.mxu0 %v2595
    %2725 = vmatprep.subr.bf16.mxu0 %v2598
    %2726 = vmatpush1.bf16.msra.mxu0 %v2597
    %2727 = vmatprep.subr.bf16.mxu0 %v2600
    %2728 = vmatpush1.bf16.msra.mxu0 %v2599
    %2729 = vmatprep.subr.bf16.mxu0 %v2602
    %2730 = vmatpush1.bf16.msra.mxu0 %v2601
    %2731 = vmatprep.subr.bf16.mxu0 %v2604
    %2732 = vmatpush1.bf16.msra.mxu0 %v2603
    %2733 = vmatprep.subr.bf16.mxu0 %v2606
    %2734 = vmatpush1.bf16.msra.mxu0 %v2605
    %2735 = vmatprep.subr.bf16.mxu0 %v2608
    %2736 = vmatpush1.bf16.msra.mxu0 %v2607
    %2737 = vmatprep.subr.bf16.mxu0 %v2610
    %2738 = vmatpush1.bf16.msra.mxu0 %v2609
    %2739 = vmatprep.subr.bf16.mxu0 %v2612
    %2740 = vmatpush1.bf16.msra.mxu0 %v2611
    %2741 = vmatprep.subr.bf16.mxu0 %v2614
    %2742 = vmatpush1.bf16.msra.mxu0 %v2613
    %2743 = vmatprep.subr.bf16.mxu0 %v2616
    %2744 = vmatpush1.bf16.msra.mxu0 %v2615
    %2745 = vmatprep.subr.bf16.mxu0 %v2618
    %2746 = vmatpush1.bf16.msra.mxu0 %v2617
    %2747 = vmatprep.subr.bf16.mxu0 %v2620
    %2748 = vmatpush1.bf16.msra.mxu0 %v2619
    %2749 = vmatprep.subr.bf16.mxu0 %v2622
    %2750 = vmatpush1.bf16.msra.mxu0 %v2621
    %2751 = vmatprep.subr.bf16.mxu0 %v2624
    %2752 = vmatpush1.bf16.msra.mxu0 %v2623
    %2753 = vmatprep.mubr.bf16.mxu0 %v2394
    %2754 = vmatmul.mubr.bf16.gmra.mrb[0].mxu0 %v2393
    %v2755 = vpop.f32.mrb[0].mxu0
    %v2756 = vadd.f32 0.0, %v2755
    %v2757 = vpop.f32.mrb[0].mxu0
    %v2758 = vadd.f32 0.0, %v2757
    %v2759 = vpop.f32.mrb[0].mxu0
    %v2760 = vadd.f32 0.0, %v2759
    %v2761 = vpop.f32.mrb[0].mxu0
    %v2762 = vadd.f32 0.0, %v2761
    %2763 = vmatprep.mubr.bf16.mxu0 %v2398
    %2764 = vmatmul.mubr.bf16.gmra.mrb[0].mxu0 %v2397
    %v2765 = vpop.f32.mrb[0].mxu0
    %v2766 = vadd.f32 0.0, %v2765
    %v2767 = vpop.f32.mrb[0].mxu0
    %v2768 = vadd.f32 0.0, %v2767
    %v2769 = vpop.f32.mrb[0].mxu0
    %v2770 = vadd.f32 0.0, %v2769
    %v2771 = vpop.f32.mrb[0].mxu0
    %v2772 = vadd.f32 0.0, %v2771
    %2773 = vdwg.mxu0
    %2774 = vmatprep.subr.bf16.mxu0 %v2626
    %2775 = vmatpush1.bf16.msra.mxu0 %v2625
    %2776 = vmatprep.subr.bf16.mxu0 %v2628
    %2777 = vmatpush1.bf16.msra.mxu0 %v2627
    %2778 = vmatprep.subr.bf16.mxu0 %v2630
    %2779 = vmatpush1.bf16.msra.mxu0 %v2629
    %2780 = vmatprep.subr.bf16.mxu0 %v2632
    %2781 = vmatpush1.bf16.msra.mxu0 %v2631
    %2782 = vmatprep.subr.bf16.mxu0 %v2634
    %2783 = vmatpush1.bf16.msra.mxu0 %v2633
    %2784 = vmatprep.subr.bf16.mxu0 %v2636
    %2785 = vmatpush1.bf16.msra.mxu0 %v2635
    %2786 = vmatprep.subr.bf16.mxu0 %v2638
    %2787 = vmatpush1.bf16.msra.mxu0 %v2637
    %2788 = vmatprep.subr.bf16.mxu0 %v2640
    %2789 = vmatpush1.bf16.msra.mxu0 %v2639
    %2790 = vmatprep.subr.bf16.mxu0 %v2642
    %2791 = vmatpush1.bf16.msra.mxu0 %v2641
    %2792 = vmatprep.subr.bf16.mxu0 %v2644
    %2793 = vmatpush1.bf16.msra.mxu0 %v2643
    %2794 = vmatprep.subr.bf16.mxu0 %v2646
    %2795 = vmatpush1.bf16.msra.mxu0 %v2645
    %2796 = vmatprep.subr.bf16.mxu0 %v2648
    %2797 = vmatpush1.bf16.msra.mxu0 %v2647
    %2798 = vmatprep.subr.bf16.mxu0 %v2650
    %2799 = vmatpush1.bf16.msra.mxu0 %v2649
    %2800 = vmatprep.subr.bf16.mxu0 %v2652
    %2801 = vmatpush1.bf16.msra.mxu0 %v2651
    %2802 = vmatprep.subr.bf16.mxu0 %v2654
    %2803 = vmatpush1.bf16.msra.mxu0 %v2653
    %2804 = vmatprep.subr.bf16.mxu0 %v2656
    %2805 = vmatpush1.bf16.msra.mxu0 %v2655
    %2806 = vmatprep.mubr.bf16.mxu0 %v2396
    %2807 = vmatmul.mubr.bf16.gmra.mrb[0].mxu0 %v2395
    %v2808 = vpop.f32.mrb[0].mxu0
    %v2809 = vadd.f32 %v2756, %v2808
    %v2810 = vpop.f32.mrb[0].mxu0
    %v2811 = vadd.f32 %v2758, %v2810
    %v2812 = vpop.f32.mrb[0].mxu0
    %v2813 = vadd.f32 %v2760, %v2812
    %v2814 = vpop.f32.mrb[0].mxu0
    %v2815 = vadd.f32 %v2762, %v2814
    %2816 = vmatprep.mubr.bf16.mxu0 %v2400
    %2817 = vmatmul.mubr.bf16.gmra.mrb[0].mxu0 %v2399
    %v2818 = vpop.f32.mrb[0].mxu0
    %v2819 = vadd.f32 %v2766, %v2818
    %v2820 = vpop.f32.mrb[0].mxu0
    %v2821 = vadd.f32 %v2768, %v2820
    %v2822 = vpop.f32.mrb[0].mxu0
    %v2823 = vadd.f32 %v2770, %v2822
    %v2824 = vpop.f32.mrb[0].mxu0
    %v2825 = vadd.f32 %v2772, %v2824
    %2826 = vdwg.mxu0
    %v2891 = vunpack.c.l.b16 %v2045
    %v2892 = vunpack.c.h.b16 %v2045
    %v2893 = vunpack.c.l.b16 %v2046
    %v2894 = vunpack.c.h.b16 %v2046
    %v2895 = vunpack.c.l.b16 %v2047
    %v2896 = vunpack.c.h.b16 %v2047
    %v2897 = vunpack.c.l.b16 %v2048
    %v2898 = vunpack.c.h.b16 %v2048
    %v2899 = vunpack.c.l.b16 %v2049
    %v2900 = vunpack.c.h.b16 %v2049
    %v2901 = vunpack.c.l.b16 %v2050
    %v2902 = vunpack.c.h.b16 %v2050
    %v2903 = vunpack.c.l.b16 %v2051
    %v2904 = vunpack.c.h.b16 %v2051
    %v2905 = vunpack.c.l.b16 %v2052
    %v2906 = vunpack.c.h.b16 %v2052
    %v2907 = vunpack.c.l.b16 %v2053
    %v2908 = vunpack.c.h.b16 %v2053
    %v2909 = vunpack.c.l.b16 %v2054
    %v2910 = vunpack.c.h.b16 %v2054
    %v2911 = vunpack.c.l.b16 %v2055
    %v2912 = vunpack.c.h.b16 %v2055
    %v2913 = vunpack.c.l.b16 %v2056
    %v2914 = vunpack.c.h.b16 %v2056
    %v2915 = vunpack.c.l.b16 %v2057
    %v2916 = vunpack.c.h.b16 %v2057
    %v2917 = vunpack.c.l.b16 %v2058
    %v2918 = vunpack.c.h.b16 %v2058
    %v2919 = vunpack.c.l.b16 %v2059
    %v2920 = vunpack.c.h.b16 %v2059
    %v2921 = vunpack.c.l.b16 %v2060
    %v2922 = vunpack.c.h.b16 %v2060
    %v2923 = vunpack.c.l.b16 %v2061
    %v2924 = vunpack.c.h.b16 %v2061
    %v2925 = vunpack.c.l.b16 %v2062
    %v2926 = vunpack.c.h.b16 %v2062
    %v2927 = vunpack.c.l.b16 %v2063
    %v2928 = vunpack.c.h.b16 %v2063
    %v2929 = vunpack.c.l.b16 %v2064
    %v2930 = vunpack.c.h.b16 %v2064
    %v2931 = vunpack.c.l.b16 %v2065
    %v2932 = vunpack.c.h.b16 %v2065
    %v2933 = vunpack.c.l.b16 %v2066
    %v2934 = vunpack.c.h.b16 %v2066
    %v2935 = vunpack.c.l.b16 %v2067
    %v2936 = vunpack.c.h.b16 %v2067
    %v2937 = vunpack.c.l.b16 %v2068
    %v2938 = vunpack.c.h.b16 %v2068
    %v2939 = vunpack.c.l.b16 %v2069
    %v2940 = vunpack.c.h.b16 %v2069
    %v2941 = vunpack.c.l.b16 %v2070
    %v2942 = vunpack.c.h.b16 %v2070
    %v2943 = vunpack.c.l.b16 %v2071
    %v2944 = vunpack.c.h.b16 %v2071
    %v2945 = vunpack.c.l.b16 %v2072
    %v2946 = vunpack.c.h.b16 %v2072
    %v2947 = vunpack.c.l.b16 %v2073
    %v2948 = vunpack.c.h.b16 %v2073
    %v2949 = vunpack.c.l.b16 %v2074
    %v2950 = vunpack.c.h.b16 %v2074
    %v2951 = vunpack.c.l.b16 %v2075
    %v2952 = vunpack.c.h.b16 %v2075
    %v2953 = vunpack.c.l.b16 %v2076
    %v2954 = vunpack.c.h.b16 %v2076
    %v2955 = vunpack.c.l.b16 %v2077
    %v2956 = vunpack.c.h.b16 %v2077
    %v2957 = vunpack.c.l.b16 %v2078
    %v2958 = vunpack.c.h.b16 %v2078
    %v2959 = vunpack.c.l.b16 %v2079
    %v2960 = vunpack.c.h.b16 %v2079
    %v2961 = vunpack.c.l.b16 %v2080
    %v2962 = vunpack.c.h.b16 %v2080
    %v2963 = vunpack.c.l.b16 %v2081
    %v2964 = vunpack.c.h.b16 %v2081
    %v2965 = vunpack.c.l.b16 %v2082
    %v2966 = vunpack.c.h.b16 %v2082
    %v2967 = vunpack.c.l.b16 %v2083
    %v2968 = vunpack.c.h.b16 %v2083
    %v2969 = vunpack.c.l.b16 %v2084
    %v2970 = vunpack.c.h.b16 %v2084
    %v2971 = vunpack.c.l.b16 %v2085
    %v2972 = vunpack.c.h.b16 %v2085
    %v2973 = vunpack.c.l.b16 %v2086
    %v2974 = vunpack.c.h.b16 %v2086
    %v2975 = vunpack.c.l.b16 %v2087
    %v2976 = vunpack.c.h.b16 %v2087
    %v2977 = vunpack.c.l.b16 %v2088
    %v2978 = vunpack.c.h.b16 %v2088
    %v2979 = vunpack.c.l.b16 %v2089
    %v2980 = vunpack.c.h.b16 %v2089
    %v2981 = vunpack.c.l.b16 %v2090
    %v2982 = vunpack.c.h.b16 %v2090
    %v2983 = vunpack.c.l.b16 %v2091
    %v2984 = vunpack.c.h.b16 %v2091
    %v2985 = vunpack.c.l.b16 %v2092
    %v2986 = vunpack.c.h.b16 %v2092
    %v2987 = vunpack.c.l.b16 %v2093
    %v2988 = vunpack.c.h.b16 %v2093
    %v2989 = vunpack.c.l.b16 %v2094
    %v2990 = vunpack.c.h.b16 %v2094
    %v2991 = vunpack.c.l.b16 %v2095
    %v2992 = vunpack.c.h.b16 %v2095
    %v2993 = vunpack.c.l.b16 %v2096
    %v2994 = vunpack.c.h.b16 %v2096
    %v2995 = vunpack.c.l.b16 %v2097
    %v2996 = vunpack.c.h.b16 %v2097
    %v2997 = vunpack.c.l.b16 %v2098
    %v2998 = vunpack.c.h.b16 %v2098
    %v2999 = vunpack.c.l.b16 %v2099
    %v3000 = vunpack.c.h.b16 %v2099
    %v3001 = vunpack.c.l.b16 %v2100
    %v3002 = vunpack.c.h.b16 %v2100
    %v3003 = vunpack.c.l.b16 %v2101
    %v3004 = vunpack.c.h.b16 %v2101
    %v3005 = vunpack.c.l.b16 %v2102
    %v3006 = vunpack.c.h.b16 %v2102
    %v3007 = vunpack.c.l.b16 %v2103
    %v3008 = vunpack.c.h.b16 %v2103
    %v3009 = vunpack.c.l.b16 %v2104
    %v3010 = vunpack.c.h.b16 %v2104
    %v3011 = vunpack.c.l.b16 %v2105
    %v3012 = vunpack.c.h.b16 %v2105
    %v3013 = vunpack.c.l.b16 %v2106
    %v3014 = vunpack.c.h.b16 %v2106
    %v3015 = vunpack.c.l.b16 %v2107
    %v3016 = vunpack.c.h.b16 %v2107
    %v3017 = vunpack.c.l.b16 %v2108
    %v3018 = vunpack.c.h.b16 %v2108
    %v3019 = vpack.c.b16 %v2893, %v2891
    %v3020 = vpack.c.b16 %v2894, %v2892
    %v3021 = vpack.c.b16 %v2897, %v2895
    %v3022 = vpack.c.b16 %v2898, %v2896
    %v3023 = vpack.c.b16 %v2901, %v2899
    %v3024 = vpack.c.b16 %v2902, %v2900
    %v3025 = vpack.c.b16 %v2905, %v2903
    %v3026 = vpack.c.b16 %v2906, %v2904
    %v3027 = vpack.c.b16 %v2909, %v2907
    %v3028 = vpack.c.b16 %v2910, %v2908
    %v3029 = vpack.c.b16 %v2913, %v2911
    %v3030 = vpack.c.b16 %v2914, %v2912
    %v3031 = vpack.c.b16 %v2917, %v2915
    %v3032 = vpack.c.b16 %v2918, %v2916
    %v3033 = vpack.c.b16 %v2921, %v2919
    %v3034 = vpack.c.b16 %v2922, %v2920
    %v3035 = vpack.c.b16 %v2925, %v2923
    %v3036 = vpack.c.b16 %v2926, %v2924
    %v3037 = vpack.c.b16 %v2929, %v2927
    %v3038 = vpack.c.b16 %v2930, %v2928
    %v3039 = vpack.c.b16 %v2933, %v2931
    %v3040 = vpack.c.b16 %v2934, %v2932
    %v3041 = vpack.c.b16 %v2937, %v2935
    %v3042 = vpack.c.b16 %v2938, %v2936
    %v3043 = vpack.c.b16 %v2941, %v2939
    %v3044 = vpack.c.b16 %v2942, %v2940
    %v3045 = vpack.c.b16 %v2945, %v2943
    %v3046 = vpack.c.b16 %v2946, %v2944
    %v3047 = vpack.c.b16 %v2949, %v2947
    %v3048 = vpack.c.b16 %v2950, %v2948
    %v3049 = vpack.c.b16 %v2953, %v2951
    %v3050 = vpack.c.b16 %v2954, %v2952
    %v3051 = vpack.c.b16 %v2957, %v2955
    %v3052 = vpack.c.b16 %v2958, %v2956
    %v3053 = vpack.c.b16 %v2961, %v2959
    %v3054 = vpack.c.b16 %v2962, %v2960
    %v3055 = vpack.c.b16 %v2965, %v2963
    %v3056 = vpack.c.b16 %v2966, %v2964
    %v3057 = vpack.c.b16 %v2969, %v2967
    %v3058 = vpack.c.b16 %v2970, %v2968
    %v3059 = vpack.c.b16 %v2973, %v2971
    %v3060 = vpack.c.b16 %v2974, %v2972
    %v3061 = vpack.c.b16 %v2977, %v2975
    %v3062 = vpack.c.b16 %v2978, %v2976
    %v3063 = vpack.c.b16 %v2981, %v2979
    %v3064 = vpack.c.b16 %v2982, %v2980
    %v3065 = vpack.c.b16 %v2985, %v2983
    %v3066 = vpack.c.b16 %v2986, %v2984
    %v3067 = vpack.c.b16 %v2989, %v2987
    %v3068 = vpack.c.b16 %v2990, %v2988
    %v3069 = vpack.c.b16 %v2993, %v2991
    %v3070 = vpack.c.b16 %v2994, %v2992
    %v3071 = vpack.c.b16 %v2997, %v2995
    %v3072 = vpack.c.b16 %v2998, %v2996
    %v3073 = vpack.c.b16 %v3001, %v2999
    %v3074 = vpack.c.b16 %v3002, %v3000
    %v3075 = vpack.c.b16 %v3005, %v3003
    %v3076 = vpack.c.b16 %v3006, %v3004
    %v3077 = vpack.c.b16 %v3009, %v3007
    %v3078 = vpack.c.b16 %v3010, %v3008
    %v3079 = vpack.c.b16 %v3013, %v3011
    %v3080 = vpack.c.b16 %v3014, %v3012
    %v3081 = vpack.c.b16 %v3017, %v3015
    %v3082 = vpack.c.b16 %v3018, %v3016
    %3147 = vmatprep.subr.bf16.mxu0 %v3020
    %3148 = vmatpush1.bf16.msra.mxu0 %v3019
    %3149 = vmatprep.subr.bf16.mxu0 %v3022
    %3150 = vmatpush1.bf16.msra.mxu0 %v3021
    %3151 = vmatprep.subr.bf16.mxu0 %v3024
    %3152 = vmatpush1.bf16.msra.mxu0 %v3023
    %3153 = vmatprep.subr.bf16.mxu0 %v3026
    %3154 = vmatpush1.bf16.msra.mxu0 %v3025
    %3155 = vmatprep.subr.bf16.mxu0 %v3028
    %3156 = vmatpush1.bf16.msra.mxu0 %v3027
    %3157 = vmatprep.subr.bf16.mxu0 %v3030
    %3158 = vmatpush1.bf16.msra.mxu0 %v3029
    %3159 = vmatprep.subr.bf16.mxu0 %v3032
    %3160 = vmatpush1.bf16.msra.mxu0 %v3031
    %3161 = vmatprep.subr.bf16.mxu0 %v3034
    %3162 = vmatpush1.bf16.msra.mxu0 %v3033
    %3163 = vmatprep.subr.bf16.mxu0 %v3036
    %3164 = vmatpush1.bf16.msra.mxu0 %v3035
    %3165 = vmatprep.subr.bf16.mxu0 %v3038
    %3166 = vmatpush1.bf16.msra.mxu0 %v3037
    %3167 = vmatprep.subr.bf16.mxu0 %v3040
    %3168 = vmatpush1.bf16.msra.mxu0 %v3039
    %3169 = vmatprep.subr.bf16.mxu0 %v3042
    %3170 = vmatpush1.bf16.msra.mxu0 %v3041
    %3171 = vmatprep.subr.bf16.mxu0 %v3044
    %3172 = vmatpush1.bf16.msra.mxu0 %v3043
    %3173 = vmatprep.subr.bf16.mxu0 %v3046
    %3174 = vmatpush1.bf16.msra.mxu0 %v3045
    %3175 = vmatprep.subr.bf16.mxu0 %v3048
    %3176 = vmatpush1.bf16.msra.mxu0 %v3047
    %3177 = vmatprep.subr.bf16.mxu0 %v3050
    %3178 = vmatpush1.bf16.msra.mxu0 %v3049
    %3179 = vmatprep.mubr.bf16.mxu0 %v2386
    %3180 = vmatmul.mubr.bf16.gmra.mrb[0].mxu0 %v2385
    %v3181 = vpop.f32.mrb[0].mxu0
    %v3182 = vadd.f32 %v2809, %v3181
    %v3183 = vpop.f32.mrb[0].mxu0
    %v3184 = vadd.f32 %v2811, %v3183
    %v3185 = vpop.f32.mrb[0].mxu0
    %v3186 = vadd.f32 %v2813, %v3185
    %v3187 = vpop.f32.mrb[0].mxu0
    %v3188 = vadd.f32 %v2815, %v3187
    %3189 = vmatprep.mubr.bf16.mxu0 %v2390
    %3190 = vmatmul.mubr.bf16.gmra.mrb[0].mxu0 %v2389
    %v3191 = vpop.f32.mrb[0].mxu0
    %v3192 = vadd.f32 %v2819, %v3191
    %v3193 = vpop.f32.mrb[0].mxu0
    %v3194 = vadd.f32 %v2821, %v3193
    %v3195 = vpop.f32.mrb[0].mxu0
    %v3196 = vadd.f32 %v2823, %v3195
    %v3197 = vpop.f32.mrb[0].mxu0
    %v3198 = vadd.f32 %v2825, %v3197
    %3199 = vdwg.mxu0
    %3200 = vmatprep.subr.bf16.mxu0 %v3052
    %3201 = vmatpush1.bf16.msra.mxu0 %v3051
    %3202 = vmatprep.subr.bf16.mxu0 %v3054
    %3203 = vmatpush1.bf16.msra.mxu0 %v3053
    %3204 = vmatprep.subr.bf16.mxu0 %v3056
    %3205 = vmatpush1.bf16.msra.mxu0 %v3055
    %3206 = vmatprep.subr.bf16.mxu0 %v3058
    %3207 = vmatpush1.bf16.msra.mxu0 %v3057
    %3208 = vmatprep.subr.bf16.mxu0 %v3060
    %3209 = vmatpush1.bf16.msra.mxu0 %v3059
    %3210 = vmatprep.subr.bf16.mxu0 %v3062
    %3211 = vmatpush1.bf16.msra.mxu0 %v3061
    %3212 = vmatprep.subr.bf16.mxu0 %v3064
    %3213 = vmatpush1.bf16.msra.mxu0 %v3063
    %3214 = vmatprep.subr.bf16.mxu0 %v3066
    %3215 = vmatpush1.bf16.msra.mxu0 %v3065
    %3216 = vmatprep.subr.bf16.mxu0 %v3068
    %3217 = vmatpush1.bf16.msra.mxu0 %v3067
    %3218 = vmatprep.subr.bf16.mxu0 %v3070
    %3219 = vmatpush1.bf16.msra.mxu0 %v3069
    %3220 = vmatprep.subr.bf16.mxu0 %v3072
    %3221 = vmatpush1.bf16.msra.mxu0 %v3071
    %3222 = vmatprep.subr.bf16.mxu0 %v3074
    %3223 = vmatpush1.bf16.msra.mxu0 %v3073
    %3224 = vmatprep.subr.bf16.mxu0 %v3076
    %3225 = vmatpush1.bf16.msra.mxu0 %v3075
    %3226 = vmatprep.subr.bf16.mxu0 %v3078
    %3227 = vmatpush1.bf16.msra.mxu0 %v3077
    %3228 = vmatprep.subr.bf16.mxu0 %v3080
    %3229 = vmatpush1.bf16.msra.mxu0 %v3079
    %3230 = vmatprep.subr.bf16.mxu0 %v3082
    %3231 = vmatpush1.bf16.msra.mxu0 %v3081
    %3232 = vmatprep.mubr.bf16.mxu0 %v2388
    %3233 = vmatmul.mubr.bf16.gmra.mrb[0].mxu0 %v2387
    %v3234 = vpop.f32.mrb[0].mxu0
    %v3235 = vadd.f32 %v3182, %v3234
    %v3236 = vpop.f32.mrb[0].mxu0
    %v3237 = vadd.f32 %v3184, %v3236
    %v3238 = vpop.f32.mrb[0].mxu0
    %v3239 = vadd.f32 %v3186, %v3238
    %v3240 = vpop.f32.mrb[0].mxu0
    %v3241 = vadd.f32 %v3188, %v3240
    %3242 = vmatprep.mubr.bf16.mxu0 %v2392
    %3243 = vmatmul.mubr.bf16.gmra.mrb[0].mxu0 %v2391
    %v3244 = vpop.f32.mrb[0].mxu0
    %v3245 = vadd.f32 %v3192, %v3244
    %v3246 = vpop.f32.mrb[0].mxu0
    %v3247 = vadd.f32 %v3194, %v3246
    %v3248 = vpop.f32.mrb[0].mxu0
    %v3249 = vadd.f32 %v3196, %v3248
    %v3250 = vpop.f32.mrb[0].mxu0
    %v3251 = vadd.f32 %v3198, %v3250
    %3252 = vdwg.mxu0
    %v3254 = vlaneseq
    %v3255 = vshrl.u32 %v3254, 7
    %v3256 = vsub.s32 0, %v3255
    %v3257 = vrot.slane %v1979, %v3256
    %v3258 = vlaneseq
    %v3259 = vshrl.u32 %v3258, 7
    %v3260 = vsub.s32 1, %v3259
    %v3261 = vrot.slane %v1979, %v3260
    %v3264 = vadd.f32 %v3235, %v3257
    %v3265 = vadd.f32 %v3237, %v3261
    %v3266 = vadd.f32 %v3239, %v3257
    %v3267 = vadd.f32 %v3241, %v3261
    %v3268 = vadd.f32 %v3245, %v3257
    %v3269 = vadd.f32 %v3247, %v3261
    %v3270 = vadd.f32 %v3249, %v3257
    %v3271 = vadd.f32 %v3251, %v3261
    %v3272 = vpack.c.bf16 %v2373, %v2369
    %v3273 = vpack.c.bf16 %v2374, %v2370
    %v3274 = vpack.c.bf16 %v2375, %v2371
    %v3275 = vpack.c.bf16 %v2376, %v2372
    %v3276 = vpack.c.bf16 %v2381, %v2377
    %v3277 = vpack.c.bf16 %v2382, %v2378
    %v3278 = vpack.c.bf16 %v2383, %v2379
    %v3279 = vpack.c.bf16 %v2384, %v2380
    %v3344 = vunpack.c.l.b16 %v2110
    %v3345 = vunpack.c.h.b16 %v2110
    %v3346 = vunpack.c.l.b16 %v2111
    %v3347 = vunpack.c.h.b16 %v2111
    %v3348 = vunpack.c.l.b16 %v2112
    %v3349 = vunpack.c.h.b16 %v2112
    %v3350 = vunpack.c.l.b16 %v2113
    %v3351 = vunpack.c.h.b16 %v2113
    %v3352 = vunpack.c.l.b16 %v2114
    %v3353 = vunpack.c.h.b16 %v2114
    %v3354 = vunpack.c.l.b16 %v2115
    %v3355 = vunpack.c.h.b16 %v2115
    %v3356 = vunpack.c.l.b16 %v2116
    %v3357 = vunpack.c.h.b16 %v2116
    %v3358 = vunpack.c.l.b16 %v2117
    %v3359 = vunpack.c.h.b16 %v2117
    %v3360 = vunpack.c.l.b16 %v2118
    %v3361 = vunpack.c.h.b16 %v2118
    %v3362 = vunpack.c.l.b16 %v2119
    %v3363 = vunpack.c.h.b16 %v2119
    %v3364 = vunpack.c.l.b16 %v2120
    %v3365 = vunpack.c.h.b16 %v2120
    %v3366 = vunpack.c.l.b16 %v2121
    %v3367 = vunpack.c.h.b16 %v2121
    %v3368 = vunpack.c.l.b16 %v2122
    %v3369 = vunpack.c.h.b16 %v2122
    %v3370 = vunpack.c.l.b16 %v2123
    %v3371 = vunpack.c.h.b16 %v2123
    %v3372 = vunpack.c.l.b16 %v2124
    %v3373 = vunpack.c.h.b16 %v2124
    %v3374 = vunpack.c.l.b16 %v2125
    %v3375 = vunpack.c.h.b16 %v2125
    %v3376 = vunpack.c.l.b16 %v2126
    %v3377 = vunpack.c.h.b16 %v2126
    %v3378 = vunpack.c.l.b16 %v2127
    %v3379 = vunpack.c.h.b16 %v2127
    %v3380 = vunpack.c.l.b16 %v2128
    %v3381 = vunpack.c.h.b16 %v2128
    %v3382 = vunpack.c.l.b16 %v2129
    %v3383 = vunpack.c.h.b16 %v2129
    %v3384 = vunpack.c.l.b16 %v2130
    %v3385 = vunpack.c.h.b16 %v2130
    %v3386 = vunpack.c.l.b16 %v2131
    %v3387 = vunpack.c.h.b16 %v2131
    %v3388 = vunpack.c.l.b16 %v2132
    %v3389 = vunpack.c.h.b16 %v2132
    %v3390 = vunpack.c.l.b16 %v2133
    %v3391 = vunpack.c.h.b16 %v2133
    %v3392 = vunpack.c.l.b16 %v2134
    %v3393 = vunpack.c.h.b16 %v2134
    %v3394 = vunpack.c.l.b16 %v2135
    %v3395 = vunpack.c.h.b16 %v2135
    %v3396 = vunpack.c.l.b16 %v2136
    %v3397 = vunpack.c.h.b16 %v2136
    %v3398 = vunpack.c.l.b16 %v2137
    %v3399 = vunpack.c.h.b16 %v2137
    %v3400 = vunpack.c.l.b16 %v2138
    %v3401 = vunpack.c.h.b16 %v2138
    %v3402 = vunpack.c.l.b16 %v2139
    %v3403 = vunpack.c.h.b16 %v2139
    %v3404 = vunpack.c.l.b16 %v2140
    %v3405 = vunpack.c.h.b16 %v2140
    %v3406 = vunpack.c.l.b16 %v2141
    %v3407 = vunpack.c.h.b16 %v2141
    %v3408 = vunpack.c.l.b16 %v2142
    %v3409 = vunpack.c.h.b16 %v2142
    %v3410 = vunpack.c.l.b16 %v2143
    %v3411 = vunpack.c.h.b16 %v2143
    %v3412 = vunpack.c.l.b16 %v2144
    %v3413 = vunpack.c.h.b16 %v2144
    %v3414 = vunpack.c.l.b16 %v2145
    %v3415 = vunpack.c.h.b16 %v2145
    %v3416 = vunpack.c.l.b16 %v2146
    %v3417 = vunpack.c.h.b16 %v2146
    %v3418 = vunpack.c.l.b16 %v2147
    %v3419 = vunpack.c.h.b16 %v2147
    %v3420 = vunpack.c.l.b16 %v2148
    %v3421 = vunpack.c.h.b16 %v2148
    %v3422 = vunpack.c.l.b16 %v2149
    %v3423 = vunpack.c.h.b16 %v2149
    %v3424 = vunpack.c.l.b16 %v2150
    %v3425 = vunpack.c.h.b16 %v2150
    %v3426 = vunpack.c.l.b16 %v2151
    %v3427 = vunpack.c.h.b16 %v2151
    %v3428 = vunpack.c.l.b16 %v2152
    %v3429 = vunpack.c.h.b16 %v2152
    %v3430 = vunpack.c.l.b16 %v2153
    %v3431 = vunpack.c.h.b16 %v2153
    %v3432 = vunpack.c.l.b16 %v2154
    %v3433 = vunpack.c.h.b16 %v2154
    %v3434 = vunpack.c.l.b16 %v2155
    %v3435 = vunpack.c.h.b16 %v2155
    %v3436 = vunpack.c.l.b16 %v2156
    %v3437 = vunpack.c.h.b16 %v2156
    %v3438 = vunpack.c.l.b16 %v2157
    %v3439 = vunpack.c.h.b16 %v2157
    %v3440 = vunpack.c.l.b16 %v2158
    %v3441 = vunpack.c.h.b16 %v2158
    %v3442 = vunpack.c.l.b16 %v2159
    %v3443 = vunpack.c.h.b16 %v2159
    %v3444 = vunpack.c.l.b16 %v2160
    %v3445 = vunpack.c.h.b16 %v2160
    %v3446 = vunpack.c.l.b16 %v2161
    %v3447 = vunpack.c.h.b16 %v2161
    %v3448 = vunpack.c.l.b16 %v2162
    %v3449 = vunpack.c.h.b16 %v2162
    %v3450 = vunpack.c.l.b16 %v2163
    %v3451 = vunpack.c.h.b16 %v2163
    %v3452 = vunpack.c.l.b16 %v2164
    %v3453 = vunpack.c.h.b16 %v2164
    %v3454 = vunpack.c.l.b16 %v2165
    %v3455 = vunpack.c.h.b16 %v2165
    %v3456 = vunpack.c.l.b16 %v2166
    %v3457 = vunpack.c.h.b16 %v2166
    %v3458 = vunpack.c.l.b16 %v2167
    %v3459 = vunpack.c.h.b16 %v2167
    %v3460 = vunpack.c.l.b16 %v2168
    %v3461 = vunpack.c.h.b16 %v2168
    %v3462 = vunpack.c.l.b16 %v2169
    %v3463 = vunpack.c.h.b16 %v2169
    %v3464 = vunpack.c.l.b16 %v2170
    %v3465 = vunpack.c.h.b16 %v2170
    %v3466 = vunpack.c.l.b16 %v2171
    %v3467 = vunpack.c.h.b16 %v2171
    %v3468 = vunpack.c.l.b16 %v2172
    %v3469 = vunpack.c.h.b16 %v2172
    %v3470 = vunpack.c.l.b16 %v2173
    %v3471 = vunpack.c.h.b16 %v2173
    %v3472 = vpack.c.b16 %v3346, %v3344
    %v3473 = vpack.c.b16 %v3347, %v3345
    %v3474 = vpack.c.b16 %v3350, %v3348
    %v3475 = vpack.c.b16 %v3351, %v3349
    %v3476 = vpack.c.b16 %v3354, %v3352
    %v3477 = vpack.c.b16 %v3355, %v3353
    %v3478 = vpack.c.b16 %v3358, %v3356
    %v3479 = vpack.c.b16 %v3359, %v3357
    %v3480 = vpack.c.b16 %v3362, %v3360
    %v3481 = vpack.c.b16 %v3363, %v3361
    %v3482 = vpack.c.b16 %v3366, %v3364
    %v3483 = vpack.c.b16 %v3367, %v3365
    %v3484 = vpack.c.b16 %v3370, %v3368
    %v3485 = vpack.c.b16 %v3371, %v3369
    %v3486 = vpack.c.b16 %v3374, %v3372
    %v3487 = vpack.c.b16 %v3375, %v3373
    %v3488 = vpack.c.b16 %v3378, %v3376
    %v3489 = vpack.c.b16 %v3379, %v3377
    %v3490 = vpack.c.b16 %v3382, %v3380
    %v3491 = vpack.c.b16 %v3383, %v3381
    %v3492 = vpack.c.b16 %v3386, %v3384
    %v3493 = vpack.c.b16 %v3387, %v3385
    %v3494 = vpack.c.b16 %v3390, %v3388
    %v3495 = vpack.c.b16 %v3391, %v3389
    %v3496 = vpack.c.b16 %v3394, %v3392
    %v3497 = vpack.c.b16 %v3395, %v3393
    %v3498 = vpack.c.b16 %v3398, %v3396
    %v3499 = vpack.c.b16 %v3399, %v3397
    %v3500 = vpack.c.b16 %v3402, %v3400
    %v3501 = vpack.c.b16 %v3403, %v3401
    %v3502 = vpack.c.b16 %v3406, %v3404
    %v3503 = vpack.c.b16 %v3407, %v3405
    %v3504 = vpack.c.b16 %v3410, %v3408
    %v3505 = vpack.c.b16 %v3411, %v3409
    %v3506 = vpack.c.b16 %v3414, %v3412
    %v3507 = vpack.c.b16 %v3415, %v3413
    %v3508 = vpack.c.b16 %v3418, %v3416
    %v3509 = vpack.c.b16 %v3419, %v3417
    %v3510 = vpack.c.b16 %v3422, %v3420
    %v3511 = vpack.c.b16 %v3423, %v3421
    %v3512 = vpack.c.b16 %v3426, %v3424
    %v3513 = vpack.c.b16 %v3427, %v3425
    %v3514 = vpack.c.b16 %v3430, %v3428
    %v3515 = vpack.c.b16 %v3431, %v3429
    %v3516 = vpack.c.b16 %v3434, %v3432
    %v3517 = vpack.c.b16 %v3435, %v3433
    %v3518 = vpack.c.b16 %v3438, %v3436
    %v3519 = vpack.c.b16 %v3439, %v3437
    %v3520 = vpack.c.b16 %v3442, %v3440
    %v3521 = vpack.c.b16 %v3443, %v3441
    %v3522 = vpack.c.b16 %v3446, %v3444
    %v3523 = vpack.c.b16 %v3447, %v3445
    %v3524 = vpack.c.b16 %v3450, %v3448
    %v3525 = vpack.c.b16 %v3451, %v3449
    %v3526 = vpack.c.b16 %v3454, %v3452
    %v3527 = vpack.c.b16 %v3455, %v3453
    %v3528 = vpack.c.b16 %v3458, %v3456
    %v3529 = vpack.c.b16 %v3459, %v3457
    %v3530 = vpack.c.b16 %v3462, %v3460
    %v3531 = vpack.c.b16 %v3463, %v3461
    %v3532 = vpack.c.b16 %v3466, %v3464
    %v3533 = vpack.c.b16 %v3467, %v3465
    %v3534 = vpack.c.b16 %v3470, %v3468
    %v3535 = vpack.c.b16 %v3471, %v3469
    %3600 = vmatprep.subr.bf16.mxu0 %v3473
    %3601 = vmatpush1.bf16.msra.mxu0 %v3472
    %3602 = vmatprep.subr.bf16.mxu0 %v3475
    %3603 = vmatpush1.bf16.msra.mxu0 %v3474
    %3604 = vmatprep.subr.bf16.mxu0 %v3477
    %3605 = vmatpush1.bf16.msra.mxu0 %v3476
    %3606 = vmatprep.subr.bf16.mxu0 %v3479
    %3607 = vmatpush1.bf16.msra.mxu0 %v3478
    %3608 = vmatprep.subr.bf16.mxu0 %v3481
    %3609 = vmatpush1.bf16.msra.mxu0 %v3480
    %3610 = vmatprep.subr.bf16.mxu0 %v3483
    %3611 = vmatpush1.bf16.msra.mxu0 %v3482
    %3612 = vmatprep.subr.bf16.mxu0 %v3485
    %3613 = vmatpush1.bf16.msra.mxu0 %v3484
    %3614 = vmatprep.subr.bf16.mxu0 %v3487
    %3615 = vmatpush1.bf16.msra.mxu0 %v3486
    %3616 = vmatprep.subr.bf16.mxu0 %v3489
    %3617 = vmatpush1.bf16.msra.mxu0 %v3488
    %3618 = vmatprep.subr.bf16.mxu0 %v3491
    %3619 = vmatpush1.bf16.msra.mxu0 %v3490
    %3620 = vmatprep.subr.bf16.mxu0 %v3493
    %3621 = vmatpush1.bf16.msra.mxu0 %v3492
    %3622 = vmatprep.subr.bf16.mxu0 %v3495
    %3623 = vmatpush1.bf16.msra.mxu0 %v3494
    %3624 = vmatprep.subr.bf16.mxu0 %v3497
    %3625 = vmatpush1.bf16.msra.mxu0 %v3496
    %3626 = vmatprep.subr.bf16.mxu0 %v3499
    %3627 = vmatpush1.bf16.msra.mxu0 %v3498
    %3628 = vmatprep.subr.bf16.mxu0 %v3501
    %3629 = vmatpush1.bf16.msra.mxu0 %v3500
    %3630 = vmatprep.subr.bf16.mxu0 %v3503
    %3631 = vmatpush1.bf16.msra.mxu0 %v3502
    %3632 = vmatprep.mubr.bf16.mxu0 %v2386
    %3633 = vmatmul.mubr.bf16.gmra.mrb[0].mxu0 %v2385
    %v3634 = vpop.f32.mrb[0].mxu0
    %v3635 = vadd.f32 0.0, %v3634
    %v3636 = vpop.f32.mrb[0].mxu0
    %v3637 = vadd.f32 0.0, %v3636
    %v3638 = vpop.f32.mrb[0].mxu0
    %v3639 = vadd.f32 0.0, %v3638
    %v3640 = vpop.f32.mrb[0].mxu0
    %v3641 = vadd.f32 0.0, %v3640
    %3642 = vmatprep.mubr.bf16.mxu0 %v2390
    %3643 = vmatmul.mubr.bf16.gmra.mrb[0].mxu0 %v2389
    %v3644 = vpop.f32.mrb[0].mxu0
    %v3645 = vadd.f32 0.0, %v3644
    %v3646 = vpop.f32.mrb[0].mxu0
    %v3647 = vadd.f32 0.0, %v3646
    %v3648 = vpop.f32.mrb[0].mxu0
    %v3649 = vadd.f32 0.0, %v3648
    %v3650 = vpop.f32.mrb[0].mxu0
    %v3651 = vadd.f32 0.0, %v3650
    %3652 = vdwg.mxu0
    %3653 = vmatprep.subr.bf16.mxu0 %v3505
    %3654 = vmatpush1.bf16.msra.mxu0 %v3504
    %3655 = vmatprep.subr.bf16.mxu0 %v3507
    %3656 = vmatpush1.bf16.msra.mxu0 %v3506
    %3657 = vmatprep.subr.bf16.mxu0 %v3509
    %3658 = vmatpush1.bf16.msra.mxu0 %v3508
    %3659 = vmatprep.subr.bf16.mxu0 %v3511
    %3660 = vmatpush1.bf16.msra.mxu0 %v3510
    %3661 = vmatprep.subr.bf16.mxu0 %v3513
    %3662 = vmatpush1.bf16.msra.mxu0 %v3512
    %3663 = vmatprep.subr.bf16.mxu0 %v3515
    %3664 = vmatpush1.bf16.msra.mxu0 %v3514
    %3665 = vmatprep.subr.bf16.mxu0 %v3517
    %3666 = vmatpush1.bf16.msra.mxu0 %v3516
    %3667 = vmatprep.subr.bf16.mxu0 %v3519
    %3668 = vmatpush1.bf16.msra.mxu0 %v3518
    %3669 = vmatprep.subr.bf16.mxu0 %v3521
    %3670 = vmatpush1.bf16.msra.mxu0 %v3520
    %3671 = vmatprep.subr.bf16.mxu0 %v3523
    %3672 = vmatpush1.bf16.msra.mxu0 %v3522
    %3673 = vmatprep.subr.bf16.mxu0 %v3525
    %3674 = vmatpush1.bf16.msra.mxu0 %v3524
    %3675 = vmatprep.subr.bf16.mxu0 %v3527
    %3676 = vmatpush1.bf16.msra.mxu0 %v3526
    %3677 = vmatprep.subr.bf16.mxu0 %v3529
    %3678 = vmatpush1.bf16.msra.mxu0 %v3528
    %3679 = vmatprep.subr.bf16.mxu0 %v3531
    %3680 = vmatpush1.bf16.msra.mxu0 %v3530
    %3681 = vmatprep.subr.bf16.mxu0 %v3533
    %3682 = vmatpush1.bf16.msra.mxu0 %v3532
    %3683 = vmatprep.subr.bf16.mxu0 %v3535
    %3684 = vmatpush1.bf16.msra.mxu0 %v3534
    %3685 = vmatprep.mubr.bf16.mxu0 %v2388
    %3686 = vmatmul.mubr.bf16.gmra.mrb[0].mxu0 %v2387
    %v3687 = vpop.f32.mrb[0].mxu0
    %v3688 = vadd.f32 %v3635, %v3687
    %v3689 = vpop.f32.mrb[0].mxu0
    %v3690 = vadd.f32 %v3637, %v3689
    %v3691 = vpop.f32.mrb[0].mxu0
    %v3692 = vadd.f32 %v3639, %v3691
    %v3693 = vpop.f32.mrb[0].mxu0
    %v3694 = vadd.f32 %v3641, %v3693
    %3695 = vmatprep.mubr.bf16.mxu0 %v2392
    %3696 = vmatmul.mubr.bf16.gmra.mrb[0].mxu0 %v2391
    %v3697 = vpop.f32.mrb[0].mxu0
    %v3698 = vadd.f32 %v3645, %v3697
    %v3699 = vpop.f32.mrb[0].mxu0
    %v3700 = vadd.f32 %v3647, %v3699
    %v3701 = vpop.f32.mrb[0].mxu0
    %v3702 = vadd.f32 %v3649, %v3701
    %v3703 = vpop.f32.mrb[0].mxu0
    %v3704 = vadd.f32 %v3651, %v3703
    %3705 = vdwg.mxu0
    %v3770 = vunpack.c.l.b16 %v1980
    %v3771 = vunpack.c.h.b16 %v1980
    %v3772 = vunpack.c.l.b16 %v1981
    %v3773 = vunpack.c.h.b16 %v1981
    %v3774 = vunpack.c.l.b16 %v1982
    %v3775 = vunpack.c.h.b16 %v1982
    %v3776 = vunpack.c.l.b16 %v1983
    %v3777 = vunpack.c.h.b16 %v1983
    %v3778 = vunpack.c.l.b16 %v1984
    %v3779 = vunpack.c.h.b16 %v1984
    %v3780 = vunpack.c.l.b16 %v1985
    %v3781 = vunpack.c.h.b16 %v1985
    %v3782 = vunpack.c.l.b16 %v1986
    %v3783 = vunpack.c.h.b16 %v1986
    %v3784 = vunpack.c.l.b16 %v1987
    %v3785 = vunpack.c.h.b16 %v1987
    %v3786 = vunpack.c.l.b16 %v1988
    %v3787 = vunpack.c.h.b16 %v1988
    %v3788 = vunpack.c.l.b16 %v1989
    %v3789 = vunpack.c.h.b16 %v1989
    %v3790 = vunpack.c.l.b16 %v1990
    %v3791 = vunpack.c.h.b16 %v1990
    %v3792 = vunpack.c.l.b16 %v1991
    %v3793 = vunpack.c.h.b16 %v1991
    %v3794 = vunpack.c.l.b16 %v1992
    %v3795 = vunpack.c.h.b16 %v1992
    %v3796 = vunpack.c.l.b16 %v1993
    %v3797 = vunpack.c.h.b16 %v1993
    %v3798 = vunpack.c.l.b16 %v1994
    %v3799 = vunpack.c.h.b16 %v1994
    %v3800 = vunpack.c.l.b16 %v1995
    %v3801 = vunpack.c.h.b16 %v1995
    %v3802 = vunpack.c.l.b16 %v1996
    %v3803 = vunpack.c.h.b16 %v1996
    %v3804 = vunpack.c.l.b16 %v1997
    %v3805 = vunpack.c.h.b16 %v1997
    %v3806 = vunpack.c.l.b16 %v1998
    %v3807 = vunpack.c.h.b16 %v1998
    %v3808 = vunpack.c.l.b16 %v1999
    %v3809 = vunpack.c.h.b16 %v1999
    %v3810 = vunpack.c.l.b16 %v2000
    %v3811 = vunpack.c.h.b16 %v2000
    %v3812 = vunpack.c.l.b16 %v2001
    %v3813 = vunpack.c.h.b16 %v2001
    %v3814 = vunpack.c.l.b16 %v2002
    %v3815 = vunpack.c.h.b16 %v2002
    %v3816 = vunpack.c.l.b16 %v2003
    %v3817 = vunpack.c.h.b16 %v2003
    %v3818 = vunpack.c.l.b16 %v2004
    %v3819 = vunpack.c.h.b16 %v2004
    %v3820 = vunpack.c.l.b16 %v2005
    %v3821 = vunpack.c.h.b16 %v2005
    %v3822 = vunpack.c.l.b16 %v2006
    %v3823 = vunpack.c.h.b16 %v2006
    %v3824 = vunpack.c.l.b16 %v2007
    %v3825 = vunpack.c.h.b16 %v2007
    %v3826 = vunpack.c.l.b16 %v2008
    %v3827 = vunpack.c.h.b16 %v2008
    %v3828 = vunpack.c.l.b16 %v2009
    %v3829 = vunpack.c.h.b16 %v2009
    %v3830 = vunpack.c.l.b16 %v2010
    %v3831 = vunpack.c.h.b16 %v2010
    %v3832 = vunpack.c.l.b16 %v2011
    %v3833 = vunpack.c.h.b16 %v2011
    %v3834 = vunpack.c.l.b16 %v2012
    %v3835 = vunpack.c.h.b16 %v2012
    %v3836 = vunpack.c.l.b16 %v2013
    %v3837 = vunpack.c.h.b16 %v2013
    %v3838 = vunpack.c.l.b16 %v2014
    %v3839 = vunpack.c.h.b16 %v2014
    %v3840 = vunpack.c.l.b16 %v2015
    %v3841 = vunpack.c.h.b16 %v2015
    %v3842 = vunpack.c.l.b16 %v2016
    %v3843 = vunpack.c.h.b16 %v2016
    %v3844 = vunpack.c.l.b16 %v2017
    %v3845 = vunpack.c.h.b16 %v2017
    %v3846 = vunpack.c.l.b16 %v2018
    %v3847 = vunpack.c.h.b16 %v2018
    %v3848 = vunpack.c.l.b16 %v2019
    %v3849 = vunpack.c.h.b16 %v2019
    %v3850 = vunpack.c.l.b16 %v2020
    %v3851 = vunpack.c.h.b16 %v2020
    %v3852 = vunpack.c.l.b16 %v2021
    %v3853 = vunpack.c.h.b16 %v2021
    %v3854 = vunpack.c.l.b16 %v2022
    %v3855 = vunpack.c.h.b16 %v2022
    %v3856 = vunpack.c.l.b16 %v2023
    %v3857 = vunpack.c.h.b16 %v2023
    %v3858 = vunpack.c.l.b16 %v2024
    %v3859 = vunpack.c.h.b16 %v2024
    %v3860 = vunpack.c.l.b16 %v2025
    %v3861 = vunpack.c.h.b16 %v2025
    %v3862 = vunpack.c.l.b16 %v2026
    %v3863 = vunpack.c.h.b16 %v2026
    %v3864 = vunpack.c.l.b16 %v2027
    %v3865 = vunpack.c.h.b16 %v2027
    %v3866 = vunpack.c.l.b16 %v2028
    %v3867 = vunpack.c.h.b16 %v2028
    %v3868 = vunpack.c.l.b16 %v2029
    %v3869 = vunpack.c.h.b16 %v2029
    %v3870 = vunpack.c.l.b16 %v2030
    %v3871 = vunpack.c.h.b16 %v2030
    %v3872 = vunpack.c.l.b16 %v2031
    %v3873 = vunpack.c.h.b16 %v2031
    %v3874 = vunpack.c.l.b16 %v2032
    %v3875 = vunpack.c.h.b16 %v2032
    %v3876 = vunpack.c.l.b16 %v2033
    %v3877 = vunpack.c.h.b16 %v2033
    %v3878 = vunpack.c.l.b16 %v2034
    %v3879 = vunpack.c.h.b16 %v2034
    %v3880 = vunpack.c.l.b16 %v2035
    %v3881 = vunpack.c.h.b16 %v2035
    %v3882 = vunpack.c.l.b16 %v2036
    %v3883 = vunpack.c.h.b16 %v2036
    %v3884 = vunpack.c.l.b16 %v2037
    %v3885 = vunpack.c.h.b16 %v2037
    %v3886 = vunpack.c.l.b16 %v2038
    %v3887 = vunpack.c.h.b16 %v2038
    %v3888 = vunpack.c.l.b16 %v2039
    %v3889 = vunpack.c.h.b16 %v2039
    %v3890 = vunpack.c.l.b16 %v2040
    %v3891 = vunpack.c.h.b16 %v2040
    %v3892 = vunpack.c.l.b16 %v2041
    %v3893 = vunpack.c.h.b16 %v2041
    %v3894 = vunpack.c.l.b16 %v2042
    %v3895 = vunpack.c.h.b16 %v2042
    %v3896 = vunpack.c.l.b16 %v2043
    %v3897 = vunpack.c.h.b16 %v2043
    %v3898 = vpack.c.b16 %v3772, %v3770
    %v3899 = vpack.c.b16 %v3773, %v3771
    %v3900 = vpack.c.b16 %v3776, %v3774
    %v3901 = vpack.c.b16 %v3777, %v3775
    %v3902 = vpack.c.b16 %v3780, %v3778
    %v3903 = vpack.c.b16 %v3781, %v3779
    %v3904 = vpack.c.b16 %v3784, %v3782
    %v3905 = vpack.c.b16 %v3785, %v3783
    %v3906 = vpack.c.b16 %v3788, %v3786
    %v3907 = vpack.c.b16 %v3789, %v3787
    %v3908 = vpack.c.b16 %v3792, %v3790
    %v3909 = vpack.c.b16 %v3793, %v3791
    %v3910 = vpack.c.b16 %v3796, %v3794
    %v3911 = vpack.c.b16 %v3797, %v3795
    %v3912 = vpack.c.b16 %v3800, %v3798
    %v3913 = vpack.c.b16 %v3801, %v3799
    %v3914 = vpack.c.b16 %v3804, %v3802
    %v3915 = vpack.c.b16 %v3805, %v3803
    %v3916 = vpack.c.b16 %v3808, %v3806
    %v3917 = vpack.c.b16 %v3809, %v3807
    %v3918 = vpack.c.b16 %v3812, %v3810
    %v3919 = vpack.c.b16 %v3813, %v3811
    %v3920 = vpack.c.b16 %v3816, %v3814
    %v3921 = vpack.c.b16 %v3817, %v3815
    %v3922 = vpack.c.b16 %v3820, %v3818
    %v3923 = vpack.c.b16 %v3821, %v3819
    %v3924 = vpack.c.b16 %v3824, %v3822
    %v3925 = vpack.c.b16 %v3825, %v3823
    %v3926 = vpack.c.b16 %v3828, %v3826
    %v3927 = vpack.c.b16 %v3829, %v3827
    %v3928 = vpack.c.b16 %v3832, %v3830
    %v3929 = vpack.c.b16 %v3833, %v3831
    %v3930 = vpack.c.b16 %v3836, %v3834
    %v3931 = vpack.c.b16 %v3837, %v3835
    %v3932 = vpack.c.b16 %v3840, %v3838
    %v3933 = vpack.c.b16 %v3841, %v3839
    %v3934 = vpack.c.b16 %v3844, %v3842
    %v3935 = vpack.c.b16 %v3845, %v3843
    %v3936 = vpack.c.b16 %v3848, %v3846
    %v3937 = vpack.c.b16 %v3849, %v3847
    %v3938 = vpack.c.b16 %v3852, %v3850
    %v3939 = vpack.c.b16 %v3853, %v3851
    %v3940 = vpack.c.b16 %v3856, %v3854
    %v3941 = vpack.c.b16 %v3857, %v3855
    %v3942 = vpack.c.b16 %v3860, %v3858
    %v3943 = vpack.c.b16 %v3861, %v3859
    %v3944 = vpack.c.b16 %v3864, %v3862
    %v3945 = vpack.c.b16 %v3865, %v3863
    %v3946 = vpack.c.b16 %v3868, %v3866
    %v3947 = vpack.c.b16 %v3869, %v3867
    %v3948 = vpack.c.b16 %v3872, %v3870
    %v3949 = vpack.c.b16 %v3873, %v3871
    %v3950 = vpack.c.b16 %v3876, %v3874
    %v3951 = vpack.c.b16 %v3877, %v3875
    %v3952 = vpack.c.b16 %v3880, %v3878
    %v3953 = vpack.c.b16 %v3881, %v3879
    %v3954 = vpack.c.b16 %v3884, %v3882
    %v3955 = vpack.c.b16 %v3885, %v3883
    %v3956 = vpack.c.b16 %v3888, %v3886
    %v3957 = vpack.c.b16 %v3889, %v3887
    %v3958 = vpack.c.b16 %v3892, %v3890
    %v3959 = vpack.c.b16 %v3893, %v3891
    %v3960 = vpack.c.b16 %v3896, %v3894
    %v3961 = vpack.c.b16 %v3897, %v3895
    %4026 = vmatprep.subr.bf16.mxu0 %v3899
    %4027 = vmatpush1.bf16.msra.mxu0 %v3898
    %4028 = vmatprep.subr.bf16.mxu0 %v3901
    %4029 = vmatpush1.bf16.msra.mxu0 %v3900
    %4030 = vmatprep.subr.bf16.mxu0 %v3903
    %4031 = vmatpush1.bf16.msra.mxu0 %v3902
    %4032 = vmatprep.subr.bf16.mxu0 %v3905
    %4033 = vmatpush1.bf16.msra.mxu0 %v3904
    %4034 = vmatprep.subr.bf16.mxu0 %v3907
    %4035 = vmatpush1.bf16.msra.mxu0 %v3906
    %4036 = vmatprep.subr.bf16.mxu0 %v3909
    %4037 = vmatpush1.bf16.msra.mxu0 %v3908
    %4038 = vmatprep.subr.bf16.mxu0 %v3911
    %4039 = vmatpush1.bf16.msra.mxu0 %v3910
    %4040 = vmatprep.subr.bf16.mxu0 %v3913
    %4041 = vmatpush1.bf16.msra.mxu0 %v3912
    %4042 = vmatprep.subr.bf16.mxu0 %v3915
    %4043 = vmatpush1.bf16.msra.mxu0 %v3914
    %4044 = vmatprep.subr.bf16.mxu0 %v3917
    %4045 = vmatpush1.bf16.msra.mxu0 %v3916
    %4046 = vmatprep.subr.bf16.mxu0 %v3919
    %4047 = vmatpush1.bf16.msra.mxu0 %v3918
    %4048 = vmatprep.subr.bf16.mxu0 %v3921
    %4049 = vmatpush1.bf16.msra.mxu0 %v3920
    %4050 = vmatprep.subr.bf16.mxu0 %v3923
    %4051 = vmatpush1.bf16.msra.mxu0 %v3922
    %4052 = vmatprep.subr.bf16.mxu0 %v3925
    %4053 = vmatpush1.bf16.msra.mxu0 %v3924
    %4054 = vmatprep.subr.bf16.mxu0 %v3927
    %4055 = vmatpush1.bf16.msra.mxu0 %v3926
    %4056 = vmatprep.subr.bf16.mxu0 %v3929
    %4057 = vmatpush1.bf16.msra.mxu0 %v3928
    %4058 = vmatprep.mubr.bf16.mxu0 %v3273
    %4059 = vmatmul.mubr.bf16.gmra.mrb[0].mxu0 %v3272
    %v4060 = vpop.f32.mrb[0].mxu0
    %v4061 = vadd.f32 %v3688, %v4060
    %v4062 = vpop.f32.mrb[0].mxu0
    %v4063 = vadd.f32 %v3690, %v4062
    %v4064 = vpop.f32.mrb[0].mxu0
    %v4065 = vadd.f32 %v3692, %v4064
    %v4066 = vpop.f32.mrb[0].mxu0
    %v4067 = vadd.f32 %v3694, %v4066
    %4068 = vmatprep.mubr.bf16.mxu0 %v3277
    %4069 = vmatmul.mubr.bf16.gmra.mrb[0].mxu0 %v3276
    %v4070 = vpop.f32.mrb[0].mxu0
    %v4071 = vadd.f32 %v3698, %v4070
    %v4072 = vpop.f32.mrb[0].mxu0
    %v4073 = vadd.f32 %v3700, %v4072
    %v4074 = vpop.f32.mrb[0].mxu0
    %v4075 = vadd.f32 %v3702, %v4074
    %v4076 = vpop.f32.mrb[0].mxu0
    %v4077 = vadd.f32 %v3704, %v4076
    %4078 = vdwg.mxu0
    %4079 = vmatprep.subr.bf16.mxu0 %v3931
    %4080 = vmatpush1.bf16.msra.mxu0 %v3930
    %4081 = vmatprep.subr.bf16.mxu0 %v3933
    %4082 = vmatpush1.bf16.msra.mxu0 %v3932
    %4083 = vmatprep.subr.bf16.mxu0 %v3935
    %4084 = vmatpush1.bf16.msra.mxu0 %v3934
    %4085 = vmatprep.subr.bf16.mxu0 %v3937
    %4086 = vmatpush1.bf16.msra.mxu0 %v3936
    %4087 = vmatprep.subr.bf16.mxu0 %v3939
    %4088 = vmatpush1.bf16.msra.mxu0 %v3938
    %4089 = vmatprep.subr.bf16.mxu0 %v3941
    %4090 = vmatpush1.bf16.msra.mxu0 %v3940
    %4091 = vmatprep.subr.bf16.mxu0 %v3943
    %4092 = vmatpush1.bf16.msra.mxu0 %v3942
    %4093 = vmatprep.subr.bf16.mxu0 %v3945
    %4094 = vmatpush1.bf16.msra.mxu0 %v3944
    %4095 = vmatprep.subr.bf16.mxu0 %v3947
    %4096 = vmatpush1.bf16.msra.mxu0 %v3946
    %4097 = vmatprep.subr.bf16.mxu0 %v3949
    %4098 = vmatpush1.bf16.msra.mxu0 %v3948
    %4099 = vmatprep.subr.bf16.mxu0 %v3951
    %4100 = vmatpush1.bf16.msra.mxu0 %v3950
    %4101 = vmatprep.subr.bf16.mxu0 %v3953
    %4102 = vmatpush1.bf16.msra.mxu0 %v3952
    %4103 = vmatprep.subr.bf16.mxu0 %v3955
    %4104 = vmatpush1.bf16.msra.mxu0 %v3954
    %4105 = vmatprep.subr.bf16.mxu0 %v3957
    %4106 = vmatpush1.bf16.msra.mxu0 %v3956
    %4107 = vmatprep.subr.bf16.mxu0 %v3959
    %4108 = vmatpush1.bf16.msra.mxu0 %v3958
    %4109 = vmatprep.subr.bf16.mxu0 %v3961
    %4110 = vmatpush1.bf16.msra.mxu0 %v3960
    %4111 = vmatprep.mubr.bf16.mxu0 %v3275
    %4112 = vmatmul.mubr.bf16.gmra.mrb[0].mxu0 %v3274
    %v4113 = vpop.f32.mrb[0].mxu0
    %v4114 = vadd.f32 %v4061, %v4113
    %v4115 = vpop.f32.mrb[0].mxu0
    %v4116 = vadd.f32 %v4063, %v4115
    %v4117 = vpop.f32.mrb[0].mxu0
    %v4118 = vadd.f32 %v4065, %v4117
    %v4119 = vpop.f32.mrb[0].mxu0
    %v4120 = vadd.f32 %v4067, %v4119
    %4121 = vmatprep.mubr.bf16.mxu0 %v3279
    %4122 = vmatmul.mubr.bf16.gmra.mrb[0].mxu0 %v3278
    %v4123 = vpop.f32.mrb[0].mxu0
    %v4124 = vadd.f32 %v4071, %v4123
    %v4125 = vpop.f32.mrb[0].mxu0
    %v4126 = vadd.f32 %v4073, %v4125
    %v4127 = vpop.f32.mrb[0].mxu0
    %v4128 = vadd.f32 %v4075, %v4127
    %v4129 = vpop.f32.mrb[0].mxu0
    %v4130 = vadd.f32 %v4077, %v4129
    %4131 = vdwg.mxu0
    %v4132 = vadd.f32 %v4114, %v3257
    %v4133 = vadd.f32 %v4116, %v3261
    %v4134 = vadd.f32 %v4118, %v3257
    %v4135 = vadd.f32 %v4120, %v3261
    %v4136 = vadd.f32 %v4124, %v3257
    %v4137 = vadd.f32 %v4126, %v3261
    %v4138 = vadd.f32 %v4128, %v3257
    %v4139 = vadd.f32 %v4130, %v3261
    %v4148 = vrot.slane %v4132, 2
    %v4149 = vrot.slane %v4133, 2
    %v4150 = vrot.slane %v4134, 2
    %v4151 = vsel %vm1698, %v4148, %v4150
    %v4152 = vrot.slane %v4135, 2
    %v4153 = vsel %vm1698, %v4149, %v4152
    %v4154 = vrot.slane %v4136, 2
    %v4155 = vsel %vm1698, %v4150, %v4154
    %v4156 = vrot.slane %v4137, 2
    %v4157 = vsel %vm1698, %v4152, %v4156
    %v4158 = vrot.slane %v4138, 2
    %v4159 = vsel %vm1698, %v4154, %v4158
    %v4160 = vrot.slane %v4139, 2
    %v4161 = vsel %vm1698, %v4156, %v4160
    %v4172 = vsel %vm1698, %v3270, %v4148
    %v4173 = vsel %vm1698, %v3271, %v4149
    %v4174 = vld [vmem:[%s7] sm:$0x3]
    %v4175 = vld [vmem:[%s8] sm:$0x3]
    %v4176 = vadd.f32 %v3264, %v3266
    %v4177 = vadd.f32 %v4176, %v3268
    %v4178 = vadd.f32 %v4177, %v4172
    %v4179 = vadd.f32 %v4178, %v4151
    %v4180 = vadd.f32 %v4179, %v4155
    %v4181 = vadd.f32 %v4180, %v4159
    %vm4182 = vcmask 1043456
    %v4183 = vsel %vm4182, %v4158, 0.0
    %v4184 = vadd.f32 %v4181, %v4183
    %v4185 = vrot.slane %v4184, 4
    %v4186 = vadd.f32 %v4184, %v4185
    %v4187 = vrot.slane %v4186, 2
    %v4188 = vadd.f32 %v4186, %v4187
    %v4189 = vrot.slane %v4188, 1
    %v4190 = vadd.f32 %v4188, %v4189
    %v4191 = vadd.f32 %v3265, %v3267
    %v4192 = vadd.f32 %v4191, %v3269
    %v4193 = vadd.f32 %v4192, %v4173
    %v4194 = vadd.f32 %v4193, %v4153
    %v4195 = vadd.f32 %v4194, %v4157
    %v4196 = vadd.f32 %v4195, %v4161
    %v4197 = vsel %vm4182, %v4160, 0.0
    %v4198 = vadd.f32 %v4196, %v4197
    %v4199 = vrot.slane %v4198, 4
    %v4200 = vadd.f32 %v4198, %v4199
    %v4201 = vrot.slane %v4200, 2
    %v4202 = vadd.f32 %v4200, %v4201
    %v4203 = vrot.slane %v4202, 1
    %v4204 = vadd.f32 %v4202, %v4203
    %v4205 = vmul.f32 %v4190, 0.016666668
    %v4206 = vmul.f32 %v4204, 0.016666668
    %v4207 = vsub.f32 %v3264, %v4205
    %v4208 = vsub.f32 %v3265, %v4206
    %v4209 = vsub.f32 %v3266, %v4205
    %v4210 = vsub.f32 %v3267, %v4206
    %v4211 = vsub.f32 %v3268, %v4205
    %v4212 = vsub.f32 %v3269, %v4206
    %v4213 = vsub.f32 %v4172, %v4205
    %v4214 = vsub.f32 %v4173, %v4206
    %v4215 = vsub.f32 %v4151, %v4205
    %v4216 = vsub.f32 %v4153, %v4206
    %v4217 = vsub.f32 %v4155, %v4205
    %v4218 = vsub.f32 %v4157, %v4206
    %v4219 = vsub.f32 %v4159, %v4205
    %v4220 = vsub.f32 %v4161, %v4206
    %v4221 = vsub.f32 %v4158, %v4205
    %v4222 = vsub.f32 %v4160, %v4206
    %v4223 = vmul.f32 %v4207, %v4207
    %v4224 = vmul.f32 %v4208, %v4208
    %v4225 = vmul.f32 %v4209, %v4209
    %v4226 = vmul.f32 %v4210, %v4210
    %v4227 = vmul.f32 %v4211, %v4211
    %v4228 = vmul.f32 %v4212, %v4212
    %v4229 = vmul.f32 %v4213, %v4213
    %v4230 = vmul.f32 %v4214, %v4214
    %v4231 = vmul.f32 %v4215, %v4215
    %v4232 = vmul.f32 %v4216, %v4216
    %v4233 = vmul.f32 %v4217, %v4217
    %v4234 = vmul.f32 %v4218, %v4218
    %v4235 = vmul.f32 %v4219, %v4219
    %v4236 = vmul.f32 %v4220, %v4220
    %v4237 = vmul.f32 %v4221, %v4221
    %v4238 = vmul.f32 %v4222, %v4222
    %v4239 = vadd.f32 %v4223, %v4225
    %v4240 = vadd.f32 %v4239, %v4227
    %v4241 = vadd.f32 %v4240, %v4229
    %v4242 = vadd.f32 %v4241, %v4231
    %v4243 = vadd.f32 %v4242, %v4233
    %v4244 = vadd.f32 %v4243, %v4235
    %v4245 = vsel %vm4182, %v4237, 0.0
    %v4246 = vadd.f32 %v4244, %v4245
    %v4247 = vrot.slane %v4246, 4
    %v4248 = vadd.f32 %v4246, %v4247
    %v4249 = vrot.slane %v4248, 2
    %v4250 = vadd.f32 %v4248, %v4249
    %v4251 = vrot.slane %v4250, 1
    %v4252 = vadd.f32 %v4250, %v4251
    %v4253 = vadd.f32 %v4224, %v4226
    %v4254 = vadd.f32 %v4253, %v4228
    %v4255 = vadd.f32 %v4254, %v4230
    %v4256 = vadd.f32 %v4255, %v4232
    %v4257 = vadd.f32 %v4256, %v4234
    %v4258 = vadd.f32 %v4257, %v4236
    %v4259 = vsel %vm4182, %v4238, 0.0
    %v4260 = vadd.f32 %v4258, %v4259
    %v4261 = vrot.slane %v4260, 4
    %v4262 = vadd.f32 %v4260, %v4261
    %v4263 = vrot.slane %v4262, 2
    %v4264 = vadd.f32 %v4262, %v4263
    %v4265 = vrot.slane %v4264, 1
    %v4266 = vadd.f32 %v4264, %v4265
    %v4267 = vmul.f32 %v4252, 0.016666668
    %v4268 = vmul.f32 %v4266, 0.016666668
    %v4269 = vadd.f32 %v4267, 1e-05
    %v4270 = vadd.f32 %v4268, 1e-05
    %v4271 = vrsqrt.pop %v4269
    %v4272 = vrsqrt.pop %v4270
    %v4275 = vcombine.low %v4271, %v4272
    %v4277 = vunpack.c.l.s4 1966171168
    %v4278 = vunpack.c.0.s8 %v4277
    %v4279 = vlaneseq
    %v4280 = vshrl.u32 %v4279, 7
    %v4281 = vsub.s32 %v4278, %v4280
    %v4282 = vrot.slane %v4275, %v4281
    %v4284 = vunpack.c.l.s4 1966171168
    %v4285 = vunpack.c.0.s8 %v4284
    %v4286 = vlaneseq
    %v4287 = vshrl.u32 %v4286, 7
    %v4288 = vsub.s32 %v4285, %v4287
    %v4289 = vrot.slane %v4282, %v4288
    %v4291 = vmul.f32 %v4174, %v4289
    %v4293 = vlaneseq
    %v4294 = vshrl.u32 %v4293, 7
    %v4295 = vsub.s32 0, %v4294
    %v4296 = vrot.slane %v4291, %v4295
    %v4297 = vlaneseq
    %v4298 = vshrl.u32 %v4297, 7
    %v4299 = vsub.s32 1, %v4298
    %v4300 = vrot.slane %v4291, %v4299
    %v4303 = vmul.f32 %v4205, %v4296
    %v4304 = vmul.f32 %v4206, %v4300
    %v4307 = vcombine.low %v4303, %v4304
    %v4309 = vunpack.c.l.s4 1966171168
    %v4310 = vunpack.c.0.s8 %v4309
    %v4311 = vlaneseq
    %v4312 = vshrl.u32 %v4311, 7
    %v4313 = vsub.s32 %v4310, %v4312
    %v4314 = vrot.slane %v4307, %v4313
    %v4316 = vunpack.c.l.s4 1966171168
    %v4317 = vunpack.c.0.s8 %v4316
    %v4318 = vlaneseq
    %v4319 = vshrl.u32 %v4318, 7
    %v4320 = vsub.s32 %v4317, %v4319
    %v4321 = vrot.slane %v4314, %v4320
    %v4323 = vsub.f32 %v4175, %v4321
    %v4324 = vmul.f32 %v3264, %v4296
    %v4325 = vmul.f32 %v3265, %v4300
    %v4326 = vmul.f32 %v3266, %v4296
    %v4327 = vmul.f32 %v3267, %v4300
    %v4328 = vmul.f32 %v3268, %v4296
    %v4329 = vmul.f32 %v3269, %v4300
    %v4330 = vmul.f32 %v4172, %v4296
    %v4331 = vmul.f32 %v4173, %v4300
    %v4332 = vmul.f32 %v4151, %v4296
    %v4333 = vmul.f32 %v4153, %v4300
    %v4334 = vmul.f32 %v4155, %v4296
    %v4335 = vmul.f32 %v4157, %v4300
    %v4336 = vmul.f32 %v4159, %v4296
    %v4337 = vmul.f32 %v4161, %v4300
    %v4338 = vmul.f32 %v4158, %v4296
    %v4339 = vmul.f32 %v4160, %v4300
    %v4341 = vlaneseq
    %v4342 = vshrl.u32 %v4341, 7
    %v4343 = vsub.s32 0, %v4342
    %v4344 = vrot.slane %v4323, %v4343
    %v4345 = vlaneseq
    %v4346 = vshrl.u32 %v4345, 7
    %v4347 = vsub.s32 1, %v4346
    %v4348 = vrot.slane %v4323, %v4347
    %v4351 = vadd.f32 %v4324, %v4344
    %v4352 = vadd.f32 %v4325, %v4348
    %v4353 = vadd.f32 %v4326, %v4344
    %v4354 = vadd.f32 %v4327, %v4348
    %v4355 = vadd.f32 %v4328, %v4344
    %v4356 = vadd.f32 %v4329, %v4348
    %v4357 = vadd.f32 %v4330, %v4344
    %v4358 = vadd.f32 %v4331, %v4348
    %v4359 = vadd.f32 %v4332, %v4344
    %v4360 = vadd.f32 %v4333, %v4348
    %v4361 = vadd.f32 %v4334, %v4344
    %v4362 = vadd.f32 %v4335, %v4348
    %v4363 = vadd.f32 %v4336, %v4344
    %v4364 = vadd.f32 %v4337, %v4348
    %v4365 = vadd.f32 %v4338, %v4344
    %v4366 = vadd.f32 %v4339, %v4348
    %v4367 = vmax.f32 %v4351, 0.0
    %v4368 = vmax.f32 %v4352, 0.0
    %v4369 = vmax.f32 %v4353, 0.0
    %v4370 = vmax.f32 %v4354, 0.0
    %v4371 = vmax.f32 %v4355, 0.0
    %v4372 = vmax.f32 %v4356, 0.0
    %v4373 = vmax.f32 %v4357, 0.0
    %v4374 = vmax.f32 %v4358, 0.0
    %v4375 = vmax.f32 %v4359, 0.0
    %v4376 = vmax.f32 %v4360, 0.0
    %v4377 = vmax.f32 %v4361, 0.0
    %v4378 = vmax.f32 %v4362, 0.0
    %v4379 = vmax.f32 %v4363, 0.0
    %v4380 = vmax.f32 %v4364, 0.0
    %v4381 = vmax.f32 %v4365, 0.0
    %v4382 = vmax.f32 %v4366, 0.0
    %v4383 = vld [vmem:[%s10] sm:$0x1]
    %v4384 = vld [vmem:[%s9] sm:$0xf]
    %v4385 = vld [vmem:[%s9 + $0x4] sm:$0xf]
    %v4386 = vld [vmem:[%s9 + $0x8] sm:$0xf]
    %v4387 = vld [vmem:[%s9 + $0xc] sm:$0xf]
    %v4388 = vld [vmem:[%s9 + $0x10] sm:$0xf]
    %v4389 = vld [vmem:[%s9 + $0x14] sm:$0xf]
    %v4390 = vld [vmem:[%s9 + $0x18] sm:$0xf]
    %v4391 = vld [vmem:[%s9 + $0x1c] sm:$0xf]
    %v4392 = vld [vmem:[%s9 + $0x20] sm:$0xf]
    %v4393 = vld [vmem:[%s9 + $0x24] sm:$0xf]
    %v4394 = vld [vmem:[%s9 + $0x28] sm:$0xf]
    %v4395 = vld [vmem:[%s9 + $0x2c] sm:$0xf]
    %v4396 = vld [vmem:[%s9 + $0x30] sm:$0xf]
    %v4397 = vld [vmem:[%s9 + $0x34] sm:$0xf]
    %v4398 = vld [vmem:[%s9 + $0x38] sm:$0xf]
    %v4399 = vld [vmem:[%s9 + $0x3c] sm:$0xf]
    %v4400 = vld [vmem:[%s9 + $0x40] sm:$0xf]
    %v4401 = vld [vmem:[%s9 + $0x44] sm:$0xf]
    %v4402 = vld [vmem:[%s9 + $0x48] sm:$0xf]
    %v4403 = vld [vmem:[%s9 + $0x4c] sm:$0xf]
    %v4404 = vld [vmem:[%s9 + $0x50] sm:$0xf]
    %v4405 = vld [vmem:[%s9 + $0x54] sm:$0xf]
    %v4406 = vld [vmem:[%s9 + $0x58] sm:$0xf]
    %v4407 = vld [vmem:[%s9 + $0x5c] sm:$0xf]
    %v4408 = vld [vmem:[%s9 + $0x60] sm:$0xf]
    %v4409 = vld [vmem:[%s9 + $0x64] sm:$0xf]
    %v4410 = vld [vmem:[%s9 + $0x68] sm:$0xf]
    %v4411 = vld [vmem:[%s9 + $0x6c] sm:$0xf]
    %v4412 = vld [vmem:[%s9 + $0x70] sm:$0xf]
    %v4413 = vld [vmem:[%s9 + $0x74] sm:$0xf]
    %v4414 = vld [vmem:[%s9 + $0x78] sm:$0xf]
    %v4415 = vld [vmem:[%s9 + $0x7c] sm:$0xf]
    %s4416 = scalar_lea.vmem %s9, 128
    %v4417 = vld [vmem:[%s4416] sm:$0xf]
    %v4418 = vld [vmem:[%s4416 + $0x4] sm:$0xf]
    %v4419 = vld [vmem:[%s4416 + $0x8] sm:$0xf]
    %v4420 = vld [vmem:[%s4416 + $0xc] sm:$0xf]
    %v4421 = vld [vmem:[%s4416 + $0x10] sm:$0xf]
    %v4422 = vld [vmem:[%s4416 + $0x14] sm:$0xf]
    %v4423 = vld [vmem:[%s4416 + $0x18] sm:$0xf]
    %v4424 = vld [vmem:[%s4416 + $0x1c] sm:$0xf]
    %v4425 = vld [vmem:[%s4416 + $0x20] sm:$0xf]
    %v4426 = vld [vmem:[%s4416 + $0x24] sm:$0xf]
    %v4427 = vld [vmem:[%s4416 + $0x28] sm:$0xf]
    %v4428 = vld [vmem:[%s4416 + $0x2c] sm:$0xf]
    %v4429 = vld [vmem:[%s4416 + $0x30] sm:$0xf]
    %v4430 = vld [vmem:[%s4416 + $0x34] sm:$0xf]
    %v4431 = vld [vmem:[%s4416 + $0x38] sm:$0xf]
    %v4432 = vld [vmem:[%s4416 + $0x3c] sm:$0xf]
    %v4433 = vld [vmem:[%s4416 + $0x40] sm:$0xf]
    %v4434 = vld [vmem:[%s4416 + $0x44] sm:$0xf]
    %v4435 = vld [vmem:[%s4416 + $0x48] sm:$0xf]
    %v4436 = vld [vmem:[%s4416 + $0x4c] sm:$0xf]
    %v4437 = vld [vmem:[%s4416 + $0x50] sm:$0xf]
    %v4438 = vld [vmem:[%s4416 + $0x54] sm:$0xf]
    %v4439 = vld [vmem:[%s4416 + $0x58] sm:$0xf]
    %v4440 = vld [vmem:[%s4416 + $0x5c] sm:$0xf]
    %v4441 = vld [vmem:[%s4416 + $0x60] sm:$0xf]
    %v4442 = vld [vmem:[%s4416 + $0x64] sm:$0xf]
    %v4443 = vld [vmem:[%s4416 + $0x68] sm:$0xf]
    %v4444 = vld [vmem:[%s4416 + $0x6c] sm:$0xf]
    %v4445 = vld [vmem:[%s4416 + $0x70] sm:$0xf]
    %v4446 = vld [vmem:[%s4416 + $0x74] sm:$0xf]
    %v4447 = vld [vmem:[%s4416 + $0x78] sm:$0xf]
    %v4448 = vld [vmem:[%s4416 + $0x7c] sm:$0xf]
    %s4449 = scalar_lea.vmem %s9, 256
    %v4450 = vld [vmem:[%s4449] sm:$0xf]
    %v4451 = vld [vmem:[%s4449 + $0x4] sm:$0xf]
    %v4452 = vld [vmem:[%s4449 + $0x8] sm:$0xf]
    %v4453 = vld [vmem:[%s4449 + $0xc] sm:$0xf]
    %v4454 = vld [vmem:[%s4449 + $0x10] sm:$0xf]
    %v4455 = vld [vmem:[%s4449 + $0x14] sm:$0xf]
    %v4456 = vld [vmem:[%s4449 + $0x18] sm:$0xf]
    %v4457 = vld [vmem:[%s4449 + $0x1c] sm:$0xf]
    %v4458 = vld [vmem:[%s4449 + $0x20] sm:$0xf]
    %v4459 = vld [vmem:[%s4449 + $0x24] sm:$0xf]
    %v4460 = vld [vmem:[%s4449 + $0x28] sm:$0xf]
    %v4461 = vld [vmem:[%s4449 + $0x2c] sm:$0xf]
    %v4462 = vld [vmem:[%s4449 + $0x30] sm:$0xf]
    %v4463 = vld [vmem:[%s4449 + $0x34] sm:$0xf]
    %v4464 = vld [vmem:[%s4449 + $0x38] sm:$0xf]
    %v4465 = vld [vmem:[%s4449 + $0x3c] sm:$0xf]
    %v4466 = vld [vmem:[%s4449 + $0x40] sm:$0xf]
    %v4467 = vld [vmem:[%s4449 + $0x44] sm:$0xf]
    %v4468 = vld [vmem:[%s4449 + $0x48] sm:$0xf]
    %v4469 = vld [vmem:[%s4449 + $0x4c] sm:$0xf]
    %v4470 = vld [vmem:[%s4449 + $0x50] sm:$0xf]
    %v4471 = vld [vmem:[%s4449 + $0x54] sm:$0xf]
    %v4472 = vld [vmem:[%s4449 + $0x58] sm:$0xf]
    %v4473 = vld [vmem:[%s4449 + $0x5c] sm:$0xf]
    %v4474 = vld [vmem:[%s4449 + $0x60] sm:$0xf]
    %v4475 = vld [vmem:[%s4449 + $0x64] sm:$0xf]
    %v4476 = vld [vmem:[%s4449 + $0x68] sm:$0xf]
    %v4477 = vld [vmem:[%s4449 + $0x6c] sm:$0xf]
    %v4478 = vld [vmem:[%s4449 + $0x70] sm:$0xf]
    %v4479 = vld [vmem:[%s4449 + $0x74] sm:$0xf]
    %v4480 = vld [vmem:[%s4449 + $0x78] sm:$0xf]
    %v4481 = vld [vmem:[%s4449 + $0x7c] sm:$0xf]
    %s4482 = scalar_lea.vmem %s9, 384
    %v4483 = vld [vmem:[%s4482] sm:$0xf]
    %v4484 = vld [vmem:[%s4482 + $0x4] sm:$0xf]
    %v4485 = vld [vmem:[%s4482 + $0x8] sm:$0xf]
    %v4486 = vld [vmem:[%s4482 + $0xc] sm:$0xf]
    %v4487 = vld [vmem:[%s4482 + $0x10] sm:$0xf]
    %v4488 = vld [vmem:[%s4482 + $0x14] sm:$0xf]
    %v4489 = vld [vmem:[%s4482 + $0x18] sm:$0xf]
    %v4490 = vld [vmem:[%s4482 + $0x1c] sm:$0xf]
    %v4491 = vld [vmem:[%s4482 + $0x20] sm:$0xf]
    %v4492 = vld [vmem:[%s4482 + $0x24] sm:$0xf]
    %v4493 = vld [vmem:[%s4482 + $0x28] sm:$0xf]
    %v4494 = vld [vmem:[%s4482 + $0x2c] sm:$0xf]
    %v4495 = vld [vmem:[%s4482 + $0x30] sm:$0xf]
    %v4496 = vld [vmem:[%s4482 + $0x34] sm:$0xf]
    %v4497 = vld [vmem:[%s4482 + $0x38] sm:$0xf]
    %v4498 = vld [vmem:[%s4482 + $0x3c] sm:$0xf]
    %v4499 = vld [vmem:[%s4482 + $0x40] sm:$0xf]
    %v4500 = vld [vmem:[%s4482 + $0x44] sm:$0xf]
    %v4501 = vld [vmem:[%s4482 + $0x48] sm:$0xf]
    %v4502 = vld [vmem:[%s4482 + $0x4c] sm:$0xf]
    %v4503 = vld [vmem:[%s4482 + $0x50] sm:$0xf]
    %v4504 = vld [vmem:[%s4482 + $0x54] sm:$0xf]
    %v4505 = vld [vmem:[%s4482 + $0x58] sm:$0xf]
    %v4506 = vld [vmem:[%s4482 + $0x5c] sm:$0xf]
    %v4507 = vld [vmem:[%s4482 + $0x60] sm:$0xf]
    %v4508 = vld [vmem:[%s4482 + $0x64] sm:$0xf]
    %v4509 = vld [vmem:[%s4482 + $0x68] sm:$0xf]
    %v4510 = vld [vmem:[%s4482 + $0x6c] sm:$0xf]
    %v4511 = vld [vmem:[%s4482 + $0x70] sm:$0xf]
    %v4512 = vld [vmem:[%s4482 + $0x74] sm:$0xf]
    %v4513 = vld [vmem:[%s4482 + $0x78] sm:$0xf]
    %v4514 = vld [vmem:[%s4482 + $0x7c] sm:$0xf]
    %vm4525 = vcmask 1042432
    %v4526 = vrot.slane %v4373, 5
    %v4527 = vrot.slane %v4375, 5
    %v4528 = vsel %vm4525, %v4526, %v4527
    %v4529 = vrot.slane %v4374, 5
    %v4530 = vrot.slane %v4376, 5
    %v4531 = vsel %vm4525, %v4529, %v4530
    %v4532 = vrot.slane %v4377, 5
    %v4533 = vsel %vm4525, %v4527, %v4532
    %v4534 = vrot.slane %v4378, 5
    %v4535 = vsel %vm4525, %v4530, %v4534
    %v4536 = vrot.slane %v4379, 5
    %v4537 = vsel %vm4525, %v4532, %v4536
    %v4538 = vrot.slane %v4380, 5
    %v4539 = vsel %vm4525, %v4534, %v4538
    %v4540 = vrot.slane %v4381, 5
    %v4541 = vsel %vm4525, %v4536, %v4540
    %v4542 = vrot.slane %v4382, 5
    %v4543 = vsel %vm4525, %v4538, %v4542
    %v4552 = vsel %vm2255, 0.0, %v4528
    %v4553 = vsel %vm2255, 0.0, %v4531
    %v4554 = vmul.f32 %v4552, %v132
    %v4555 = vmul.f32 %v4553, %v132
    %v4556 = vmul.f32 %v4533, %v133
    %v4557 = vmul.f32 %v4535, %v133
    %v4558 = vmul.f32 %v4537, %v134
    %v4559 = vmul.f32 %v4539, %v134
    %v4560 = vmul.f32 %v4541, %v135
    %v4561 = vmul.f32 %v4543, %v135
    %v4568 = vrot.slane %v4367, 1
    %v4569 = vrot.slane %v4369, 1
    %v4570 = vsel %vm1363, %v4568, %v4569
    %v4571 = vrot.slane %v4368, 1
    %v4572 = vrot.slane %v4370, 1
    %v4573 = vsel %vm1363, %v4571, %v4572
    %v4574 = vrot.slane %v4371, 1
    %v4575 = vsel %vm1363, %v4569, %v4574
    %v4576 = vrot.slane %v4372, 1
    %v4577 = vsel %vm1363, %v4572, %v4576
    %v4578 = vrot.slane %v4373, 1
    %v4579 = vsel %vm1363, %v4574, %v4578
    %v4580 = vrot.slane %v4374, 1
    %v4581 = vsel %vm1363, %v4576, %v4580
    %v4590 = vsel %vm2364, %v4578, 0.0
    %v4591 = vsel %vm2364, %v4580, 0.0
    %v4592 = vmul.f32 %v4570, %v136
    %v4593 = vmul.f32 %v4573, %v136
    %v4594 = vmul.f32 %v4575, %v137
    %v4595 = vmul.f32 %v4577, %v137
    %v4596 = vmul.f32 %v4579, %v138
    %v4597 = vmul.f32 %v4581, %v138
    %v4598 = vmul.f32 %v4590, %v139
    %v4599 = vmul.f32 %v4591, %v139
    %v4600 = vrot.slane %v4367, 2
    %v4601 = vrot.slane %v4368, 2
    %v4602 = vrot.slane %v4369, 2
    %v4603 = vsel %vm1698, %v4600, %v4602
    %v4604 = vrot.slane %v4370, 2
    %v4605 = vsel %vm1698, %v4601, %v4604
    %v4606 = vrot.slane %v4371, 2
    %v4607 = vsel %vm1698, %v4602, %v4606
    %v4608 = vrot.slane %v4372, 2
    %v4609 = vsel %vm1698, %v4604, %v4608
    %v4610 = vrot.slane %v4373, 2
    %v4611 = vsel %vm1698, %v4606, %v4610
    %v4612 = vrot.slane %v4374, 2
    %v4613 = vsel %vm1698, %v4608, %v4612
    %v4624 = vsel %vm1698, %v4560, %v4600
    %v4625 = vsel %vm1698, %v4561, %v4601
    %vm4626 = vcmask 1041408
    %v4627 = vrot.slane %v4373, 6
    %v4628 = vrot.slane %v4375, 6
    %v4629 = vsel %vm4626, %v4627, %v4628
    %v4630 = vrot.slane %v4374, 6
    %v4631 = vrot.slane %v4376, 6
    %v4632 = vsel %vm4626, %v4630, %v4631
    %v4633 = vrot.slane %v4377, 6
    %v4634 = vsel %vm4626, %v4628, %v4633
    %v4635 = vrot.slane %v4378, 6
    %v4636 = vsel %vm4626, %v4631, %v4635
    %v4637 = vrot.slane %v4379, 6
    %v4638 = vsel %vm4626, %v4633, %v4637
    %v4639 = vrot.slane %v4380, 6
    %v4640 = vsel %vm4626, %v4635, %v4639
    %v4641 = vrot.slane %v4381, 6
    %v4642 = vsel %vm4626, %v4637, %v4641
    %v4643 = vrot.slane %v4382, 6
    %v4644 = vsel %vm4626, %v4639, %v4643
    %v4661 = vrot.slane %v4592, 2
    %v4662 = vrot.slane %v4593, 2
    %v4663 = vrot.slane %v4594, 2
    %v4664 = vsel %vm1698, %v4661, %v4663
    %v4665 = vrot.slane %v4595, 2
    %v4666 = vsel %vm1698, %v4662, %v4665
    %v4667 = vrot.slane %v4596, 2
    %v4668 = vsel %vm1698, %v4663, %v4667
    %v4669 = vrot.slane %v4597, 2
    %v4670 = vsel %vm1698, %v4665, %v4669
    %v4671 = vrot.slane %v4598, 2
    %v4672 = vsel %vm1698, %v4667, %v4671
    %v4673 = vrot.slane %v4599, 2
    %v4674 = vsel %vm1698, %v4669, %v4673
    %v4685 = vsel %vm1698, %v4642, %v4661
    %v4686 = vsel %vm1698, %v4644, %v4662
    %v4687 = vpack.c.bf16 %v4369, %v4367
    %v4688 = vpack.c.bf16 %v4370, %v4368
    %v4689 = vpack.c.bf16 %v4373, %v4371
    %v4690 = vpack.c.bf16 %v4374, %v4372
    %v4691 = vpack.c.bf16 %v4377, %v4375
    %v4692 = vpack.c.bf16 %v4378, %v4376
    %v4693 = vpack.c.bf16 %v4381, %v4379
    %v4694 = vpack.c.bf16 %v4382, %v4380
    %v4695 = vpack.c.bf16 %v4556, %v4554
    %v4696 = vpack.c.bf16 %v4557, %v4555
    %v4697 = vpack.c.bf16 %v4624, %v4558
    %v4698 = vpack.c.bf16 %v4625, %v4559
    %v4699 = vpack.c.bf16 %v4607, %v4603
    %v4700 = vpack.c.bf16 %v4609, %v4605
    %v4701 = vpack.c.bf16 %v4610, %v4611
    %v4702 = vpack.c.bf16 %v4612, %v4613
    %v4735 = vunpack.c.l.b16 %v4483
    %v4736 = vunpack.c.l.b16 %v4484
    %v4737 = vunpack.c.l.b16 %v4485
    %v4738 = vunpack.c.l.b16 %v4486
    %v4739 = vunpack.c.l.b16 %v4487
    %v4740 = vunpack.c.l.b16 %v4488
    %v4741 = vunpack.c.l.b16 %v4489
    %v4742 = vunpack.c.l.b16 %v4490
    %v4743 = vunpack.c.l.b16 %v4491
    %v4744 = vunpack.c.l.b16 %v4492
    %v4745 = vunpack.c.l.b16 %v4493
    %v4746 = vunpack.c.l.b16 %v4494
    %v4747 = vunpack.c.l.b16 %v4495
    %v4748 = vunpack.c.l.b16 %v4496
    %v4749 = vunpack.c.l.b16 %v4497
    %v4750 = vunpack.c.l.b16 %v4498
    %v4751 = vunpack.c.l.b16 %v4499
    %v4752 = vunpack.c.l.b16 %v4500
    %v4753 = vunpack.c.l.b16 %v4501
    %v4754 = vunpack.c.l.b16 %v4502
    %v4755 = vunpack.c.l.b16 %v4503
    %v4756 = vunpack.c.l.b16 %v4504
    %v4757 = vunpack.c.l.b16 %v4505
    %v4758 = vunpack.c.l.b16 %v4506
    %v4759 = vunpack.c.l.b16 %v4507
    %v4760 = vunpack.c.l.b16 %v4508
    %v4761 = vunpack.c.l.b16 %v4509
    %v4762 = vunpack.c.l.b16 %v4510
    %v4763 = vunpack.c.l.b16 %v4511
    %v4764 = vunpack.c.l.b16 %v4512
    %v4765 = vunpack.c.l.b16 %v4513
    %v4766 = vunpack.c.l.b16 %v4514
    %v4767 = vpack.c.b16 %v4736, %v4735
    %v4768 = vpack.c.b16 %v4738, %v4737
    %v4769 = vpack.c.b16 %v4740, %v4739
    %v4770 = vpack.c.b16 %v4742, %v4741
    %v4771 = vpack.c.b16 %v4744, %v4743
    %v4772 = vpack.c.b16 %v4746, %v4745
    %v4773 = vpack.c.b16 %v4748, %v4747
    %v4774 = vpack.c.b16 %v4750, %v4749
    %v4775 = vpack.c.b16 %v4752, %v4751
    %v4776 = vpack.c.b16 %v4754, %v4753
    %v4777 = vpack.c.b16 %v4756, %v4755
    %v4778 = vpack.c.b16 %v4758, %v4757
    %v4779 = vpack.c.b16 %v4760, %v4759
    %v4780 = vpack.c.b16 %v4762, %v4761
    %v4781 = vpack.c.b16 %v4764, %v4763
    %v4782 = vpack.c.b16 %v4766, %v4765
    %4799 = vmatprep.subr.bf16.mxu0 0
    %4800 = vmatpush1.bf16.msra.mxu0 %v4767
    %4801 = vmatprep.subr.bf16.mxu0 0
    %4802 = vmatpush1.bf16.msra.mxu0 %v4768
    %4803 = vmatprep.subr.bf16.mxu0 0
    %4804 = vmatpush1.bf16.msra.mxu0 %v4769
    %4805 = vmatprep.subr.bf16.mxu0 0
    %4806 = vmatpush1.bf16.msra.mxu0 %v4770
    %4807 = vmatprep.subr.bf16.mxu0 0
    %4808 = vmatpush1.bf16.msra.mxu0 %v4771
    %4809 = vmatprep.subr.bf16.mxu0 0
    %4810 = vmatpush1.bf16.msra.mxu0 %v4772
    %4811 = vmatprep.subr.bf16.mxu0 0
    %4812 = vmatpush1.bf16.msra.mxu0 %v4773
    %4813 = vmatprep.subr.bf16.mxu0 0
    %4814 = vmatpush1.bf16.msra.mxu0 %v4774
    %4815 = vmatprep.subr.bf16.mxu0 0
    %4816 = vmatpush1.bf16.msra.mxu0 %v4775
    %4817 = vmatprep.subr.bf16.mxu0 0
    %4818 = vmatpush1.bf16.msra.mxu0 %v4776
    %4819 = vmatprep.subr.bf16.mxu0 0
    %4820 = vmatpush1.bf16.msra.mxu0 %v4777
    %4821 = vmatprep.subr.bf16.mxu0 0
    %4822 = vmatpush1.bf16.msra.mxu0 %v4778
    %4823 = vmatprep.subr.bf16.mxu0 0
    %4824 = vmatpush1.bf16.msra.mxu0 %v4779
    %4825 = vmatprep.subr.bf16.mxu0 0
    %4826 = vmatpush1.bf16.msra.mxu0 %v4780
    %4827 = vmatprep.subr.bf16.mxu0 0
    %4828 = vmatpush1.bf16.msra.mxu0 %v4781
    %4829 = vmatprep.subr.bf16.mxu0 0
    %4830 = vmatpush1.bf16.msra.mxu0 %v4782
    %4831 = vmatprep.mubr.bf16.mxu0 %v4696
    %4832 = vmatmul.mubr.bf16.gmra.mrb[0].mxu0 %v4695
    %v4833 = vpop.f32.mrb[0].mxu0
    %v4834 = vadd.f32 0.0, %v4833
    %v4835 = vpop.f32.mrb[0].mxu0
    %v4836 = vpop.f32.mrb[0].mxu0
    %v4837 = vadd.f32 0.0, %v4836
    %v4838 = vpop.f32.mrb[0].mxu0
    %4839 = vmatprep.mubr.bf16.mxu0 %v4698
    %4840 = vmatmul.mubr.bf16.gmra.mrb[0].mxu0 %v4697
    %v4841 = vpop.f32.mrb[0].mxu0
    %v4842 = vadd.f32 0.0, %v4841
    %v4843 = vpop.f32.mrb[0].mxu0
    %v4844 = vpop.f32.mrb[0].mxu0
    %v4845 = vadd.f32 0.0, %v4844
    %v4846 = vpop.f32.mrb[0].mxu0
    %4847 = vmatprep.mubr.bf16.mxu0 %v4700
    %4848 = vmatmul.mubr.bf16.gmra.mrb[0].mxu0 %v4699
    %v4849 = vpop.f32.mrb[0].mxu0
    %v4850 = vadd.f32 0.0, %v4849
    %v4851 = vpop.f32.mrb[0].mxu0
    %v4852 = vpop.f32.mrb[0].mxu0
    %v4853 = vadd.f32 0.0, %v4852
    %v4854 = vpop.f32.mrb[0].mxu0
    %4855 = vmatprep.mubr.bf16.mxu0 %v4702
    %4856 = vmatmul.mubr.bf16.gmra.mrb[0].mxu0 %v4701
    %v4857 = vpop.f32.mrb[0].mxu0
    %v4858 = vadd.f32 0.0, %v4857
    %v4859 = vpop.f32.mrb[0].mxu0
    %v4860 = vpop.f32.mrb[0].mxu0
    %v4861 = vadd.f32 0.0, %v4860
    %v4862 = vpop.f32.mrb[0].mxu0
    %4863 = vdwg.mxu0
    %v4896 = vunpack.c.l.b16 %v4417
    %v4897 = vunpack.c.l.b16 %v4418
    %v4898 = vunpack.c.l.b16 %v4419
    %v4899 = vunpack.c.l.b16 %v4420
    %v4900 = vunpack.c.l.b16 %v4421
    %v4901 = vunpack.c.l.b16 %v4422
    %v4902 = vunpack.c.l.b16 %v4423
    %v4903 = vunpack.c.l.b16 %v4424
    %v4904 = vunpack.c.l.b16 %v4425
    %v4905 = vunpack.c.l.b16 %v4426
    %v4906 = vunpack.c.l.b16 %v4427
    %v4907 = vunpack.c.l.b16 %v4428
    %v4908 = vunpack.c.l.b16 %v4429
    %v4909 = vunpack.c.l.b16 %v4430
    %v4910 = vunpack.c.l.b16 %v4431
    %v4911 = vunpack.c.l.b16 %v4432
    %v4912 = vunpack.c.l.b16 %v4433
    %v4913 = vunpack.c.l.b16 %v4434
    %v4914 = vunpack.c.l.b16 %v4435
    %v4915 = vunpack.c.l.b16 %v4436
    %v4916 = vunpack.c.l.b16 %v4437
    %v4917 = vunpack.c.l.b16 %v4438
    %v4918 = vunpack.c.l.b16 %v4439
    %v4919 = vunpack.c.l.b16 %v4440
    %v4920 = vunpack.c.l.b16 %v4441
    %v4921 = vunpack.c.l.b16 %v4442
    %v4922 = vunpack.c.l.b16 %v4443
    %v4923 = vunpack.c.l.b16 %v4444
    %v4924 = vunpack.c.l.b16 %v4445
    %v4925 = vunpack.c.l.b16 %v4446
    %v4926 = vunpack.c.l.b16 %v4447
    %v4927 = vunpack.c.l.b16 %v4448
    %v4928 = vpack.c.b16 %v4897, %v4896
    %v4929 = vpack.c.b16 %v4899, %v4898
    %v4930 = vpack.c.b16 %v4901, %v4900
    %v4931 = vpack.c.b16 %v4903, %v4902
    %v4932 = vpack.c.b16 %v4905, %v4904
    %v4933 = vpack.c.b16 %v4907, %v4906
    %v4934 = vpack.c.b16 %v4909, %v4908
    %v4935 = vpack.c.b16 %v4911, %v4910
    %v4936 = vpack.c.b16 %v4913, %v4912
    %v4937 = vpack.c.b16 %v4915, %v4914
    %v4938 = vpack.c.b16 %v4917, %v4916
    %v4939 = vpack.c.b16 %v4919, %v4918
    %v4940 = vpack.c.b16 %v4921, %v4920
    %v4941 = vpack.c.b16 %v4923, %v4922
    %v4942 = vpack.c.b16 %v4925, %v4924
    %v4943 = vpack.c.b16 %v4927, %v4926
    %4960 = vmatprep.subr.bf16.mxu0 0
    %4961 = vmatpush1.bf16.msra.mxu0 %v4928
    %4962 = vmatprep.subr.bf16.mxu0 0
    %4963 = vmatpush1.bf16.msra.mxu0 %v4929
    %4964 = vmatprep.subr.bf16.mxu0 0
    %4965 = vmatpush1.bf16.msra.mxu0 %v4930
    %4966 = vmatprep.subr.bf16.mxu0 0
    %4967 = vmatpush1.bf16.msra.mxu0 %v4931
    %4968 = vmatprep.subr.bf16.mxu0 0
    %4969 = vmatpush1.bf16.msra.mxu0 %v4932
    %4970 = vmatprep.subr.bf16.mxu0 0
    %4971 = vmatpush1.bf16.msra.mxu0 %v4933
    %4972 = vmatprep.subr.bf16.mxu0 0
    %4973 = vmatpush1.bf16.msra.mxu0 %v4934
    %4974 = vmatprep.subr.bf16.mxu0 0
    %4975 = vmatpush1.bf16.msra.mxu0 %v4935
    %4976 = vmatprep.subr.bf16.mxu0 0
    %4977 = vmatpush1.bf16.msra.mxu0 %v4936
    %4978 = vmatprep.subr.bf16.mxu0 0
    %4979 = vmatpush1.bf16.msra.mxu0 %v4937
    %4980 = vmatprep.subr.bf16.mxu0 0
    %4981 = vmatpush1.bf16.msra.mxu0 %v4938
    %4982 = vmatprep.subr.bf16.mxu0 0
    %4983 = vmatpush1.bf16.msra.mxu0 %v4939
    %4984 = vmatprep.subr.bf16.mxu0 0
    %4985 = vmatpush1.bf16.msra.mxu0 %v4940
    %4986 = vmatprep.subr.bf16.mxu0 0
    %4987 = vmatpush1.bf16.msra.mxu0 %v4941
    %4988 = vmatprep.subr.bf16.mxu0 0
    %4989 = vmatpush1.bf16.msra.mxu0 %v4942
    %4990 = vmatprep.subr.bf16.mxu0 0
    %4991 = vmatpush1.bf16.msra.mxu0 %v4943
    %4992 = vmatprep.mubr.bf16.mxu0 %v4688
    %4993 = vmatmul.mubr.bf16.gmra.mrb[0].mxu0 %v4687
    %v4994 = vpop.f32.mrb[0].mxu0
    %v4995 = vadd.f32 %v4834, %v4994
    %v4996 = vpop.f32.mrb[0].mxu0
    %v4997 = vpop.f32.mrb[0].mxu0
    %v4998 = vadd.f32 %v4837, %v4997
    %v4999 = vpop.f32.mrb[0].mxu0
    %5000 = vmatprep.mubr.bf16.mxu0 %v4690
    %5001 = vmatmul.mubr.bf16.gmra.mrb[0].mxu0 %v4689
    %v5002 = vpop.f32.mrb[0].mxu0
    %v5003 = vadd.f32 %v4842, %v5002
    %v5004 = vpop.f32.mrb[0].mxu0
    %v5005 = vpop.f32.mrb[0].mxu0
    %v5006 = vadd.f32 %v4845, %v5005
    %v5007 = vpop.f32.mrb[0].mxu0
    %5008 = vmatprep.mubr.bf16.mxu0 %v4692
    %5009 = vmatmul.mubr.bf16.gmra.mrb[0].mxu0 %v4691
    %v5010 = vpop.f32.mrb[0].mxu0
    %v5011 = vadd.f32 %v4850, %v5010
    %v5012 = vpop.f32.mrb[0].mxu0
    %v5013 = vpop.f32.mrb[0].mxu0
    %v5014 = vadd.f32 %v4853, %v5013
    %v5015 = vpop.f32.mrb[0].mxu0
    %5016 = vmatprep.mubr.bf16.mxu0 %v4694
    %5017 = vmatmul.mubr.bf16.gmra.mrb[0].mxu0 %v4693
    %v5018 = vpop.f32.mrb[0].mxu0
    %v5019 = vadd.f32 %v4858, %v5018
    %v5020 = vpop.f32.mrb[0].mxu0
    %v5021 = vpop.f32.mrb[0].mxu0
    %v5022 = vadd.f32 %v4861, %v5021
    %v5023 = vpop.f32.mrb[0].mxu0
    %5024 = vdwg.mxu0
    %v5026 = vlaneseq
    %v5027 = vshrl.u32 %v5026, 7
    %v5028 = vsub.s32 0, %v5027
    %v5029 = vrot.slane %v4383, %v5028
    %v5031 = vadd.f32 %v4995, %v5029
    %v5032 = vadd.f32 %v4998, %v5029
    %v5033 = vadd.f32 %v5003, %v5029
    %v5034 = vadd.f32 %v5006, %v5029
    %v5035 = vadd.f32 %v5011, %v5029
    %v5036 = vadd.f32 %v5014, %v5029
    %v5037 = vadd.f32 %v5019, %v5029
    %v5038 = vadd.f32 %v5022, %v5029
    %v5039 = vpack.c.bf16 %v4634, %v4629
    %v5040 = vpack.c.bf16 %v4636, %v4632
    %v5041 = vpack.c.bf16 %v4685, %v4638
    %v5042 = vpack.c.bf16 %v4686, %v4640
    %v5043 = vpack.c.bf16 %v4668, %v4664
    %v5044 = vpack.c.bf16 %v4670, %v4666
    %v5045 = vpack.c.bf16 %v4671, %v4672
    %v5046 = vpack.c.bf16 %v4673, %v4674
    %v5079 = vunpack.c.l.b16 %v4450
    %v5080 = vunpack.c.l.b16 %v4451
    %v5081 = vunpack.c.l.b16 %v4452
    %v5082 = vunpack.c.l.b16 %v4453
    %v5083 = vunpack.c.l.b16 %v4454
    %v5084 = vunpack.c.l.b16 %v4455
    %v5085 = vunpack.c.l.b16 %v4456
    %v5086 = vunpack.c.l.b16 %v4457
    %v5087 = vunpack.c.l.b16 %v4458
    %v5088 = vunpack.c.l.b16 %v4459
    %v5089 = vunpack.c.l.b16 %v4460
    %v5090 = vunpack.c.l.b16 %v4461
    %v5091 = vunpack.c.l.b16 %v4462
    %v5092 = vunpack.c.l.b16 %v4463
    %v5093 = vunpack.c.l.b16 %v4464
    %v5094 = vunpack.c.l.b16 %v4465
    %v5095 = vunpack.c.l.b16 %v4466
    %v5096 = vunpack.c.l.b16 %v4467
    %v5097 = vunpack.c.l.b16 %v4468
    %v5098 = vunpack.c.l.b16 %v4469
    %v5099 = vunpack.c.l.b16 %v4470
    %v5100 = vunpack.c.l.b16 %v4471
    %v5101 = vunpack.c.l.b16 %v4472
    %v5102 = vunpack.c.l.b16 %v4473
    %v5103 = vunpack.c.l.b16 %v4474
    %v5104 = vunpack.c.l.b16 %v4475
    %v5105 = vunpack.c.l.b16 %v4476
    %v5106 = vunpack.c.l.b16 %v4477
    %v5107 = vunpack.c.l.b16 %v4478
    %v5108 = vunpack.c.l.b16 %v4479
    %v5109 = vunpack.c.l.b16 %v4480
    %v5110 = vunpack.c.l.b16 %v4481
    %v5111 = vpack.c.b16 %v5080, %v5079
    %v5112 = vpack.c.b16 %v5082, %v5081
    %v5113 = vpack.c.b16 %v5084, %v5083
    %v5114 = vpack.c.b16 %v5086, %v5085
    %v5115 = vpack.c.b16 %v5088, %v5087
    %v5116 = vpack.c.b16 %v5090, %v5089
    %v5117 = vpack.c.b16 %v5092, %v5091
    %v5118 = vpack.c.b16 %v5094, %v5093
    %v5119 = vpack.c.b16 %v5096, %v5095
    %v5120 = vpack.c.b16 %v5098, %v5097
    %v5121 = vpack.c.b16 %v5100, %v5099
    %v5122 = vpack.c.b16 %v5102, %v5101
    %v5123 = vpack.c.b16 %v5104, %v5103
    %v5124 = vpack.c.b16 %v5106, %v5105
    %v5125 = vpack.c.b16 %v5108, %v5107
    %v5126 = vpack.c.b16 %v5110, %v5109
    %5143 = vmatprep.subr.bf16.mxu0 0
    %5144 = vmatpush1.bf16.msra.mxu0 %v5111
    %5145 = vmatprep.subr.bf16.mxu0 0
    %5146 = vmatpush1.bf16.msra.mxu0 %v5112
    %5147 = vmatprep.subr.bf16.mxu0 0
    %5148 = vmatpush1.bf16.msra.mxu0 %v5113
    %5149 = vmatprep.subr.bf16.mxu0 0
    %5150 = vmatpush1.bf16.msra.mxu0 %v5114
    %5151 = vmatprep.subr.bf16.mxu0 0
    %5152 = vmatpush1.bf16.msra.mxu0 %v5115
    %5153 = vmatprep.subr.bf16.mxu0 0
    %5154 = vmatpush1.bf16.msra.mxu0 %v5116
    %5155 = vmatprep.subr.bf16.mxu0 0
    %5156 = vmatpush1.bf16.msra.mxu0 %v5117
    %5157 = vmatprep.subr.bf16.mxu0 0
    %5158 = vmatpush1.bf16.msra.mxu0 %v5118
    %5159 = vmatprep.subr.bf16.mxu0 0
    %5160 = vmatpush1.bf16.msra.mxu0 %v5119
    %5161 = vmatprep.subr.bf16.mxu0 0
    %5162 = vmatpush1.bf16.msra.mxu0 %v5120
    %5163 = vmatprep.subr.bf16.mxu0 0
    %5164 = vmatpush1.bf16.msra.mxu0 %v5121
    %5165 = vmatprep.subr.bf16.mxu0 0
    %5166 = vmatpush1.bf16.msra.mxu0 %v5122
    %5167 = vmatprep.subr.bf16.mxu0 0
    %5168 = vmatpush1.bf16.msra.mxu0 %v5123
    %5169 = vmatprep.subr.bf16.mxu0 0
    %5170 = vmatpush1.bf16.msra.mxu0 %v5124
    %5171 = vmatprep.subr.bf16.mxu0 0
    %5172 = vmatpush1.bf16.msra.mxu0 %v5125
    %5173 = vmatprep.subr.bf16.mxu0 0
    %5174 = vmatpush1.bf16.msra.mxu0 %v5126
    %5175 = vmatprep.mubr.bf16.mxu0 %v4688
    %5176 = vmatmul.mubr.bf16.gmra.mrb[0].mxu0 %v4687
    %v5177 = vpop.f32.mrb[0].mxu0
    %v5178 = vadd.f32 0.0, %v5177
    %v5179 = vpop.f32.mrb[0].mxu0
    %v5180 = vpop.f32.mrb[0].mxu0
    %v5181 = vadd.f32 0.0, %v5180
    %v5182 = vpop.f32.mrb[0].mxu0
    %5183 = vmatprep.mubr.bf16.mxu0 %v4690
    %5184 = vmatmul.mubr.bf16.gmra.mrb[0].mxu0 %v4689
    %v5185 = vpop.f32.mrb[0].mxu0
    %v5186 = vadd.f32 0.0, %v5185
    %v5187 = vpop.f32.mrb[0].mxu0
    %v5188 = vpop.f32.mrb[0].mxu0
    %v5189 = vadd.f32 0.0, %v5188
    %v5190 = vpop.f32.mrb[0].mxu0
    %5191 = vmatprep.mubr.bf16.mxu0 %v4692
    %5192 = vmatmul.mubr.bf16.gmra.mrb[0].mxu0 %v4691
    %v5193 = vpop.f32.mrb[0].mxu0
    %v5194 = vadd.f32 0.0, %v5193
    %v5195 = vpop.f32.mrb[0].mxu0
    %v5196 = vpop.f32.mrb[0].mxu0
    %v5197 = vadd.f32 0.0, %v5196
    %v5198 = vpop.f32.mrb[0].mxu0
    %5199 = vmatprep.mubr.bf16.mxu0 %v4694
    %5200 = vmatmul.mubr.bf16.gmra.mrb[0].mxu0 %v4693
    %v5201 = vpop.f32.mrb[0].mxu0
    %v5202 = vadd.f32 0.0, %v5201
    %v5203 = vpop.f32.mrb[0].mxu0
    %v5204 = vpop.f32.mrb[0].mxu0
    %v5205 = vadd.f32 0.0, %v5204
    %v5206 = vpop.f32.mrb[0].mxu0
    %5207 = vdwg.mxu0
    %v5240 = vunpack.c.l.b16 %v4384
    %v5241 = vunpack.c.l.b16 %v4385
    %v5242 = vunpack.c.l.b16 %v4386
    %v5243 = vunpack.c.l.b16 %v4387
    %v5244 = vunpack.c.l.b16 %v4388
    %v5245 = vunpack.c.l.b16 %v4389
    %v5246 = vunpack.c.l.b16 %v4390
    %v5247 = vunpack.c.l.b16 %v4391
    %v5248 = vunpack.c.l.b16 %v4392
    %v5249 = vunpack.c.l.b16 %v4393
    %v5250 = vunpack.c.l.b16 %v4394
    %v5251 = vunpack.c.l.b16 %v4395
    %v5252 = vunpack.c.l.b16 %v4396
    %v5253 = vunpack.c.l.b16 %v4397
    %v5254 = vunpack.c.l.b16 %v4398
    %v5255 = vunpack.c.l.b16 %v4399
    %v5256 = vunpack.c.l.b16 %v4400
    %v5257 = vunpack.c.l.b16 %v4401
    %v5258 = vunpack.c.l.b16 %v4402
    %v5259 = vunpack.c.l.b16 %v4403
    %v5260 = vunpack.c.l.b16 %v4404
    %v5261 = vunpack.c.l.b16 %v4405
    %v5262 = vunpack.c.l.b16 %v4406
    %v5263 = vunpack.c.l.b16 %v4407
    %v5264 = vunpack.c.l.b16 %v4408
    %v5265 = vunpack.c.l.b16 %v4409
    %v5266 = vunpack.c.l.b16 %v4410
    %v5267 = vunpack.c.l.b16 %v4411
    %v5268 = vunpack.c.l.b16 %v4412
    %v5269 = vunpack.c.l.b16 %v4413
    %v5270 = vunpack.c.l.b16 %v4414
    %v5271 = vunpack.c.l.b16 %v4415
    %v5272 = vpack.c.b16 %v5241, %v5240
    %v5273 = vpack.c.b16 %v5243, %v5242
    %v5274 = vpack.c.b16 %v5245, %v5244
    %v5275 = vpack.c.b16 %v5247, %v5246
    %v5276 = vpack.c.b16 %v5249, %v5248
    %v5277 = vpack.c.b16 %v5251, %v5250
    %v5278 = vpack.c.b16 %v5253, %v5252
    %v5279 = vpack.c.b16 %v5255, %v5254
    %v5280 = vpack.c.b16 %v5257, %v5256
    %v5281 = vpack.c.b16 %v5259, %v5258
    %v5282 = vpack.c.b16 %v5261, %v5260
    %v5283 = vpack.c.b16 %v5263, %v5262
    %v5284 = vpack.c.b16 %v5265, %v5264
    %v5285 = vpack.c.b16 %v5267, %v5266
    %v5286 = vpack.c.b16 %v5269, %v5268
    %v5287 = vpack.c.b16 %v5271, %v5270
    %5304 = vmatprep.subr.bf16.mxu0 0
    %5305 = vmatpush1.bf16.msra.mxu0 %v5272
    %5306 = vmatprep.subr.bf16.mxu0 0
    %5307 = vmatpush1.bf16.msra.mxu0 %v5273
    %5308 = vmatprep.subr.bf16.mxu0 0
    %5309 = vmatpush1.bf16.msra.mxu0 %v5274
    %5310 = vmatprep.subr.bf16.mxu0 0
    %5311 = vmatpush1.bf16.msra.mxu0 %v5275
    %5312 = vmatprep.subr.bf16.mxu0 0
    %5313 = vmatpush1.bf16.msra.mxu0 %v5276
    %5314 = vmatprep.subr.bf16.mxu0 0
    %5315 = vmatpush1.bf16.msra.mxu0 %v5277
    %5316 = vmatprep.subr.bf16.mxu0 0
    %5317 = vmatpush1.bf16.msra.mxu0 %v5278
    %5318 = vmatprep.subr.bf16.mxu0 0
    %5319 = vmatpush1.bf16.msra.mxu0 %v5279
    %5320 = vmatprep.subr.bf16.mxu0 0
    %5321 = vmatpush1.bf16.msra.mxu0 %v5280
    %5322 = vmatprep.subr.bf16.mxu0 0
    %5323 = vmatpush1.bf16.msra.mxu0 %v5281
    %5324 = vmatprep.subr.bf16.mxu0 0
    %5325 = vmatpush1.bf16.msra.mxu0 %v5282
    %5326 = vmatprep.subr.bf16.mxu0 0
    %5327 = vmatpush1.bf16.msra.mxu0 %v5283
    %5328 = vmatprep.subr.bf16.mxu0 0
    %5329 = vmatpush1.bf16.msra.mxu0 %v5284
    %5330 = vmatprep.subr.bf16.mxu0 0
    %5331 = vmatpush1.bf16.msra.mxu0 %v5285
    %5332 = vmatprep.subr.bf16.mxu0 0
    %5333 = vmatpush1.bf16.msra.mxu0 %v5286
    %5334 = vmatprep.subr.bf16.mxu0 0
    %5335 = vmatpush1.bf16.msra.mxu0 %v5287
    %5336 = vmatprep.mubr.bf16.mxu0 %v5040
    %5337 = vmatmul.mubr.bf16.gmra.mrb[0].mxu0 %v5039
    %v5338 = vpop.f32.mrb[0].mxu0
    %v5339 = vadd.f32 %v5178, %v5338
    %v5340 = vpop.f32.mrb[0].mxu0
    %v5341 = vpop.f32.mrb[0].mxu0
    %v5342 = vadd.f32 %v5181, %v5341
    %v5343 = vpop.f32.mrb[0].mxu0
    %5344 = vmatprep.mubr.bf16.mxu0 %v5042
    %5345 = vmatmul.mubr.bf16.gmra.mrb[0].mxu0 %v5041
    %v5346 = vpop.f32.mrb[0].mxu0
    %v5347 = vadd.f32 %v5186, %v5346
    %v5348 = vpop.f32.mrb[0].mxu0
    %v5349 = vpop.f32.mrb[0].mxu0
    %v5350 = vadd.f32 %v5189, %v5349
    %v5351 = vpop.f32.mrb[0].mxu0
    %5352 = vmatprep.mubr.bf16.mxu0 %v5044
    %5353 = vmatmul.mubr.bf16.gmra.mrb[0].mxu0 %v5043
    %v5354 = vpop.f32.mrb[0].mxu0
    %v5355 = vadd.f32 %v5194, %v5354
    %v5356 = vpop.f32.mrb[0].mxu0
    %v5357 = vpop.f32.mrb[0].mxu0
    %v5358 = vadd.f32 %v5197, %v5357
    %v5359 = vpop.f32.mrb[0].mxu0
    %5360 = vmatprep.mubr.bf16.mxu0 %v5046
    %5361 = vmatmul.mubr.bf16.gmra.mrb[0].mxu0 %v5045
    %v5362 = vpop.f32.mrb[0].mxu0
    %v5363 = vadd.f32 %v5202, %v5362
    %v5364 = vpop.f32.mrb[0].mxu0
    %v5365 = vpop.f32.mrb[0].mxu0
    %v5366 = vadd.f32 %v5205, %v5365
    %v5367 = vpop.f32.mrb[0].mxu0
    %5368 = vdwg.mxu0
    %v5369 = vadd.f32 %v5339, %v5029
    %v5370 = vadd.f32 %v5342, %v5029
    %v5371 = vadd.f32 %v5347, %v5029
    %v5372 = vadd.f32 %v5350, %v5029
    %v5373 = vadd.f32 %v5355, %v5029
    %v5374 = vadd.f32 %v5358, %v5029
    %v5375 = vadd.f32 %v5363, %v5029
    %v5376 = vadd.f32 %v5366, %v5029
    %v5381 = vrot.slane %v5369, 2
    %v5382 = vrot.slane %v5370, 2
    %v5383 = vsel %vm1698, %v5381, %v5382
    %v5384 = vrot.slane %v5371, 2
    %v5385 = vsel %vm1698, %v5382, %v5384
    %v5386 = vrot.slane %v5372, 2
    %v5387 = vsel %vm1698, %v5384, %v5386
    %v5398 = vrot.slane %v5034, 2
    %v5399 = vrot.slane %v5035, 2
    %v5400 = vsel %vm1698, %v5398, %v5399
    %v5401 = vrot.slane %v5036, 2
    %v5402 = vsel %vm1698, %v5399, %v5401
    %v5403 = vrot.slane %v5037, 2
    %v5404 = vsel %vm1698, %v5401, %v5403
    %v5405 = vrot.slane %v5038, 2
    %v5406 = vsel %vm1698, %v5403, %v5405
    %v5416 = vrot.slane %v5372, 4
    %v5417 = vrot.slane %v5373, 4
    %v5418 = vsel %vm4182, %v5416, %v5417
    %v5419 = vrot.slane %v5374, 4
    %v5420 = vsel %vm4182, %v5417, %v5419
    %v5421 = vrot.slane %v5375, 4
    %v5422 = vsel %vm4182, %v5419, %v5421
    %v5423 = vrot.slane %v5376, 4
    %v5424 = vsel %vm4182, %v5421, %v5423
    %v5429 = vsel %vm1698, %v5034, %v5381
    %v5430 = vsel %vm4182, %v5386, %v5400
    %v5431 = vsel %vm4626, %v5405, %v5418
    %v5432 = vld [vmem:[%s11] sm:$0x1]
    %v5433 = vld [vmem:[%s12] sm:$0x1]
    %v5434 = vadd.f32 %v5031, %v5032
    %v5435 = vadd.f32 %v5434, %v5033
    %v5436 = vadd.f32 %v5435, %v5429
    %v5437 = vadd.f32 %v5436, %v5383
    %v5438 = vadd.f32 %v5437, %v5385
    %v5439 = vadd.f32 %v5438, %v5387
    %v5440 = vadd.f32 %v5439, %v5430
    %v5441 = vadd.f32 %v5440, %v5402
    %v5442 = vadd.f32 %v5441, %v5404
    %v5443 = vadd.f32 %v5442, %v5406
    %v5444 = vadd.f32 %v5443, %v5431
    %v5445 = vadd.f32 %v5444, %v5420
    %v5446 = vadd.f32 %v5445, %v5422
    %v5447 = vadd.f32 %v5446, %v5424
    %v5448 = vrot.slane %v5447, 4
    %v5449 = vadd.f32 %v5447, %v5448
    %v5450 = vrot.slane %v5449, 2
    %v5451 = vadd.f32 %v5449, %v5450
    %v5452 = vrot.slane %v5451, 1
    %v5453 = vadd.f32 %v5451, %v5452
    %v5454 = vmul.f32 %v5453, 0.008333334
    %v5455 = vsub.f32 %v5031, %v5454
    %v5456 = vsub.f32 %v5032, %v5454
    %v5457 = vsub.f32 %v5033, %v5454
    %v5458 = vsub.f32 %v5429, %v5454
    %v5459 = vsub.f32 %v5383, %v5454
    %v5460 = vsub.f32 %v5385, %v5454
    %v5461 = vsub.f32 %v5387, %v5454
    %v5462 = vsub.f32 %v5430, %v5454
    %v5463 = vsub.f32 %v5402, %v5454
    %v5464 = vsub.f32 %v5404, %v5454
    %v5465 = vsub.f32 %v5406, %v5454
    %v5466 = vsub.f32 %v5431, %v5454
    %v5467 = vsub.f32 %v5420, %v5454
    %v5468 = vsub.f32 %v5422, %v5454
    %v5469 = vsub.f32 %v5424, %v5454
    %v5470 = vmul.f32 %v5455, %v5455
    %v5471 = vmul.f32 %v5456, %v5456
    %v5472 = vmul.f32 %v5457, %v5457
    %v5473 = vmul.f32 %v5458, %v5458
    %v5474 = vmul.f32 %v5459, %v5459
    %v5475 = vmul.f32 %v5460, %v5460
    %v5476 = vmul.f32 %v5461, %v5461
    %v5477 = vmul.f32 %v5462, %v5462
    %v5478 = vmul.f32 %v5463, %v5463
    %v5479 = vmul.f32 %v5464, %v5464
    %v5480 = vmul.f32 %v5465, %v5465
    %v5481 = vmul.f32 %v5466, %v5466
    %v5482 = vmul.f32 %v5467, %v5467
    %v5483 = vmul.f32 %v5468, %v5468
    %v5484 = vmul.f32 %v5469, %v5469
    %v5485 = vadd.f32 %v5470, %v5471
    %v5486 = vadd.f32 %v5485, %v5472
    %v5487 = vadd.f32 %v5486, %v5473
    %v5488 = vadd.f32 %v5487, %v5474
    %v5489 = vadd.f32 %v5488, %v5475
    %v5490 = vadd.f32 %v5489, %v5476
    %v5491 = vadd.f32 %v5490, %v5477
    %v5492 = vadd.f32 %v5491, %v5478
    %v5493 = vadd.f32 %v5492, %v5479
    %v5494 = vadd.f32 %v5493, %v5480
    %v5495 = vadd.f32 %v5494, %v5481
    %v5496 = vadd.f32 %v5495, %v5482
    %v5497 = vadd.f32 %v5496, %v5483
    %v5498 = vadd.f32 %v5497, %v5484
    %v5499 = vrot.slane %v5498, 4
    %v5500 = vadd.f32 %v5498, %v5499
    %v5501 = vrot.slane %v5500, 2
    %v5502 = vadd.f32 %v5500, %v5501
    %v5503 = vrot.slane %v5502, 1
    %v5504 = vadd.f32 %v5502, %v5503
    %v5505 = vmul.f32 %v5504, 0.008333334
    %v5506 = vadd.f32 %v5505, 1e-05
    %v5507 = vrsqrt.pop %v5506
    %v5508 = vmul.f32 %v5432, %v5507
    %v5509 = vmul.f32 %v5454, %v5508
    %v5510 = vsub.f32 %v5433, %v5509
    %v5512 = vlaneseq
    %v5513 = vshrl.u32 %v5512, 7
    %v5514 = vsub.s32 0, %v5513
    %v5515 = vrot.slane %v5508, %v5514
    %v5517 = vmul.f32 %v5031, %v5515
    %v5518 = vmul.f32 %v5032, %v5515
    %v5519 = vmul.f32 %v5033, %v5515
    %v5520 = vmul.f32 %v5429, %v5515
    %v5521 = vmul.f32 %v5383, %v5515
    %v5522 = vmul.f32 %v5385, %v5515
    %v5523 = vmul.f32 %v5387, %v5515
    %v5524 = vmul.f32 %v5430, %v5515
    %v5525 = vmul.f32 %v5402, %v5515
    %v5526 = vmul.f32 %v5404, %v5515
    %v5527 = vmul.f32 %v5406, %v5515
    %v5528 = vmul.f32 %v5431, %v5515
    %v5529 = vmul.f32 %v5420, %v5515
    %v5530 = vmul.f32 %v5422, %v5515
    %v5531 = vmul.f32 %v5424, %v5515
    %v5533 = vlaneseq
    %v5534 = vshrl.u32 %v5533, 7
    %v5535 = vsub.s32 0, %v5534
    %v5536 = vrot.slane %v5510, %v5535
    %v5538 = vadd.f32 %v5517, %v5536
    %v5539 = vadd.f32 %v5518, %v5536
    %v5540 = vadd.f32 %v5519, %v5536
    %v5541 = vadd.f32 %v5520, %v5536
    %v5542 = vadd.f32 %v5521, %v5536
    %v5543 = vadd.f32 %v5522, %v5536
    %v5544 = vadd.f32 %v5523, %v5536
    %v5545 = vadd.f32 %v5524, %v5536
    %v5546 = vadd.f32 %v5525, %v5536
    %v5547 = vadd.f32 %v5526, %v5536
    %v5548 = vadd.f32 %v5527, %v5536
    %v5549 = vadd.f32 %v5528, %v5536
    %v5550 = vadd.f32 %v5529, %v5536
    %v5551 = vadd.f32 %v5530, %v5536
    %v5552 = vadd.f32 %v5531, %v5536
    %v5553 = vmax.f32 %v5538, 0.0
    %v5554 = vmax.f32 %v5539, 0.0
    %v5555 = vmax.f32 %v5540, 0.0
    %v5556 = vmax.f32 %v5541, 0.0
    %v5557 = vmax.f32 %v5542, 0.0
    %v5558 = vmax.f32 %v5543, 0.0
    %v5559 = vmax.f32 %v5544, 0.0
    %v5560 = vmax.f32 %v5545, 0.0
    %v5561 = vmax.f32 %v5546, 0.0
    %v5562 = vmax.f32 %v5547, 0.0
    %v5563 = vmax.f32 %v5548, 0.0
    %v5564 = vmax.f32 %v5549, 0.0
    %v5565 = vmax.f32 %v5550, 0.0
    %v5566 = vmax.f32 %v5551, 0.0
    %v5567 = vmax.f32 %v5552, 0.0
    %v5568 = vld [vmem:[%s14] sm:$0x1]
    %v5569 = vld [vmem:[%s13] sm:$0xf]
    %v5570 = vld [vmem:[%s13 + $0x4] sm:$0xf]
    %v5571 = vld [vmem:[%s13 + $0x8] sm:$0xf]
    %v5572 = vld [vmem:[%s13 + $0xc] sm:$0xf]
    %v5573 = vld [vmem:[%s13 + $0x10] sm:$0xf]
    %v5574 = vld [vmem:[%s13 + $0x14] sm:$0xf]
    %v5575 = vld [vmem:[%s13 + $0x18] sm:$0xf]
    %v5576 = vld [vmem:[%s13 + $0x1c] sm:$0xf]
    %v5577 = vld [vmem:[%s13 + $0x20] sm:$0xf]
    %v5578 = vld [vmem:[%s13 + $0x24] sm:$0xf]
    %v5579 = vld [vmem:[%s13 + $0x28] sm:$0xf]
    %v5580 = vld [vmem:[%s13 + $0x2c] sm:$0xf]
    %v5581 = vld [vmem:[%s13 + $0x30] sm:$0xf]
    %v5582 = vld [vmem:[%s13 + $0x34] sm:$0xf]
    %v5583 = vld [vmem:[%s13 + $0x38] sm:$0xf]
    %v5584 = vld [vmem:[%s13 + $0x3c] sm:$0xf]
    %s5585 = scalar_lea.vmem %s13, 64
    %v5586 = vld [vmem:[%s5585] sm:$0xf]
    %v5587 = vld [vmem:[%s5585 + $0x4] sm:$0xf]
    %v5588 = vld [vmem:[%s5585 + $0x8] sm:$0xf]
    %v5589 = vld [vmem:[%s5585 + $0xc] sm:$0xf]
    %v5590 = vld [vmem:[%s5585 + $0x10] sm:$0xf]
    %v5591 = vld [vmem:[%s5585 + $0x14] sm:$0xf]
    %v5592 = vld [vmem:[%s5585 + $0x18] sm:$0xf]
    %v5593 = vld [vmem:[%s5585 + $0x1c] sm:$0xf]
    %v5594 = vld [vmem:[%s5585 + $0x20] sm:$0xf]
    %v5595 = vld [vmem:[%s5585 + $0x24] sm:$0xf]
    %v5596 = vld [vmem:[%s5585 + $0x28] sm:$0xf]
    %v5597 = vld [vmem:[%s5585 + $0x2c] sm:$0xf]
    %v5598 = vld [vmem:[%s5585 + $0x30] sm:$0xf]
    %v5599 = vld [vmem:[%s5585 + $0x34] sm:$0xf]
    %v5600 = vld [vmem:[%s5585 + $0x38] sm:$0xf]
    %v5601 = vld [vmem:[%s5585 + $0x3c] sm:$0xf]
    %s5602 = scalar_lea.vmem %s13, 128
    %v5603 = vld [vmem:[%s5602] sm:$0xf]
    %v5604 = vld [vmem:[%s5602 + $0x4] sm:$0xf]
    %v5605 = vld [vmem:[%s5602 + $0x8] sm:$0xf]
    %v5606 = vld [vmem:[%s5602 + $0xc] sm:$0xf]
    %v5607 = vld [vmem:[%s5602 + $0x10] sm:$0xf]
    %v5608 = vld [vmem:[%s5602 + $0x14] sm:$0xf]
    %v5609 = vld [vmem:[%s5602 + $0x18] sm:$0xf]
    %v5610 = vld [vmem:[%s5602 + $0x1c] sm:$0xf]
    %v5611 = vld [vmem:[%s5602 + $0x20] sm:$0xf]
    %v5612 = vld [vmem:[%s5602 + $0x24] sm:$0xf]
    %v5613 = vld [vmem:[%s5602 + $0x28] sm:$0xf]
    %v5614 = vld [vmem:[%s5602 + $0x2c] sm:$0xf]
    %v5615 = vld [vmem:[%s5602 + $0x30] sm:$0xf]
    %v5616 = vld [vmem:[%s5602 + $0x34] sm:$0xf]
    %v5617 = vld [vmem:[%s5602 + $0x38] sm:$0xf]
    %v5618 = vld [vmem:[%s5602 + $0x3c] sm:$0xf]
    %s5619 = scalar_lea.vmem %s13, 192
    %v5620 = vld [vmem:[%s5619] sm:$0xf]
    %v5621 = vld [vmem:[%s5619 + $0x4] sm:$0xf]
    %v5622 = vld [vmem:[%s5619 + $0x8] sm:$0xf]
    %v5623 = vld [vmem:[%s5619 + $0xc] sm:$0xf]
    %v5624 = vld [vmem:[%s5619 + $0x10] sm:$0xf]
    %v5625 = vld [vmem:[%s5619 + $0x14] sm:$0xf]
    %v5626 = vld [vmem:[%s5619 + $0x18] sm:$0xf]
    %v5627 = vld [vmem:[%s5619 + $0x1c] sm:$0xf]
    %v5628 = vld [vmem:[%s5619 + $0x20] sm:$0xf]
    %v5629 = vld [vmem:[%s5619 + $0x24] sm:$0xf]
    %v5630 = vld [vmem:[%s5619 + $0x28] sm:$0xf]
    %v5631 = vld [vmem:[%s5619 + $0x2c] sm:$0xf]
    %v5632 = vld [vmem:[%s5619 + $0x30] sm:$0xf]
    %v5633 = vld [vmem:[%s5619 + $0x34] sm:$0xf]
    %v5634 = vld [vmem:[%s5619 + $0x38] sm:$0xf]
    %v5635 = vld [vmem:[%s5619 + $0x3c] sm:$0xf]
    %v5640 = vrot.slane %v5564, 1
    %v5641 = vrot.slane %v5565, 1
    %v5642 = vsel %vm1363, %v5640, %v5641
    %v5643 = vrot.slane %v5566, 1
    %v5644 = vsel %vm1363, %v5641, %v5643
    %v5645 = vrot.slane %v5567, 1
    %v5646 = vsel %vm1363, %v5643, %v5645
    %v5651 = vsel %vm2255, 0.0, %v5642
    %v5652 = vmul.f32 %v5651, %v132
    %v5653 = vmul.f32 %v5644, %v133
    %v5654 = vmul.f32 %v5646, %v134
    %v5655 = vmul.f32 %v5645, %v135
    %v5660 = vrot.slane %v5553, 1
    %v5661 = vrot.slane %v5554, 1
    %v5662 = vsel %vm1363, %v5660, %v5661
    %v5663 = vrot.slane %v5555, 1
    %v5664 = vsel %vm1363, %v5661, %v5663
    %v5665 = vrot.slane %v5556, 1
    %v5666 = vsel %vm1363, %v5663, %v5665
    %v5671 = vsel %vm2364, %v5665, 0.0
    %v5672 = vmul.f32 %v5662, %v136
    %v5673 = vmul.f32 %v5664, %v137
    %v5674 = vmul.f32 %v5666, %v138
    %v5675 = vmul.f32 %v5671, %v139
    %v5683 = vrot.slane %v5553, 2
    %v5684 = vrot.slane %v5554, 2
    %v5685 = vsel %vm1698, %v5683, %v5684
    %v5686 = vrot.slane %v5555, 2
    %v5687 = vsel %vm1698, %v5684, %v5686
    %v5688 = vrot.slane %v5556, 2
    %v5689 = vsel %vm1698, %v5686, %v5688
    %v5690 = vrot.slane %v5557, 2
    %v5691 = vsel %vm1698, %v5688, %v5690
    %v5692 = vrot.slane %v5558, 2
    %v5693 = vsel %vm1698, %v5690, %v5692
    %v5694 = vrot.slane %v5559, 2
    %v5695 = vsel %vm1698, %v5692, %v5694
    %v5696 = vrot.slane %v5560, 2
    %v5697 = vsel %vm1698, %v5694, %v5696
    %v5698 = vrot.slane %v5561, 2
    %v5699 = vsel %vm1698, %v5696, %v5698
    %v5700 = vrot.slane %v5562, 2
    %v5701 = vsel %vm1698, %v5698, %v5700
    %v5702 = vrot.slane %v5563, 2
    %v5703 = vsel %vm1698, %v5700, %v5702
    %v5704 = vrot.slane %v5564, 2
    %v5705 = vsel %vm1698, %v5702, %v5704
    %v5718 = vsel %vm1698, %v5655, %v5683
    %v5719 = vrot.slane %v5556, 6
    %v5720 = vrot.slane %v5557, 6
    %v5721 = vsel %vm4626, %v5719, %v5720
    %v5722 = vrot.slane %v5558, 6
    %v5723 = vsel %vm4626, %v5720, %v5722
    %v5724 = vrot.slane %v5559, 6
    %v5725 = vsel %vm4626, %v5722, %v5724
    %v5726 = vrot.slane %v5560, 6
    %v5727 = vsel %vm4626, %v5724, %v5726
    %v5728 = vrot.slane %v5561, 6
    %v5729 = vsel %vm4626, %v5726, %v5728
    %v5730 = vrot.slane %v5562, 6
    %v5731 = vsel %vm4626, %v5728, %v5730
    %v5732 = vrot.slane %v5563, 6
    %v5733 = vsel %vm4626, %v5730, %v5732
    %v5734 = vrot.slane %v5564, 6
    %v5735 = vsel %vm4626, %v5732, %v5734
    %v5736 = vrot.slane %v5565, 6
    %v5737 = vsel %vm4626, %v5734, %v5736
    %v5738 = vrot.slane %v5566, 6
    %v5739 = vsel %vm4626, %v5736, %v5738
    %v5740 = vrot.slane %v5567, 6
    %v5741 = vsel %vm4626, %v5738, %v5740
    %v5758 = vrot.slane %v5672, 6
    %v5759 = vrot.slane %v5673, 6
    %v5760 = vsel %vm4626, %v5758, %v5759
    %v5761 = vrot.slane %v5674, 6
    %v5762 = vsel %vm4626, %v5759, %v5761
    %v5763 = vrot.slane %v5675, 6
    %v5764 = vsel %vm4626, %v5761, %v5763
    %v5769 = vsel %vm4626, %v5740, %v5758
    %v5770 = vpack.c.bf16 %v5554, %v5553
    %v5771 = vpack.c.bf16 %v5556, %v5555
    %v5772 = vpack.c.bf16 %v5558, %v5557
    %v5773 = vpack.c.bf16 %v5560, %v5559
    %v5774 = vpack.c.bf16 %v5562, %v5561
    %v5775 = vpack.c.bf16 %v5564, %v5563
    %v5776 = vpack.c.bf16 %v5566, %v5565
    %v5777 = vpack.c.bf16 %v5567, %v5567
    %v5778 = vpack.c.bf16 %v5653, %v5652
    %v5779 = vpack.c.bf16 %v5718, %v5654
    %v5780 = vpack.c.bf16 %v5687, %v5685
    %v5781 = vpack.c.bf16 %v5691, %v5689
    %v5782 = vpack.c.bf16 %v5695, %v5693
    %v5783 = vpack.c.bf16 %v5699, %v5697
    %v5784 = vpack.c.bf16 %v5703, %v5701
    %v5785 = vpack.c.bf16 %v5705, %v5705
    %v5802 = vunpack.c.l.b16 %v5620
    %v5803 = vunpack.c.l.b16 %v5621
    %v5804 = vunpack.c.l.b16 %v5622
    %v5805 = vunpack.c.l.b16 %v5623
    %v5806 = vunpack.c.l.b16 %v5624
    %v5807 = vunpack.c.l.b16 %v5625
    %v5808 = vunpack.c.l.b16 %v5626
    %v5809 = vunpack.c.l.b16 %v5627
    %v5810 = vunpack.c.l.b16 %v5628
    %v5811 = vunpack.c.l.b16 %v5629
    %v5812 = vunpack.c.l.b16 %v5630
    %v5813 = vunpack.c.l.b16 %v5631
    %v5814 = vunpack.c.l.b16 %v5632
    %v5815 = vunpack.c.l.b16 %v5633
    %v5816 = vunpack.c.l.b16 %v5634
    %v5817 = vunpack.c.l.b16 %v5635
    %v5818 = vpack.c.b16 %v5803, %v5802
    %v5819 = vpack.c.b16 %v5805, %v5804
    %v5820 = vpack.c.b16 %v5807, %v5806
    %v5821 = vpack.c.b16 %v5809, %v5808
    %v5822 = vpack.c.b16 %v5811, %v5810
    %v5823 = vpack.c.b16 %v5813, %v5812
    %v5824 = vpack.c.b16 %v5815, %v5814
    %v5825 = vpack.c.b16 %v5817, %v5816
    %5834 = vmatprep.subr.bf16.mxu0 0
    %5835 = vmatpush1.bf16.msra.mxu0 %v5818
    %5836 = vmatprep.subr.bf16.mxu0 0
    %5837 = vmatpush1.bf16.msra.mxu0 %v5819
    %5838 = vmatprep.subr.bf16.mxu0 0
    %5839 = vmatpush1.bf16.msra.mxu0 %v5820
    %5840 = vmatprep.subr.bf16.mxu0 0
    %5841 = vmatpush1.bf16.msra.mxu0 %v5821
    %5842 = vmatprep.subr.bf16.mxu0 0
    %5843 = vmatpush1.bf16.msra.mxu0 %v5822
    %5844 = vmatprep.subr.bf16.mxu0 0
    %5845 = vmatpush1.bf16.msra.mxu0 %v5823
    %5846 = vmatprep.subr.bf16.mxu0 0
    %5847 = vmatpush1.bf16.msra.mxu0 %v5824
    %5848 = vmatprep.subr.bf16.mxu0 0
    %5849 = vmatpush1.bf16.msra.mxu0 %v5825
    %5850 = vmatprep.subr.bf16.mxu0 0
    %5851 = vmatpush1.bf16.msra.mxu0 0
    %5852 = vmatprep.subr.bf16.mxu0 0
    %5853 = vmatpush1.bf16.msra.mxu0 0
    %5854 = vmatprep.subr.bf16.mxu0 0
    %5855 = vmatpush1.bf16.msra.mxu0 0
    %5856 = vmatprep.subr.bf16.mxu0 0
    %5857 = vmatpush1.bf16.msra.mxu0 0
    %5858 = vmatprep.subr.bf16.mxu0 0
    %5859 = vmatpush1.bf16.msra.mxu0 0
    %5860 = vmatprep.subr.bf16.mxu0 0
    %5861 = vmatpush1.bf16.msra.mxu0 0
    %5862 = vmatprep.subr.bf16.mxu0 0
    %5863 = vmatpush1.bf16.msra.mxu0 0
    %5864 = vmatprep.subr.bf16.mxu0 0
    %5865 = vmatpush1.bf16.msra.mxu0 0
    %5866 = vmatprep.mubr.bf16.mxu0 0
    %5867 = vmatmul.mubr.bf16.gmra.mrb[0].mxu0 %v5778
    %v5868 = vpop.f32.mrb[0].mxu0
    %v5869 = vadd.f32 0.0, %v5868
    %v5870 = vpop.f32.mrb[0].mxu0
    %v5871 = vpop.f32.mrb[0].mxu0
    %v5872 = vadd.f32 0.0, %v5871
    %v5873 = vpop.f32.mrb[0].mxu0
    %5874 = vmatprep.mubr.bf16.mxu0 0
    %5875 = vmatmul.mubr.bf16.gmra.mrb[0].mxu0 %v5779
    %v5876 = vpop.f32.mrb[0].mxu0
    %v5877 = vadd.f32 0.0, %v5876
    %v5878 = vpop.f32.mrb[0].mxu0
    %v5879 = vpop.f32.mrb[0].mxu0
    %v5880 = vadd.f32 0.0, %v5879
    %v5881 = vpop.f32.mrb[0].mxu0
    %5882 = vmatprep.mubr.bf16.mxu0 0
    %5883 = vmatmul.mubr.bf16.gmra.mrb[0].mxu0 %v5780
    %v5884 = vpop.f32.mrb[0].mxu0
    %v5885 = vadd.f32 0.0, %v5884
    %v5886 = vpop.f32.mrb[0].mxu0
    %v5887 = vpop.f32.mrb[0].mxu0
    %v5888 = vadd.f32 0.0, %v5887
    %v5889 = vpop.f32.mrb[0].mxu0
    %5890 = vmatprep.mubr.bf16.mxu0 0
    %5891 = vmatmul.mubr.bf16.gmra.mrb[0].mxu0 %v5781
    %v5892 = vpop.f32.mrb[0].mxu0
    %v5893 = vadd.f32 0.0, %v5892
    %v5894 = vpop.f32.mrb[0].mxu0
    %v5895 = vpop.f32.mrb[0].mxu0
    %v5896 = vadd.f32 0.0, %v5895
    %v5897 = vpop.f32.mrb[0].mxu0
    %5898 = vmatprep.mubr.bf16.mxu0 0
    %5899 = vmatmul.mubr.bf16.gmra.mrb[0].mxu0 %v5782
    %v5900 = vpop.f32.mrb[0].mxu0
    %v5901 = vadd.f32 0.0, %v5900
    %v5902 = vpop.f32.mrb[0].mxu0
    %v5903 = vpop.f32.mrb[0].mxu0
    %v5904 = vadd.f32 0.0, %v5903
    %v5905 = vpop.f32.mrb[0].mxu0
    %5906 = vmatprep.mubr.bf16.mxu0 0
    %5907 = vmatmul.mubr.bf16.gmra.mrb[0].mxu0 %v5783
    %v5908 = vpop.f32.mrb[0].mxu0
    %v5909 = vadd.f32 0.0, %v5908
    %v5910 = vpop.f32.mrb[0].mxu0
    %v5911 = vpop.f32.mrb[0].mxu0
    %v5912 = vadd.f32 0.0, %v5911
    %v5913 = vpop.f32.mrb[0].mxu0
    %5914 = vmatprep.mubr.bf16.mxu0 0
    %5915 = vmatmul.mubr.bf16.gmra.mrb[0].mxu0 %v5784
    %v5916 = vpop.f32.mrb[0].mxu0
    %v5917 = vadd.f32 0.0, %v5916
    %v5918 = vpop.f32.mrb[0].mxu0
    %v5919 = vpop.f32.mrb[0].mxu0
    %v5920 = vadd.f32 0.0, %v5919
    %v5921 = vpop.f32.mrb[0].mxu0
    %5922 = vmatprep.mubr.bf16.mxu0 0
    %5923 = vmatmul.mubr.bf16.gmra.mrb[0].mxu0 %v5785
    %v5924 = vpop.f32.mrb[0].mxu0
    %v5925 = vadd.f32 0.0, %v5924
    %v5926 = vpop.f32.mrb[0].mxu0
    %v5927 = vpop.f32.mrb[0].mxu0
    %v5928 = vpop.f32.mrb[0].mxu0
    %5929 = vdwg.mxu0
    %v5946 = vunpack.c.l.b16 %v5586
    %v5947 = vunpack.c.l.b16 %v5587
    %v5948 = vunpack.c.l.b16 %v5588
    %v5949 = vunpack.c.l.b16 %v5589
    %v5950 = vunpack.c.l.b16 %v5590
    %v5951 = vunpack.c.l.b16 %v5591
    %v5952 = vunpack.c.l.b16 %v5592
    %v5953 = vunpack.c.l.b16 %v5593
    %v5954 = vunpack.c.l.b16 %v5594
    %v5955 = vunpack.c.l.b16 %v5595
    %v5956 = vunpack.c.l.b16 %v5596
    %v5957 = vunpack.c.l.b16 %v5597
    %v5958 = vunpack.c.l.b16 %v5598
    %v5959 = vunpack.c.l.b16 %v5599
    %v5960 = vunpack.c.l.b16 %v5600
    %v5961 = vunpack.c.l.b16 %v5601
    %v5962 = vpack.c.b16 %v5947, %v5946
    %v5963 = vpack.c.b16 %v5949, %v5948
    %v5964 = vpack.c.b16 %v5951, %v5950
    %v5965 = vpack.c.b16 %v5953, %v5952
    %v5966 = vpack.c.b16 %v5955, %v5954
    %v5967 = vpack.c.b16 %v5957, %v5956
    %v5968 = vpack.c.b16 %v5959, %v5958
    %v5969 = vpack.c.b16 %v5961, %v5960
    %5978 = vmatprep.subr.bf16.mxu0 0
    %5979 = vmatpush1.bf16.msra.mxu0 %v5962
    %5980 = vmatprep.subr.bf16.mxu0 0
    %5981 = vmatpush1.bf16.msra.mxu0 %v5963
    %5982 = vmatprep.subr.bf16.mxu0 0
    %5983 = vmatpush1.bf16.msra.mxu0 %v5964
    %5984 = vmatprep.subr.bf16.mxu0 0
    %5985 = vmatpush1.bf16.msra.mxu0 %v5965
    %5986 = vmatprep.subr.bf16.mxu0 0
    %5987 = vmatpush1.bf16.msra.mxu0 %v5966
    %5988 = vmatprep.subr.bf16.mxu0 0
    %5989 = vmatpush1.bf16.msra.mxu0 %v5967
    %5990 = vmatprep.subr.bf16.mxu0 0
    %5991 = vmatpush1.bf16.msra.mxu0 %v5968
    %5992 = vmatprep.subr.bf16.mxu0 0
    %5993 = vmatpush1.bf16.msra.mxu0 %v5969
    %5994 = vmatprep.subr.bf16.mxu0 0
    %5995 = vmatpush1.bf16.msra.mxu0 0
    %5996 = vmatprep.subr.bf16.mxu0 0
    %5997 = vmatpush1.bf16.msra.mxu0 0
    %5998 = vmatprep.subr.bf16.mxu0 0
    %5999 = vmatpush1.bf16.msra.mxu0 0
    %6000 = vmatprep.subr.bf16.mxu0 0
    %6001 = vmatpush1.bf16.msra.mxu0 0
    %6002 = vmatprep.subr.bf16.mxu0 0
    %6003 = vmatpush1.bf16.msra.mxu0 0
    %6004 = vmatprep.subr.bf16.mxu0 0
    %6005 = vmatpush1.bf16.msra.mxu0 0
    %6006 = vmatprep.subr.bf16.mxu0 0
    %6007 = vmatpush1.bf16.msra.mxu0 0
    %6008 = vmatprep.subr.bf16.mxu0 0
    %6009 = vmatpush1.bf16.msra.mxu0 0
    %6010 = vmatprep.mubr.bf16.mxu0 0
    %6011 = vmatmul.mubr.bf16.gmra.mrb[0].mxu0 %v5770
    %v6012 = vpop.f32.mrb[0].mxu0
    %v6013 = vadd.f32 %v5869, %v6012
    %v6014 = vpop.f32.mrb[0].mxu0
    %v6015 = vpop.f32.mrb[0].mxu0
    %v6016 = vadd.f32 %v5872, %v6015
    %v6017 = vpop.f32.mrb[0].mxu0
    %6018 = vmatprep.mubr.bf16.mxu0 0
    %6019 = vmatmul.mubr.bf16.gmra.mrb[0].mxu0 %v5771
    %v6020 = vpop.f32.mrb[0].mxu0
    %v6021 = vadd.f32 %v5877, %v6020
    %v6022 = vpop.f32.mrb[0].mxu0
    %v6023 = vpop.f32.mrb[0].mxu0
    %v6024 = vadd.f32 %v5880, %v6023
    %v6025 = vpop.f32.mrb[0].mxu0
    %6026 = vmatprep.mubr.bf16.mxu0 0
    %6027 = vmatmul.mubr.bf16.gmra.mrb[0].mxu0 %v5772
    %v6028 = vpop.f32.mrb[0].mxu0
    %v6029 = vadd.f32 %v5885, %v6028
    %v6030 = vpop.f32.mrb[0].mxu0
    %v6031 = vpop.f32.mrb[0].mxu0
    %v6032 = vadd.f32 %v5888, %v6031
    %v6033 = vpop.f32.mrb[0].mxu0
    %6034 = vmatprep.mubr.bf16.mxu0 0
    %6035 = vmatmul.mubr.bf16.gmra.mrb[0].mxu0 %v5773
    %v6036 = vpop.f32.mrb[0].mxu0
    %v6037 = vadd.f32 %v5893, %v6036
    %v6038 = vpop.f32.mrb[0].mxu0
    %v6039 = vpop.f32.mrb[0].mxu0
    %v6040 = vadd.f32 %v5896, %v6039
    %v6041 = vpop.f32.mrb[0].mxu0
    %6042 = vmatprep.mubr.bf16.mxu0 0
    %6043 = vmatmul.mubr.bf16.gmra.mrb[0].mxu0 %v5774
    %v6044 = vpop.f32.mrb[0].mxu0
    %v6045 = vadd.f32 %v5901, %v6044
    %v6046 = vpop.f32.mrb[0].mxu0
    %v6047 = vpop.f32.mrb[0].mxu0
    %v6048 = vadd.f32 %v5904, %v6047
    %v6049 = vpop.f32.mrb[0].mxu0
    %6050 = vmatprep.mubr.bf16.mxu0 0
    %6051 = vmatmul.mubr.bf16.gmra.mrb[0].mxu0 %v5775
    %v6052 = vpop.f32.mrb[0].mxu0
    %v6053 = vadd.f32 %v5909, %v6052
    %v6054 = vpop.f32.mrb[0].mxu0
    %v6055 = vpop.f32.mrb[0].mxu0
    %v6056 = vadd.f32 %v5912, %v6055
    %v6057 = vpop.f32.mrb[0].mxu0
    %6058 = vmatprep.mubr.bf16.mxu0 0
    %6059 = vmatmul.mubr.bf16.gmra.mrb[0].mxu0 %v5776
    %v6060 = vpop.f32.mrb[0].mxu0
    %v6061 = vadd.f32 %v5917, %v6060
    %v6062 = vpop.f32.mrb[0].mxu0
    %v6063 = vpop.f32.mrb[0].mxu0
    %v6064 = vadd.f32 %v5920, %v6063
    %v6065 = vpop.f32.mrb[0].mxu0
    %6066 = vmatprep.mubr.bf16.mxu0 0
    %6067 = vmatmul.mubr.bf16.gmra.mrb[0].mxu0 %v5777
    %v6068 = vpop.f32.mrb[0].mxu0
    %v6069 = vadd.f32 %v5925, %v6068
    %v6070 = vpop.f32.mrb[0].mxu0
    %v6071 = vpop.f32.mrb[0].mxu0
    %v6072 = vpop.f32.mrb[0].mxu0
    %6073 = vdwg.mxu0
    %v6075 = vlaneseq
    %v6076 = vshrl.u32 %v6075, 7
    %v6077 = vsub.s32 0, %v6076
    %v6078 = vrot.slane %v5568, %v6077
    %v6080 = vadd.f32 %v6013, %v6078
    %v6081 = vadd.f32 %v6016, %v6078
    %v6082 = vadd.f32 %v6021, %v6078
    %v6083 = vadd.f32 %v6024, %v6078
    %v6084 = vadd.f32 %v6029, %v6078
    %v6085 = vadd.f32 %v6032, %v6078
    %v6086 = vadd.f32 %v6037, %v6078
    %v6087 = vadd.f32 %v6040, %v6078
    %v6088 = vadd.f32 %v6045, %v6078
    %v6089 = vadd.f32 %v6048, %v6078
    %v6090 = vadd.f32 %v6053, %v6078
    %v6091 = vadd.f32 %v6056, %v6078
    %v6092 = vadd.f32 %v6061, %v6078
    %v6093 = vadd.f32 %v6064, %v6078
    %v6094 = vadd.f32 %v6069, %v6078
    %v6095 = vpack.c.bf16 %v5723, %v5721
    %v6096 = vpack.c.bf16 %v5727, %v5725
    %v6097 = vpack.c.bf16 %v5731, %v5729
    %v6098 = vpack.c.bf16 %v5735, %v5733
    %v6099 = vpack.c.bf16 %v5739, %v5737
    %v6100 = vpack.c.bf16 %v5769, %v5741
    %v6101 = vpack.c.bf16 %v5762, %v5760
    %v6102 = vpack.c.bf16 %v5764, %v5764
    %v6119 = vunpack.c.l.b16 %v5603
    %v6120 = vunpack.c.l.b16 %v5604
    %v6121 = vunpack.c.l.b16 %v5605
    %v6122 = vunpack.c.l.b16 %v5606
    %v6123 = vunpack.c.l.b16 %v5607
    %v6124 = vunpack.c.l.b16 %v5608
    %v6125 = vunpack.c.l.b16 %v5609
    %v6126 = vunpack.c.l.b16 %v5610
    %v6127 = vunpack.c.l.b16 %v5611
    %v6128 = vunpack.c.l.b16 %v5612
    %v6129 = vunpack.c.l.b16 %v5613
    %v6130 = vunpack.c.l.b16 %v5614
    %v6131 = vunpack.c.l.b16 %v5615
    %v6132 = vunpack.c.l.b16 %v5616
    %v6133 = vunpack.c.l.b16 %v5617
    %v6134 = vunpack.c.l.b16 %v5618
    %v6135 = vpack.c.b16 %v6120, %v6119
    %v6136 = vpack.c.b16 %v6122, %v6121
    %v6137 = vpack.c.b16 %v6124, %v6123
    %v6138 = vpack.c.b16 %v6126, %v6125
    %v6139 = vpack.c.b16 %v6128, %v6127
    %v6140 = vpack.c.b16 %v6130, %v6129
    %v6141 = vpack.c.b16 %v6132, %v6131
    %v6142 = vpack.c.b16 %v6134, %v6133
    %6151 = vmatprep.subr.bf16.mxu0 0
    %6152 = vmatpush1.bf16.msra.mxu0 %v6135
    %6153 = vmatprep.subr.bf16.mxu0 0
    %6154 = vmatpush1.bf16.msra.mxu0 %v6136
    %6155 = vmatprep.subr.bf16.mxu0 0
    %6156 = vmatpush1.bf16.msra.mxu0 %v6137
    %6157 = vmatprep.subr.bf16.mxu0 0
    %6158 = vmatpush1.bf16.msra.mxu0 %v6138
    %6159 = vmatprep.subr.bf16.mxu0 0
    %6160 = vmatpush1.bf16.msra.mxu0 %v6139
    %6161 = vmatprep.subr.bf16.mxu0 0
    %6162 = vmatpush1.bf16.msra.mxu0 %v6140
    %6163 = vmatprep.subr.bf16.mxu0 0
    %6164 = vmatpush1.bf16.msra.mxu0 %v6141
    %6165 = vmatprep.subr.bf16.mxu0 0
    %6166 = vmatpush1.bf16.msra.mxu0 %v6142
    %6167 = vmatprep.subr.bf16.mxu0 0
    %6168 = vmatpush1.bf16.msra.mxu0 0
    %6169 = vmatprep.subr.bf16.mxu0 0
    %6170 = vmatpush1.bf16.msra.mxu0 0
    %6171 = vmatprep.subr.bf16.mxu0 0
    %6172 = vmatpush1.bf16.msra.mxu0 0
    %6173 = vmatprep.subr.bf16.mxu0 0
    %6174 = vmatpush1.bf16.msra.mxu0 0
    %6175 = vmatprep.subr.bf16.mxu0 0
    %6176 = vmatpush1.bf16.msra.mxu0 0
    %6177 = vmatprep.subr.bf16.mxu0 0
    %6178 = vmatpush1.bf16.msra.mxu0 0
    %6179 = vmatprep.subr.bf16.mxu0 0
    %6180 = vmatpush1.bf16.msra.mxu0 0
    %6181 = vmatprep.subr.bf16.mxu0 0
    %6182 = vmatpush1.bf16.msra.mxu0 0
    %6183 = vmatprep.mubr.bf16.mxu0 0
    %6184 = vmatmul.mubr.bf16.gmra.mrb[0].mxu0 %v5770
    %v6185 = vpop.f32.mrb[0].mxu0
    %v6186 = vadd.f32 0.0, %v6185
    %v6187 = vpop.f32.mrb[0].mxu0
    %v6188 = vpop.f32.mrb[0].mxu0
    %v6189 = vadd.f32 0.0, %v6188
    %v6190 = vpop.f32.mrb[0].mxu0
    %6191 = vmatprep.mubr.bf16.mxu0 0
    %6192 = vmatmul.mubr.bf16.gmra.mrb[0].mxu0 %v5771
    %v6193 = vpop.f32.mrb[0].mxu0
    %v6194 = vadd.f32 0.0, %v6193
    %v6195 = vpop.f32.mrb[0].mxu0
    %v6196 = vpop.f32.mrb[0].mxu0
    %v6197 = vadd.f32 0.0, %v6196
    %v6198 = vpop.f32.mrb[0].mxu0
    %6199 = vmatprep.mubr.bf16.mxu0 0
    %6200 = vmatmul.mubr.bf16.gmra.mrb[0].mxu0 %v5772
    %v6201 = vpop.f32.mrb[0].mxu0
    %v6202 = vadd.f32 0.0, %v6201
    %v6203 = vpop.f32.mrb[0].mxu0
    %v6204 = vpop.f32.mrb[0].mxu0
    %v6205 = vadd.f32 0.0, %v6204
    %v6206 = vpop.f32.mrb[0].mxu0
    %6207 = vmatprep.mubr.bf16.mxu0 0
    %6208 = vmatmul.mubr.bf16.gmra.mrb[0].mxu0 %v5773
    %v6209 = vpop.f32.mrb[0].mxu0
    %v6210 = vadd.f32 0.0, %v6209
    %v6211 = vpop.f32.mrb[0].mxu0
    %v6212 = vpop.f32.mrb[0].mxu0
    %v6213 = vadd.f32 0.0, %v6212
    %v6214 = vpop.f32.mrb[0].mxu0
    %6215 = vmatprep.mubr.bf16.mxu0 0
    %6216 = vmatmul.mubr.bf16.gmra.mrb[0].mxu0 %v5774
    %v6217 = vpop.f32.mrb[0].mxu0
    %v6218 = vadd.f32 0.0, %v6217
    %v6219 = vpop.f32.mrb[0].mxu0
    %v6220 = vpop.f32.mrb[0].mxu0
    %v6221 = vadd.f32 0.0, %v6220
    %v6222 = vpop.f32.mrb[0].mxu0
    %6223 = vmatprep.mubr.bf16.mxu0 0
    %6224 = vmatmul.mubr.bf16.gmra.mrb[0].mxu0 %v5775
    %v6225 = vpop.f32.mrb[0].mxu0
    %v6226 = vadd.f32 0.0, %v6225
    %v6227 = vpop.f32.mrb[0].mxu0
    %v6228 = vpop.f32.mrb[0].mxu0
    %v6229 = vadd.f32 0.0, %v6228
    %v6230 = vpop.f32.mrb[0].mxu0
    %6231 = vmatprep.mubr.bf16.mxu0 0
    %6232 = vmatmul.mubr.bf16.gmra.mrb[0].mxu0 %v5776
    %v6233 = vpop.f32.mrb[0].mxu0
    %v6234 = vadd.f32 0.0, %v6233
    %v6235 = vpop.f32.mrb[0].mxu0
    %v6236 = vpop.f32.mrb[0].mxu0
    %v6237 = vadd.f32 0.0, %v6236
    %v6238 = vpop.f32.mrb[0].mxu0
    %6239 = vmatprep.mubr.bf16.mxu0 0
    %6240 = vmatmul.mubr.bf16.gmra.mrb[0].mxu0 %v5777
    %v6241 = vpop.f32.mrb[0].mxu0
    %v6242 = vadd.f32 0.0, %v6241
    %v6243 = vpop.f32.mrb[0].mxu0
    %v6244 = vpop.f32.mrb[0].mxu0
    %v6245 = vpop.f32.mrb[0].mxu0
    %6246 = vdwg.mxu0
    %v6263 = vunpack.c.l.b16 %v5569
    %v6264 = vunpack.c.l.b16 %v5570
    %v6265 = vunpack.c.l.b16 %v5571
    %v6266 = vunpack.c.l.b16 %v5572
    %v6267 = vunpack.c.l.b16 %v5573
    %v6268 = vunpack.c.l.b16 %v5574
    %v6269 = vunpack.c.l.b16 %v5575
    %v6270 = vunpack.c.l.b16 %v5576
    %v6271 = vunpack.c.l.b16 %v5577
    %v6272 = vunpack.c.l.b16 %v5578
    %v6273 = vunpack.c.l.b16 %v5579
    %v6274 = vunpack.c.l.b16 %v5580
    %v6275 = vunpack.c.l.b16 %v5581
    %v6276 = vunpack.c.l.b16 %v5582
    %v6277 = vunpack.c.l.b16 %v5583
    %v6278 = vunpack.c.l.b16 %v5584
    %v6279 = vpack.c.b16 %v6264, %v6263
    %v6280 = vpack.c.b16 %v6266, %v6265
    %v6281 = vpack.c.b16 %v6268, %v6267
    %v6282 = vpack.c.b16 %v6270, %v6269
    %v6283 = vpack.c.b16 %v6272, %v6271
    %v6284 = vpack.c.b16 %v6274, %v6273
    %v6285 = vpack.c.b16 %v6276, %v6275
    %v6286 = vpack.c.b16 %v6278, %v6277
    %6295 = vmatprep.subr.bf16.mxu0 0
    %6296 = vmatpush1.bf16.msra.mxu0 %v6279
    %6297 = vmatprep.subr.bf16.mxu0 0
    %6298 = vmatpush1.bf16.msra.mxu0 %v6280
    %6299 = vmatprep.subr.bf16.mxu0 0
    %6300 = vmatpush1.bf16.msra.mxu0 %v6281
    %6301 = vmatprep.subr.bf16.mxu0 0
    %6302 = vmatpush1.bf16.msra.mxu0 %v6282
    %6303 = vmatprep.subr.bf16.mxu0 0
    %6304 = vmatpush1.bf16.msra.mxu0 %v6283
    %6305 = vmatprep.subr.bf16.mxu0 0
    %6306 = vmatpush1.bf16.msra.mxu0 %v6284
    %6307 = vmatprep.subr.bf16.mxu0 0
    %6308 = vmatpush1.bf16.msra.mxu0 %v6285
    %6309 = vmatprep.subr.bf16.mxu0 0
    %6310 = vmatpush1.bf16.msra.mxu0 %v6286
    %6311 = vmatprep.subr.bf16.mxu0 0
    %6312 = vmatpush1.bf16.msra.mxu0 0
    %6313 = vmatprep.subr.bf16.mxu0 0
    %6314 = vmatpush1.bf16.msra.mxu0 0
    %6315 = vmatprep.subr.bf16.mxu0 0
    %6316 = vmatpush1.bf16.msra.mxu0 0
    %6317 = vmatprep.subr.bf16.mxu0 0
    %6318 = vmatpush1.bf16.msra.mxu0 0
    %6319 = vmatprep.subr.bf16.mxu0 0
    %6320 = vmatpush1.bf16.msra.mxu0 0
    %6321 = vmatprep.subr.bf16.mxu0 0
    %6322 = vmatpush1.bf16.msra.mxu0 0
    %6323 = vmatprep.subr.bf16.mxu0 0
    %6324 = vmatpush1.bf16.msra.mxu0 0
    %6325 = vmatprep.subr.bf16.mxu0 0
    %6326 = vmatpush1.bf16.msra.mxu0 0
    %6327 = vmatprep.mubr.bf16.mxu0 0
    %6328 = vmatmul.mubr.bf16.gmra.mrb[0].mxu0 %v6095
    %v6329 = vpop.f32.mrb[0].mxu0
    %v6330 = vadd.f32 %v6186, %v6329
    %v6331 = vpop.f32.mrb[0].mxu0
    %v6332 = vpop.f32.mrb[0].mxu0
    %v6333 = vadd.f32 %v6189, %v6332
    %v6334 = vpop.f32.mrb[0].mxu0
    %6335 = vmatprep.mubr.bf16.mxu0 0
    %6336 = vmatmul.mubr.bf16.gmra.mrb[0].mxu0 %v6096
    %v6337 = vpop.f32.mrb[0].mxu0
    %v6338 = vadd.f32 %v6194, %v6337
    %v6339 = vpop.f32.mrb[0].mxu0
    %v6340 = vpop.f32.mrb[0].mxu0
    %v6341 = vadd.f32 %v6197, %v6340
    %v6342 = vpop.f32.mrb[0].mxu0
    %6343 = vmatprep.mubr.bf16.mxu0 0
    %6344 = vmatmul.mubr.bf16.gmra.mrb[0].mxu0 %v6097
    %v6345 = vpop.f32.mrb[0].mxu0
    %v6346 = vadd.f32 %v6202, %v6345
    %v6347 = vpop.f32.mrb[0].mxu0
    %v6348 = vpop.f32.mrb[0].mxu0
    %v6349 = vadd.f32 %v6205, %v6348
    %v6350 = vpop.f32.mrb[0].mxu0
    %6351 = vmatprep.mubr.bf16.mxu0 0
    %6352 = vmatmul.mubr.bf16.gmra.mrb[0].mxu0 %v6098
    %v6353 = vpop.f32.mrb[0].mxu0
    %v6354 = vadd.f32 %v6210, %v6353
    %v6355 = vpop.f32.mrb[0].mxu0
    %v6356 = vpop.f32.mrb[0].mxu0
    %v6357 = vadd.f32 %v6213, %v6356
    %v6358 = vpop.f32.mrb[0].mxu0
    %6359 = vmatprep.mubr.bf16.mxu0 0
    %6360 = vmatmul.mubr.bf16.gmra.mrb[0].mxu0 %v6099
    %v6361 = vpop.f32.mrb[0].mxu0
    %v6362 = vadd.f32 %v6218, %v6361
    %v6363 = vpop.f32.mrb[0].mxu0
    %v6364 = vpop.f32.mrb[0].mxu0
    %v6365 = vadd.f32 %v6221, %v6364
    %v6366 = vpop.f32.mrb[0].mxu0
    %6367 = vmatprep.mubr.bf16.mxu0 0
    %6368 = vmatmul.mubr.bf16.gmra.mrb[0].mxu0 %v6100
    %v6369 = vpop.f32.mrb[0].mxu0
    %v6370 = vadd.f32 %v6226, %v6369
    %v6371 = vpop.f32.mrb[0].mxu0
    %v6372 = vpop.f32.mrb[0].mxu0
    %v6373 = vadd.f32 %v6229, %v6372
    %v6374 = vpop.f32.mrb[0].mxu0
    %6375 = vmatprep.mubr.bf16.mxu0 0
    %6376 = vmatmul.mubr.bf16.gmra.mrb[0].mxu0 %v6101
    %v6377 = vpop.f32.mrb[0].mxu0
    %v6378 = vadd.f32 %v6234, %v6377
    %v6379 = vpop.f32.mrb[0].mxu0
    %v6380 = vpop.f32.mrb[0].mxu0
    %v6381 = vadd.f32 %v6237, %v6380
    %v6382 = vpop.f32.mrb[0].mxu0
    %6383 = vmatprep.mubr.bf16.mxu0 0
    %6384 = vmatmul.mubr.bf16.gmra.mrb[0].mxu0 %v6102
    %v6385 = vpop.f32.mrb[0].mxu0
    %v6386 = vadd.f32 %v6242, %v6385
    %v6387 = vpop.f32.mrb[0].mxu0
    %v6388 = vpop.f32.mrb[0].mxu0
    %v6389 = vpop.f32.mrb[0].mxu0
    %6390 = vdwg.mxu0
    %v6391 = vadd.f32 %v6330, %v6078
    %v6392 = vadd.f32 %v6333, %v6078
    %v6393 = vadd.f32 %v6338, %v6078
    %v6394 = vadd.f32 %v6341, %v6078
    %v6395 = vadd.f32 %v6346, %v6078
    %v6396 = vadd.f32 %v6349, %v6078
    %v6397 = vadd.f32 %v6354, %v6078
    %v6398 = vadd.f32 %v6357, %v6078
    %v6399 = vadd.f32 %v6362, %v6078
    %v6400 = vadd.f32 %v6365, %v6078
    %v6401 = vadd.f32 %v6370, %v6078
    %v6402 = vadd.f32 %v6373, %v6078
    %v6403 = vadd.f32 %v6378, %v6078
    %v6404 = vadd.f32 %v6381, %v6078
    %v6405 = vadd.f32 %v6386, %v6078
    %v6410 = vrot.slane %v6391, 2
    %v6411 = vrot.slane %v6392, 2
    %v6412 = vsel %vm1698, %v6410, %v6411
    %v6413 = vrot.slane %v6393, 2
    %v6414 = vsel %vm1698, %v6411, %v6413
    %v6415 = vrot.slane %v6394, 2
    %v6416 = vsel %vm1698, %v6413, %v6415
    %v6427 = vrot.slane %v6083, 2
    %v6428 = vrot.slane %v6084, 2
    %v6429 = vsel %vm1698, %v6427, %v6428
    %v6430 = vrot.slane %v6085, 2
    %v6431 = vsel %vm1698, %v6428, %v6430
    %v6432 = vrot.slane %v6086, 2
    %v6433 = vsel %vm1698, %v6430, %v6432
    %v6434 = vrot.slane %v6087, 2
    %v6435 = vsel %vm1698, %v6432, %v6434
    %v6445 = vrot.slane %v6394, 4
    %v6446 = vrot.slane %v6395, 4
    %v6447 = vsel %vm4182, %v6445, %v6446
    %v6448 = vrot.slane %v6396, 4
    %v6449 = vsel %vm4182, %v6446, %v6448
    %v6450 = vrot.slane %v6397, 4
    %v6451 = vsel %vm4182, %v6448, %v6450
    %v6452 = vrot.slane %v6398, 4
    %v6453 = vsel %vm4182, %v6450, %v6452
    %v6462 = vrot.slane %v6087, 4
    %v6463 = vrot.slane %v6088, 4
    %v6464 = vsel %vm4182, %v6462, %v6463
    %v6465 = vrot.slane %v6089, 4
    %v6466 = vsel %vm4182, %v6463, %v6465
    %v6467 = vrot.slane %v6090, 4
    %v6468 = vsel %vm4182, %v6465, %v6467
    %v6469 = vrot.slane %v6091, 4
    %v6470 = vsel %vm4182, %v6467, %v6469
    %v6479 = vrot.slane %v6398, 6
    %v6480 = vrot.slane %v6399, 6
    %v6481 = vsel %vm4626, %v6479, %v6480
    %v6482 = vrot.slane %v6400, 6
    %v6483 = vsel %vm4626, %v6480, %v6482
    %v6484 = vrot.slane %v6401, 6
    %v6485 = vsel %vm4626, %v6482, %v6484
    %v6486 = vrot.slane %v6402, 6
    %v6487 = vsel %vm4626, %v6484, %v6486
    %v6496 = vrot.slane %v6091, 6
    %v6497 = vrot.slane %v6092, 6
    %v6498 = vsel %vm4626, %v6496, %v6497
    %v6499 = vrot.slane %v6093, 6
    %v6500 = vsel %vm4626, %v6497, %v6499
    %v6501 = vrot.slane %v6094, 6
    %v6502 = vsel %vm4626, %v6499, %v6501
    %v6508 = vsel %vm1698, %v6083, %v6410
    %v6509 = vsel %vm4182, %v6415, %v6429
    %v6510 = vsel %vm4626, %v6434, %v6447
    %v6511 = vsel %vm1698, %v6470, %v6479
    %v6512 = vsel %vm4182, %v6487, %v6496
    %v6513 = vsel %vm4626, %v6501, %v6402
    %v6514 = vld [vmem:[%s15] sm:$0x1]
    %v6515 = vld [vmem:[%s16] sm:$0x1]
    %vm6516 = vcmask 523264
    %v6517 = vsel %vm6516, %v6080, 0.0
    %v6518 = vsel %vm6516, %v6081, 0.0
    %v6519 = vadd.f32 %v6517, %v6518
    %v6520 = vsel %vm6516, %v6082, 0.0
    %v6521 = vadd.f32 %v6519, %v6520
    %v6522 = vsel %vm6516, %v6508, 0.0
    %v6523 = vadd.f32 %v6521, %v6522
    %v6524 = vsel %vm6516, %v6412, 0.0
    %v6525 = vadd.f32 %v6523, %v6524
    %v6526 = vsel %vm6516, %v6414, 0.0
    %v6527 = vadd.f32 %v6525, %v6526
    %v6528 = vsel %vm6516, %v6416, 0.0
    %v6529 = vadd.f32 %v6527, %v6528
    %v6530 = vsel %vm6516, %v6509, 0.0
    %v6531 = vadd.f32 %v6529, %v6530
    %v6532 = vsel %vm6516, %v6431, 0.0
    %v6533 = vadd.f32 %v6531, %v6532
    %v6534 = vsel %vm6516, %v6433, 0.0
    %v6535 = vadd.f32 %v6533, %v6534
    %v6536 = vsel %vm6516, %v6435, 0.0
    %v6537 = vadd.f32 %v6535, %v6536
    %v6538 = vsel %vm6516, %v6510, 0.0
    %v6539 = vadd.f32 %v6537, %v6538
    %v6540 = vsel %vm6516, %v6449, 0.0
    %v6541 = vadd.f32 %v6539, %v6540
    %v6542 = vsel %vm6516, %v6451, 0.0
    %v6543 = vadd.f32 %v6541, %v6542
    %v6544 = vsel %vm6516, %v6453, 0.0
    %v6545 = vadd.f32 %v6543, %v6544
    %v6546 = vsel %vm6516, %v6464, 0.0
    %v6547 = vadd.f32 %v6545, %v6546
    %v6548 = vsel %vm6516, %v6466, 0.0
    %v6549 = vadd.f32 %v6547, %v6548
    %v6550 = vsel %vm6516, %v6468, 0.0
    %v6551 = vadd.f32 %v6549, %v6550
    %v6552 = vsel %vm6516, %v6511, 0.0
    %v6553 = vadd.f32 %v6551, %v6552
    %v6554 = vsel %vm6516, %v6481, 0.0
    %v6555 = vadd.f32 %v6553, %v6554
    %v6556 = vsel %vm6516, %v6483, 0.0
    %v6557 = vadd.f32 %v6555, %v6556
    %v6558 = vsel %vm6516, %v6485, 0.0
    %v6559 = vadd.f32 %v6557, %v6558
    %v6560 = vsel %vm6516, %v6512, 0.0
    %v6561 = vadd.f32 %v6559, %v6560
    %v6562 = vsel %vm6516, %v6498, 0.0
    %v6563 = vadd.f32 %v6561, %v6562
    %v6564 = vsel %vm6516, %v6500, 0.0
    %v6565 = vadd.f32 %v6563, %v6564
    %v6566 = vsel %vm6516, %v6502, 0.0
    %v6567 = vadd.f32 %v6565, %v6566
    %v6568 = vsel %vm6516, %v6513, 0.0
    %v6569 = vadd.f32 %v6567, %v6568
    %v6570 = vsel %vm6516, %v6403, 0.0
    %v6571 = vadd.f32 %v6569, %v6570
    %v6572 = vsel %vm6516, %v6404, 0.0
    %v6573 = vadd.f32 %v6571, %v6572
    %v6574 = vsel %vm6516, %v6405, 0.0
    %v6575 = vadd.f32 %v6573, %v6574
    %v6576 = vrot.slane %v6575, 4
    %v6577 = vadd.f32 %v6575, %v6576
    %v6578 = vrot.slane %v6577, 2
    %v6579 = vadd.f32 %v6577, %v6578
    %v6580 = vrot.slane %v6579, 1
    %v6581 = vadd.f32 %v6579, %v6580
    %v6582 = vmul.f32 %v6581, 0.004166667
    %v6583 = vsub.f32 %v6080, %v6582
    %v6584 = vsub.f32 %v6081, %v6582
    %v6585 = vsub.f32 %v6082, %v6582
    %v6586 = vsub.f32 %v6508, %v6582
    %v6587 = vsub.f32 %v6412, %v6582
    %v6588 = vsub.f32 %v6414, %v6582
    %v6589 = vsub.f32 %v6416, %v6582
    %v6590 = vsub.f32 %v6509, %v6582
    %v6591 = vsub.f32 %v6431, %v6582
    %v6592 = vsub.f32 %v6433, %v6582
    %v6593 = vsub.f32 %v6435, %v6582
    %v6594 = vsub.f32 %v6510, %v6582
    %v6595 = vsub.f32 %v6449, %v6582
    %v6596 = vsub.f32 %v6451, %v6582
    %v6597 = vsub.f32 %v6453, %v6582
    %v6598 = vsub.f32 %v6464, %v6582
    %v6599 = vsub.f32 %v6466, %v6582
    %v6600 = vsub.f32 %v6468, %v6582
    %v6601 = vsub.f32 %v6511, %v6582
    %v6602 = vsub.f32 %v6481, %v6582
    %v6603 = vsub.f32 %v6483, %v6582
    %v6604 = vsub.f32 %v6485, %v6582
    %v6605 = vsub.f32 %v6512, %v6582
    %v6606 = vsub.f32 %v6498, %v6582
    %v6607 = vsub.f32 %v6500, %v6582
    %v6608 = vsub.f32 %v6502, %v6582
    %v6609 = vsub.f32 %v6513, %v6582
    %v6610 = vsub.f32 %v6403, %v6582
    %v6611 = vsub.f32 %v6404, %v6582
    %v6612 = vsub.f32 %v6405, %v6582
    %v6613 = vmul.f32 %v6583, %v6583
    %v6614 = vmul.f32 %v6584, %v6584
    %v6615 = vmul.f32 %v6585, %v6585
    %v6616 = vmul.f32 %v6586, %v6586
    %v6617 = vmul.f32 %v6587, %v6587
    %v6618 = vmul.f32 %v6588, %v6588
    %v6619 = vmul.f32 %v6589, %v6589
    %v6620 = vmul.f32 %v6590, %v6590
    %v6621 = vmul.f32 %v6591, %v6591
    %v6622 = vmul.f32 %v6592, %v6592
    %v6623 = vmul.f32 %v6593, %v6593
    %v6624 = vmul.f32 %v6594, %v6594
    %v6625 = vmul.f32 %v6595, %v6595
    %v6626 = vmul.f32 %v6596, %v6596
    %v6627 = vmul.f32 %v6597, %v6597
    %v6628 = vmul.f32 %v6598, %v6598
    %v6629 = vmul.f32 %v6599, %v6599
    %v6630 = vmul.f32 %v6600, %v6600
    %v6631 = vmul.f32 %v6601, %v6601
    %v6632 = vmul.f32 %v6602, %v6602
    %v6633 = vmul.f32 %v6603, %v6603
    %v6634 = vmul.f32 %v6604, %v6604
    %v6635 = vmul.f32 %v6605, %v6605
    %v6636 = vmul.f32 %v6606, %v6606
    %v6637 = vmul.f32 %v6607, %v6607
    %v6638 = vmul.f32 %v6608, %v6608
    %v6639 = vmul.f32 %v6609, %v6609
    %v6640 = vmul.f32 %v6610, %v6610
    %v6641 = vmul.f32 %v6611, %v6611
    %v6642 = vmul.f32 %v6612, %v6612
    %v6643 = vsel %vm6516, %v6613, 0.0
    %v6644 = vsel %vm6516, %v6614, 0.0
    %v6645 = vadd.f32 %v6643, %v6644
    %v6646 = vsel %vm6516, %v6615, 0.0
    %v6647 = vadd.f32 %v6645, %v6646
    %v6648 = vsel %vm6516, %v6616, 0.0
    %v6649 = vadd.f32 %v6647, %v6648
    %v6650 = vsel %vm6516, %v6617, 0.0
    %v6651 = vadd.f32 %v6649, %v6650
    %v6652 = vsel %vm6516, %v6618, 0.0
    %v6653 = vadd.f32 %v6651, %v6652
    %v6654 = vsel %vm6516, %v6619, 0.0
    %v6655 = vadd.f32 %v6653, %v6654
    %v6656 = vsel %vm6516, %v6620, 0.0
    %v6657 = vadd.f32 %v6655, %v6656
    %v6658 = vsel %vm6516, %v6621, 0.0
    %v6659 = vadd.f32 %v6657, %v6658
    %v6660 = vsel %vm6516, %v6622, 0.0
    %v6661 = vadd.f32 %v6659, %v6660
    %v6662 = vsel %vm6516, %v6623, 0.0
    %v6663 = vadd.f32 %v6661, %v6662
    %v6664 = vsel %vm6516, %v6624, 0.0
    %v6665 = vadd.f32 %v6663, %v6664
    %v6666 = vsel %vm6516, %v6625, 0.0
    %v6667 = vadd.f32 %v6665, %v6666
    %v6668 = vsel %vm6516, %v6626, 0.0
    %v6669 = vadd.f32 %v6667, %v6668
    %v6670 = vsel %vm6516, %v6627, 0.0
    %v6671 = vadd.f32 %v6669, %v6670
    %v6672 = vsel %vm6516, %v6628, 0.0
    %v6673 = vadd.f32 %v6671, %v6672
    %v6674 = vsel %vm6516, %v6629, 0.0
    %v6675 = vadd.f32 %v6673, %v6674
    %v6676 = vsel %vm6516, %v6630, 0.0
    %v6677 = vadd.f32 %v6675, %v6676
    %v6678 = vsel %vm6516, %v6631, 0.0
    %v6679 = vadd.f32 %v6677, %v6678
    %v6680 = vsel %vm6516, %v6632, 0.0
    %v6681 = vadd.f32 %v6679, %v6680
    %v6682 = vsel %vm6516, %v6633, 0.0
    %v6683 = vadd.f32 %v6681, %v6682
    %v6684 = vsel %vm6516, %v6634, 0.0
    %v6685 = vadd.f32 %v6683, %v6684
    %v6686 = vsel %vm6516, %v6635, 0.0
    %v6687 = vadd.f32 %v6685, %v6686
    %v6688 = vsel %vm6516, %v6636, 0.0
    %v6689 = vadd.f32 %v6687, %v6688
    %v6690 = vsel %vm6516, %v6637, 0.0
    %v6691 = vadd.f32 %v6689, %v6690
    %v6692 = vsel %vm6516, %v6638, 0.0
    %v6693 = vadd.f32 %v6691, %v6692
    %v6694 = vsel %vm6516, %v6639, 0.0
    %v6695 = vadd.f32 %v6693, %v6694
    %v6696 = vsel %vm6516, %v6640, 0.0
    %v6697 = vadd.f32 %v6695, %v6696
    %v6698 = vsel %vm6516, %v6641, 0.0
    %v6699 = vadd.f32 %v6697, %v6698
    %v6700 = vsel %vm6516, %v6642, 0.0
    %v6701 = vadd.f32 %v6699, %v6700
    %v6702 = vrot.slane %v6701, 4
    %v6703 = vadd.f32 %v6701, %v6702
    %v6704 = vrot.slane %v6703, 2
    %v6705 = vadd.f32 %v6703, %v6704
    %v6706 = vrot.slane %v6705, 1
    %v6707 = vadd.f32 %v6705, %v6706
    %v6708 = vmul.f32 %v6707, 0.004166667
    %v6709 = vadd.f32 %v6708, 1e-05
    %v6710 = vrsqrt.pop %v6709
    %v6711 = vmul.f32 %v6514, %v6710
    %v6712 = vmul.f32 %v6582, %v6711
    %v6713 = vsub.f32 %v6515, %v6712
    %v6715 = vlaneseq
    %v6716 = vshrl.u32 %v6715, 7
    %v6717 = vsub.s32 0, %v6716
    %v6718 = vrot.slane %v6711, %v6717
    %v6720 = vmul.f32 %v6080, %v6718
    %v6721 = vmul.f32 %v6081, %v6718
    %v6722 = vmul.f32 %v6082, %v6718
    %v6723 = vmul.f32 %v6508, %v6718
    %v6724 = vmul.f32 %v6412, %v6718
    %v6725 = vmul.f32 %v6414, %v6718
    %v6726 = vmul.f32 %v6416, %v6718
    %v6727 = vmul.f32 %v6509, %v6718
    %v6728 = vmul.f32 %v6431, %v6718
    %v6729 = vmul.f32 %v6433, %v6718
    %v6730 = vmul.f32 %v6435, %v6718
    %v6731 = vmul.f32 %v6510, %v6718
    %v6732 = vmul.f32 %v6449, %v6718
    %v6733 = vmul.f32 %v6451, %v6718
    %v6734 = vmul.f32 %v6453, %v6718
    %v6735 = vmul.f32 %v6464, %v6718
    %v6736 = vmul.f32 %v6466, %v6718
    %v6737 = vmul.f32 %v6468, %v6718
    %v6738 = vmul.f32 %v6511, %v6718
    %v6739 = vmul.f32 %v6481, %v6718
    %v6740 = vmul.f32 %v6483, %v6718
    %v6741 = vmul.f32 %v6485, %v6718
    %v6742 = vmul.f32 %v6512, %v6718
    %v6743 = vmul.f32 %v6498, %v6718
    %v6744 = vmul.f32 %v6500, %v6718
    %v6745 = vmul.f32 %v6502, %v6718
    %v6746 = vmul.f32 %v6513, %v6718
    %v6747 = vmul.f32 %v6403, %v6718
    %v6748 = vmul.f32 %v6404, %v6718
    %v6749 = vmul.f32 %v6405, %v6718
    %v6751 = vlaneseq
    %v6752 = vshrl.u32 %v6751, 7
    %v6753 = vsub.s32 0, %v6752
    %v6754 = vrot.slane %v6713, %v6753
    %v6756 = vadd.f32 %v6720, %v6754
    %v6757 = vadd.f32 %v6721, %v6754
    %v6758 = vadd.f32 %v6722, %v6754
    %v6759 = vadd.f32 %v6723, %v6754
    %v6760 = vadd.f32 %v6724, %v6754
    %v6761 = vadd.f32 %v6725, %v6754
    %v6762 = vadd.f32 %v6726, %v6754
    %v6763 = vadd.f32 %v6727, %v6754
    %v6764 = vadd.f32 %v6728, %v6754
    %v6765 = vadd.f32 %v6729, %v6754
    %v6766 = vadd.f32 %v6730, %v6754
    %v6767 = vadd.f32 %v6731, %v6754
    %v6768 = vadd.f32 %v6732, %v6754
    %v6769 = vadd.f32 %v6733, %v6754
    %v6770 = vadd.f32 %v6734, %v6754
    %v6771 = vadd.f32 %v6735, %v6754
    %v6772 = vadd.f32 %v6736, %v6754
    %v6773 = vadd.f32 %v6737, %v6754
    %v6774 = vadd.f32 %v6738, %v6754
    %v6775 = vadd.f32 %v6739, %v6754
    %v6776 = vadd.f32 %v6740, %v6754
    %v6777 = vadd.f32 %v6741, %v6754
    %v6778 = vadd.f32 %v6742, %v6754
    %v6779 = vadd.f32 %v6743, %v6754
    %v6780 = vadd.f32 %v6744, %v6754
    %v6781 = vadd.f32 %v6745, %v6754
    %v6782 = vadd.f32 %v6746, %v6754
    %v6783 = vadd.f32 %v6747, %v6754
    %v6784 = vadd.f32 %v6748, %v6754
    %v6785 = vadd.f32 %v6749, %v6754
    %v6786 = vmax.f32 %v6756, 0.0
    %v6787 = vmax.f32 %v6757, 0.0
    %v6788 = vmax.f32 %v6758, 0.0
    %v6789 = vmax.f32 %v6759, 0.0
    %v6790 = vmax.f32 %v6760, 0.0
    %v6791 = vmax.f32 %v6761, 0.0
    %v6792 = vmax.f32 %v6762, 0.0
    %v6793 = vmax.f32 %v6763, 0.0
    %v6794 = vmax.f32 %v6764, 0.0
    %v6795 = vmax.f32 %v6765, 0.0
    %v6796 = vmax.f32 %v6766, 0.0
    %v6797 = vmax.f32 %v6767, 0.0
    %v6798 = vmax.f32 %v6768, 0.0
    %v6799 = vmax.f32 %v6769, 0.0
    %v6800 = vmax.f32 %v6770, 0.0
    %v6801 = vmax.f32 %v6771, 0.0
    %v6802 = vmax.f32 %v6772, 0.0
    %v6803 = vmax.f32 %v6773, 0.0
    %v6804 = vmax.f32 %v6774, 0.0
    %v6805 = vmax.f32 %v6775, 0.0
    %v6806 = vmax.f32 %v6776, 0.0
    %v6807 = vmax.f32 %v6777, 0.0
    %v6808 = vmax.f32 %v6778, 0.0
    %v6809 = vmax.f32 %v6779, 0.0
    %v6810 = vmax.f32 %v6780, 0.0
    %v6811 = vmax.f32 %v6781, 0.0
    %v6812 = vmax.f32 %v6782, 0.0
    %v6813 = vmax.f32 %v6783, 0.0
    %v6814 = vmax.f32 %v6784, 0.0
    %v6815 = vmax.f32 %v6785, 0.0
    %v6816 = vld [vmem:[%s18] sm:$0x1]
    %v6817 = vld [vmem:[%s17] sm:$0xf]
    %v6818 = vld [vmem:[%s17 + $0x4] sm:$0xf]
    %v6819 = vld [vmem:[%s17 + $0x8] sm:$0xf]
    %v6820 = vld [vmem:[%s17 + $0xc] sm:$0xf]
    %v6821 = vld [vmem:[%s17 + $0x10] sm:$0xf]
    %v6822 = vld [vmem:[%s17 + $0x14] sm:$0xf]
    %v6823 = vld [vmem:[%s17 + $0x18] sm:$0xf]
    %v6824 = vld [vmem:[%s17 + $0x1c] sm:$0xf]
    %s6825 = scalar_lea.vmem %s17, 32
    %v6826 = vld [vmem:[%s6825] sm:$0xf]
    %v6827 = vld [vmem:[%s6825 + $0x4] sm:$0xf]
    %v6828 = vld [vmem:[%s6825 + $0x8] sm:$0xf]
    %v6829 = vld [vmem:[%s6825 + $0xc] sm:$0xf]
    %v6830 = vld [vmem:[%s6825 + $0x10] sm:$0xf]
    %v6831 = vld [vmem:[%s6825 + $0x14] sm:$0xf]
    %v6832 = vld [vmem:[%s6825 + $0x18] sm:$0xf]
    %v6833 = vld [vmem:[%s6825 + $0x1c] sm:$0xf]
    %s6834 = scalar_lea.vmem %s17, 64
    %v6835 = vld [vmem:[%s6834] sm:$0xf]
    %v6836 = vld [vmem:[%s6834 + $0x4] sm:$0xf]
    %v6837 = vld [vmem:[%s6834 + $0x8] sm:$0xf]
    %v6838 = vld [vmem:[%s6834 + $0xc] sm:$0xf]
    %v6839 = vld [vmem:[%s6834 + $0x10] sm:$0xf]
    %v6840 = vld [vmem:[%s6834 + $0x14] sm:$0xf]
    %v6841 = vld [vmem:[%s6834 + $0x18] sm:$0xf]
    %v6842 = vld [vmem:[%s6834 + $0x1c] sm:$0xf]
    %s6843 = scalar_lea.vmem %s17, 96
    %v6844 = vld [vmem:[%s6843] sm:$0xf]
    %v6845 = vld [vmem:[%s6843 + $0x4] sm:$0xf]
    %v6846 = vld [vmem:[%s6843 + $0x8] sm:$0xf]
    %v6847 = vld [vmem:[%s6843 + $0xc] sm:$0xf]
    %v6848 = vld [vmem:[%s6843 + $0x10] sm:$0xf]
    %v6849 = vld [vmem:[%s6843 + $0x14] sm:$0xf]
    %v6850 = vld [vmem:[%s6843 + $0x18] sm:$0xf]
    %v6851 = vld [vmem:[%s6843 + $0x1c] sm:$0xf]
    %v6856 = vrot.slane %v6812, 1
    %v6857 = vrot.slane %v6813, 1
    %v6858 = vsel %vm1363, %v6856, %v6857
    %v6859 = vrot.slane %v6814, 1
    %v6860 = vsel %vm1363, %v6857, %v6859
    %v6861 = vrot.slane %v6815, 1
    %v6862 = vsel %vm1363, %v6859, %v6861
    %v6867 = vsel %vm2255, 0.0, %v6858
    %v6868 = vmul.f32 %v6867, %v132
    %v6869 = vmul.f32 %v6860, %v133
    %v6870 = vmul.f32 %v6862, %v134
    %v6871 = vmul.f32 %v6861, %v135
    %v6876 = vrot.slane %v6786, 1
    %v6877 = vrot.slane %v6787, 1
    %v6878 = vsel %vm1363, %v6876, %v6877
    %v6879 = vrot.slane %v6788, 1
    %v6880 = vsel %vm1363, %v6877, %v6879
    %v6881 = vrot.slane %v6789, 1
    %v6882 = vsel %vm1363, %v6879, %v6881
    %v6887 = vsel %vm2364, %v6881, 0.0
    %v6888 = vmul.f32 %v6878, %v136
    %v6889 = vmul.f32 %v6880, %v137
    %v6890 = vmul.f32 %v6882, %v138
    %v6891 = vmul.f32 %v6887, %v139
    %v6914 = vrot.slane %v6786, 2
    %v6915 = vrot.slane %v6787, 2
    %v6916 = vsel %vm1698, %v6914, %v6915
    %v6917 = vrot.slane %v6788, 2
    %v6918 = vsel %vm1698, %v6915, %v6917
    %v6919 = vrot.slane %v6789, 2
    %v6920 = vsel %vm1698, %v6917, %v6919
    %v6921 = vrot.slane %v6790, 2
    %v6922 = vsel %vm1698, %v6919, %v6921
    %v6923 = vrot.slane %v6791, 2
    %v6924 = vsel %vm1698, %v6921, %v6923
    %v6925 = vrot.slane %v6792, 2
    %v6926 = vsel %vm1698, %v6923, %v6925
    %v6927 = vrot.slane %v6793, 2
    %v6928 = vsel %vm1698, %v6925, %v6927
    %v6929 = vrot.slane %v6794, 2
    %v6930 = vsel %vm1698, %v6927, %v6929
    %v6931 = vrot.slane %v6795, 2
    %v6932 = vsel %vm1698, %v6929, %v6931
    %v6933 = vrot.slane %v6796, 2
    %v6934 = vsel %vm1698, %v6931, %v6933
    %v6935 = vrot.slane %v6797, 2
    %v6936 = vsel %vm1698, %v6933, %v6935
    %v6937 = vrot.slane %v6798, 2
    %v6938 = vsel %vm1698, %v6935, %v6937
    %v6939 = vrot.slane %v6799, 2
    %v6940 = vsel %vm1698, %v6937, %v6939
    %v6941 = vrot.slane %v6800, 2
    %v6942 = vsel %vm1698, %v6939, %v6941
    %v6943 = vrot.slane %v6801, 2
    %v6944 = vsel %vm1698, %v6941, %v6943
    %v6945 = vrot.slane %v6802, 2
    %v6946 = vsel %vm1698, %v6943, %v6945
    %v6947 = vrot.slane %v6803, 2
    %v6948 = vsel %vm1698, %v6945, %v6947
    %v6949 = vrot.slane %v6804, 2
    %v6950 = vsel %vm1698, %v6947, %v6949
    %v6951 = vrot.slane %v6805, 2
    %v6952 = vsel %vm1698, %v6949, %v6951
    %v6953 = vrot.slane %v6806, 2
    %v6954 = vsel %vm1698, %v6951, %v6953
    %v6955 = vrot.slane %v6807, 2
    %v6956 = vsel %vm1698, %v6953, %v6955
    %v6957 = vrot.slane %v6808, 2
    %v6958 = vsel %vm1698, %v6955, %v6957
    %v6959 = vrot.slane %v6809, 2
    %v6960 = vsel %vm1698, %v6957, %v6959
    %v6961 = vrot.slane %v6810, 2
    %v6962 = vsel %vm1698, %v6959, %v6961
    %v6963 = vrot.slane %v6811, 2
    %v6964 = vsel %vm1698, %v6961, %v6963
    %v6965 = vrot.slane %v6812, 2
    %v6966 = vsel %vm1698, %v6963, %v6965
    %v6994 = vsel %vm1698, %v6871, %v6914
    %v6995 = vrot.slane %v6789, 6
    %v6996 = vrot.slane %v6790, 6
    %v6997 = vsel %vm4626, %v6995, %v6996
    %v6998 = vrot.slane %v6791, 6
    %v6999 = vsel %vm4626, %v6996, %v6998
    %v7000 = vrot.slane %v6792, 6
    %v7001 = vsel %vm4626, %v6998, %v7000
    %v7002 = vrot.slane %v6793, 6
    %v7003 = vsel %vm4626, %v7000, %v7002
    %v7004 = vrot.slane %v6794, 6
    %v7005 = vsel %vm4626, %v7002, %v7004
    %v7006 = vrot.slane %v6795, 6
    %v7007 = vsel %vm4626, %v7004, %v7006
    %v7008 = vrot.slane %v6796, 6
    %v7009 = vsel %vm4626, %v7006, %v7008
    %v7010 = vrot.slane %v6797, 6
    %v7011 = vsel %vm4626, %v7008, %v7010
    %v7012 = vrot.slane %v6798, 6
    %v7013 = vsel %vm4626, %v7010, %v7012
    %v7014 = vrot.slane %v6799, 6
    %v7015 = vsel %vm4626, %v7012, %v7014
    %v7016 = vrot.slane %v6800, 6
    %v7017 = vsel %vm4626, %v7014, %v7016
    %v7018 = vrot.slane %v6801, 6
    %v7019 = vsel %vm4626, %v7016, %v7018
    %v7020 = vrot.slane %v6802, 6
    %v7021 = vsel %vm4626, %v7018, %v7020
    %v7022 = vrot.slane %v6803, 6
    %v7023 = vsel %vm4626, %v7020, %v7022
    %v7024 = vrot.slane %v6804, 6
    %v7025 = vsel %vm4626, %v7022, %v7024
    %v7026 = vrot.slane %v6805, 6
    %v7027 = vsel %vm4626, %v7024, %v7026
    %v7028 = vrot.slane %v6806, 6
    %v7029 = vsel %vm4626, %v7026, %v7028
    %v7030 = vrot.slane %v6807, 6
    %v7031 = vsel %vm4626, %v7028, %v7030
    %v7032 = vrot.slane %v6808, 6
    %v7033 = vsel %vm4626, %v7030, %v7032
    %v7034 = vrot.slane %v6809, 6
    %v7035 = vsel %vm4626, %v7032, %v7034
    %v7036 = vrot.slane %v6810, 6
    %v7037 = vsel %vm4626, %v7034, %v7036
    %v7038 = vrot.slane %v6811, 6
    %v7039 = vsel %vm4626, %v7036, %v7038
    %v7040 = vrot.slane %v6812, 6
    %v7041 = vsel %vm4626, %v7038, %v7040
    %v7042 = vrot.slane %v6813, 6
    %v7043 = vsel %vm4626, %v7040, %v7042
    %v7044 = vrot.slane %v6814, 6
    %v7045 = vsel %vm4626, %v7042, %v7044
    %v7046 = vrot.slane %v6815, 6
    %v7047 = vsel %vm4626, %v7044, %v7046
    %v7079 = vrot.slane %v6888, 6
    %v7080 = vrot.slane %v6889, 6
    %v7081 = vsel %vm4626, %v7079, %v7080
    %v7082 = vrot.slane %v6890, 6
    %v7083 = vsel %vm4626, %v7080, %v7082
    %v7084 = vrot.slane %v6891, 6
    %v7085 = vsel %vm4626, %v7082, %v7084
    %v7090 = vsel %vm4626, %v7046, %v7079
    %v7091 = vpack.c.bf16 %v6787, %v6786
    %v7092 = vpack.c.bf16 %v6789, %v6788
    %v7093 = vpack.c.bf16 %v6791, %v6790
    %v7094 = vpack.c.bf16 %v6793, %v6792
    %v7095 = vpack.c.bf16 %v6795, %v6794
    %v7096 = vpack.c.bf16 %v6797, %v6796
    %v7097 = vpack.c.bf16 %v6799, %v6798
    %v7098 = vpack.c.bf16 %v6801, %v6800
    %v7099 = vpack.c.bf16 %v6803, %v6802
    %v7100 = vpack.c.bf16 %v6805, %v6804
    %v7101 = vpack.c.bf16 %v6807, %v6806
    %v7102 = vpack.c.bf16 %v6809, %v6808
    %v7103 = vpack.c.bf16 %v6811, %v6810
    %v7104 = vpack.c.bf16 %v6813, %v6812
    %v7105 = vpack.c.bf16 %v6815, %v6814
    %v7106 = vpack.c.bf16 %v6869, %v6868
    %v7107 = vpack.c.bf16 %v6994, %v6870
    %v7108 = vpack.c.bf16 %v6918, %v6916
    %v7109 = vpack.c.bf16 %v6922, %v6920
    %v7110 = vpack.c.bf16 %v6926, %v6924
    %v7111 = vpack.c.bf16 %v6930, %v6928
    %v7112 = vpack.c.bf16 %v6934, %v6932
    %v7113 = vpack.c.bf16 %v6938, %v6936
    %v7114 = vpack.c.bf16 %v6942, %v6940
    %v7115 = vpack.c.bf16 %v6946, %v6944
    %v7116 = vpack.c.bf16 %v6950, %v6948
    %v7117 = vpack.c.bf16 %v6954, %v6952
    %v7118 = vpack.c.bf16 %v6958, %v6956
    %v7119 = vpack.c.bf16 %v6962, %v6960
    %v7120 = vpack.c.bf16 %v6966, %v6964
    %v7129 = vunpack.c.l.b16 %v6844
    %v7130 = vunpack.c.l.b16 %v6845
    %v7131 = vunpack.c.l.b16 %v6846
    %v7132 = vunpack.c.l.b16 %v6847
    %v7133 = vunpack.c.l.b16 %v6848
    %v7134 = vunpack.c.l.b16 %v6849
    %v7135 = vunpack.c.l.b16 %v6850
    %v7136 = vunpack.c.l.b16 %v6851
    %v7137 = vpack.c.b16 %v7130, %v7129
    %v7138 = vpack.c.b16 %v7132, %v7131
    %v7139 = vpack.c.b16 %v7134, %v7133
    %v7140 = vpack.c.b16 %v7136, %v7135
    %v7146 = vsel %vm6516, %v7106, 0
    %v7149 = vsel %vm6516, %v7107, 0
    %v7152 = vsel %vm6516, %v7108, 0
    %v7155 = vsel %vm6516, %v7109, 0
    %v7158 = vsel %vm6516, %v7110, 0
    %v7161 = vsel %vm6516, %v7111, 0
    %v7164 = vsel %vm6516, %v7112, 0
    %v7167 = vsel %vm6516, %v7113, 0
    %v7170 = vsel %vm6516, %v7114, 0
    %v7173 = vsel %vm6516, %v7115, 0
    %v7176 = vsel %vm6516, %v7116, 0
    %v7179 = vsel %vm6516, %v7117, 0
    %v7182 = vsel %vm6516, %v7118, 0
    %v7185 = vsel %vm6516, %v7119, 0
    %v7188 = vsel %vm6516, %v7120, 0
    %7190 = vmatprep.subr.bf16.mxu0 0
    %7191 = vmatpush1.bf16.msra.mxu0 %v7137
    %7192 = vmatprep.subr.bf16.mxu0 0
    %7193 = vmatpush1.bf16.msra.mxu0 %v7138
    %7194 = vmatprep.subr.bf16.mxu0 0
    %7195 = vmatpush1.bf16.msra.mxu0 %v7139
    %7196 = vmatprep.subr.bf16.mxu0 0
    %7197 = vmatpush1.bf16.msra.mxu0 %v7140
    %7198 = vmatprep.subr.bf16.mxu0 0
    %7199 = vmatpush1.bf16.msra.mxu0 0
    %7200 = vmatprep.subr.bf16.mxu0 0
    %7201 = vmatpush1.bf16.msra.mxu0 0
    %7202 = vmatprep.subr.bf16.mxu0 0
    %7203 = vmatpush1.bf16.msra.mxu0 0
    %7204 = vmatprep.subr.bf16.mxu0 0
    %7205 = vmatpush1.bf16.msra.mxu0 0
    %7206 = vmatprep.subr.bf16.mxu0 0
    %7207 = vmatpush1.bf16.msra.mxu0 0
    %7208 = vmatprep.subr.bf16.mxu0 0
    %7209 = vmatpush1.bf16.msra.mxu0 0
    %7210 = vmatprep.subr.bf16.mxu0 0
    %7211 = vmatpush1.bf16.msra.mxu0 0
    %7212 = vmatprep.subr.bf16.mxu0 0
    %7213 = vmatpush1.bf16.msra.mxu0 0
    %7214 = vmatprep.subr.bf16.mxu0 0
    %7215 = vmatpush1.bf16.msra.mxu0 0
    %7216 = vmatprep.subr.bf16.mxu0 0
    %7217 = vmatpush1.bf16.msra.mxu0 0
    %7218 = vmatprep.subr.bf16.mxu0 0
    %7219 = vmatpush1.bf16.msra.mxu0 0
    %7220 = vmatprep.subr.bf16.mxu0 0
    %7221 = vmatpush1.bf16.msra.mxu0 0
    %7222 = vmatprep.mubr.bf16.mxu0 0
    %7223 = vmatmul.mubr.bf16.gmra.mrb[0].mxu0 %v7146
    %v7224 = vpop.f32.mrb[0].mxu0
    %v7225 = vadd.f32 0.0, %v7224
    %v7226 = vpop.f32.mrb[0].mxu0
    %v7227 = vpop.f32.mrb[0].mxu0
    %v7228 = vadd.f32 0.0, %v7227
    %v7229 = vpop.f32.mrb[0].mxu0
    %7230 = vmatprep.mubr.bf16.mxu0 0
    %7231 = vmatmul.mubr.bf16.gmra.mrb[0].mxu0 %v7149
    %v7232 = vpop.f32.mrb[0].mxu0
    %v7233 = vadd.f32 0.0, %v7232
    %v7234 = vpop.f32.mrb[0].mxu0
    %v7235 = vpop.f32.mrb[0].mxu0
    %v7236 = vadd.f32 0.0, %v7235
    %v7237 = vpop.f32.mrb[0].mxu0
    %7238 = vmatprep.mubr.bf16.mxu0 0
    %7239 = vmatmul.mubr.bf16.gmra.mrb[0].mxu0 %v7152
    %v7240 = vpop.f32.mrb[0].mxu0
    %v7241 = vadd.f32 0.0, %v7240
    %v7242 = vpop.f32.mrb[0].mxu0
    %v7243 = vpop.f32.mrb[0].mxu0
    %v7244 = vadd.f32 0.0, %v7243
    %v7245 = vpop.f32.mrb[0].mxu0
    %7246 = vmatprep.mubr.bf16.mxu0 0
    %7247 = vmatmul.mubr.bf16.gmra.mrb[0].mxu0 %v7155
    %v7248 = vpop.f32.mrb[0].mxu0
    %v7249 = vadd.f32 0.0, %v7248
    %v7250 = vpop.f32.mrb[0].mxu0
    %v7251 = vpop.f32.mrb[0].mxu0
    %v7252 = vadd.f32 0.0, %v7251
    %v7253 = vpop.f32.mrb[0].mxu0
    %7254 = vmatprep.mubr.bf16.mxu0 0
    %7255 = vmatmul.mubr.bf16.gmra.mrb[0].mxu0 %v7158
    %v7256 = vpop.f32.mrb[0].mxu0
    %v7257 = vadd.f32 0.0, %v7256
    %v7258 = vpop.f32.mrb[0].mxu0
    %v7259 = vpop.f32.mrb[0].mxu0
    %v7260 = vadd.f32 0.0, %v7259
    %v7261 = vpop.f32.mrb[0].mxu0
    %7262 = vmatprep.mubr.bf16.mxu0 0
    %7263 = vmatmul.mubr.bf16.gmra.mrb[0].mxu0 %v7161
    %v7264 = vpop.f32.mrb[0].mxu0
    %v7265 = vadd.f32 0.0, %v7264
    %v7266 = vpop.f32.mrb[0].mxu0
    %v7267 = vpop.f32.mrb[0].mxu0
    %v7268 = vadd.f32 0.0, %v7267
    %v7269 = vpop.f32.mrb[0].mxu0
    %7270 = vmatprep.mubr.bf16.mxu0 0
    %7271 = vmatmul.mubr.bf16.gmra.mrb[0].mxu0 %v7164
    %v7272 = vpop.f32.mrb[0].mxu0
    %v7273 = vadd.f32 0.0, %v7272
    %v7274 = vpop.f32.mrb[0].mxu0
    %v7275 = vpop.f32.mrb[0].mxu0
    %v7276 = vadd.f32 0.0, %v7275
    %v7277 = vpop.f32.mrb[0].mxu0
    %7278 = vmatprep.mubr.bf16.mxu0 0
    %7279 = vmatmul.mubr.bf16.gmra.mrb[0].mxu0 %v7167
    %v7280 = vpop.f32.mrb[0].mxu0
    %v7281 = vadd.f32 0.0, %v7280
    %v7282 = vpop.f32.mrb[0].mxu0
    %v7283 = vpop.f32.mrb[0].mxu0
    %v7284 = vadd.f32 0.0, %v7283
    %v7285 = vpop.f32.mrb[0].mxu0
    %7286 = vmatprep.mubr.bf16.mxu0 0
    %7287 = vmatmul.mubr.bf16.gmra.mrb[0].mxu0 %v7170
    %v7288 = vpop.f32.mrb[0].mxu0
    %v7289 = vadd.f32 0.0, %v7288
    %v7290 = vpop.f32.mrb[0].mxu0
    %v7291 = vpop.f32.mrb[0].mxu0
    %v7292 = vadd.f32 0.0, %v7291
    %v7293 = vpop.f32.mrb[0].mxu0
    %7294 = vmatprep.mubr.bf16.mxu0 0
    %7295 = vmatmul.mubr.bf16.gmra.mrb[0].mxu0 %v7173
    %v7296 = vpop.f32.mrb[0].mxu0
    %v7297 = vadd.f32 0.0, %v7296
    %v7298 = vpop.f32.mrb[0].mxu0
    %v7299 = vpop.f32.mrb[0].mxu0
    %v7300 = vadd.f32 0.0, %v7299
    %v7301 = vpop.f32.mrb[0].mxu0
    %7302 = vmatprep.mubr.bf16.mxu0 0
    %7303 = vmatmul.mubr.bf16.gmra.mrb[0].mxu0 %v7176
    %v7304 = vpop.f32.mrb[0].mxu0
    %v7305 = vadd.f32 0.0, %v7304
    %v7306 = vpop.f32.mrb[0].mxu0
    %v7307 = vpop.f32.mrb[0].mxu0
    %v7308 = vadd.f32 0.0, %v7307
    %v7309 = vpop.f32.mrb[0].mxu0
    %7310 = vmatprep.mubr.bf16.mxu0 0
    %7311 = vmatmul.mubr.bf16.gmra.mrb[0].mxu0 %v7179
    %v7312 = vpop.f32.mrb[0].mxu0
    %v7313 = vadd.f32 0.0, %v7312
    %v7314 = vpop.f32.mrb[0].mxu0
    %v7315 = vpop.f32.mrb[0].mxu0
    %v7316 = vadd.f32 0.0, %v7315
    %v7317 = vpop.f32.mrb[0].mxu0
    %7318 = vmatprep.mubr.bf16.mxu0 0
    %7319 = vmatmul.mubr.bf16.gmra.mrb[0].mxu0 %v7182
    %v7320 = vpop.f32.mrb[0].mxu0
    %v7321 = vadd.f32 0.0, %v7320
    %v7322 = vpop.f32.mrb[0].mxu0
    %v7323 = vpop.f32.mrb[0].mxu0
    %v7324 = vadd.f32 0.0, %v7323
    %v7325 = vpop.f32.mrb[0].mxu0
    %7326 = vmatprep.mubr.bf16.mxu0 0
    %7327 = vmatmul.mubr.bf16.gmra.mrb[0].mxu0 %v7185
    %v7328 = vpop.f32.mrb[0].mxu0
    %v7329 = vadd.f32 0.0, %v7328
    %v7330 = vpop.f32.mrb[0].mxu0
    %v7331 = vpop.f32.mrb[0].mxu0
    %v7332 = vadd.f32 0.0, %v7331
    %v7333 = vpop.f32.mrb[0].mxu0
    %7334 = vmatprep.mubr.bf16.mxu0 0
    %7335 = vmatmul.mubr.bf16.gmra.mrb[0].mxu0 %v7188
    %v7336 = vpop.f32.mrb[0].mxu0
    %v7337 = vadd.f32 0.0, %v7336
    %v7338 = vpop.f32.mrb[0].mxu0
    %v7339 = vpop.f32.mrb[0].mxu0
    %v7340 = vadd.f32 0.0, %v7339
    %v7341 = vpop.f32.mrb[0].mxu0
    %7342 = vdwg.mxu0
    %v7351 = vunpack.c.l.b16 %v6826
    %v7352 = vunpack.c.l.b16 %v6827
    %v7353 = vunpack.c.l.b16 %v6828
    %v7354 = vunpack.c.l.b16 %v6829
    %v7355 = vunpack.c.l.b16 %v6830
    %v7356 = vunpack.c.l.b16 %v6831
    %v7357 = vunpack.c.l.b16 %v6832
    %v7358 = vunpack.c.l.b16 %v6833
    %v7359 = vpack.c.b16 %v7352, %v7351
    %v7360 = vpack.c.b16 %v7354, %v7353
    %v7361 = vpack.c.b16 %v7356, %v7355
    %v7362 = vpack.c.b16 %v7358, %v7357
    %v7368 = vsel %vm6516, %v7091, 0
    %v7371 = vsel %vm6516, %v7092, 0
    %v7374 = vsel %vm6516, %v7093, 0
    %v7377 = vsel %vm6516, %v7094, 0
    %v7380 = vsel %vm6516, %v7095, 0
    %v7383 = vsel %vm6516, %v7096, 0
    %v7386 = vsel %vm6516, %v7097, 0
    %v7389 = vsel %vm6516, %v7098, 0
    %v7392 = vsel %vm6516, %v7099, 0
    %v7395 = vsel %vm6516, %v7100, 0
    %v7398 = vsel %vm6516, %v7101, 0
    %v7401 = vsel %vm6516, %v7102, 0
    %v7404 = vsel %vm6516, %v7103, 0
    %v7407 = vsel %vm6516, %v7104, 0
    %v7410 = vsel %vm6516, %v7105, 0
    %7412 = vmatprep.subr.bf16.mxu0 0
    %7413 = vmatpush1.bf16.msra.mxu0 %v7359
    %7414 = vmatprep.subr.bf16.mxu0 0
    %7415 = vmatpush1.bf16.msra.mxu0 %v7360
    %7416 = vmatprep.subr.bf16.mxu0 0
    %7417 = vmatpush1.bf16.msra.mxu0 %v7361
    %7418 = vmatprep.subr.bf16.mxu0 0
    %7419 = vmatpush1.bf16.msra.mxu0 %v7362
    %7420 = vmatprep.subr.bf16.mxu0 0
    %7421 = vmatpush1.bf16.msra.mxu0 0
    %7422 = vmatprep.subr.bf16.mxu0 0
    %7423 = vmatpush1.bf16.msra.mxu0 0
    %7424 = vmatprep.subr.bf16.mxu0 0
    %7425 = vmatpush1.bf16.msra.mxu0 0
    %7426 = vmatprep.subr.bf16.mxu0 0
    %7427 = vmatpush1.bf16.msra.mxu0 0
    %7428 = vmatprep.subr.bf16.mxu0 0
    %7429 = vmatpush1.bf16.msra.mxu0 0
    %7430 = vmatprep.subr.bf16.mxu0 0
    %7431 = vmatpush1.bf16.msra.mxu0 0
    %7432 = vmatprep.subr.bf16.mxu0 0
    %7433 = vmatpush1.bf16.msra.mxu0 0
    %7434 = vmatprep.subr.bf16.mxu0 0
    %7435 = vmatpush1.bf16.msra.mxu0 0
    %7436 = vmatprep.subr.bf16.mxu0 0
    %7437 = vmatpush1.bf16.msra.mxu0 0
    %7438 = vmatprep.subr.bf16.mxu0 0
    %7439 = vmatpush1.bf16.msra.mxu0 0
    %7440 = vmatprep.subr.bf16.mxu0 0
    %7441 = vmatpush1.bf16.msra.mxu0 0
    %7442 = vmatprep.subr.bf16.mxu0 0
    %7443 = vmatpush1.bf16.msra.mxu0 0
    %7444 = vmatprep.mubr.bf16.mxu0 0
    %7445 = vmatmul.mubr.bf16.gmra.mrb[0].mxu0 %v7368
    %v7446 = vpop.f32.mrb[0].mxu0
    %v7447 = vadd.f32 %v7225, %v7446
    %v7448 = vpop.f32.mrb[0].mxu0
    %v7449 = vpop.f32.mrb[0].mxu0
    %v7450 = vadd.f32 %v7228, %v7449
    %v7451 = vpop.f32.mrb[0].mxu0
    %7452 = vmatprep.mubr.bf16.mxu0 0
    %7453 = vmatmul.mubr.bf16.gmra.mrb[0].mxu0 %v7371
    %v7454 = vpop.f32.mrb[0].mxu0
    %v7455 = vadd.f32 %v7233, %v7454
    %v7456 = vpop.f32.mrb[0].mxu0
    %v7457 = vpop.f32.mrb[0].mxu0
    %v7458 = vadd.f32 %v7236, %v7457
    %v7459 = vpop.f32.mrb[0].mxu0
    %7460 = vmatprep.mubr.bf16.mxu0 0
    %7461 = vmatmul.mubr.bf16.gmra.mrb[0].mxu0 %v7374
    %v7462 = vpop.f32.mrb[0].mxu0
    %v7463 = vadd.f32 %v7241, %v7462
    %v7464 = vpop.f32.mrb[0].mxu0
    %v7465 = vpop.f32.mrb[0].mxu0
    %v7466 = vadd.f32 %v7244, %v7465
    %v7467 = vpop.f32.mrb[0].mxu0
    %7468 = vmatprep.mubr.bf16.mxu0 0
    %7469 = vmatmul.mubr.bf16.gmra.mrb[0].mxu0 %v7377
    %v7470 = vpop.f32.mrb[0].mxu0
    %v7471 = vadd.f32 %v7249, %v7470
    %v7472 = vpop.f32.mrb[0].mxu0
    %v7473 = vpop.f32.mrb[0].mxu0
    %v7474 = vadd.f32 %v7252, %v7473
    %v7475 = vpop.f32.mrb[0].mxu0
    %7476 = vmatprep.mubr.bf16.mxu0 0
    %7477 = vmatmul.mubr.bf16.gmra.mrb[0].mxu0 %v7380
    %v7478 = vpop.f32.mrb[0].mxu0
    %v7479 = vadd.f32 %v7257, %v7478
    %v7480 = vpop.f32.mrb[0].mxu0
    %v7481 = vpop.f32.mrb[0].mxu0
    %v7482 = vadd.f32 %v7260, %v7481
    %v7483 = vpop.f32.mrb[0].mxu0
    %7484 = vmatprep.mubr.bf16.mxu0 0
    %7485 = vmatmul.mubr.bf16.gmra.mrb[0].mxu0 %v7383
    %v7486 = vpop.f32.mrb[0].mxu0
    %v7487 = vadd.f32 %v7265, %v7486
    %v7488 = vpop.f32.mrb[0].mxu0
    %v7489 = vpop.f32.mrb[0].mxu0
    %v7490 = vadd.f32 %v7268, %v7489
    %v7491 = vpop.f32.mrb[0].mxu0
    %7492 = vmatprep.mubr.bf16.mxu0 0
    %7493 = vmatmul.mubr.bf16.gmra.mrb[0].mxu0 %v7386
    %v7494 = vpop.f32.mrb[0].mxu0
    %v7495 = vadd.f32 %v7273, %v7494
    %v7496 = vpop.f32.mrb[0].mxu0
    %v7497 = vpop.f32.mrb[0].mxu0
    %v7498 = vadd.f32 %v7276, %v7497
    %v7499 = vpop.f32.mrb[0].mxu0
    %7500 = vmatprep.mubr.bf16.mxu0 0
    %7501 = vmatmul.mubr.bf16.gmra.mrb[0].mxu0 %v7389
    %v7502 = vpop.f32.mrb[0].mxu0
    %v7503 = vadd.f32 %v7281, %v7502
    %v7504 = vpop.f32.mrb[0].mxu0
    %v7505 = vpop.f32.mrb[0].mxu0
    %v7506 = vadd.f32 %v7284, %v7505
    %v7507 = vpop.f32.mrb[0].mxu0
    %7508 = vmatprep.mubr.bf16.mxu0 0
    %7509 = vmatmul.mubr.bf16.gmra.mrb[0].mxu0 %v7392
    %v7510 = vpop.f32.mrb[0].mxu0
    %v7511 = vadd.f32 %v7289, %v7510
    %v7512 = vpop.f32.mrb[0].mxu0
    %v7513 = vpop.f32.mrb[0].mxu0
    %v7514 = vadd.f32 %v7292, %v7513
    %v7515 = vpop.f32.mrb[0].mxu0
    %7516 = vmatprep.mubr.bf16.mxu0 0
    %7517 = vmatmul.mubr.bf16.gmra.mrb[0].mxu0 %v7395
    %v7518 = vpop.f32.mrb[0].mxu0
    %v7519 = vadd.f32 %v7297, %v7518
    %v7520 = vpop.f32.mrb[0].mxu0
    %v7521 = vpop.f32.mrb[0].mxu0
    %v7522 = vadd.f32 %v7300, %v7521
    %v7523 = vpop.f32.mrb[0].mxu0
    %7524 = vmatprep.mubr.bf16.mxu0 0
    %7525 = vmatmul.mubr.bf16.gmra.mrb[0].mxu0 %v7398
    %v7526 = vpop.f32.mrb[0].mxu0
    %v7527 = vadd.f32 %v7305, %v7526
    %v7528 = vpop.f32.mrb[0].mxu0
    %v7529 = vpop.f32.mrb[0].mxu0
    %v7530 = vadd.f32 %v7308, %v7529
    %v7531 = vpop.f32.mrb[0].mxu0
    %7532 = vmatprep.mubr.bf16.mxu0 0
    %7533 = vmatmul.mubr.bf16.gmra.mrb[0].mxu0 %v7401
    %v7534 = vpop.f32.mrb[0].mxu0
    %v7535 = vadd.f32 %v7313, %v7534
    %v7536 = vpop.f32.mrb[0].mxu0
    %v7537 = vpop.f32.mrb[0].mxu0
    %v7538 = vadd.f32 %v7316, %v7537
    %v7539 = vpop.f32.mrb[0].mxu0
    %7540 = vmatprep.mubr.bf16.mxu0 0
    %7541 = vmatmul.mubr.bf16.gmra.mrb[0].mxu0 %v7404
    %v7542 = vpop.f32.mrb[0].mxu0
    %v7543 = vadd.f32 %v7321, %v7542
    %v7544 = vpop.f32.mrb[0].mxu0
    %v7545 = vpop.f32.mrb[0].mxu0
    %v7546 = vadd.f32 %v7324, %v7545
    %v7547 = vpop.f32.mrb[0].mxu0
    %7548 = vmatprep.mubr.bf16.mxu0 0
    %7549 = vmatmul.mubr.bf16.gmra.mrb[0].mxu0 %v7407
    %v7550 = vpop.f32.mrb[0].mxu0
    %v7551 = vadd.f32 %v7329, %v7550
    %v7552 = vpop.f32.mrb[0].mxu0
    %v7553 = vpop.f32.mrb[0].mxu0
    %v7554 = vadd.f32 %v7332, %v7553
    %v7555 = vpop.f32.mrb[0].mxu0
    %7556 = vmatprep.mubr.bf16.mxu0 0
    %7557 = vmatmul.mubr.bf16.gmra.mrb[0].mxu0 %v7410
    %v7558 = vpop.f32.mrb[0].mxu0
    %v7559 = vadd.f32 %v7337, %v7558
    %v7560 = vpop.f32.mrb[0].mxu0
    %v7561 = vpop.f32.mrb[0].mxu0
    %v7562 = vadd.f32 %v7340, %v7561
    %v7563 = vpop.f32.mrb[0].mxu0
    %7564 = vdwg.mxu0
    %v7566 = vlaneseq
    %v7567 = vshrl.u32 %v7566, 7
    %v7568 = vsub.s32 0, %v7567
    %v7569 = vrot.slane %v6816, %v7568
    %v7571 = vadd.f32 %v7447, %v7569
    %v7572 = vadd.f32 %v7450, %v7569
    %v7573 = vadd.f32 %v7455, %v7569
    %v7574 = vadd.f32 %v7458, %v7569
    %v7575 = vadd.f32 %v7463, %v7569
    %v7576 = vadd.f32 %v7466, %v7569
    %v7577 = vadd.f32 %v7471, %v7569
    %v7578 = vadd.f32 %v7474, %v7569
    %v7579 = vadd.f32 %v7479, %v7569
    %v7580 = vadd.f32 %v7482, %v7569
    %v7581 = vadd.f32 %v7487, %v7569
    %v7582 = vadd.f32 %v7490, %v7569
    %v7583 = vadd.f32 %v7495, %v7569
    %v7584 = vadd.f32 %v7498, %v7569
    %v7585 = vadd.f32 %v7503, %v7569
    %v7586 = vadd.f32 %v7506, %v7569
    %v7587 = vadd.f32 %v7511, %v7569
    %v7588 = vadd.f32 %v7514, %v7569
    %v7589 = vadd.f32 %v7519, %v7569
    %v7590 = vadd.f32 %v7522, %v7569
    %v7591 = vadd.f32 %v7527, %v7569
    %v7592 = vadd.f32 %v7530, %v7569
    %v7593 = vadd.f32 %v7535, %v7569
    %v7594 = vadd.f32 %v7538, %v7569
    %v7595 = vadd.f32 %v7543, %v7569
    %v7596 = vadd.f32 %v7546, %v7569
    %v7597 = vadd.f32 %v7551, %v7569
    %v7598 = vadd.f32 %v7554, %v7569
    %v7599 = vadd.f32 %v7559, %v7569
    %v7600 = vadd.f32 %v7562, %v7569
    %v7601 = vpack.c.bf16 %v6999, %v6997
    %v7602 = vpack.c.bf16 %v7003, %v7001
    %v7603 = vpack.c.bf16 %v7007, %v7005
    %v7604 = vpack.c.bf16 %v7011, %v7009
    %v7605 = vpack.c.bf16 %v7015, %v7013
    %v7606 = vpack.c.bf16 %v7019, %v7017
    %v7607 = vpack.c.bf16 %v7023, %v7021
    %v7608 = vpack.c.bf16 %v7027, %v7025
    %v7609 = vpack.c.bf16 %v7031, %v7029
    %v7610 = vpack.c.bf16 %v7035, %v7033
    %v7611 = vpack.c.bf16 %v7039, %v7037
    %v7612 = vpack.c.bf16 %v7043, %v7041
    %v7613 = vpack.c.bf16 %v7047, %v7045
    %v7614 = vpack.c.bf16 %v7081, %v7090
    %v7615 = vpack.c.bf16 %v7085, %v7083
    %v7624 = vunpack.c.l.b16 %v6835
    %v7625 = vunpack.c.l.b16 %v6836
    %v7626 = vunpack.c.l.b16 %v6837
    %v7627 = vunpack.c.l.b16 %v6838
    %v7628 = vunpack.c.l.b16 %v6839
    %v7629 = vunpack.c.l.b16 %v6840
    %v7630 = vunpack.c.l.b16 %v6841
    %v7631 = vunpack.c.l.b16 %v6842
    %v7632 = vpack.c.b16 %v7625, %v7624
    %v7633 = vpack.c.b16 %v7627, %v7626
    %v7634 = vpack.c.b16 %v7629, %v7628
    %v7635 = vpack.c.b16 %v7631, %v7630
    %7640 = vmatprep.subr.bf16.mxu0 0
    %7641 = vmatpush1.bf16.msra.mxu0 %v7632
    %7642 = vmatprep.subr.bf16.mxu0 0
    %7643 = vmatpush1.bf16.msra.mxu0 %v7633
    %7644 = vmatprep.subr.bf16.mxu0 0
    %7645 = vmatpush1.bf16.msra.mxu0 %v7634
    %7646 = vmatprep.subr.bf16.mxu0 0
    %7647 = vmatpush1.bf16.msra.mxu0 %v7635
    %7648 = vmatprep.subr.bf16.mxu0 0
    %7649 = vmatpush1.bf16.msra.mxu0 0
    %7650 = vmatprep.subr.bf16.mxu0 0
    %7651 = vmatpush1.bf16.msra.mxu0 0
    %7652 = vmatprep.subr.bf16.mxu0 0
    %7653 = vmatpush1.bf16.msra.mxu0 0
    %7654 = vmatprep.subr.bf16.mxu0 0
    %7655 = vmatpush1.bf16.msra.mxu0 0
    %7656 = vmatprep.subr.bf16.mxu0 0
    %7657 = vmatpush1.bf16.msra.mxu0 0
    %7658 = vmatprep.subr.bf16.mxu0 0
    %7659 = vmatpush1.bf16.msra.mxu0 0
    %7660 = vmatprep.subr.bf16.mxu0 0
    %7661 = vmatpush1.bf16.msra.mxu0 0
    %7662 = vmatprep.subr.bf16.mxu0 0
    %7663 = vmatpush1.bf16.msra.mxu0 0
    %7664 = vmatprep.subr.bf16.mxu0 0
    %7665 = vmatpush1.bf16.msra.mxu0 0
    %7666 = vmatprep.subr.bf16.mxu0 0
    %7667 = vmatpush1.bf16.msra.mxu0 0
    %7668 = vmatprep.subr.bf16.mxu0 0
    %7669 = vmatpush1.bf16.msra.mxu0 0
    %7670 = vmatprep.subr.bf16.mxu0 0
    %7671 = vmatpush1.bf16.msra.mxu0 0
    %7672 = vmatprep.mubr.bf16.mxu0 0
    %7673 = vmatmul.mubr.bf16.gmra.mrb[0].mxu0 %v7368
    %v7674 = vpop.f32.mrb[0].mxu0
    %v7675 = vadd.f32 0.0, %v7674
    %v7676 = vpop.f32.mrb[0].mxu0
    %v7677 = vpop.f32.mrb[0].mxu0
    %v7678 = vadd.f32 0.0, %v7677
    %v7679 = vpop.f32.mrb[0].mxu0
    %7680 = vmatprep.mubr.bf16.mxu0 0
    %7681 = vmatmul.mubr.bf16.gmra.mrb[0].mxu0 %v7371
    %v7682 = vpop.f32.mrb[0].mxu0
    %v7683 = vadd.f32 0.0, %v7682
    %v7684 = vpop.f32.mrb[0].mxu0
    %v7685 = vpop.f32.mrb[0].mxu0
    %v7686 = vadd.f32 0.0, %v7685
    %v7687 = vpop.f32.mrb[0].mxu0
    %7688 = vmatprep.mubr.bf16.mxu0 0
    %7689 = vmatmul.mubr.bf16.gmra.mrb[0].mxu0 %v7374
    %v7690 = vpop.f32.mrb[0].mxu0
    %v7691 = vadd.f32 0.0, %v7690
    %v7692 = vpop.f32.mrb[0].mxu0
    %v7693 = vpop.f32.mrb[0].mxu0
    %v7694 = vadd.f32 0.0, %v7693
    %v7695 = vpop.f32.mrb[0].mxu0
    %7696 = vmatprep.mubr.bf16.mxu0 0
    %7697 = vmatmul.mubr.bf16.gmra.mrb[0].mxu0 %v7377
    %v7698 = vpop.f32.mrb[0].mxu0
    %v7699 = vadd.f32 0.0, %v7698
    %v7700 = vpop.f32.mrb[0].mxu0
    %v7701 = vpop.f32.mrb[0].mxu0
    %v7702 = vadd.f32 0.0, %v7701
    %v7703 = vpop.f32.mrb[0].mxu0
    %7704 = vmatprep.mubr.bf16.mxu0 0
    %7705 = vmatmul.mubr.bf16.gmra.mrb[0].mxu0 %v7380
    %v7706 = vpop.f32.mrb[0].mxu0
    %v7707 = vadd.f32 0.0, %v7706
    %v7708 = vpop.f32.mrb[0].mxu0
    %v7709 = vpop.f32.mrb[0].mxu0
    %v7710 = vadd.f32 0.0, %v7709
    %v7711 = vpop.f32.mrb[0].mxu0
    %7712 = vmatprep.mubr.bf16.mxu0 0
    %7713 = vmatmul.mubr.bf16.gmra.mrb[0].mxu0 %v7383
    %v7714 = vpop.f32.mrb[0].mxu0
    %v7715 = vadd.f32 0.0, %v7714
    %v7716 = vpop.f32.mrb[0].mxu0
    %v7717 = vpop.f32.mrb[0].mxu0
    %v7718 = vadd.f32 0.0, %v7717
    %v7719 = vpop.f32.mrb[0].mxu0
    %7720 = vmatprep.mubr.bf16.mxu0 0
    %7721 = vmatmul.mubr.bf16.gmra.mrb[0].mxu0 %v7386
    %v7722 = vpop.f32.mrb[0].mxu0
    %v7723 = vadd.f32 0.0, %v7722
    %v7724 = vpop.f32.mrb[0].mxu0
    %v7725 = vpop.f32.mrb[0].mxu0
    %v7726 = vadd.f32 0.0, %v7725
    %v7727 = vpop.f32.mrb[0].mxu0
    %7728 = vmatprep.mubr.bf16.mxu0 0
    %7729 = vmatmul.mubr.bf16.gmra.mrb[0].mxu0 %v7389
    %v7730 = vpop.f32.mrb[0].mxu0
    %v7731 = vadd.f32 0.0, %v7730
    %v7732 = vpop.f32.mrb[0].mxu0
    %v7733 = vpop.f32.mrb[0].mxu0
    %v7734 = vadd.f32 0.0, %v7733
    %v7735 = vpop.f32.mrb[0].mxu0
    %7736 = vmatprep.mubr.bf16.mxu0 0
    %7737 = vmatmul.mubr.bf16.gmra.mrb[0].mxu0 %v7392
    %v7738 = vpop.f32.mrb[0].mxu0
    %v7739 = vadd.f32 0.0, %v7738
    %v7740 = vpop.f32.mrb[0].mxu0
    %v7741 = vpop.f32.mrb[0].mxu0
    %v7742 = vadd.f32 0.0, %v7741
    %v7743 = vpop.f32.mrb[0].mxu0
    %7744 = vmatprep.mubr.bf16.mxu0 0
    %7745 = vmatmul.mubr.bf16.gmra.mrb[0].mxu0 %v7395
    %v7746 = vpop.f32.mrb[0].mxu0
    %v7747 = vadd.f32 0.0, %v7746
    %v7748 = vpop.f32.mrb[0].mxu0
    %v7749 = vpop.f32.mrb[0].mxu0
    %v7750 = vadd.f32 0.0, %v7749
    %v7751 = vpop.f32.mrb[0].mxu0
    %7752 = vmatprep.mubr.bf16.mxu0 0
    %7753 = vmatmul.mubr.bf16.gmra.mrb[0].mxu0 %v7398
    %v7754 = vpop.f32.mrb[0].mxu0
    %v7755 = vadd.f32 0.0, %v7754
    %v7756 = vpop.f32.mrb[0].mxu0
    %v7757 = vpop.f32.mrb[0].mxu0
    %v7758 = vadd.f32 0.0, %v7757
    %v7759 = vpop.f32.mrb[0].mxu0
    %7760 = vmatprep.mubr.bf16.mxu0 0
    %7761 = vmatmul.mubr.bf16.gmra.mrb[0].mxu0 %v7401
    %v7762 = vpop.f32.mrb[0].mxu0
    %v7763 = vadd.f32 0.0, %v7762
    %v7764 = vpop.f32.mrb[0].mxu0
    %v7765 = vpop.f32.mrb[0].mxu0
    %v7766 = vadd.f32 0.0, %v7765
    %v7767 = vpop.f32.mrb[0].mxu0
    %7768 = vmatprep.mubr.bf16.mxu0 0
    %7769 = vmatmul.mubr.bf16.gmra.mrb[0].mxu0 %v7404
    %v7770 = vpop.f32.mrb[0].mxu0
    %v7771 = vadd.f32 0.0, %v7770
    %v7772 = vpop.f32.mrb[0].mxu0
    %v7773 = vpop.f32.mrb[0].mxu0
    %v7774 = vadd.f32 0.0, %v7773
    %v7775 = vpop.f32.mrb[0].mxu0
    %7776 = vmatprep.mubr.bf16.mxu0 0
    %7777 = vmatmul.mubr.bf16.gmra.mrb[0].mxu0 %v7407
    %v7778 = vpop.f32.mrb[0].mxu0
    %v7779 = vadd.f32 0.0, %v7778
    %v7780 = vpop.f32.mrb[0].mxu0
    %v7781 = vpop.f32.mrb[0].mxu0
    %v7782 = vadd.f32 0.0, %v7781
    %v7783 = vpop.f32.mrb[0].mxu0
    %7784 = vmatprep.mubr.bf16.mxu0 0
    %7785 = vmatmul.mubr.bf16.gmra.mrb[0].mxu0 %v7410
    %v7786 = vpop.f32.mrb[0].mxu0
    %v7787 = vadd.f32 0.0, %v7786
    %v7788 = vpop.f32.mrb[0].mxu0
    %v7789 = vpop.f32.mrb[0].mxu0
    %v7790 = vadd.f32 0.0, %v7789
    %v7791 = vpop.f32.mrb[0].mxu0
    %7792 = vdwg.mxu0
    %v7801 = vunpack.c.l.b16 %v6817
    %v7802 = vunpack.c.l.b16 %v6818
    %v7803 = vunpack.c.l.b16 %v6819
    %v7804 = vunpack.c.l.b16 %v6820
    %v7805 = vunpack.c.l.b16 %v6821
    %v7806 = vunpack.c.l.b16 %v6822
    %v7807 = vunpack.c.l.b16 %v6823
    %v7808 = vunpack.c.l.b16 %v6824
    %v7809 = vpack.c.b16 %v7802, %v7801
    %v7810 = vpack.c.b16 %v7804, %v7803
    %v7811 = vpack.c.b16 %v7806, %v7805
    %v7812 = vpack.c.b16 %v7808, %v7807
    %v7818 = vsel %vm6516, %v7601, 0
    %v7821 = vsel %vm6516, %v7602, 0
    %v7824 = vsel %vm6516, %v7603, 0
    %v7827 = vsel %vm6516, %v7604, 0
    %v7830 = vsel %vm6516, %v7605, 0
    %v7833 = vsel %vm6516, %v7606, 0
    %v7836 = vsel %vm6516, %v7607, 0
    %v7839 = vsel %vm6516, %v7608, 0
    %v7842 = vsel %vm6516, %v7609, 0
    %v7845 = vsel %vm6516, %v7610, 0
    %v7848 = vsel %vm6516, %v7611, 0
    %v7851 = vsel %vm6516, %v7612, 0
    %v7854 = vsel %vm6516, %v7613, 0
    %v7857 = vsel %vm6516, %v7614, 0
    %v7860 = vsel %vm6516, %v7615, 0
    %7862 = vmatprep.subr.bf16.mxu0 0
    %7863 = vmatpush1.bf16.msra.mxu0 %v7809
    %7864 = vmatprep.subr.bf16.mxu0 0
    %7865 = vmatpush1.bf16.msra.mxu0 %v7810
    %7866 = vmatprep.subr.bf16.mxu0 0
    %7867 = vmatpush1.bf16.msra.mxu0 %v7811
    %7868 = vmatprep.subr.bf16.mxu0 0
    %7869 = vmatpush1.bf16.msra.mxu0 %v7812
    %7870 = vmatprep.subr.bf16.mxu0 0
    %7871 = vmatpush1.bf16.msra.mxu0 0
    %7872 = vmatprep.subr.bf16.mxu0 0
    %7873 = vmatpush1.bf16.msra.mxu0 0
    %7874 = vmatprep.subr.bf16.mxu0 0
    %7875 = vmatpush1.bf16.msra.mxu0 0
    %7876 = vmatprep.subr.bf16.mxu0 0
    %7877 = vmatpush1.bf16.msra.mxu0 0
    %7878 = vmatprep.subr.bf16.mxu0 0
    %7879 = vmatpush1.bf16.msra.mxu0 0
    %7880 = vmatprep.subr.bf16.mxu0 0
    %7881 = vmatpush1.bf16.msra.mxu0 0
    %7882 = vmatprep.subr.bf16.mxu0 0
    %7883 = vmatpush1.bf16.msra.mxu0 0
    %7884 = vmatprep.subr.bf16.mxu0 0
    %7885 = vmatpush1.bf16.msra.mxu0 0
    %7886 = vmatprep.subr.bf16.mxu0 0
    %7887 = vmatpush1.bf16.msra.mxu0 0
    %7888 = vmatprep.subr.bf16.mxu0 0
    %7889 = vmatpush1.bf16.msra.mxu0 0
    %7890 = vmatprep.subr.bf16.mxu0 0
    %7891 = vmatpush1.bf16.msra.mxu0 0
    %7892 = vmatprep.subr.bf16.mxu0 0
    %7893 = vmatpush1.bf16.msra.mxu0 0
    %7894 = vmatprep.mubr.bf16.mxu0 0
    %7895 = vmatmul.mubr.bf16.gmra.mrb[0].mxu0 %v7818
    %v7896 = vpop.f32.mrb[0].mxu0
    %v7897 = vadd.f32 %v7675, %v7896
    %v7898 = vpop.f32.mrb[0].mxu0
    %v7899 = vpop.f32.mrb[0].mxu0
    %v7900 = vadd.f32 %v7678, %v7899
    %v7901 = vpop.f32.mrb[0].mxu0
    %7902 = vmatprep.mubr.bf16.mxu0 0
    %7903 = vmatmul.mubr.bf16.gmra.mrb[0].mxu0 %v7821
    %v7904 = vpop.f32.mrb[0].mxu0
    %v7905 = vadd.f32 %v7683, %v7904
    %v7906 = vpop.f32.mrb[0].mxu0
    %v7907 = vpop.f32.mrb[0].mxu0
    %v7908 = vadd.f32 %v7686, %v7907
    %v7909 = vpop.f32.mrb[0].mxu0
    %7910 = vmatprep.mubr.bf16.mxu0 0
    %7911 = vmatmul.mubr.bf16.gmra.mrb[0].mxu0 %v7824
    %v7912 = vpop.f32.mrb[0].mxu0
    %v7913 = vadd.f32 %v7691, %v7912
    %v7914 = vpop.f32.mrb[0].mxu0
    %v7915 = vpop.f32.mrb[0].mxu0
    %v7916 = vadd.f32 %v7694, %v7915
    %v7917 = vpop.f32.mrb[0].mxu0
    %7918 = vmatprep.mubr.bf16.mxu0 0
    %7919 = vmatmul.mubr.bf16.gmra.mrb[0].mxu0 %v7827
    %v7920 = vpop.f32.mrb[0].mxu0
    %v7921 = vadd.f32 %v7699, %v7920
    %v7922 = vpop.f32.mrb[0].mxu0
    %v7923 = vpop.f32.mrb[0].mxu0
    %v7924 = vadd.f32 %v7702, %v7923
    %v7925 = vpop.f32.mrb[0].mxu0
    %7926 = vmatprep.mubr.bf16.mxu0 0
    %7927 = vmatmul.mubr.bf16.gmra.mrb[0].mxu0 %v7830
    %v7928 = vpop.f32.mrb[0].mxu0
    %v7929 = vadd.f32 %v7707, %v7928
    %v7930 = vpop.f32.mrb[0].mxu0
    %v7931 = vpop.f32.mrb[0].mxu0
    %v7932 = vadd.f32 %v7710, %v7931
    %v7933 = vpop.f32.mrb[0].mxu0
    %7934 = vmatprep.mubr.bf16.mxu0 0
    %7935 = vmatmul.mubr.bf16.gmra.mrb[0].mxu0 %v7833
    %v7936 = vpop.f32.mrb[0].mxu0
    %v7937 = vadd.f32 %v7715, %v7936
    %v7938 = vpop.f32.mrb[0].mxu0
    %v7939 = vpop.f32.mrb[0].mxu0
    %v7940 = vadd.f32 %v7718, %v7939
    %v7941 = vpop.f32.mrb[0].mxu0
    %7942 = vmatprep.mubr.bf16.mxu0 0
    %7943 = vmatmul.mubr.bf16.gmra.mrb[0].mxu0 %v7836
    %v7944 = vpop.f32.mrb[0].mxu0
    %v7945 = vadd.f32 %v7723, %v7944
    %v7946 = vpop.f32.mrb[0].mxu0
    %v7947 = vpop.f32.mrb[0].mxu0
    %v7948 = vadd.f32 %v7726, %v7947
    %v7949 = vpop.f32.mrb[0].mxu0
    %7950 = vmatprep.mubr.bf16.mxu0 0
    %7951 = vmatmul.mubr.bf16.gmra.mrb[0].mxu0 %v7839
    %v7952 = vpop.f32.mrb[0].mxu0
    %v7953 = vadd.f32 %v7731, %v7952
    %v7954 = vpop.f32.mrb[0].mxu0
    %v7955 = vpop.f32.mrb[0].mxu0
    %v7956 = vadd.f32 %v7734, %v7955
    %v7957 = vpop.f32.mrb[0].mxu0
    %7958 = vmatprep.mubr.bf16.mxu0 0
    %7959 = vmatmul.mubr.bf16.gmra.mrb[0].mxu0 %v7842
    %v7960 = vpop.f32.mrb[0].mxu0
    %v7961 = vadd.f32 %v7739, %v7960
    %v7962 = vpop.f32.mrb[0].mxu0
    %v7963 = vpop.f32.mrb[0].mxu0
    %v7964 = vadd.f32 %v7742, %v7963
    %v7965 = vpop.f32.mrb[0].mxu0
    %7966 = vmatprep.mubr.bf16.mxu0 0
    %7967 = vmatmul.mubr.bf16.gmra.mrb[0].mxu0 %v7845
    %v7968 = vpop.f32.mrb[0].mxu0
    %v7969 = vadd.f32 %v7747, %v7968
    %v7970 = vpop.f32.mrb[0].mxu0
    %v7971 = vpop.f32.mrb[0].mxu0
    %v7972 = vadd.f32 %v7750, %v7971
    %v7973 = vpop.f32.mrb[0].mxu0
    %7974 = vmatprep.mubr.bf16.mxu0 0
    %7975 = vmatmul.mubr.bf16.gmra.mrb[0].mxu0 %v7848
    %v7976 = vpop.f32.mrb[0].mxu0
    %v7977 = vadd.f32 %v7755, %v7976
    %v7978 = vpop.f32.mrb[0].mxu0
    %v7979 = vpop.f32.mrb[0].mxu0
    %v7980 = vadd.f32 %v7758, %v7979
    %v7981 = vpop.f32.mrb[0].mxu0
    %7982 = vmatprep.mubr.bf16.mxu0 0
    %7983 = vmatmul.mubr.bf16.gmra.mrb[0].mxu0 %v7851
    %v7984 = vpop.f32.mrb[0].mxu0
    %v7985 = vadd.f32 %v7763, %v7984
    %v7986 = vpop.f32.mrb[0].mxu0
    %v7987 = vpop.f32.mrb[0].mxu0
    %v7988 = vadd.f32 %v7766, %v7987
    %v7989 = vpop.f32.mrb[0].mxu0
    %7990 = vmatprep.mubr.bf16.mxu0 0
    %7991 = vmatmul.mubr.bf16.gmra.mrb[0].mxu0 %v7854
    %v7992 = vpop.f32.mrb[0].mxu0
    %v7993 = vadd.f32 %v7771, %v7992
    %v7994 = vpop.f32.mrb[0].mxu0
    %v7995 = vpop.f32.mrb[0].mxu0
    %v7996 = vadd.f32 %v7774, %v7995
    %v7997 = vpop.f32.mrb[0].mxu0
    %7998 = vmatprep.mubr.bf16.mxu0 0
    %7999 = vmatmul.mubr.bf16.gmra.mrb[0].mxu0 %v7857
    %v8000 = vpop.f32.mrb[0].mxu0
    %v8001 = vadd.f32 %v7779, %v8000
    %v8002 = vpop.f32.mrb[0].mxu0
    %v8003 = vpop.f32.mrb[0].mxu0
    %v8004 = vadd.f32 %v7782, %v8003
    %v8005 = vpop.f32.mrb[0].mxu0
    %8006 = vmatprep.mubr.bf16.mxu0 0
    %8007 = vmatmul.mubr.bf16.gmra.mrb[0].mxu0 %v7860
    %v8008 = vpop.f32.mrb[0].mxu0
    %v8009 = vadd.f32 %v7787, %v8008
    %v8010 = vpop.f32.mrb[0].mxu0
    %v8011 = vpop.f32.mrb[0].mxu0
    %v8012 = vadd.f32 %v7790, %v8011
    %v8013 = vpop.f32.mrb[0].mxu0
    %8014 = vdwg.mxu0
    %v8015 = vadd.f32 %v7897, %v7569
    %v8016 = vadd.f32 %v7900, %v7569
    %v8017 = vadd.f32 %v7905, %v7569
    %v8018 = vadd.f32 %v7908, %v7569
    %v8019 = vadd.f32 %v7913, %v7569
    %v8020 = vadd.f32 %v7916, %v7569
    %v8021 = vadd.f32 %v7921, %v7569
    %v8022 = vadd.f32 %v7924, %v7569
    %v8023 = vadd.f32 %v7929, %v7569
    %v8024 = vadd.f32 %v7932, %v7569
    %v8025 = vadd.f32 %v7937, %v7569
    %v8026 = vadd.f32 %v7940, %v7569
    %v8027 = vadd.f32 %v7945, %v7569
    %v8028 = vadd.f32 %v7948, %v7569
    %v8029 = vadd.f32 %v7953, %v7569
    %v8030 = vadd.f32 %v7956, %v7569
    %v8031 = vadd.f32 %v7961, %v7569
    %v8032 = vadd.f32 %v7964, %v7569
    %v8033 = vadd.f32 %v7969, %v7569
    %v8034 = vadd.f32 %v7972, %v7569
    %v8035 = vadd.f32 %v7977, %v7569
    %v8036 = vadd.f32 %v7980, %v7569
    %v8037 = vadd.f32 %v7985, %v7569
    %v8038 = vadd.f32 %v7988, %v7569
    %v8039 = vadd.f32 %v7993, %v7569
    %v8040 = vadd.f32 %v7996, %v7569
    %v8041 = vadd.f32 %v8001, %v7569
    %v8042 = vadd.f32 %v8004, %v7569
    %v8043 = vadd.f32 %v8009, %v7569
    %v8044 = vadd.f32 %v8012, %v7569
    %v8049 = vrot.slane %v8015, 2
    %v8050 = vrot.slane %v8016, 2
    %v8051 = vsel %vm1698, %v8049, %v8050
    %v8052 = vrot.slane %v8017, 2
    %v8053 = vsel %vm1698, %v8050, %v8052
    %v8054 = vrot.slane %v8018, 2
    %v8055 = vsel %vm1698, %v8052, %v8054
    %v8066 = vrot.slane %v7574, 2
    %v8067 = vrot.slane %v7575, 2
    %v8068 = vsel %vm1698, %v8066, %v8067
    %v8069 = vrot.slane %v7576, 2
    %v8070 = vsel %vm1698, %v8067, %v8069
    %v8071 = vrot.slane %v7577, 2
    %v8072 = vsel %vm1698, %v8069, %v8071
    %v8073 = vrot.slane %v7578, 2
    %v8074 = vsel %vm1698, %v8071, %v8073
    %v8084 = vrot.slane %v8018, 4
    %v8085 = vrot.slane %v8019, 4
    %v8086 = vsel %vm4182, %v8084, %v8085
    %v8087 = vrot.slane %v8020, 4
    %v8088 = vsel %vm4182, %v8085, %v8087
    %v8089 = vrot.slane %v8021, 4
    %v8090 = vsel %vm4182, %v8087, %v8089
    %v8091 = vrot.slane %v8022, 4
    %v8092 = vsel %vm4182, %v8089, %v8091
    %v8101 = vrot.slane %v7578, 4
    %v8102 = vrot.slane %v7579, 4
    %v8103 = vsel %vm4182, %v8101, %v8102
    %v8104 = vrot.slane %v7580, 4
    %v8105 = vsel %vm4182, %v8102, %v8104
    %v8106 = vrot.slane %v7581, 4
    %v8107 = vsel %vm4182, %v8104, %v8106
    %v8108 = vrot.slane %v7582, 4
    %v8109 = vsel %vm4182, %v8106, %v8108
    %v8118 = vrot.slane %v8022, 6
    %v8119 = vrot.slane %v8023, 6
    %v8120 = vsel %vm4626, %v8118, %v8119
    %v8121 = vrot.slane %v8024, 6
    %v8122 = vsel %vm4626, %v8119, %v8121
    %v8123 = vrot.slane %v8025, 6
    %v8124 = vsel %vm4626, %v8121, %v8123
    %v8125 = vrot.slane %v8026, 6
    %v8126 = vsel %vm4626, %v8123, %v8125
    %v8135 = vrot.slane %v7582, 6
    %v8136 = vrot.slane %v7583, 6
    %v8137 = vsel %vm4626, %v8135, %v8136
    %v8138 = vrot.slane %v7584, 6
    %v8139 = vsel %vm4626, %v8136, %v8138
    %v8140 = vrot.slane %v7585, 6
    %v8141 = vsel %vm4626, %v8138, %v8140
    %v8151 = vrot.slane %v8030, 2
    %v8152 = vrot.slane %v8031, 2
    %v8153 = vsel %vm1698, %v8151, %v8152
    %v8154 = vrot.slane %v8032, 2
    %v8155 = vsel %vm1698, %v8152, %v8154
    %v8156 = vrot.slane %v8033, 2
    %v8157 = vsel %vm1698, %v8154, %v8156
    %v8168 = vrot.slane %v7589, 2
    %v8169 = vrot.slane %v7590, 2
    %v8170 = vsel %vm1698, %v8168, %v8169
    %v8171 = vrot.slane %v7591, 2
    %v8172 = vsel %vm1698, %v8169, %v8171
    %v8173 = vrot.slane %v7592, 2
    %v8174 = vsel %vm1698, %v8171, %v8173
    %v8175 = vrot.slane %v7593, 2
    %v8176 = vsel %vm1698, %v8173, %v8175
    %v8186 = vrot.slane %v8033, 4
    %v8187 = vrot.slane %v8034, 4
    %v8188 = vsel %vm4182, %v8186, %v8187
    %v8189 = vrot.slane %v8035, 4
    %v8190 = vsel %vm4182, %v8187, %v8189
    %v8191 = vrot.slane %v8036, 4
    %v8192 = vsel %vm4182, %v8189, %v8191
    %v8193 = vrot.slane %v8037, 4
    %v8194 = vsel %vm4182, %v8191, %v8193
    %v8203 = vrot.slane %v7593, 4
    %v8204 = vrot.slane %v7594, 4
    %v8205 = vsel %vm4182, %v8203, %v8204
    %v8206 = vrot.slane %v7595, 4
    %v8207 = vsel %vm4182, %v8204, %v8206
    %v8208 = vrot.slane %v7596, 4
    %v8209 = vsel %vm4182, %v8206, %v8208
    %v8210 = vrot.slane %v7597, 4
    %v8211 = vsel %vm4182, %v8208, %v8210
    %v8220 = vrot.slane %v8037, 6
    %v8221 = vrot.slane %v8038, 6
    %v8222 = vsel %vm4626, %v8220, %v8221
    %v8223 = vrot.slane %v8039, 6
    %v8224 = vsel %vm4626, %v8221, %v8223
    %v8225 = vrot.slane %v8040, 6
    %v8226 = vsel %vm4626, %v8223, %v8225
    %v8227 = vrot.slane %v8041, 6
    %v8228 = vsel %vm4626, %v8225, %v8227
    %v8237 = vrot.slane %v7597, 6
    %v8238 = vrot.slane %v7598, 6
    %v8239 = vsel %vm4626, %v8237, %v8238
    %v8240 = vrot.slane %v7599, 6
    %v8241 = vsel %vm4626, %v8238, %v8240
    %v8242 = vrot.slane %v7600, 6
    %v8243 = vsel %vm4626, %v8240, %v8242
    %v8249 = vsel %vm1698, %v7574, %v8049
    %v8250 = vsel %vm4182, %v8054, %v8068
    %v8251 = vsel %vm4626, %v8073, %v8086
    %v8252 = vsel %vm1698, %v8109, %v8118
    %v8253 = vsel %vm4182, %v8126, %v8135
    %v8254 = vsel %vm4626, %v8140, %v8026
    %v8255 = vsel %vm1698, %v7589, %v8151
    %v8256 = vsel %vm4182, %v8156, %v8170
    %v8257 = vsel %vm4626, %v8175, %v8188
    %v8258 = vsel %vm1698, %v8211, %v8220
    %v8259 = vsel %vm4182, %v8228, %v8237
    %v8260 = vsel %vm4626, %v8242, %v8041
    %v8261 = vld [vmem:[%s19] sm:$0x1]
    %v8262 = vld [vmem:[%s20] sm:$0x1]
    %vm8263 = vcmask 261120
    %v8264 = vsel %vm8263, %v7571, 0.0
    %v8265 = vsel %vm8263, %v7572, 0.0
    %v8266 = vadd.f32 %v8264, %v8265
    %v8267 = vsel %vm8263, %v7573, 0.0
    %v8268 = vadd.f32 %v8266, %v8267
    %v8269 = vsel %vm8263, %v8249, 0.0
    %v8270 = vadd.f32 %v8268, %v8269
    %v8271 = vsel %vm8263, %v8051, 0.0
    %v8272 = vadd.f32 %v8270, %v8271
    %v8273 = vsel %vm8263, %v8053, 0.0
    %v8274 = vadd.f32 %v8272, %v8273
    %v8275 = vsel %vm8263, %v8055, 0.0
    %v8276 = vadd.f32 %v8274, %v8275
    %v8277 = vsel %vm8263, %v8250, 0.0
    %v8278 = vadd.f32 %v8276, %v8277
    %v8279 = vsel %vm8263, %v8070, 0.0
    %v8280 = vadd.f32 %v8278, %v8279
    %v8281 = vsel %vm8263, %v8072, 0.0
    %v8282 = vadd.f32 %v8280, %v8281
    %v8283 = vsel %vm8263, %v8074, 0.0
    %v8284 = vadd.f32 %v8282, %v8283
    %v8285 = vsel %vm8263, %v8251, 0.0
    %v8286 = vadd.f32 %v8284, %v8285
    %v8287 = vsel %vm8263, %v8088, 0.0
    %v8288 = vadd.f32 %v8286, %v8287
    %v8289 = vsel %vm8263, %v8090, 0.0
    %v8290 = vadd.f32 %v8288, %v8289
    %v8291 = vsel %vm8263, %v8092, 0.0
    %v8292 = vadd.f32 %v8290, %v8291
    %v8293 = vsel %vm8263, %v8103, 0.0
    %v8294 = vadd.f32 %v8292, %v8293
    %v8295 = vsel %vm8263, %v8105, 0.0
    %v8296 = vadd.f32 %v8294, %v8295
    %v8297 = vsel %vm8263, %v8107, 0.0
    %v8298 = vadd.f32 %v8296, %v8297
    %v8299 = vsel %vm8263, %v8252, 0.0
    %v8300 = vadd.f32 %v8298, %v8299
    %v8301 = vsel %vm8263, %v8120, 0.0
    %v8302 = vadd.f32 %v8300, %v8301
    %v8303 = vsel %vm8263, %v8122, 0.0
    %v8304 = vadd.f32 %v8302, %v8303
    %v8305 = vsel %vm8263, %v8124, 0.0
    %v8306 = vadd.f32 %v8304, %v8305
    %v8307 = vsel %vm8263, %v8253, 0.0
    %v8308 = vadd.f32 %v8306, %v8307
    %v8309 = vsel %vm8263, %v8137, 0.0
    %v8310 = vadd.f32 %v8308, %v8309
    %v8311 = vsel %vm8263, %v8139, 0.0
    %v8312 = vadd.f32 %v8310, %v8311
    %v8313 = vsel %vm8263, %v8141, 0.0
    %v8314 = vadd.f32 %v8312, %v8313
    %v8315 = vsel %vm8263, %v8254, 0.0
    %v8316 = vadd.f32 %v8314, %v8315
    %v8317 = vsel %vm8263, %v8027, 0.0
    %v8318 = vadd.f32 %v8316, %v8317
    %v8319 = vsel %vm8263, %v8028, 0.0
    %v8320 = vadd.f32 %v8318, %v8319
    %v8321 = vsel %vm8263, %v8029, 0.0
    %v8322 = vadd.f32 %v8320, %v8321
    %v8323 = vsel %vm8263, %v7586, 0.0
    %v8324 = vadd.f32 %v8322, %v8323
    %v8325 = vsel %vm8263, %v7587, 0.0
    %v8326 = vadd.f32 %v8324, %v8325
    %v8327 = vsel %vm8263, %v7588, 0.0
    %v8328 = vadd.f32 %v8326, %v8327
    %v8329 = vsel %vm8263, %v8255, 0.0
    %v8330 = vadd.f32 %v8328, %v8329
    %v8331 = vsel %vm8263, %v8153, 0.0
    %v8332 = vadd.f32 %v8330, %v8331
    %v8333 = vsel %vm8263, %v8155, 0.0
    %v8334 = vadd.f32 %v8332, %v8333
    %v8335 = vsel %vm8263, %v8157, 0.0
    %v8336 = vadd.f32 %v8334, %v8335
    %v8337 = vsel %vm8263, %v8256, 0.0
    %v8338 = vadd.f32 %v8336, %v8337
    %v8339 = vsel %vm8263, %v8172, 0.0
    %v8340 = vadd.f32 %v8338, %v8339
    %v8341 = vsel %vm8263, %v8174, 0.0
    %v8342 = vadd.f32 %v8340, %v8341
    %v8343 = vsel %vm8263, %v8176, 0.0
    %v8344 = vadd.f32 %v8342, %v8343
    %v8345 = vsel %vm8263, %v8257, 0.0
    %v8346 = vadd.f32 %v8344, %v8345
    %v8347 = vsel %vm8263, %v8190, 0.0
    %v8348 = vadd.f32 %v8346, %v8347
    %v8349 = vsel %vm8263, %v8192, 0.0
    %v8350 = vadd.f32 %v8348, %v8349
    %v8351 = vsel %vm8263, %v8194, 0.0
    %v8352 = vadd.f32 %v8350, %v8351
    %v8353 = vsel %vm8263, %v8205, 0.0
    %v8354 = vadd.f32 %v8352, %v8353
    %v8355 = vsel %vm8263, %v8207, 0.0
    %v8356 = vadd.f32 %v8354, %v8355
    %v8357 = vsel %vm8263, %v8209, 0.0
    %v8358 = vadd.f32 %v8356, %v8357
    %v8359 = vsel %vm8263, %v8258, 0.0
    %v8360 = vadd.f32 %v8358, %v8359
    %v8361 = vsel %vm8263, %v8222, 0.0
    %v8362 = vadd.f32 %v8360, %v8361
    %v8363 = vsel %vm8263, %v8224, 0.0
    %v8364 = vadd.f32 %v8362, %v8363
    %v8365 = vsel %vm8263, %v8226, 0.0
    %v8366 = vadd.f32 %v8364, %v8365
    %v8367 = vsel %vm8263, %v8259, 0.0
    %v8368 = vadd.f32 %v8366, %v8367
    %v8369 = vsel %vm8263, %v8239, 0.0
    %v8370 = vadd.f32 %v8368, %v8369
    %v8371 = vsel %vm8263, %v8241, 0.0
    %v8372 = vadd.f32 %v8370, %v8371
    %v8373 = vsel %vm8263, %v8243, 0.0
    %v8374 = vadd.f32 %v8372, %v8373
    %v8375 = vsel %vm8263, %v8260, 0.0
    %v8376 = vadd.f32 %v8374, %v8375
    %v8377 = vsel %vm8263, %v8042, 0.0
    %v8378 = vadd.f32 %v8376, %v8377
    %v8379 = vsel %vm8263, %v8043, 0.0
    %v8380 = vadd.f32 %v8378, %v8379
    %v8381 = vsel %vm8263, %v8044, 0.0
    %v8382 = vadd.f32 %v8380, %v8381
    %v8383 = vrot.slane %v8382, 4
    %v8384 = vadd.f32 %v8382, %v8383
    %v8385 = vrot.slane %v8384, 2
    %v8386 = vadd.f32 %v8384, %v8385
    %v8387 = vrot.slane %v8386, 1
    %v8388 = vadd.f32 %v8386, %v8387
    %v8389 = vmul.f32 %v8388, 0.0020833334
    %v8390 = vsub.f32 %v7571, %v8389
    %v8391 = vsub.f32 %v7572, %v8389
    %v8392 = vsub.f32 %v7573, %v8389
    %v8393 = vsub.f32 %v8249, %v8389
    %v8394 = vsub.f32 %v8051, %v8389
    %v8395 = vsub.f32 %v8053, %v8389
    %v8396 = vsub.f32 %v8055, %v8389
    %v8397 = vsub.f32 %v8250, %v8389
    %v8398 = vsub.f32 %v8070, %v8389
    %v8399 = vsub.f32 %v8072, %v8389
    %v8400 = vsub.f32 %v8074, %v8389
    %v8401 = vsub.f32 %v8251, %v8389
    %v8402 = vsub.f32 %v8088, %v8389
    %v8403 = vsub.f32 %v8090, %v8389
    %v8404 = vsub.f32 %v8092, %v8389
    %v8405 = vsub.f32 %v8103, %v8389
    %v8406 = vsub.f32 %v8105, %v8389
    %v8407 = vsub.f32 %v8107, %v8389
    %v8408 = vsub.f32 %v8252, %v8389
    %v8409 = vsub.f32 %v8120, %v8389
    %v8410 = vsub.f32 %v8122, %v8389
    %v8411 = vsub.f32 %v8124, %v8389
    %v8412 = vsub.f32 %v8253, %v8389
    %v8413 = vsub.f32 %v8137, %v8389
    %v8414 = vsub.f32 %v8139, %v8389
    %v8415 = vsub.f32 %v8141, %v8389
    %v8416 = vsub.f32 %v8254, %v8389
    %v8417 = vsub.f32 %v8027, %v8389
    %v8418 = vsub.f32 %v8028, %v8389
    %v8419 = vsub.f32 %v8029, %v8389
    %v8420 = vsub.f32 %v7586, %v8389
    %v8421 = vsub.f32 %v7587, %v8389
    %v8422 = vsub.f32 %v7588, %v8389
    %v8423 = vsub.f32 %v8255, %v8389
    %v8424 = vsub.f32 %v8153, %v8389
    %v8425 = vsub.f32 %v8155, %v8389
    %v8426 = vsub.f32 %v8157, %v8389
    %v8427 = vsub.f32 %v8256, %v8389
    %v8428 = vsub.f32 %v8172, %v8389
    %v8429 = vsub.f32 %v8174, %v8389
    %v8430 = vsub.f32 %v8176, %v8389
    %v8431 = vsub.f32 %v8257, %v8389
    %v8432 = vsub.f32 %v8190, %v8389
    %v8433 = vsub.f32 %v8192, %v8389
    %v8434 = vsub.f32 %v8194, %v8389
    %v8435 = vsub.f32 %v8205, %v8389
    %v8436 = vsub.f32 %v8207, %v8389
    %v8437 = vsub.f32 %v8209, %v8389
    %v8438 = vsub.f32 %v8258, %v8389
    %v8439 = vsub.f32 %v8222, %v8389
    %v8440 = vsub.f32 %v8224, %v8389
    %v8441 = vsub.f32 %v8226, %v8389
    %v8442 = vsub.f32 %v8259, %v8389
    %v8443 = vsub.f32 %v8239, %v8389
    %v8444 = vsub.f32 %v8241, %v8389
    %v8445 = vsub.f32 %v8243, %v8389
    %v8446 = vsub.f32 %v8260, %v8389
    %v8447 = vsub.f32 %v8042, %v8389
    %v8448 = vsub.f32 %v8043, %v8389
    %v8449 = vsub.f32 %v8044, %v8389
    %v8450 = vmul.f32 %v8390, %v8390
    %v8451 = vmul.f32 %v8391, %v8391
    %v8452 = vmul.f32 %v8392, %v8392
    %v8453 = vmul.f32 %v8393, %v8393
    %v8454 = vmul.f32 %v8394, %v8394
    %v8455 = vmul.f32 %v8395, %v8395
    %v8456 = vmul.f32 %v8396, %v8396
    %v8457 = vmul.f32 %v8397, %v8397
    %v8458 = vmul.f32 %v8398, %v8398
    %v8459 = vmul.f32 %v8399, %v8399
    %v8460 = vmul.f32 %v8400, %v8400
    %v8461 = vmul.f32 %v8401, %v8401
    %v8462 = vmul.f32 %v8402, %v8402
    %v8463 = vmul.f32 %v8403, %v8403
    %v8464 = vmul.f32 %v8404, %v8404
    %v8465 = vmul.f32 %v8405, %v8405
    %v8466 = vmul.f32 %v8406, %v8406
    %v8467 = vmul.f32 %v8407, %v8407
    %v8468 = vmul.f32 %v8408, %v8408
    %v8469 = vmul.f32 %v8409, %v8409
    %v8470 = vmul.f32 %v8410, %v8410
    %v8471 = vmul.f32 %v8411, %v8411
    %v8472 = vmul.f32 %v8412, %v8412
    %v8473 = vmul.f32 %v8413, %v8413
    %v8474 = vmul.f32 %v8414, %v8414
    %v8475 = vmul.f32 %v8415, %v8415
    %v8476 = vmul.f32 %v8416, %v8416
    %v8477 = vmul.f32 %v8417, %v8417
    %v8478 = vmul.f32 %v8418, %v8418
    %v8479 = vmul.f32 %v8419, %v8419
    %v8480 = vmul.f32 %v8420, %v8420
    %v8481 = vmul.f32 %v8421, %v8421
    %v8482 = vmul.f32 %v8422, %v8422
    %v8483 = vmul.f32 %v8423, %v8423
    %v8484 = vmul.f32 %v8424, %v8424
    %v8485 = vmul.f32 %v8425, %v8425
    %v8486 = vmul.f32 %v8426, %v8426
    %v8487 = vmul.f32 %v8427, %v8427
    %v8488 = vmul.f32 %v8428, %v8428
    %v8489 = vmul.f32 %v8429, %v8429
    %v8490 = vmul.f32 %v8430, %v8430
    %v8491 = vmul.f32 %v8431, %v8431
    %v8492 = vmul.f32 %v8432, %v8432
    %v8493 = vmul.f32 %v8433, %v8433
    %v8494 = vmul.f32 %v8434, %v8434
    %v8495 = vmul.f32 %v8435, %v8435
    %v8496 = vmul.f32 %v8436, %v8436
    %v8497 = vmul.f32 %v8437, %v8437
    %v8498 = vmul.f32 %v8438, %v8438
    %v8499 = vmul.f32 %v8439, %v8439
    %v8500 = vmul.f32 %v8440, %v8440
    %v8501 = vmul.f32 %v8441, %v8441
    %v8502 = vmul.f32 %v8442, %v8442
    %v8503 = vmul.f32 %v8443, %v8443
    %v8504 = vmul.f32 %v8444, %v8444
    %v8505 = vmul.f32 %v8445, %v8445
    %v8506 = vmul.f32 %v8446, %v8446
    %v8507 = vmul.f32 %v8447, %v8447
    %v8508 = vmul.f32 %v8448, %v8448
    %v8509 = vmul.f32 %v8449, %v8449
    %v8510 = vsel %vm8263, %v8450, 0.0
    %v8511 = vsel %vm8263, %v8451, 0.0
    %v8512 = vadd.f32 %v8510, %v8511
    %v8513 = vsel %vm8263, %v8452, 0.0
    %v8514 = vadd.f32 %v8512, %v8513
    %v8515 = vsel %vm8263, %v8453, 0.0
    %v8516 = vadd.f32 %v8514, %v8515
    %v8517 = vsel %vm8263, %v8454, 0.0
    %v8518 = vadd.f32 %v8516, %v8517
    %v8519 = vsel %vm8263, %v8455, 0.0
    %v8520 = vadd.f32 %v8518, %v8519
    %v8521 = vsel %vm8263, %v8456, 0.0
    %v8522 = vadd.f32 %v8520, %v8521
    %v8523 = vsel %vm8263, %v8457, 0.0
    %v8524 = vadd.f32 %v8522, %v8523
    %v8525 = vsel %vm8263, %v8458, 0.0
    %v8526 = vadd.f32 %v8524, %v8525
    %v8527 = vsel %vm8263, %v8459, 0.0
    %v8528 = vadd.f32 %v8526, %v8527
    %v8529 = vsel %vm8263, %v8460, 0.0
    %v8530 = vadd.f32 %v8528, %v8529
    %v8531 = vsel %vm8263, %v8461, 0.0
    %v8532 = vadd.f32 %v8530, %v8531
    %v8533 = vsel %vm8263, %v8462, 0.0
    %v8534 = vadd.f32 %v8532, %v8533
    %v8535 = vsel %vm8263, %v8463, 0.0
    %v8536 = vadd.f32 %v8534, %v8535
    %v8537 = vsel %vm8263, %v8464, 0.0
    %v8538 = vadd.f32 %v8536, %v8537
    %v8539 = vsel %vm8263, %v8465, 0.0
    %v8540 = vadd.f32 %v8538, %v8539
    %v8541 = vsel %vm8263, %v8466, 0.0
    %v8542 = vadd.f32 %v8540, %v8541
    %v8543 = vsel %vm8263, %v8467, 0.0
    %v8544 = vadd.f32 %v8542, %v8543
    %v8545 = vsel %vm8263, %v8468, 0.0
    %v8546 = vadd.f32 %v8544, %v8545
    %v8547 = vsel %vm8263, %v8469, 0.0
    %v8548 = vadd.f32 %v8546, %v8547
    %v8549 = vsel %vm8263, %v8470, 0.0
    %v8550 = vadd.f32 %v8548, %v8549
    %v8551 = vsel %vm8263, %v8471, 0.0
    %v8552 = vadd.f32 %v8550, %v8551
    %v8553 = vsel %vm8263, %v8472, 0.0
    %v8554 = vadd.f32 %v8552, %v8553
    %v8555 = vsel %vm8263, %v8473, 0.0
    %v8556 = vadd.f32 %v8554, %v8555
    %v8557 = vsel %vm8263, %v8474, 0.0
    %v8558 = vadd.f32 %v8556, %v8557
    %v8559 = vsel %vm8263, %v8475, 0.0
    %v8560 = vadd.f32 %v8558, %v8559
    %v8561 = vsel %vm8263, %v8476, 0.0
    %v8562 = vadd.f32 %v8560, %v8561
    %v8563 = vsel %vm8263, %v8477, 0.0
    %v8564 = vadd.f32 %v8562, %v8563
    %v8565 = vsel %vm8263, %v8478, 0.0
    %v8566 = vadd.f32 %v8564, %v8565
    %v8567 = vsel %vm8263, %v8479, 0.0
    %v8568 = vadd.f32 %v8566, %v8567
    %v8569 = vsel %vm8263, %v8480, 0.0
    %v8570 = vadd.f32 %v8568, %v8569
    %v8571 = vsel %vm8263, %v8481, 0.0
    %v8572 = vadd.f32 %v8570, %v8571
    %v8573 = vsel %vm8263, %v8482, 0.0
    %v8574 = vadd.f32 %v8572, %v8573
    %v8575 = vsel %vm8263, %v8483, 0.0
    %v8576 = vadd.f32 %v8574, %v8575
    %v8577 = vsel %vm8263, %v8484, 0.0
    %v8578 = vadd.f32 %v8576, %v8577
    %v8579 = vsel %vm8263, %v8485, 0.0
    %v8580 = vadd.f32 %v8578, %v8579
    %v8581 = vsel %vm8263, %v8486, 0.0
    %v8582 = vadd.f32 %v8580, %v8581
    %v8583 = vsel %vm8263, %v8487, 0.0
    %v8584 = vadd.f32 %v8582, %v8583
    %v8585 = vsel %vm8263, %v8488, 0.0
    %v8586 = vadd.f32 %v8584, %v8585
    %v8587 = vsel %vm8263, %v8489, 0.0
    %v8588 = vadd.f32 %v8586, %v8587
    %v8589 = vsel %vm8263, %v8490, 0.0
    %v8590 = vadd.f32 %v8588, %v8589
    %v8591 = vsel %vm8263, %v8491, 0.0
    %v8592 = vadd.f32 %v8590, %v8591
    %v8593 = vsel %vm8263, %v8492, 0.0
    %v8594 = vadd.f32 %v8592, %v8593
    %v8595 = vsel %vm8263, %v8493, 0.0
    %v8596 = vadd.f32 %v8594, %v8595
    %v8597 = vsel %vm8263, %v8494, 0.0
    %v8598 = vadd.f32 %v8596, %v8597
    %v8599 = vsel %vm8263, %v8495, 0.0
    %v8600 = vadd.f32 %v8598, %v8599
    %v8601 = vsel %vm8263, %v8496, 0.0
    %v8602 = vadd.f32 %v8600, %v8601
    %v8603 = vsel %vm8263, %v8497, 0.0
    %v8604 = vadd.f32 %v8602, %v8603
    %v8605 = vsel %vm8263, %v8498, 0.0
    %v8606 = vadd.f32 %v8604, %v8605
    %v8607 = vsel %vm8263, %v8499, 0.0
    %v8608 = vadd.f32 %v8606, %v8607
    %v8609 = vsel %vm8263, %v8500, 0.0
    %v8610 = vadd.f32 %v8608, %v8609
    %v8611 = vsel %vm8263, %v8501, 0.0
    %v8612 = vadd.f32 %v8610, %v8611
    %v8613 = vsel %vm8263, %v8502, 0.0
    %v8614 = vadd.f32 %v8612, %v8613
    %v8615 = vsel %vm8263, %v8503, 0.0
    %v8616 = vadd.f32 %v8614, %v8615
    %v8617 = vsel %vm8263, %v8504, 0.0
    %v8618 = vadd.f32 %v8616, %v8617
    %v8619 = vsel %vm8263, %v8505, 0.0
    %v8620 = vadd.f32 %v8618, %v8619
    %v8621 = vsel %vm8263, %v8506, 0.0
    %v8622 = vadd.f32 %v8620, %v8621
    %v8623 = vsel %vm8263, %v8507, 0.0
    %v8624 = vadd.f32 %v8622, %v8623
    %v8625 = vsel %vm8263, %v8508, 0.0
    %v8626 = vadd.f32 %v8624, %v8625
    %v8627 = vsel %vm8263, %v8509, 0.0
    %v8628 = vadd.f32 %v8626, %v8627
    %v8629 = vrot.slane %v8628, 4
    %v8630 = vadd.f32 %v8628, %v8629
    %v8631 = vrot.slane %v8630, 2
    %v8632 = vadd.f32 %v8630, %v8631
    %v8633 = vrot.slane %v8632, 1
    %v8634 = vadd.f32 %v8632, %v8633
    %v8635 = vmul.f32 %v8634, 0.0020833334
    %v8636 = vadd.f32 %v8635, 1e-05
    %v8637 = vrsqrt.pop %v8636
    %v8638 = vmul.f32 %v8261, %v8637
    %v8639 = vmul.f32 %v8389, %v8638
    %v8640 = vsub.f32 %v8262, %v8639
    %v8642 = vlaneseq
    %v8643 = vshrl.u32 %v8642, 7
    %v8644 = vsub.s32 0, %v8643
    %v8645 = vrot.slane %v8638, %v8644
    %v8647 = vmul.f32 %v7571, %v8645
    %v8648 = vmul.f32 %v7572, %v8645
    %v8649 = vmul.f32 %v7573, %v8645
    %v8650 = vmul.f32 %v8249, %v8645
    %v8651 = vmul.f32 %v8051, %v8645
    %v8652 = vmul.f32 %v8053, %v8645
    %v8653 = vmul.f32 %v8055, %v8645
    %v8654 = vmul.f32 %v8250, %v8645
    %v8655 = vmul.f32 %v8070, %v8645
    %v8656 = vmul.f32 %v8072, %v8645
    %v8657 = vmul.f32 %v8074, %v8645
    %v8658 = vmul.f32 %v8251, %v8645
    %v8659 = vmul.f32 %v8088, %v8645
    %v8660 = vmul.f32 %v8090, %v8645
    %v8661 = vmul.f32 %v8092, %v8645
    %v8662 = vmul.f32 %v8103, %v8645
    %v8663 = vmul.f32 %v8105, %v8645
    %v8664 = vmul.f32 %v8107, %v8645
    %v8665 = vmul.f32 %v8252, %v8645
    %v8666 = vmul.f32 %v8120, %v8645
    %v8667 = vmul.f32 %v8122, %v8645
    %v8668 = vmul.f32 %v8124, %v8645
    %v8669 = vmul.f32 %v8253, %v8645
    %v8670 = vmul.f32 %v8137, %v8645
    %v8671 = vmul.f32 %v8139, %v8645
    %v8672 = vmul.f32 %v8141, %v8645
    %v8673 = vmul.f32 %v8254, %v8645
    %v8674 = vmul.f32 %v8027, %v8645
    %v8675 = vmul.f32 %v8028, %v8645
    %v8676 = vmul.f32 %v8029, %v8645
    %v8677 = vmul.f32 %v7586, %v8645
    %v8678 = vmul.f32 %v7587, %v8645
    %v8679 = vmul.f32 %v7588, %v8645
    %v8680 = vmul.f32 %v8255, %v8645
    %v8681 = vmul.f32 %v8153, %v8645
    %v8682 = vmul.f32 %v8155, %v8645
    %v8683 = vmul.f32 %v8157, %v8645
    %v8684 = vmul.f32 %v8256, %v8645
    %v8685 = vmul.f32 %v8172, %v8645
    %v8686 = vmul.f32 %v8174, %v8645
    %v8687 = vmul.f32 %v8176, %v8645
    %v8688 = vmul.f32 %v8257, %v8645
    %v8689 = vmul.f32 %v8190, %v8645
    %v8690 = vmul.f32 %v8192, %v8645
    %v8691 = vmul.f32 %v8194, %v8645
    %v8692 = vmul.f32 %v8205, %v8645
    %v8693 = vmul.f32 %v8207, %v8645
    %v8694 = vmul.f32 %v8209, %v8645
    %v8695 = vmul.f32 %v8258, %v8645
    %v8696 = vmul.f32 %v8222, %v8645
    %v8697 = vmul.f32 %v8224, %v8645
    %v8698 = vmul.f32 %v8226, %v8645
    %v8699 = vmul.f32 %v8259, %v8645
    %v8700 = vmul.f32 %v8239, %v8645
    %v8701 = vmul.f32 %v8241, %v8645
    %v8702 = vmul.f32 %v8243, %v8645
    %v8703 = vmul.f32 %v8260, %v8645
    %v8704 = vmul.f32 %v8042, %v8645
    %v8705 = vmul.f32 %v8043, %v8645
    %v8706 = vmul.f32 %v8044, %v8645
    %v8708 = vlaneseq
    %v8709 = vshrl.u32 %v8708, 7
    %v8710 = vsub.s32 0, %v8709
    %v8711 = vrot.slane %v8640, %v8710
    %v8713 = vadd.f32 %v8647, %v8711
    %v8714 = vadd.f32 %v8648, %v8711
    %v8715 = vadd.f32 %v8649, %v8711
    %v8716 = vadd.f32 %v8650, %v8711
    %v8717 = vadd.f32 %v8651, %v8711
    %v8718 = vadd.f32 %v8652, %v8711
    %v8719 = vadd.f32 %v8653, %v8711
    %v8720 = vadd.f32 %v8654, %v8711
    %v8721 = vadd.f32 %v8655, %v8711
    %v8722 = vadd.f32 %v8656, %v8711
    %v8723 = vadd.f32 %v8657, %v8711
    %v8724 = vadd.f32 %v8658, %v8711
    %v8725 = vadd.f32 %v8659, %v8711
    %v8726 = vadd.f32 %v8660, %v8711
    %v8727 = vadd.f32 %v8661, %v8711
    %v8728 = vadd.f32 %v8662, %v8711
    %v8729 = vadd.f32 %v8663, %v8711
    %v8730 = vadd.f32 %v8664, %v8711
    %v8731 = vadd.f32 %v8665, %v8711
    %v8732 = vadd.f32 %v8666, %v8711
    %v8733 = vadd.f32 %v8667, %v8711
    %v8734 = vadd.f32 %v8668, %v8711
    %v8735 = vadd.f32 %v8669, %v8711
    %v8736 = vadd.f32 %v8670, %v8711
    %v8737 = vadd.f32 %v8671, %v8711
    %v8738 = vadd.f32 %v8672, %v8711
    %v8739 = vadd.f32 %v8673, %v8711
    %v8740 = vadd.f32 %v8674, %v8711
    %v8741 = vadd.f32 %v8675, %v8711
    %v8742 = vadd.f32 %v8676, %v8711
    %v8743 = vadd.f32 %v8677, %v8711
    %v8744 = vadd.f32 %v8678, %v8711
    %v8745 = vadd.f32 %v8679, %v8711
    %v8746 = vadd.f32 %v8680, %v8711
    %v8747 = vadd.f32 %v8681, %v8711
    %v8748 = vadd.f32 %v8682, %v8711
    %v8749 = vadd.f32 %v8683, %v8711
    %v8750 = vadd.f32 %v8684, %v8711
    %v8751 = vadd.f32 %v8685, %v8711
    %v8752 = vadd.f32 %v8686, %v8711
    %v8753 = vadd.f32 %v8687, %v8711
    %v8754 = vadd.f32 %v8688, %v8711
    %v8755 = vadd.f32 %v8689, %v8711
    %v8756 = vadd.f32 %v8690, %v8711
    %v8757 = vadd.f32 %v8691, %v8711
    %v8758 = vadd.f32 %v8692, %v8711
    %v8759 = vadd.f32 %v8693, %v8711
    %v8760 = vadd.f32 %v8694, %v8711
    %v8761 = vadd.f32 %v8695, %v8711
    %v8762 = vadd.f32 %v8696, %v8711
    %v8763 = vadd.f32 %v8697, %v8711
    %v8764 = vadd.f32 %v8698, %v8711
    %v8765 = vadd.f32 %v8699, %v8711
    %v8766 = vadd.f32 %v8700, %v8711
    %v8767 = vadd.f32 %v8701, %v8711
    %v8768 = vadd.f32 %v8702, %v8711
    %v8769 = vadd.f32 %v8703, %v8711
    %v8770 = vadd.f32 %v8704, %v8711
    %v8771 = vadd.f32 %v8705, %v8711
    %v8772 = vadd.f32 %v8706, %v8711
    %v8773 = vmax.f32 %v8713, 0.0
    %v8774 = vmax.f32 %v8714, 0.0
    %v8775 = vmax.f32 %v8715, 0.0
    %v8776 = vmax.f32 %v8716, 0.0
    %v8777 = vmax.f32 %v8717, 0.0
    %v8778 = vmax.f32 %v8718, 0.0
    %v8779 = vmax.f32 %v8719, 0.0
    %v8780 = vmax.f32 %v8720, 0.0
    %v8781 = vmax.f32 %v8721, 0.0
    %v8782 = vmax.f32 %v8722, 0.0
    %v8783 = vmax.f32 %v8723, 0.0
    %v8784 = vmax.f32 %v8724, 0.0
    %v8785 = vmax.f32 %v8725, 0.0
    %v8786 = vmax.f32 %v8726, 0.0
    %v8787 = vmax.f32 %v8727, 0.0
    %v8788 = vmax.f32 %v8728, 0.0
    %v8789 = vmax.f32 %v8729, 0.0
    %v8790 = vmax.f32 %v8730, 0.0
    %v8791 = vmax.f32 %v8731, 0.0
    %v8792 = vmax.f32 %v8732, 0.0
    %v8793 = vmax.f32 %v8733, 0.0
    %v8794 = vmax.f32 %v8734, 0.0
    %v8795 = vmax.f32 %v8735, 0.0
    %v8796 = vmax.f32 %v8736, 0.0
    %v8797 = vmax.f32 %v8737, 0.0
    %v8798 = vmax.f32 %v8738, 0.0
    %v8799 = vmax.f32 %v8739, 0.0
    %v8800 = vmax.f32 %v8740, 0.0
    %v8801 = vmax.f32 %v8741, 0.0
    %v8802 = vmax.f32 %v8742, 0.0
    %v8803 = vmax.f32 %v8743, 0.0
    %v8804 = vmax.f32 %v8744, 0.0
    %v8805 = vmax.f32 %v8745, 0.0
    %v8806 = vmax.f32 %v8746, 0.0
    %v8807 = vmax.f32 %v8747, 0.0
    %v8808 = vmax.f32 %v8748, 0.0
    %v8809 = vmax.f32 %v8749, 0.0
    %v8810 = vmax.f32 %v8750, 0.0
    %v8811 = vmax.f32 %v8751, 0.0
    %v8812 = vmax.f32 %v8752, 0.0
    %v8813 = vmax.f32 %v8753, 0.0
    %v8814 = vmax.f32 %v8754, 0.0
    %v8815 = vmax.f32 %v8755, 0.0
    %v8816 = vmax.f32 %v8756, 0.0
    %v8817 = vmax.f32 %v8757, 0.0
    %v8818 = vmax.f32 %v8758, 0.0
    %v8819 = vmax.f32 %v8759, 0.0
    %v8820 = vmax.f32 %v8760, 0.0
    %v8821 = vmax.f32 %v8761, 0.0
    %v8822 = vmax.f32 %v8762, 0.0
    %v8823 = vmax.f32 %v8763, 0.0
    %v8824 = vmax.f32 %v8764, 0.0
    %v8825 = vmax.f32 %v8765, 0.0
    %v8826 = vmax.f32 %v8766, 0.0
    %v8827 = vmax.f32 %v8767, 0.0
    %v8828 = vmax.f32 %v8768, 0.0
    %v8829 = vmax.f32 %v8769, 0.0
    %v8830 = vmax.f32 %v8770, 0.0
    %v8831 = vmax.f32 %v8771, 0.0
    %v8832 = vmax.f32 %v8772, 0.0
    %v8833 = vld [vmem:[%s22] sm:$0x1]
    %v8834 = vld [vmem:[%s21] sm:$0xf]
    %v8835 = vld [vmem:[%s21 + $0x4] sm:$0xf]
    %v8836 = vld [vmem:[%s21 + $0x8] sm:$0xf]
    %v8837 = vld [vmem:[%s21 + $0xc] sm:$0xf]
    %s8838 = scalar_lea.vmem %s21, 16
    %v8839 = vld [vmem:[%s8838] sm:$0xf]
    %v8840 = vld [vmem:[%s8838 + $0x4] sm:$0xf]
    %v8841 = vld [vmem:[%s8838 + $0x8] sm:$0xf]
    %v8842 = vld [vmem:[%s8838 + $0xc] sm:$0xf]
    %s8843 = scalar_lea.vmem %s21, 32
    %v8844 = vld [vmem:[%s8843] sm:$0xf]
    %v8845 = vld [vmem:[%s8843 + $0x4] sm:$0xf]
    %v8846 = vld [vmem:[%s8843 + $0x8] sm:$0xf]
    %v8847 = vld [vmem:[%s8843 + $0xc] sm:$0xf]
    %s8848 = scalar_lea.vmem %s21, 48
    %v8849 = vld [vmem:[%s8848] sm:$0xf]
    %v8850 = vld [vmem:[%s8848 + $0x4] sm:$0xf]
    %v8851 = vld [vmem:[%s8848 + $0x8] sm:$0xf]
    %v8852 = vld [vmem:[%s8848 + $0xc] sm:$0xf]
    %v8857 = vrot.slane %v8829, 1
    %v8858 = vrot.slane %v8830, 1
    %v8859 = vsel %vm1363, %v8857, %v8858
    %v8860 = vrot.slane %v8831, 1
    %v8861 = vsel %vm1363, %v8858, %v8860
    %v8862 = vrot.slane %v8832, 1
    %v8863 = vsel %vm1363, %v8860, %v8862
    %v8868 = vsel %vm2255, 0.0, %v8859
    %v8869 = vmul.f32 %v8868, %v132
    %v8870 = vmul.f32 %v8861, %v133
    %v8871 = vmul.f32 %v8863, %v134
    %v8872 = vmul.f32 %v8862, %v135
    %v8877 = vrot.slane %v8773, 1
    %v8878 = vrot.slane %v8774, 1
    %v8879 = vsel %vm1363, %v8877, %v8878
    %v8880 = vrot.slane %v8775, 1
    %v8881 = vsel %vm1363, %v8878, %v8880
    %v8882 = vrot.slane %v8776, 1
    %v8883 = vsel %vm1363, %v8880, %v8882
    %v8888 = vsel %vm2364, %v8882, 0.0
    %v8889 = vmul.f32 %v8879, %v136
    %v8890 = vmul.f32 %v8881, %v137
    %v8891 = vmul.f32 %v8883, %v138
    %v8892 = vmul.f32 %v8888, %v139
    %v8945 = vrot.slane %v8773, 2
    %v8946 = vrot.slane %v8774, 2
    %v8947 = vsel %vm1698, %v8945, %v8946
    %v8948 = vrot.slane %v8775, 2
    %v8949 = vsel %vm1698, %v8946, %v8948
    %v8950 = vrot.slane %v8776, 2
    %v8951 = vsel %vm1698, %v8948, %v8950
    %v8952 = vrot.slane %v8777, 2
    %v8953 = vsel %vm1698, %v8950, %v8952
    %v8954 = vrot.slane %v8778, 2
    %v8955 = vsel %vm1698, %v8952, %v8954
    %v8956 = vrot.slane %v8779, 2
    %v8957 = vsel %vm1698, %v8954, %v8956
    %v8958 = vrot.slane %v8780, 2
    %v8959 = vsel %vm1698, %v8956, %v8958
    %v8960 = vrot.slane %v8781, 2
    %v8961 = vsel %vm1698, %v8958, %v8960
    %v8962 = vrot.slane %v8782, 2
    %v8963 = vsel %vm1698, %v8960, %v8962
    %v8964 = vrot.slane %v8783, 2
    %v8965 = vsel %vm1698, %v8962, %v8964
    %v8966 = vrot.slane %v8784, 2
    %v8967 = vsel %vm1698, %v8964, %v8966
    %v8968 = vrot.slane %v8785, 2
    %v8969 = vsel %vm1698, %v8966, %v8968
    %v8970 = vrot.slane %v8786, 2
    %v8971 = vsel %vm1698, %v8968, %v8970
    %v8972 = vrot.slane %v8787, 2
    %v8973 = vsel %vm1698, %v8970, %v8972
    %v8974 = vrot.slane %v8788, 2
    %v8975 = vsel %vm1698, %v8972, %v8974
    %v8976 = vrot.slane %v8789, 2
    %v8977 = vsel %vm1698, %v8974, %v8976
    %v8978 = vrot.slane %v8790, 2
    %v8979 = vsel %vm1698, %v8976, %v8978
    %v8980 = vrot.slane %v8791, 2
    %v8981 = vsel %vm1698, %v8978, %v8980
    %v8982 = vrot.slane %v8792, 2
    %v8983 = vsel %vm1698, %v8980, %v8982
    %v8984 = vrot.slane %v8793, 2
    %v8985 = vsel %vm1698, %v8982, %v8984
    %v8986 = vrot.slane %v8794, 2
    %v8987 = vsel %vm1698, %v8984, %v8986
    %v8988 = vrot.slane %v8795, 2
    %v8989 = vsel %vm1698, %v8986, %v8988
    %v8990 = vrot.slane %v8796, 2
    %v8991 = vsel %vm1698, %v8988, %v8990
    %v8992 = vrot.slane %v8797, 2
    %v8993 = vsel %vm1698, %v8990, %v8992
    %v8994 = vrot.slane %v8798, 2
    %v8995 = vsel %vm1698, %v8992, %v8994
    %v8996 = vrot.slane %v8799, 2
    %v8997 = vsel %vm1698, %v8994, %v8996
    %v8998 = vrot.slane %v8800, 2
    %v8999 = vsel %vm1698, %v8996, %v8998
    %v9000 = vrot.slane %v8801, 2
    %v9001 = vsel %vm1698, %v8998, %v9000
    %v9002 = vrot.slane %v8802, 2
    %v9003 = vsel %vm1698, %v9000, %v9002
    %v9004 = vrot.slane %v8803, 2
    %v9005 = vsel %vm1698, %v9002, %v9004
    %v9006 = vrot.slane %v8804, 2
    %v9007 = vsel %vm1698, %v9004, %v9006
    %v9008 = vrot.slane %v8805, 2
    %v9009 = vsel %vm1698, %v9006, %v9008
    %v9010 = vrot.slane %v8806, 2
    %v9011 = vsel %vm1698, %v9008, %v9010
    %v9012 = vrot.slane %v8807, 2
    %v9013 = vsel %vm1698, %v9010, %v9012
    %v9014 = vrot.slane %v8808, 2
    %v9015 = vsel %vm1698, %v9012, %v9014
    %v9016 = vrot.slane %v8809, 2
    %v9017 = vsel %vm1698, %v9014, %v9016
    %v9018 = vrot.slane %v8810, 2
    %v9019 = vsel %vm1698, %v9016, %v9018
    %v9020 = vrot.slane %v8811, 2
    %v9021 = vsel %vm1698, %v9018, %v9020
    %v9022 = vrot.slane %v8812, 2
    %v9023 = vsel %vm1698, %v9020, %v9022
    %v9024 = vrot.slane %v8813, 2
    %v9025 = vsel %vm1698, %v9022, %v9024
    %v9026 = vrot.slane %v8814, 2
    %v9027 = vsel %vm1698, %v9024, %v9026
    %v9028 = vrot.slane %v8815, 2
    %v9029 = vsel %vm1698, %v9026, %v9028
    %v9030 = vrot.slane %v8816, 2
    %v9031 = vsel %vm1698, %v9028, %v9030
    %v9032 = vrot.slane %v8817, 2
    %v9033 = vsel %vm1698, %v9030, %v9032
    %v9034 = vrot.slane %v8818, 2
    %v9035 = vsel %vm1698, %v9032, %v9034
    %v9036 = vrot.slane %v8819, 2
    %v9037 = vsel %vm1698, %v9034, %v9036
    %v9038 = vrot.slane %v8820, 2
    %v9039 = vsel %vm1698, %v9036, %v9038
    %v9040 = vrot.slane %v8821, 2
    %v9041 = vsel %vm1698, %v9038, %v9040
    %v9042 = vrot.slane %v8822, 2
    %v9043 = vsel %vm1698, %v9040, %v9042
    %v9044 = vrot.slane %v8823, 2
    %v9045 = vsel %vm1698, %v9042, %v9044
    %v9046 = vrot.slane %v8824, 2
    %v9047 = vsel %vm1698, %v9044, %v9046
    %v9048 = vrot.slane %v8825, 2
    %v9049 = vsel %vm1698, %v9046, %v9048
    %v9050 = vrot.slane %v8826, 2
    %v9051 = vsel %vm1698, %v9048, %v9050
    %v9052 = vrot.slane %v8827, 2
    %v9053 = vsel %vm1698, %v9050, %v9052
    %v9054 = vrot.slane %v8828, 2
    %v9055 = vsel %vm1698, %v9052, %v9054
    %v9056 = vrot.slane %v8829, 2
    %v9057 = vsel %vm1698, %v9054, %v9056
    %v9115 = vsel %vm1698, %v8872, %v8945
    %v9116 = vrot.slane %v8776, 6
    %v9117 = vrot.slane %v8777, 6
    %v9118 = vsel %vm4626, %v9116, %v9117
    %v9119 = vrot.slane %v8778, 6
    %v9120 = vsel %vm4626, %v9117, %v9119
    %v9121 = vrot.slane %v8779, 6
    %v9122 = vsel %vm4626, %v9119, %v9121
    %v9123 = vrot.slane %v8780, 6
    %v9124 = vsel %vm4626, %v9121, %v9123
    %v9125 = vrot.slane %v8781, 6
    %v9126 = vsel %vm4626, %v9123, %v9125
    %v9127 = vrot.slane %v8782, 6
    %v9128 = vsel %vm4626, %v9125, %v9127
    %v9129 = vrot.slane %v8783, 6
    %v9130 = vsel %vm4626, %v9127, %v9129
    %v9131 = vrot.slane %v8784, 6
    %v9132 = vsel %vm4626, %v9129, %v9131
    %v9133 = vrot.slane %v8785, 6
    %v9134 = vsel %vm4626, %v9131, %v9133
    %v9135 = vrot.slane %v8786, 6
    %v9136 = vsel %vm4626, %v9133, %v9135
    %v9137 = vrot.slane %v8787, 6
    %v9138 = vsel %vm4626, %v9135, %v9137
    %v9139 = vrot.slane %v8788, 6
    %v9140 = vsel %vm4626, %v9137, %v9139
    %v9141 = vrot.slane %v8789, 6
    %v9142 = vsel %vm4626, %v9139, %v9141
    %v9143 = vrot.slane %v8790, 6
    %v9144 = vsel %vm4626, %v9141, %v9143
    %v9145 = vrot.slane %v8791, 6
    %v9146 = vsel %vm4626, %v9143, %v9145
    %v9147 = vrot.slane %v8792, 6
    %v9148 = vsel %vm4626, %v9145, %v9147
    %v9149 = vrot.slane %v8793, 6
    %v9150 = vsel %vm4626, %v9147, %v9149
    %v9151 = vrot.slane %v8794, 6
    %v9152 = vsel %vm4626, %v9149, %v9151
    %v9153 = vrot.slane %v8795, 6
    %v9154 = vsel %vm4626, %v9151, %v9153
    %v9155 = vrot.slane %v8796, 6
    %v9156 = vsel %vm4626, %v9153, %v9155
    %v9157 = vrot.slane %v8797, 6
    %v9158 = vsel %vm4626, %v9155, %v9157
    %v9159 = vrot.slane %v8798, 6
    %v9160 = vsel %vm4626, %v9157, %v9159
    %v9161 = vrot.slane %v8799, 6
    %v9162 = vsel %vm4626, %v9159, %v9161
    %v9163 = vrot.slane %v8800, 6
    %v9164 = vsel %vm4626, %v9161, %v9163
    %v9165 = vrot.slane %v8801, 6
    %v9166 = vsel %vm4626, %v9163, %v9165
    %v9167 = vrot.slane %v8802, 6
    %v9168 = vsel %vm4626, %v9165, %v9167
    %v9169 = vrot.slane %v8803, 6
    %v9170 = vsel %vm4626, %v9167, %v9169
    %v9171 = vrot.slane %v8804, 6
    %v9172 = vsel %vm4626, %v9169, %v9171
    %v9173 = vrot.slane %v8805, 6
    %v9174 = vsel %vm4626, %v9171, %v9173
    %v9175 = vrot.slane %v8806, 6
    %v9176 = vsel %vm4626, %v9173, %v9175
    %v9177 = vrot.slane %v8807, 6
    %v9178 = vsel %vm4626, %v9175, %v9177
    %v9179 = vrot.slane %v8808, 6
    %v9180 = vsel %vm4626, %v9177, %v9179
    %v9181 = vrot.slane %v8809, 6
    %v9182 = vsel %vm4626, %v9179, %v9181
    %v9183 = vrot.slane %v8810, 6
    %v9184 = vsel %vm4626, %v9181, %v9183
    %v9185 = vrot.slane %v8811, 6
    %v9186 = vsel %vm4626, %v9183, %v9185
    %v9187 = vrot.slane %v8812, 6
    %v9188 = vsel %vm4626, %v9185, %v9187
    %v9189 = vrot.slane %v8813, 6
    %v9190 = vsel %vm4626, %v9187, %v9189
    %v9191 = vrot.slane %v8814, 6
    %v9192 = vsel %vm4626, %v9189, %v9191
    %v9193 = vrot.slane %v8815, 6
    %v9194 = vsel %vm4626, %v9191, %v9193
    %v9195 = vrot.slane %v8816, 6
    %v9196 = vsel %vm4626, %v9193, %v9195
    %v9197 = vrot.slane %v8817, 6
    %v9198 = vsel %vm4626, %v9195, %v9197
    %v9199 = vrot.slane %v8818, 6
    %v9200 = vsel %vm4626, %v9197, %v9199
    %v9201 = vrot.slane %v8819, 6
    %v9202 = vsel %vm4626, %v9199, %v9201
    %v9203 = vrot.slane %v8820, 6
    %v9204 = vsel %vm4626, %v9201, %v9203
    %v9205 = vrot.slane %v8821, 6
    %v9206 = vsel %vm4626, %v9203, %v9205
    %v9207 = vrot.slane %v8822, 6
    %v9208 = vsel %vm4626, %v9205, %v9207
    %v9209 = vrot.slane %v8823, 6
    %v9210 = vsel %vm4626, %v9207, %v9209
    %v9211 = vrot.slane %v8824, 6
    %v9212 = vsel %vm4626, %v9209, %v9211
    %v9213 = vrot.slane %v8825, 6
    %v9214 = vsel %vm4626, %v9211, %v9213
    %v9215 = vrot.slane %v8826, 6
    %v9216 = vsel %vm4626, %v9213, %v9215
    %v9217 = vrot.slane %v8827, 6
    %v9218 = vsel %vm4626, %v9215, %v9217
    %v9219 = vrot.slane %v8828, 6
    %v9220 = vsel %vm4626, %v9217, %v9219
    %v9221 = vrot.slane %v8829, 6
    %v9222 = vsel %vm4626, %v9219, %v9221
    %v9223 = vrot.slane %v8830, 6
    %v9224 = vsel %vm4626, %v9221, %v9223
    %v9225 = vrot.slane %v8831, 6
    %v9226 = vsel %vm4626, %v9223, %v9225
    %v9227 = vrot.slane %v8832, 6
    %v9228 = vsel %vm4626, %v9225, %v9227
    %v9290 = vrot.slane %v8889, 6
    %v9291 = vrot.slane %v8890, 6
    %v9292 = vsel %vm4626, %v9290, %v9291
    %v9293 = vrot.slane %v8891, 6
    %v9294 = vsel %vm4626, %v9291, %v9293
    %v9295 = vrot.slane %v8892, 6
    %v9296 = vsel %vm4626, %v9293, %v9295
    %v9301 = vsel %vm4626, %v9227, %v9290
    %v9302 = vpack.c.bf16 %v8774, %v8773
    %v9303 = vpack.c.bf16 %v8776, %v8775
    %v9304 = vpack.c.bf16 %v8778, %v8777
    %v9305 = vpack.c.bf16 %v8780, %v8779
    %v9306 = vpack.c.bf16 %v8782, %v8781
    %v9307 = vpack.c.bf16 %v8784, %v8783
    %v9308 = vpack.c.bf16 %v8786, %v8785
    %v9309 = vpack.c.bf16 %v8788, %v8787
    %v9310 = vpack.c.bf16 %v8790, %v8789
    %v9311 = vpack.c.bf16 %v8792, %v8791
    %v9312 = vpack.c.bf16 %v8794, %v8793
    %v9313 = vpack.c.bf16 %v8796, %v8795
    %v9314 = vpack.c.bf16 %v8798, %v8797
    %v9315 = vpack.c.bf16 %v8800, %v8799
    %v9316 = vpack.c.bf16 %v8802, %v8801
    %v9317 = vpack.c.bf16 %v8804, %v8803
    %v9318 = vpack.c.bf16 %v8806, %v8805
    %v9319 = vpack.c.bf16 %v8808, %v8807
    %v9320 = vpack.c.bf16 %v8810, %v8809
    %v9321 = vpack.c.bf16 %v8812, %v8811
    %v9322 = vpack.c.bf16 %v8814, %v8813
    %v9323 = vpack.c.bf16 %v8816, %v8815
    %v9324 = vpack.c.bf16 %v8818, %v8817
    %v9325 = vpack.c.bf16 %v8820, %v8819
    %v9326 = vpack.c.bf16 %v8822, %v8821
    %v9327 = vpack.c.bf16 %v8824, %v8823
    %v9328 = vpack.c.bf16 %v8826, %v8825
    %v9329 = vpack.c.bf16 %v8828, %v8827
    %v9330 = vpack.c.bf16 %v8830, %v8829
    %v9331 = vpack.c.bf16 %v8832, %v8831
    %v9332 = vpack.c.bf16 %v8870, %v8869
    %v9333 = vpack.c.bf16 %v9115, %v8871
    %v9334 = vpack.c.bf16 %v8949, %v8947
    %v9335 = vpack.c.bf16 %v8953, %v8951
    %v9336 = vpack.c.bf16 %v8957, %v8955
    %v9337 = vpack.c.bf16 %v8961, %v8959
    %v9338 = vpack.c.bf16 %v8965, %v8963
    %v9339 = vpack.c.bf16 %v8969, %v8967
    %v9340 = vpack.c.bf16 %v8973, %v8971
    %v9341 = vpack.c.bf16 %v8977, %v8975
    %v9342 = vpack.c.bf16 %v8981, %v8979
    %v9343 = vpack.c.bf16 %v8985, %v8983
    %v9344 = vpack.c.bf16 %v8989, %v8987
    %v9345 = vpack.c.bf16 %v8993, %v8991
    %v9346 = vpack.c.bf16 %v8997, %v8995
    %v9347 = vpack.c.bf16 %v9001, %v8999
    %v9348 = vpack.c.bf16 %v9005, %v9003
    %v9349 = vpack.c.bf16 %v9009, %v9007
    %v9350 = vpack.c.bf16 %v9013, %v9011
    %v9351 = vpack.c.bf16 %v9017, %v9015
    %v9352 = vpack.c.bf16 %v9021, %v9019
    %v9353 = vpack.c.bf16 %v9025, %v9023
    %v9354 = vpack.c.bf16 %v9029, %v9027
    %v9355 = vpack.c.bf16 %v9033, %v9031
    %v9356 = vpack.c.bf16 %v9037, %v9035
    %v9357 = vpack.c.bf16 %v9041, %v9039
    %v9358 = vpack.c.bf16 %v9045, %v9043
    %v9359 = vpack.c.bf16 %v9049, %v9047
    %v9360 = vpack.c.bf16 %v9053, %v9051
    %v9361 = vpack.c.bf16 %v9057, %v9055
    %v9366 = vunpack.c.l.b16 %v8849
    %v9367 = vunpack.c.l.b16 %v8850
    %v9368 = vunpack.c.l.b16 %v8851
    %v9369 = vunpack.c.l.b16 %v8852
    %v9370 = vpack.c.b16 %v9367, %v9366
    %v9371 = vpack.c.b16 %v9369, %v9368
    %v9375 = vsel %vm8263, %v9332, 0
    %v9378 = vsel %vm8263, %v9333, 0
    %v9381 = vsel %vm8263, %v9334, 0
    %v9384 = vsel %vm8263, %v9335, 0
    %v9387 = vsel %vm8263, %v9336, 0
    %v9390 = vsel %vm8263, %v9337, 0
    %v9393 = vsel %vm8263, %v9338, 0
    %v9396 = vsel %vm8263, %v9339, 0
    %v9399 = vsel %vm8263, %v9340, 0
    %v9402 = vsel %vm8263, %v9341, 0
    %v9405 = vsel %vm8263, %v9342, 0
    %v9408 = vsel %vm8263, %v9343, 0
    %v9411 = vsel %vm8263, %v9344, 0
    %v9414 = vsel %vm8263, %v9345, 0
    %v9417 = vsel %vm8263, %v9346, 0
    %v9420 = vsel %vm8263, %v9347, 0
    %v9423 = vsel %vm8263, %v9348, 0
    %v9426 = vsel %vm8263, %v9349, 0
    %v9429 = vsel %vm8263, %v9350, 0
    %v9432 = vsel %vm8263, %v9351, 0
    %v9435 = vsel %vm8263, %v9352, 0
    %v9438 = vsel %vm8263, %v9353, 0
    %v9441 = vsel %vm8263, %v9354, 0
    %v9444 = vsel %vm8263, %v9355, 0
    %v9447 = vsel %vm8263, %v9356, 0
    %v9450 = vsel %vm8263, %v9357, 0
    %v9453 = vsel %vm8263, %v9358, 0
    %v9456 = vsel %vm8263, %v9359, 0
    %v9459 = vsel %vm8263, %v9360, 0
    %v9462 = vsel %vm8263, %v9361, 0
    %9464 = vmatprep.subr.bf16.mxu0 0
    %9465 = vmatpush1.bf16.msra.mxu0 %v9370
    %9466 = vmatprep.subr.bf16.mxu0 0
    %9467 = vmatpush1.bf16.msra.mxu0 %v9371
    %9468 = vmatprep.subr.bf16.mxu0 0
    %9469 = vmatpush1.bf16.msra.mxu0 0
    %9470 = vmatprep.subr.bf16.mxu0 0
    %9471 = vmatpush1.bf16.msra.mxu0 0
    %9472 = vmatprep.subr.bf16.mxu0 0
    %9473 = vmatpush1.bf16.msra.mxu0 0
    %9474 = vmatprep.subr.bf16.mxu0 0
    %9475 = vmatpush1.bf16.msra.mxu0 0
    %9476 = vmatprep.subr.bf16.mxu0 0
    %9477 = vmatpush1.bf16.msra.mxu0 0
    %9478 = vmatprep.subr.bf16.mxu0 0
    %9479 = vmatpush1.bf16.msra.mxu0 0
    %9480 = vmatprep.subr.bf16.mxu0 0
    %9481 = vmatpush1.bf16.msra.mxu0 0
    %9482 = vmatprep.subr.bf16.mxu0 0
    %9483 = vmatpush1.bf16.msra.mxu0 0
    %9484 = vmatprep.subr.bf16.mxu0 0
    %9485 = vmatpush1.bf16.msra.mxu0 0
    %9486 = vmatprep.subr.bf16.mxu0 0
    %9487 = vmatpush1.bf16.msra.mxu0 0
    %9488 = vmatprep.subr.bf16.mxu0 0
    %9489 = vmatpush1.bf16.msra.mxu0 0
    %9490 = vmatprep.subr.bf16.mxu0 0
    %9491 = vmatpush1.bf16.msra.mxu0 0
    %9492 = vmatprep.subr.bf16.mxu0 0
    %9493 = vmatpush1.bf16.msra.mxu0 0
    %9494 = vmatprep.subr.bf16.mxu0 0
    %9495 = vmatpush1.bf16.msra.mxu0 0
    %9496 = vmatprep.mubr.bf16.mxu0 0
    %9497 = vmatmul.mubr.bf16.gmra.mrb[0].mxu0 %v9375
    %v9498 = vpop.f32.mrb[0].mxu0
    %v9499 = vadd.f32 0.0, %v9498
    %v9500 = vpop.f32.mrb[0].mxu0
    %v9501 = vpop.f32.mrb[0].mxu0
    %v9502 = vadd.f32 0.0, %v9501
    %v9503 = vpop.f32.mrb[0].mxu0
    %9504 = vmatprep.mubr.bf16.mxu0 0
    %9505 = vmatmul.mubr.bf16.gmra.mrb[0].mxu0 %v9378
    %v9506 = vpop.f32.mrb[0].mxu0
    %v9507 = vadd.f32 0.0, %v9506
    %v9508 = vpop.f32.mrb[0].mxu0
    %v9509 = vpop.f32.mrb[0].mxu0
    %v9510 = vadd.f32 0.0, %v9509
    %v9511 = vpop.f32.mrb[0].mxu0
    %9512 = vmatprep.mubr.bf16.mxu0 0
    %9513 = vmatmul.mubr.bf16.gmra.mrb[0].mxu0 %v9381
    %v9514 = vpop.f32.mrb[0].mxu0
    %v9515 = vadd.f32 0.0, %v9514
    %v9516 = vpop.f32.mrb[0].mxu0
    %v9517 = vpop.f32.mrb[0].mxu0
    %v9518 = vadd.f32 0.0, %v9517
    %v9519 = vpop.f32.mrb[0].mxu0
    %9520 = vmatprep.mubr.bf16.mxu0 0
    %9521 = vmatmul.mubr.bf16.gmra.mrb[0].mxu0 %v9384
    %v9522 = vpop.f32.mrb[0].mxu0
    %v9523 = vadd.f32 0.0, %v9522
    %v9524 = vpop.f32.mrb[0].mxu0
    %v9525 = vpop.f32.mrb[0].mxu0
    %v9526 = vadd.f32 0.0, %v9525
    %v9527 = vpop.f32.mrb[0].mxu0
    %9528 = vmatprep.mubr.bf16.mxu0 0
    %9529 = vmatmul.mubr.bf16.gmra.mrb[0].mxu0 %v9387
    %v9530 = vpop.f32.mrb[0].mxu0
    %v9531 = vadd.f32 0.0, %v9530
    %v9532 = vpop.f32.mrb[0].mxu0
    %v9533 = vpop.f32.mrb[0].mxu0
    %v9534 = vadd.f32 0.0, %v9533
    %v9535 = vpop.f32.mrb[0].mxu0
    %9536 = vmatprep.mubr.bf16.mxu0 0
    %9537 = vmatmul.mubr.bf16.gmra.mrb[0].mxu0 %v9390
    %v9538 = vpop.f32.mrb[0].mxu0
    %v9539 = vadd.f32 0.0, %v9538
    %v9540 = vpop.f32.mrb[0].mxu0
    %v9541 = vpop.f32.mrb[0].mxu0
    %v9542 = vadd.f32 0.0, %v9541
    %v9543 = vpop.f32.mrb[0].mxu0
    %9544 = vmatprep.mubr.bf16.mxu0 0
    %9545 = vmatmul.mubr.bf16.gmra.mrb[0].mxu0 %v9393
    %v9546 = vpop.f32.mrb[0].mxu0
    %v9547 = vadd.f32 0.0, %v9546
    %v9548 = vpop.f32.mrb[0].mxu0
    %v9549 = vpop.f32.mrb[0].mxu0
    %v9550 = vadd.f32 0.0, %v9549
    %v9551 = vpop.f32.mrb[0].mxu0
    %9552 = vmatprep.mubr.bf16.mxu0 0
    %9553 = vmatmul.mubr.bf16.gmra.mrb[0].mxu0 %v9396
    %v9554 = vpop.f32.mrb[0].mxu0
    %v9555 = vadd.f32 0.0, %v9554
    %v9556 = vpop.f32.mrb[0].mxu0
    %v9557 = vpop.f32.mrb[0].mxu0
    %v9558 = vadd.f32 0.0, %v9557
    %v9559 = vpop.f32.mrb[0].mxu0
    %9560 = vmatprep.mubr.bf16.mxu0 0
    %9561 = vmatmul.mubr.bf16.gmra.mrb[0].mxu0 %v9399
    %v9562 = vpop.f32.mrb[0].mxu0
    %v9563 = vadd.f32 0.0, %v9562
    %v9564 = vpop.f32.mrb[0].mxu0
    %v9565 = vpop.f32.mrb[0].mxu0
    %v9566 = vadd.f32 0.0, %v9565
    %v9567 = vpop.f32.mrb[0].mxu0
    %9568 = vmatprep.mubr.bf16.mxu0 0
    %9569 = vmatmul.mubr.bf16.gmra.mrb[0].mxu0 %v9402
    %v9570 = vpop.f32.mrb[0].mxu0
    %v9571 = vadd.f32 0.0, %v9570
    %v9572 = vpop.f32.mrb[0].mxu0
    %v9573 = vpop.f32.mrb[0].mxu0
    %v9574 = vadd.f32 0.0, %v9573
    %v9575 = vpop.f32.mrb[0].mxu0
    %9576 = vmatprep.mubr.bf16.mxu0 0
    %9577 = vmatmul.mubr.bf16.gmra.mrb[0].mxu0 %v9405
    %v9578 = vpop.f32.mrb[0].mxu0
    %v9579 = vadd.f32 0.0, %v9578
    %v9580 = vpop.f32.mrb[0].mxu0
    %v9581 = vpop.f32.mrb[0].mxu0
    %v9582 = vadd.f32 0.0, %v9581
    %v9583 = vpop.f32.mrb[0].mxu0
    %9584 = vmatprep.mubr.bf16.mxu0 0
    %9585 = vmatmul.mubr.bf16.gmra.mrb[0].mxu0 %v9408
    %v9586 = vpop.f32.mrb[0].mxu0
    %v9587 = vadd.f32 0.0, %v9586
    %v9588 = vpop.f32.mrb[0].mxu0
    %v9589 = vpop.f32.mrb[0].mxu0
    %v9590 = vadd.f32 0.0, %v9589
    %v9591 = vpop.f32.mrb[0].mxu0
    %9592 = vmatprep.mubr.bf16.mxu0 0
    %9593 = vmatmul.mubr.bf16.gmra.mrb[0].mxu0 %v9411
    %v9594 = vpop.f32.mrb[0].mxu0
    %v9595 = vadd.f32 0.0, %v9594
    %v9596 = vpop.f32.mrb[0].mxu0
    %v9597 = vpop.f32.mrb[0].mxu0
    %v9598 = vadd.f32 0.0, %v9597
    %v9599 = vpop.f32.mrb[0].mxu0
    %9600 = vmatprep.mubr.bf16.mxu0 0
    %9601 = vmatmul.mubr.bf16.gmra.mrb[0].mxu0 %v9414
    %v9602 = vpop.f32.mrb[0].mxu0
    %v9603 = vadd.f32 0.0, %v9602
    %v9604 = vpop.f32.mrb[0].mxu0
    %v9605 = vpop.f32.mrb[0].mxu0
    %v9606 = vadd.f32 0.0, %v9605
    %v9607 = vpop.f32.mrb[0].mxu0
    %9608 = vmatprep.mubr.bf16.mxu0 0
    %9609 = vmatmul.mubr.bf16.gmra.mrb[0].mxu0 %v9417
    %v9610 = vpop.f32.mrb[0].mxu0
    %v9611 = vadd.f32 0.0, %v9610
    %v9612 = vpop.f32.mrb[0].mxu0
    %v9613 = vpop.f32.mrb[0].mxu0
    %v9614 = vadd.f32 0.0, %v9613
    %v9615 = vpop.f32.mrb[0].mxu0
    %9616 = vmatprep.mubr.bf16.mxu0 0
    %9617 = vmatmul.mubr.bf16.gmra.mrb[0].mxu0 %v9420
    %v9618 = vpop.f32.mrb[0].mxu0
    %v9619 = vadd.f32 0.0, %v9618
    %v9620 = vpop.f32.mrb[0].mxu0
    %v9621 = vpop.f32.mrb[0].mxu0
    %v9622 = vadd.f32 0.0, %v9621
    %v9623 = vpop.f32.mrb[0].mxu0
    %9624 = vmatprep.mubr.bf16.mxu0 0
    %9625 = vmatmul.mubr.bf16.gmra.mrb[0].mxu0 %v9423
    %v9626 = vpop.f32.mrb[0].mxu0
    %v9627 = vadd.f32 0.0, %v9626
    %v9628 = vpop.f32.mrb[0].mxu0
    %v9629 = vpop.f32.mrb[0].mxu0
    %v9630 = vadd.f32 0.0, %v9629
    %v9631 = vpop.f32.mrb[0].mxu0
    %9632 = vmatprep.mubr.bf16.mxu0 0
    %9633 = vmatmul.mubr.bf16.gmra.mrb[0].mxu0 %v9426
    %v9634 = vpop.f32.mrb[0].mxu0
    %v9635 = vadd.f32 0.0, %v9634
    %v9636 = vpop.f32.mrb[0].mxu0
    %v9637 = vpop.f32.mrb[0].mxu0
    %v9638 = vadd.f32 0.0, %v9637
    %v9639 = vpop.f32.mrb[0].mxu0
    %9640 = vmatprep.mubr.bf16.mxu0 0
    %9641 = vmatmul.mubr.bf16.gmra.mrb[0].mxu0 %v9429
    %v9642 = vpop.f32.mrb[0].mxu0
    %v9643 = vadd.f32 0.0, %v9642
    %v9644 = vpop.f32.mrb[0].mxu0
    %v9645 = vpop.f32.mrb[0].mxu0
    %v9646 = vadd.f32 0.0, %v9645
    %v9647 = vpop.f32.mrb[0].mxu0
    %9648 = vmatprep.mubr.bf16.mxu0 0
    %9649 = vmatmul.mubr.bf16.gmra.mrb[0].mxu0 %v9432
    %v9650 = vpop.f32.mrb[0].mxu0
    %v9651 = vadd.f32 0.0, %v9650
    %v9652 = vpop.f32.mrb[0].mxu0
    %v9653 = vpop.f32.mrb[0].mxu0
    %v9654 = vadd.f32 0.0, %v9653
    %v9655 = vpop.f32.mrb[0].mxu0
    %9656 = vmatprep.mubr.bf16.mxu0 0
    %9657 = vmatmul.mubr.bf16.gmra.mrb[0].mxu0 %v9435
    %v9658 = vpop.f32.mrb[0].mxu0
    %v9659 = vadd.f32 0.0, %v9658
    %v9660 = vpop.f32.mrb[0].mxu0
    %v9661 = vpop.f32.mrb[0].mxu0
    %v9662 = vadd.f32 0.0, %v9661
    %v9663 = vpop.f32.mrb[0].mxu0
    %9664 = vmatprep.mubr.bf16.mxu0 0
    %9665 = vmatmul.mubr.bf16.gmra.mrb[0].mxu0 %v9438
    %v9666 = vpop.f32.mrb[0].mxu0
    %v9667 = vadd.f32 0.0, %v9666
    %v9668 = vpop.f32.mrb[0].mxu0
    %v9669 = vpop.f32.mrb[0].mxu0
    %v9670 = vadd.f32 0.0, %v9669
    %v9671 = vpop.f32.mrb[0].mxu0
    %9672 = vmatprep.mubr.bf16.mxu0 0
    %9673 = vmatmul.mubr.bf16.gmra.mrb[0].mxu0 %v9441
    %v9674 = vpop.f32.mrb[0].mxu0
    %v9675 = vadd.f32 0.0, %v9674
    %v9676 = vpop.f32.mrb[0].mxu0
    %v9677 = vpop.f32.mrb[0].mxu0
    %v9678 = vadd.f32 0.0, %v9677
    %v9679 = vpop.f32.mrb[0].mxu0
    %9680 = vmatprep.mubr.bf16.mxu0 0
    %9681 = vmatmul.mubr.bf16.gmra.mrb[0].mxu0 %v9444
    %v9682 = vpop.f32.mrb[0].mxu0
    %v9683 = vadd.f32 0.0, %v9682
    %v9684 = vpop.f32.mrb[0].mxu0
    %v9685 = vpop.f32.mrb[0].mxu0
    %v9686 = vadd.f32 0.0, %v9685
    %v9687 = vpop.f32.mrb[0].mxu0
    %9688 = vmatprep.mubr.bf16.mxu0 0
    %9689 = vmatmul.mubr.bf16.gmra.mrb[0].mxu0 %v9447
    %v9690 = vpop.f32.mrb[0].mxu0
    %v9691 = vadd.f32 0.0, %v9690
    %v9692 = vpop.f32.mrb[0].mxu0
    %v9693 = vpop.f32.mrb[0].mxu0
    %v9694 = vadd.f32 0.0, %v9693
    %v9695 = vpop.f32.mrb[0].mxu0
    %9696 = vmatprep.mubr.bf16.mxu0 0
    %9697 = vmatmul.mubr.bf16.gmra.mrb[0].mxu0 %v9450
    %v9698 = vpop.f32.mrb[0].mxu0
    %v9699 = vadd.f32 0.0, %v9698
    %v9700 = vpop.f32.mrb[0].mxu0
    %v9701 = vpop.f32.mrb[0].mxu0
    %v9702 = vadd.f32 0.0, %v9701
    %v9703 = vpop.f32.mrb[0].mxu0
    %9704 = vmatprep.mubr.bf16.mxu0 0
    %9705 = vmatmul.mubr.bf16.gmra.mrb[0].mxu0 %v9453
    %v9706 = vpop.f32.mrb[0].mxu0
    %v9707 = vadd.f32 0.0, %v9706
    %v9708 = vpop.f32.mrb[0].mxu0
    %v9709 = vpop.f32.mrb[0].mxu0
    %v9710 = vadd.f32 0.0, %v9709
    %v9711 = vpop.f32.mrb[0].mxu0
    %9712 = vmatprep.mubr.bf16.mxu0 0
    %9713 = vmatmul.mubr.bf16.gmra.mrb[0].mxu0 %v9456
    %v9714 = vpop.f32.mrb[0].mxu0
    %v9715 = vadd.f32 0.0, %v9714
    %v9716 = vpop.f32.mrb[0].mxu0
    %v9717 = vpop.f32.mrb[0].mxu0
    %v9718 = vadd.f32 0.0, %v9717
    %v9719 = vpop.f32.mrb[0].mxu0
    %9720 = vmatprep.mubr.bf16.mxu0 0
    %9721 = vmatmul.mubr.bf16.gmra.mrb[0].mxu0 %v9459
    %v9722 = vpop.f32.mrb[0].mxu0
    %v9723 = vadd.f32 0.0, %v9722
    %v9724 = vpop.f32.mrb[0].mxu0
    %v9725 = vpop.f32.mrb[0].mxu0
    %v9726 = vadd.f32 0.0, %v9725
    %v9727 = vpop.f32.mrb[0].mxu0
    %9728 = vmatprep.mubr.bf16.mxu0 0
    %9729 = vmatmul.mubr.bf16.gmra.mrb[0].mxu0 %v9462
    %v9730 = vpop.f32.mrb[0].mxu0
    %v9731 = vadd.f32 0.0, %v9730
    %v9732 = vpop.f32.mrb[0].mxu0
    %v9733 = vpop.f32.mrb[0].mxu0
    %v9734 = vadd.f32 0.0, %v9733
    %v9735 = vpop.f32.mrb[0].mxu0
    %9736 = vdwg.mxu0
    %v9741 = vunpack.c.l.b16 %v8839
    %v9742 = vunpack.c.l.b16 %v8840
    %v9743 = vunpack.c.l.b16 %v8841
    %v9744 = vunpack.c.l.b16 %v8842
    %v9745 = vpack.c.b16 %v9742, %v9741
    %v9746 = vpack.c.b16 %v9744, %v9743
    %v9750 = vsel %vm8263, %v9302, 0
    %v9753 = vsel %vm8263, %v9303, 0
    %v9756 = vsel %vm8263, %v9304, 0
    %v9759 = vsel %vm8263, %v9305, 0
    %v9762 = vsel %vm8263, %v9306, 0
    %v9765 = vsel %vm8263, %v9307, 0
    %v9768 = vsel %vm8263, %v9308, 0
    %v9771 = vsel %vm8263, %v9309, 0
    %v9774 = vsel %vm8263, %v9310, 0
    %v9777 = vsel %vm8263, %v9311, 0
    %v9780 = vsel %vm8263, %v9312, 0
    %v9783 = vsel %vm8263, %v9313, 0
    %v9786 = vsel %vm8263, %v9314, 0
    %v9789 = vsel %vm8263, %v9315, 0
    %v9792 = vsel %vm8263, %v9316, 0
    %v9795 = vsel %vm8263, %v9317, 0
    %v9798 = vsel %vm8263, %v9318, 0
    %v9801 = vsel %vm8263, %v9319, 0
    %v9804 = vsel %vm8263, %v9320, 0
    %v9807 = vsel %vm8263, %v9321, 0
    %v9810 = vsel %vm8263, %v9322, 0
    %v9813 = vsel %vm8263, %v9323, 0
    %v9816 = vsel %vm8263, %v9324, 0
    %v9819 = vsel %vm8263, %v9325, 0
    %v9822 = vsel %vm8263, %v9326, 0
    %v9825 = vsel %vm8263, %v9327, 0
    %v9828 = vsel %vm8263, %v9328, 0
    %v9831 = vsel %vm8263, %v9329, 0
    %v9834 = vsel %vm8263, %v9330, 0
    %v9837 = vsel %vm8263, %v9331, 0
    %9839 = vmatprep.subr.bf16.mxu0 0
    %9840 = vmatpush1.bf16.msra.mxu0 %v9745
    %9841 = vmatprep.subr.bf16.mxu0 0
    %9842 = vmatpush1.bf16.msra.mxu0 %v9746
    %9843 = vmatprep.subr.bf16.mxu0 0
    %9844 = vmatpush1.bf16.msra.mxu0 0
    %9845 = vmatprep.subr.bf16.mxu0 0
    %9846 = vmatpush1.bf16.msra.mxu0 0
    %9847 = vmatprep.subr.bf16.mxu0 0
    %9848 = vmatpush1.bf16.msra.mxu0 0
    %9849 = vmatprep.subr.bf16.mxu0 0
    %9850 = vmatpush1.bf16.msra.mxu0 0
    %9851 = vmatprep.subr.bf16.mxu0 0
    %9852 = vmatpush1.bf16.msra.mxu0 0
    %9853 = vmatprep.subr.bf16.mxu0 0
    %9854 = vmatpush1.bf16.msra.mxu0 0
    %9855 = vmatprep.subr.bf16.mxu0 0
    %9856 = vmatpush1.bf16.msra.mxu0 0
    %9857 = vmatprep.subr.bf16.mxu0 0
    %9858 = vmatpush1.bf16.msra.mxu0 0
    %9859 = vmatprep.subr.bf16.mxu0 0
    %9860 = vmatpush1.bf16.msra.mxu0 0
    %9861 = vmatprep.subr.bf16.mxu0 0
    %9862 = vmatpush1.bf16.msra.mxu0 0
    %9863 = vmatprep.subr.bf16.mxu0 0
    %9864 = vmatpush1.bf16.msra.mxu0 0
    %9865 = vmatprep.subr.bf16.mxu0 0
    %9866 = vmatpush1.bf16.msra.mxu0 0
    %9867 = vmatprep.subr.bf16.mxu0 0
    %9868 = vmatpush1.bf16.msra.mxu0 0
    %9869 = vmatprep.subr.bf16.mxu0 0
    %9870 = vmatpush1.bf16.msra.mxu0 0
    %9871 = vmatprep.mubr.bf16.mxu0 0
    %9872 = vmatmul.mubr.bf16.gmra.mrb[0].mxu0 %v9750
    %v9873 = vpop.f32.mrb[0].mxu0
    %v9874 = vadd.f32 %v9499, %v9873
    %v9875 = vpop.f32.mrb[0].mxu0
    %v9876 = vpop.f32.mrb[0].mxu0
    %v9877 = vadd.f32 %v9502, %v9876
    %v9878 = vpop.f32.mrb[0].mxu0
    %9879 = vmatprep.mubr.bf16.mxu0 0
    %9880 = vmatmul.mubr.bf16.gmra.mrb[0].mxu0 %v9753
    %v9881 = vpop.f32.mrb[0].mxu0
    %v9882 = vadd.f32 %v9507, %v9881
    %v9883 = vpop.f32.mrb[0].mxu0
    %v9884 = vpop.f32.mrb[0].mxu0
    %v9885 = vadd.f32 %v9510, %v9884
    %v9886 = vpop.f32.mrb[0].mxu0
    %9887 = vmatprep.mubr.bf16.mxu0 0
    %9888 = vmatmul.mubr.bf16.gmra.mrb[0].mxu0 %v9756
    %v9889 = vpop.f32.mrb[0].mxu0
    %v9890 = vadd.f32 %v9515, %v9889
    %v9891 = vpop.f32.mrb[0].mxu0
    %v9892 = vpop.f32.mrb[0].mxu0
    %v9893 = vadd.f32 %v9518, %v9892
    %v9894 = vpop.f32.mrb[0].mxu0
    %9895 = vmatprep.mubr.bf16.mxu0 0
    %9896 = vmatmul.mubr.bf16.gmra.mrb[0].mxu0 %v9759
    %v9897 = vpop.f32.mrb[0].mxu0
    %v9898 = vadd.f32 %v9523, %v9897
    %v9899 = vpop.f32.mrb[0].mxu0
    %v9900 = vpop.f32.mrb[0].mxu0
    %v9901 = vadd.f32 %v9526, %v9900
    %v9902 = vpop.f32.mrb[0].mxu0
    %9903 = vmatprep.mubr.bf16.mxu0 0
    %9904 = vmatmul.mubr.bf16.gmra.mrb[0].mxu0 %v9762
    %v9905 = vpop.f32.mrb[0].mxu0
    %v9906 = vadd.f32 %v9531, %v9905
    %v9907 = vpop.f32.mrb[0].mxu0
    %v9908 = vpop.f32.mrb[0].mxu0
    %v9909 = vadd.f32 %v9534, %v9908
    %v9910 = vpop.f32.mrb[0].mxu0
    %9911 = vmatprep.mubr.bf16.mxu0 0
    %9912 = vmatmul.mubr.bf16.gmra.mrb[0].mxu0 %v9765
    %v9913 = vpop.f32.mrb[0].mxu0
    %v9914 = vadd.f32 %v9539, %v9913
    %v9915 = vpop.f32.mrb[0].mxu0
    %v9916 = vpop.f32.mrb[0].mxu0
    %v9917 = vadd.f32 %v9542, %v9916
    %v9918 = vpop.f32.mrb[0].mxu0
    %9919 = vmatprep.mubr.bf16.mxu0 0
    %9920 = vmatmul.mubr.bf16.gmra.mrb[0].mxu0 %v9768
    %v9921 = vpop.f32.mrb[0].mxu0
    %v9922 = vadd.f32 %v9547, %v9921
    %v9923 = vpop.f32.mrb[0].mxu0
    %v9924 = vpop.f32.mrb[0].mxu0
    %v9925 = vadd.f32 %v9550, %v9924
    %v9926 = vpop.f32.mrb[0].mxu0
    %9927 = vmatprep.mubr.bf16.mxu0 0
    %9928 = vmatmul.mubr.bf16.gmra.mrb[0].mxu0 %v9771
    %v9929 = vpop.f32.mrb[0].mxu0
    %v9930 = vadd.f32 %v9555, %v9929
    %v9931 = vpop.f32.mrb[0].mxu0
    %v9932 = vpop.f32.mrb[0].mxu0
    %v9933 = vadd.f32 %v9558, %v9932
    %v9934 = vpop.f32.mrb[0].mxu0
    %9935 = vmatprep.mubr.bf16.mxu0 0
    %9936 = vmatmul.mubr.bf16.gmra.mrb[0].mxu0 %v9774
    %v9937 = vpop.f32.mrb[0].mxu0
    %v9938 = vadd.f32 %v9563, %v9937
    %v9939 = vpop.f32.mrb[0].mxu0
    %v9940 = vpop.f32.mrb[0].mxu0
    %v9941 = vadd.f32 %v9566, %v9940
    %v9942 = vpop.f32.mrb[0].mxu0
    %9943 = vmatprep.mubr.bf16.mxu0 0
    %9944 = vmatmul.mubr.bf16.gmra.mrb[0].mxu0 %v9777
    %v9945 = vpop.f32.mrb[0].mxu0
    %v9946 = vadd.f32 %v9571, %v9945
    %v9947 = vpop.f32.mrb[0].mxu0
    %v9948 = vpop.f32.mrb[0].mxu0
    %v9949 = vadd.f32 %v9574, %v9948
    %v9950 = vpop.f32.mrb[0].mxu0
    %9951 = vmatprep.mubr.bf16.mxu0 0
    %9952 = vmatmul.mubr.bf16.gmra.mrb[0].mxu0 %v9780
    %v9953 = vpop.f32.mrb[0].mxu0
    %v9954 = vadd.f32 %v9579, %v9953
    %v9955 = vpop.f32.mrb[0].mxu0
    %v9956 = vpop.f32.mrb[0].mxu0
    %v9957 = vadd.f32 %v9582, %v9956
    %v9958 = vpop.f32.mrb[0].mxu0
    %9959 = vmatprep.mubr.bf16.mxu0 0
    %9960 = vmatmul.mubr.bf16.gmra.mrb[0].mxu0 %v9783
    %v9961 = vpop.f32.mrb[0].mxu0
    %v9962 = vadd.f32 %v9587, %v9961
    %v9963 = vpop.f32.mrb[0].mxu0
    %v9964 = vpop.f32.mrb[0].mxu0
    %v9965 = vadd.f32 %v9590, %v9964
    %v9966 = vpop.f32.mrb[0].mxu0
    %9967 = vmatprep.mubr.bf16.mxu0 0
    %9968 = vmatmul.mubr.bf16.gmra.mrb[0].mxu0 %v9786
    %v9969 = vpop.f32.mrb[0].mxu0
    %v9970 = vadd.f32 %v9595, %v9969
    %v9971 = vpop.f32.mrb[0].mxu0
    %v9972 = vpop.f32.mrb[0].mxu0
    %v9973 = vadd.f32 %v9598, %v9972
    %v9974 = vpop.f32.mrb[0].mxu0
    %9975 = vmatprep.mubr.bf16.mxu0 0
    %9976 = vmatmul.mubr.bf16.gmra.mrb[0].mxu0 %v9789
    %v9977 = vpop.f32.mrb[0].mxu0
    %v9978 = vadd.f32 %v9603, %v9977
    %v9979 = vpop.f32.mrb[0].mxu0
    %v9980 = vpop.f32.mrb[0].mxu0
    %v9981 = vadd.f32 %v9606, %v9980
    %v9982 = vpop.f32.mrb[0].mxu0
    %9983 = vmatprep.mubr.bf16.mxu0 0
    %9984 = vmatmul.mubr.bf16.gmra.mrb[0].mxu0 %v9792
    %v9985 = vpop.f32.mrb[0].mxu0
    %v9986 = vadd.f32 %v9611, %v9985
    %v9987 = vpop.f32.mrb[0].mxu0
    %v9988 = vpop.f32.mrb[0].mxu0
    %v9989 = vadd.f32 %v9614, %v9988
    %v9990 = vpop.f32.mrb[0].mxu0
    %9991 = vmatprep.mubr.bf16.mxu0 0
    %9992 = vmatmul.mubr.bf16.gmra.mrb[0].mxu0 %v9795
    %v9993 = vpop.f32.mrb[0].mxu0
    %v9994 = vadd.f32 %v9619, %v9993
    %v9995 = vpop.f32.mrb[0].mxu0
    %v9996 = vpop.f32.mrb[0].mxu0
    %v9997 = vadd.f32 %v9622, %v9996
    %v9998 = vpop.f32.mrb[0].mxu0
    %9999 = vmatprep.mubr.bf16.mxu0 0
    %10000 = vmatmul.mubr.bf16.gmra.mrb[0].mxu0 %v9798
    %v10001 = vpop.f32.mrb[0].mxu0
    %v10002 = vadd.f32 %v9627, %v10001
    %v10003 = vpop.f32.mrb[0].mxu0
    %v10004 = vpop.f32.mrb[0].mxu0
    %v10005 = vadd.f32 %v9630, %v10004
    %v10006 = vpop.f32.mrb[0].mxu0
    %10007 = vmatprep.mubr.bf16.mxu0 0
    %10008 = vmatmul.mubr.bf16.gmra.mrb[0].mxu0 %v9801
    %v10009 = vpop.f32.mrb[0].mxu0
    %v10010 = vadd.f32 %v9635, %v10009
    %v10011 = vpop.f32.mrb[0].mxu0
    %v10012 = vpop.f32.mrb[0].mxu0
    %v10013 = vadd.f32 %v9638, %v10012
    %v10014 = vpop.f32.mrb[0].mxu0
    %10015 = vmatprep.mubr.bf16.mxu0 0
    %10016 = vmatmul.mubr.bf16.gmra.mrb[0].mxu0 %v9804
    %v10017 = vpop.f32.mrb[0].mxu0
    %v10018 = vadd.f32 %v9643, %v10017
    %v10019 = vpop.f32.mrb[0].mxu0
    %v10020 = vpop.f32.mrb[0].mxu0
    %v10021 = vadd.f32 %v9646, %v10020
    %v10022 = vpop.f32.mrb[0].mxu0
    %10023 = vmatprep.mubr.bf16.mxu0 0
    %10024 = vmatmul.mubr.bf16.gmra.mrb[0].mxu0 %v9807
    %v10025 = vpop.f32.mrb[0].mxu0
    %v10026 = vadd.f32 %v9651, %v10025
    %v10027 = vpop.f32.mrb[0].mxu0
    %v10028 = vpop.f32.mrb[0].mxu0
    %v10029 = vadd.f32 %v9654, %v10028
    %v10030 = vpop.f32.mrb[0].mxu0
    %10031 = vmatprep.mubr.bf16.mxu0 0
    %10032 = vmatmul.mubr.bf16.gmra.mrb[0].mxu0 %v9810
    %v10033 = vpop.f32.mrb[0].mxu0
    %v10034 = vadd.f32 %v9659, %v10033
    %v10035 = vpop.f32.mrb[0].mxu0
    %v10036 = vpop.f32.mrb[0].mxu0
    %v10037 = vadd.f32 %v9662, %v10036
    %v10038 = vpop.f32.mrb[0].mxu0
    %10039 = vmatprep.mubr.bf16.mxu0 0
    %10040 = vmatmul.mubr.bf16.gmra.mrb[0].mxu0 %v9813
    %v10041 = vpop.f32.mrb[0].mxu0
    %v10042 = vadd.f32 %v9667, %v10041
    %v10043 = vpop.f32.mrb[0].mxu0
    %v10044 = vpop.f32.mrb[0].mxu0
    %v10045 = vadd.f32 %v9670, %v10044
    %v10046 = vpop.f32.mrb[0].mxu0
    %10047 = vmatprep.mubr.bf16.mxu0 0
    %10048 = vmatmul.mubr.bf16.gmra.mrb[0].mxu0 %v9816
    %v10049 = vpop.f32.mrb[0].mxu0
    %v10050 = vadd.f32 %v9675, %v10049
    %v10051 = vpop.f32.mrb[0].mxu0
    %v10052 = vpop.f32.mrb[0].mxu0
    %v10053 = vadd.f32 %v9678, %v10052
    %v10054 = vpop.f32.mrb[0].mxu0
    %10055 = vmatprep.mubr.bf16.mxu0 0
    %10056 = vmatmul.mubr.bf16.gmra.mrb[0].mxu0 %v9819
    %v10057 = vpop.f32.mrb[0].mxu0
    %v10058 = vadd.f32 %v9683, %v10057
    %v10059 = vpop.f32.mrb[0].mxu0
    %v10060 = vpop.f32.mrb[0].mxu0
    %v10061 = vadd.f32 %v9686, %v10060
    %v10062 = vpop.f32.mrb[0].mxu0
    %10063 = vmatprep.mubr.bf16.mxu0 0
    %10064 = vmatmul.mubr.bf16.gmra.mrb[0].mxu0 %v9822
    %v10065 = vpop.f32.mrb[0].mxu0
    %v10066 = vadd.f32 %v9691, %v10065
    %v10067 = vpop.f32.mrb[0].mxu0
    %v10068 = vpop.f32.mrb[0].mxu0
    %v10069 = vadd.f32 %v9694, %v10068
    %v10070 = vpop.f32.mrb[0].mxu0
    %10071 = vmatprep.mubr.bf16.mxu0 0
    %10072 = vmatmul.mubr.bf16.gmra.mrb[0].mxu0 %v9825
    %v10073 = vpop.f32.mrb[0].mxu0
    %v10074 = vadd.f32 %v9699, %v10073
    %v10075 = vpop.f32.mrb[0].mxu0
    %v10076 = vpop.f32.mrb[0].mxu0
    %v10077 = vadd.f32 %v9702, %v10076
    %v10078 = vpop.f32.mrb[0].mxu0
    %10079 = vmatprep.mubr.bf16.mxu0 0
    %10080 = vmatmul.mubr.bf16.gmra.mrb[0].mxu0 %v9828
    %v10081 = vpop.f32.mrb[0].mxu0
    %v10082 = vadd.f32 %v9707, %v10081
    %v10083 = vpop.f32.mrb[0].mxu0
    %v10084 = vpop.f32.mrb[0].mxu0
    %v10085 = vadd.f32 %v9710, %v10084
    %v10086 = vpop.f32.mrb[0].mxu0
    %10087 = vmatprep.mubr.bf16.mxu0 0
    %10088 = vmatmul.mubr.bf16.gmra.mrb[0].mxu0 %v9831
    %v10089 = vpop.f32.mrb[0].mxu0
    %v10090 = vadd.f32 %v9715, %v10089
    %v10091 = vpop.f32.mrb[0].mxu0
    %v10092 = vpop.f32.mrb[0].mxu0
    %v10093 = vadd.f32 %v9718, %v10092
    %v10094 = vpop.f32.mrb[0].mxu0
    %10095 = vmatprep.mubr.bf16.mxu0 0
    %10096 = vmatmul.mubr.bf16.gmra.mrb[0].mxu0 %v9834
    %v10097 = vpop.f32.mrb[0].mxu0
    %v10098 = vadd.f32 %v9723, %v10097
    %v10099 = vpop.f32.mrb[0].mxu0
    %v10100 = vpop.f32.mrb[0].mxu0
    %v10101 = vadd.f32 %v9726, %v10100
    %v10102 = vpop.f32.mrb[0].mxu0
    %10103 = vmatprep.mubr.bf16.mxu0 0
    %10104 = vmatmul.mubr.bf16.gmra.mrb[0].mxu0 %v9837
    %v10105 = vpop.f32.mrb[0].mxu0
    %v10106 = vadd.f32 %v9731, %v10105
    %v10107 = vpop.f32.mrb[0].mxu0
    %v10108 = vpop.f32.mrb[0].mxu0
    %v10109 = vadd.f32 %v9734, %v10108
    %v10110 = vpop.f32.mrb[0].mxu0
    %10111 = vdwg.mxu0
    %v10113 = vlaneseq
    %v10114 = vshrl.u32 %v10113, 7
    %v10115 = vsub.s32 0, %v10114
    %v10116 = vrot.slane %v8833, %v10115
    %v10118 = vadd.f32 %v9874, %v10116
    %v10119 = vadd.f32 %v9877, %v10116
    %v10120 = vadd.f32 %v9882, %v10116
    %v10121 = vadd.f32 %v9885, %v10116
    %v10122 = vadd.f32 %v9890, %v10116
    %v10123 = vadd.f32 %v9893, %v10116
    %v10124 = vadd.f32 %v9898, %v10116
    %v10125 = vadd.f32 %v9901, %v10116
    %v10126 = vadd.f32 %v9906, %v10116
    %v10127 = vadd.f32 %v9909, %v10116
    %v10128 = vadd.f32 %v9914, %v10116
    %v10129 = vadd.f32 %v9917, %v10116
    %v10130 = vadd.f32 %v9922, %v10116
    %v10131 = vadd.f32 %v9925, %v10116
    %v10132 = vadd.f32 %v9930, %v10116
    %v10133 = vadd.f32 %v9933, %v10116
    %v10134 = vadd.f32 %v9938, %v10116
    %v10135 = vadd.f32 %v9941, %v10116
    %v10136 = vadd.f32 %v9946, %v10116
    %v10137 = vadd.f32 %v9949, %v10116
    %v10138 = vadd.f32 %v9954, %v10116
    %v10139 = vadd.f32 %v9957, %v10116
    %v10140 = vadd.f32 %v9962, %v10116
    %v10141 = vadd.f32 %v9965, %v10116
    %v10142 = vadd.f32 %v9970, %v10116
    %v10143 = vadd.f32 %v9973, %v10116
    %v10144 = vadd.f32 %v9978, %v10116
    %v10145 = vadd.f32 %v9981, %v10116
    %v10146 = vadd.f32 %v9986, %v10116
    %v10147 = vadd.f32 %v9989, %v10116
    %v10148 = vadd.f32 %v9994, %v10116
    %v10149 = vadd.f32 %v9997, %v10116
    %v10150 = vadd.f32 %v10002, %v10116
    %v10151 = vadd.f32 %v10005, %v10116
    %v10152 = vadd.f32 %v10010, %v10116
    %v10153 = vadd.f32 %v10013, %v10116
    %v10154 = vadd.f32 %v10018, %v10116
    %v10155 = vadd.f32 %v10021, %v10116
    %v10156 = vadd.f32 %v10026, %v10116
    %v10157 = vadd.f32 %v10029, %v10116
    %v10158 = vadd.f32 %v10034, %v10116
    %v10159 = vadd.f32 %v10037, %v10116
    %v10160 = vadd.f32 %v10042, %v10116
    %v10161 = vadd.f32 %v10045, %v10116
    %v10162 = vadd.f32 %v10050, %v10116
    %v10163 = vadd.f32 %v10053, %v10116
    %v10164 = vadd.f32 %v10058, %v10116
    %v10165 = vadd.f32 %v10061, %v10116
    %v10166 = vadd.f32 %v10066, %v10116
    %v10167 = vadd.f32 %v10069, %v10116
    %v10168 = vadd.f32 %v10074, %v10116
    %v10169 = vadd.f32 %v10077, %v10116
    %v10170 = vadd.f32 %v10082, %v10116
    %v10171 = vadd.f32 %v10085, %v10116
    %v10172 = vadd.f32 %v10090, %v10116
    %v10173 = vadd.f32 %v10093, %v10116
    %v10174 = vadd.f32 %v10098, %v10116
    %v10175 = vadd.f32 %v10101, %v10116
    %v10176 = vadd.f32 %v10106, %v10116
    %v10177 = vadd.f32 %v10109, %v10116
    %v10178 = vpack.c.bf16 %v9120, %v9118
    %v10179 = vpack.c.bf16 %v9124, %v9122
    %v10180 = vpack.c.bf16 %v9128, %v9126
    %v10181 = vpack.c.bf16 %v9132, %v9130
    %v10182 = vpack.c.bf16 %v9136, %v9134
    %v10183 = vpack.c.bf16 %v9140, %v9138
    %v10184 = vpack.c.bf16 %v9144, %v9142
    %v10185 = vpack.c.bf16 %v9148, %v9146
    %v10186 = vpack.c.bf16 %v9152, %v9150
    %v10187 = vpack.c.bf16 %v9156, %v9154
    %v10188 = vpack.c.bf16 %v9160, %v9158
    %v10189 = vpack.c.bf16 %v9164, %v9162
    %v10190 = vpack.c.bf16 %v9168, %v9166
    %v10191 = vpack.c.bf16 %v9172, %v9170
    %v10192 = vpack.c.bf16 %v9176, %v9174
    %v10193 = vpack.c.bf16 %v9180, %v9178
    %v10194 = vpack.c.bf16 %v9184, %v9182
    %v10195 = vpack.c.bf16 %v9188, %v9186
    %v10196 = vpack.c.bf16 %v9192, %v9190
    %v10197 = vpack.c.bf16 %v9196, %v9194
    %v10198 = vpack.c.bf16 %v9200, %v9198
    %v10199 = vpack.c.bf16 %v9204, %v9202
    %v10200 = vpack.c.bf16 %v9208, %v9206
    %v10201 = vpack.c.bf16 %v9212, %v9210
    %v10202 = vpack.c.bf16 %v9216, %v9214
    %v10203 = vpack.c.bf16 %v9220, %v9218
    %v10204 = vpack.c.bf16 %v9224, %v9222
    %v10205 = vpack.c.bf16 %v9228, %v9226
    %v10206 = vpack.c.bf16 %v9292, %v9301
    %v10207 = vpack.c.bf16 %v9296, %v9294
    %v10212 = vunpack.c.l.b16 %v8844
    %v10213 = vunpack.c.l.b16 %v8845
    %v10214 = vunpack.c.l.b16 %v8846
    %v10215 = vunpack.c.l.b16 %v8847
    %v10216 = vpack.c.b16 %v10213, %v10212
    %v10217 = vpack.c.b16 %v10215, %v10214
    %10220 = vmatprep.subr.bf16.mxu0 0
    %10221 = vmatpush1.bf16.msra.mxu0 %v10216
    %10222 = vmatprep.subr.bf16.mxu0 0
    %10223 = vmatpush1.bf16.msra.mxu0 %v10217
    %10224 = vmatprep.subr.bf16.mxu0 0
    %10225 = vmatpush1.bf16.msra.mxu0 0
    %10226 = vmatprep.subr.bf16.mxu0 0
    %10227 = vmatpush1.bf16.msra.mxu0 0
    %10228 = vmatprep.subr.bf16.mxu0 0
    %10229 = vmatpush1.bf16.msra.mxu0 0
    %10230 = vmatprep.subr.bf16.mxu0 0
    %10231 = vmatpush1.bf16.msra.mxu0 0
    %10232 = vmatprep.subr.bf16.mxu0 0
    %10233 = vmatpush1.bf16.msra.mxu0 0
    %10234 = vmatprep.subr.bf16.mxu0 0
    %10235 = vmatpush1.bf16.msra.mxu0 0
    %10236 = vmatprep.subr.bf16.mxu0 0
    %10237 = vmatpush1.bf16.msra.mxu0 0
    %10238 = vmatprep.subr.bf16.mxu0 0
    %10239 = vmatpush1.bf16.msra.mxu0 0
    %10240 = vmatprep.subr.bf16.mxu0 0
    %10241 = vmatpush1.bf16.msra.mxu0 0
    %10242 = vmatprep.subr.bf16.mxu0 0
    %10243 = vmatpush1.bf16.msra.mxu0 0
    %10244 = vmatprep.subr.bf16.mxu0 0
    %10245 = vmatpush1.bf16.msra.mxu0 0
    %10246 = vmatprep.subr.bf16.mxu0 0
    %10247 = vmatpush1.bf16.msra.mxu0 0
    %10248 = vmatprep.subr.bf16.mxu0 0
    %10249 = vmatpush1.bf16.msra.mxu0 0
    %10250 = vmatprep.subr.bf16.mxu0 0
    %10251 = vmatpush1.bf16.msra.mxu0 0
    %10252 = vmatprep.mubr.bf16.mxu0 0
    %10253 = vmatmul.mubr.bf16.gmra.mrb[0].mxu0 %v9750
    %v10254 = vpop.f32.mrb[0].mxu0
    %v10255 = vadd.f32 0.0, %v10254
    %v10256 = vpop.f32.mrb[0].mxu0
    %v10257 = vpop.f32.mrb[0].mxu0
    %v10258 = vadd.f32 0.0, %v10257
    %v10259 = vpop.f32.mrb[0].mxu0
    %10260 = vmatprep.mubr.bf16.mxu0 0
    %10261 = vmatmul.mubr.bf16.gmra.mrb[0].mxu0 %v9753
    %v10262 = vpop.f32.mrb[0].mxu0
    %v10263 = vadd.f32 0.0, %v10262
    %v10264 = vpop.f32.mrb[0].mxu0
    %v10265 = vpop.f32.mrb[0].mxu0
    %v10266 = vadd.f32 0.0, %v10265
    %v10267 = vpop.f32.mrb[0].mxu0
    %10268 = vmatprep.mubr.bf16.mxu0 0
    %10269 = vmatmul.mubr.bf16.gmra.mrb[0].mxu0 %v9756
    %v10270 = vpop.f32.mrb[0].mxu0
    %v10271 = vadd.f32 0.0, %v10270
    %v10272 = vpop.f32.mrb[0].mxu0
    %v10273 = vpop.f32.mrb[0].mxu0
    %v10274 = vadd.f32 0.0, %v10273
    %v10275 = vpop.f32.mrb[0].mxu0
    %10276 = vmatprep.mubr.bf16.mxu0 0
    %10277 = vmatmul.mubr.bf16.gmra.mrb[0].mxu0 %v9759
    %v10278 = vpop.f32.mrb[0].mxu0
    %v10279 = vadd.f32 0.0, %v10278
    %v10280 = vpop.f32.mrb[0].mxu0
    %v10281 = vpop.f32.mrb[0].mxu0
    %v10282 = vadd.f32 0.0, %v10281
    %v10283 = vpop.f32.mrb[0].mxu0
    %10284 = vmatprep.mubr.bf16.mxu0 0
    %10285 = vmatmul.mubr.bf16.gmra.mrb[0].mxu0 %v9762
    %v10286 = vpop.f32.mrb[0].mxu0
    %v10287 = vadd.f32 0.0, %v10286
    %v10288 = vpop.f32.mrb[0].mxu0
    %v10289 = vpop.f32.mrb[0].mxu0
    %v10290 = vadd.f32 0.0, %v10289
    %v10291 = vpop.f32.mrb[0].mxu0
    %10292 = vmatprep.mubr.bf16.mxu0 0
    %10293 = vmatmul.mubr.bf16.gmra.mrb[0].mxu0 %v9765
    %v10294 = vpop.f32.mrb[0].mxu0
    %v10295 = vadd.f32 0.0, %v10294
    %v10296 = vpop.f32.mrb[0].mxu0
    %v10297 = vpop.f32.mrb[0].mxu0
    %v10298 = vadd.f32 0.0, %v10297
    %v10299 = vpop.f32.mrb[0].mxu0
    %10300 = vmatprep.mubr.bf16.mxu0 0
    %10301 = vmatmul.mubr.bf16.gmra.mrb[0].mxu0 %v9768
    %v10302 = vpop.f32.mrb[0].mxu0
    %v10303 = vadd.f32 0.0, %v10302
    %v10304 = vpop.f32.mrb[0].mxu0
    %v10305 = vpop.f32.mrb[0].mxu0
    %v10306 = vadd.f32 0.0, %v10305
    %v10307 = vpop.f32.mrb[0].mxu0
    %10308 = vmatprep.mubr.bf16.mxu0 0
    %10309 = vmatmul.mubr.bf16.gmra.mrb[0].mxu0 %v9771
    %v10310 = vpop.f32.mrb[0].mxu0
    %v10311 = vadd.f32 0.0, %v10310
    %v10312 = vpop.f32.mrb[0].mxu0
    %v10313 = vpop.f32.mrb[0].mxu0
    %v10314 = vadd.f32 0.0, %v10313
    %v10315 = vpop.f32.mrb[0].mxu0
    %10316 = vmatprep.mubr.bf16.mxu0 0
    %10317 = vmatmul.mubr.bf16.gmra.mrb[0].mxu0 %v9774
    %v10318 = vpop.f32.mrb[0].mxu0
    %v10319 = vadd.f32 0.0, %v10318
    %v10320 = vpop.f32.mrb[0].mxu0
    %v10321 = vpop.f32.mrb[0].mxu0
    %v10322 = vadd.f32 0.0, %v10321
    %v10323 = vpop.f32.mrb[0].mxu0
    %10324 = vmatprep.mubr.bf16.mxu0 0
    %10325 = vmatmul.mubr.bf16.gmra.mrb[0].mxu0 %v9777
    %v10326 = vpop.f32.mrb[0].mxu0
    %v10327 = vadd.f32 0.0, %v10326
    %v10328 = vpop.f32.mrb[0].mxu0
    %v10329 = vpop.f32.mrb[0].mxu0
    %v10330 = vadd.f32 0.0, %v10329
    %v10331 = vpop.f32.mrb[0].mxu0
    %10332 = vmatprep.mubr.bf16.mxu0 0
    %10333 = vmatmul.mubr.bf16.gmra.mrb[0].mxu0 %v9780
    %v10334 = vpop.f32.mrb[0].mxu0
    %v10335 = vadd.f32 0.0, %v10334
    %v10336 = vpop.f32.mrb[0].mxu0
    %v10337 = vpop.f32.mrb[0].mxu0
    %v10338 = vadd.f32 0.0, %v10337
    %v10339 = vpop.f32.mrb[0].mxu0
    %10340 = vmatprep.mubr.bf16.mxu0 0
    %10341 = vmatmul.mubr.bf16.gmra.mrb[0].mxu0 %v9783
    %v10342 = vpop.f32.mrb[0].mxu0
    %v10343 = vadd.f32 0.0, %v10342
    %v10344 = vpop.f32.mrb[0].mxu0
    %v10345 = vpop.f32.mrb[0].mxu0
    %v10346 = vadd.f32 0.0, %v10345
    %v10347 = vpop.f32.mrb[0].mxu0
    %10348 = vmatprep.mubr.bf16.mxu0 0
    %10349 = vmatmul.mubr.bf16.gmra.mrb[0].mxu0 %v9786
    %v10350 = vpop.f32.mrb[0].mxu0
    %v10351 = vadd.f32 0.0, %v10350
    %v10352 = vpop.f32.mrb[0].mxu0
    %v10353 = vpop.f32.mrb[0].mxu0
    %v10354 = vadd.f32 0.0, %v10353
    %v10355 = vpop.f32.mrb[0].mxu0
    %10356 = vmatprep.mubr.bf16.mxu0 0
    %10357 = vmatmul.mubr.bf16.gmra.mrb[0].mxu0 %v9789
    %v10358 = vpop.f32.mrb[0].mxu0
    %v10359 = vadd.f32 0.0, %v10358
    %v10360 = vpop.f32.mrb[0].mxu0
    %v10361 = vpop.f32.mrb[0].mxu0
    %v10362 = vadd.f32 0.0, %v10361
    %v10363 = vpop.f32.mrb[0].mxu0
    %10364 = vmatprep.mubr.bf16.mxu0 0
    %10365 = vmatmul.mubr.bf16.gmra.mrb[0].mxu0 %v9792
    %v10366 = vpop.f32.mrb[0].mxu0
    %v10367 = vadd.f32 0.0, %v10366
    %v10368 = vpop.f32.mrb[0].mxu0
    %v10369 = vpop.f32.mrb[0].mxu0
    %v10370 = vadd.f32 0.0, %v10369
    %v10371 = vpop.f32.mrb[0].mxu0
    %10372 = vmatprep.mubr.bf16.mxu0 0
    %10373 = vmatmul.mubr.bf16.gmra.mrb[0].mxu0 %v9795
    %v10374 = vpop.f32.mrb[0].mxu0
    %v10375 = vadd.f32 0.0, %v10374
    %v10376 = vpop.f32.mrb[0].mxu0
    %v10377 = vpop.f32.mrb[0].mxu0
    %v10378 = vadd.f32 0.0, %v10377
    %v10379 = vpop.f32.mrb[0].mxu0
    %10380 = vmatprep.mubr.bf16.mxu0 0
    %10381 = vmatmul.mubr.bf16.gmra.mrb[0].mxu0 %v9798
    %v10382 = vpop.f32.mrb[0].mxu0
    %v10383 = vadd.f32 0.0, %v10382
    %v10384 = vpop.f32.mrb[0].mxu0
    %v10385 = vpop.f32.mrb[0].mxu0
    %v10386 = vadd.f32 0.0, %v10385
    %v10387 = vpop.f32.mrb[0].mxu0
    %10388 = vmatprep.mubr.bf16.mxu0 0
    %10389 = vmatmul.mubr.bf16.gmra.mrb[0].mxu0 %v9801
    %v10390 = vpop.f32.mrb[0].mxu0
    %v10391 = vadd.f32 0.0, %v10390
    %v10392 = vpop.f32.mrb[0].mxu0
    %v10393 = vpop.f32.mrb[0].mxu0
    %v10394 = vadd.f32 0.0, %v10393
    %v10395 = vpop.f32.mrb[0].mxu0
    %10396 = vmatprep.mubr.bf16.mxu0 0
    %10397 = vmatmul.mubr.bf16.gmra.mrb[0].mxu0 %v9804
    %v10398 = vpop.f32.mrb[0].mxu0
    %v10399 = vadd.f32 0.0, %v10398
    %v10400 = vpop.f32.mrb[0].mxu0
    %v10401 = vpop.f32.mrb[0].mxu0
    %v10402 = vadd.f32 0.0, %v10401
    %v10403 = vpop.f32.mrb[0].mxu0
    %10404 = vmatprep.mubr.bf16.mxu0 0
    %10405 = vmatmul.mubr.bf16.gmra.mrb[0].mxu0 %v9807
    %v10406 = vpop.f32.mrb[0].mxu0
    %v10407 = vadd.f32 0.0, %v10406
    %v10408 = vpop.f32.mrb[0].mxu0
    %v10409 = vpop.f32.mrb[0].mxu0
    %v10410 = vadd.f32 0.0, %v10409
    %v10411 = vpop.f32.mrb[0].mxu0
    %10412 = vmatprep.mubr.bf16.mxu0 0
    %10413 = vmatmul.mubr.bf16.gmra.mrb[0].mxu0 %v9810
    %v10414 = vpop.f32.mrb[0].mxu0
    %v10415 = vadd.f32 0.0, %v10414
    %v10416 = vpop.f32.mrb[0].mxu0
    %v10417 = vpop.f32.mrb[0].mxu0
    %v10418 = vadd.f32 0.0, %v10417
    %v10419 = vpop.f32.mrb[0].mxu0
    %10420 = vmatprep.mubr.bf16.mxu0 0
    %10421 = vmatmul.mubr.bf16.gmra.mrb[0].mxu0 %v9813
    %v10422 = vpop.f32.mrb[0].mxu0
    %v10423 = vadd.f32 0.0, %v10422
    %v10424 = vpop.f32.mrb[0].mxu0
    %v10425 = vpop.f32.mrb[0].mxu0
    %v10426 = vadd.f32 0.0, %v10425
    %v10427 = vpop.f32.mrb[0].mxu0
    %10428 = vmatprep.mubr.bf16.mxu0 0
    %10429 = vmatmul.mubr.bf16.gmra.mrb[0].mxu0 %v9816
    %v10430 = vpop.f32.mrb[0].mxu0
    %v10431 = vadd.f32 0.0, %v10430
    %v10432 = vpop.f32.mrb[0].mxu0
    %v10433 = vpop.f32.mrb[0].mxu0
    %v10434 = vadd.f32 0.0, %v10433
    %v10435 = vpop.f32.mrb[0].mxu0
    %10436 = vmatprep.mubr.bf16.mxu0 0
    %10437 = vmatmul.mubr.bf16.gmra.mrb[0].mxu0 %v9819
    %v10438 = vpop.f32.mrb[0].mxu0
    %v10439 = vadd.f32 0.0, %v10438
    %v10440 = vpop.f32.mrb[0].mxu0
    %v10441 = vpop.f32.mrb[0].mxu0
    %v10442 = vadd.f32 0.0, %v10441
    %v10443 = vpop.f32.mrb[0].mxu0
    %10444 = vmatprep.mubr.bf16.mxu0 0
    %10445 = vmatmul.mubr.bf16.gmra.mrb[0].mxu0 %v9822
    %v10446 = vpop.f32.mrb[0].mxu0
    %v10447 = vadd.f32 0.0, %v10446
    %v10448 = vpop.f32.mrb[0].mxu0
    %v10449 = vpop.f32.mrb[0].mxu0
    %v10450 = vadd.f32 0.0, %v10449
    %v10451 = vpop.f32.mrb[0].mxu0
    %10452 = vmatprep.mubr.bf16.mxu0 0
    %10453 = vmatmul.mubr.bf16.gmra.mrb[0].mxu0 %v9825
    %v10454 = vpop.f32.mrb[0].mxu0
    %v10455 = vadd.f32 0.0, %v10454
    %v10456 = vpop.f32.mrb[0].mxu0
    %v10457 = vpop.f32.mrb[0].mxu0
    %v10458 = vadd.f32 0.0, %v10457
    %v10459 = vpop.f32.mrb[0].mxu0
    %10460 = vmatprep.mubr.bf16.mxu0 0
    %10461 = vmatmul.mubr.bf16.gmra.mrb[0].mxu0 %v9828
    %v10462 = vpop.f32.mrb[0].mxu0
    %v10463 = vadd.f32 0.0, %v10462
    %v10464 = vpop.f32.mrb[0].mxu0
    %v10465 = vpop.f32.mrb[0].mxu0
    %v10466 = vadd.f32 0.0, %v10465
    %v10467 = vpop.f32.mrb[0].mxu0
    %10468 = vmatprep.mubr.bf16.mxu0 0
    %10469 = vmatmul.mubr.bf16.gmra.mrb[0].mxu0 %v9831
    %v10470 = vpop.f32.mrb[0].mxu0
    %v10471 = vadd.f32 0.0, %v10470
    %v10472 = vpop.f32.mrb[0].mxu0
    %v10473 = vpop.f32.mrb[0].mxu0
    %v10474 = vadd.f32 0.0, %v10473
    %v10475 = vpop.f32.mrb[0].mxu0
    %10476 = vmatprep.mubr.bf16.mxu0 0
    %10477 = vmatmul.mubr.bf16.gmra.mrb[0].mxu0 %v9834
    %v10478 = vpop.f32.mrb[0].mxu0
    %v10479 = vadd.f32 0.0, %v10478
    %v10480 = vpop.f32.mrb[0].mxu0
    %v10481 = vpop.f32.mrb[0].mxu0
    %v10482 = vadd.f32 0.0, %v10481
    %v10483 = vpop.f32.mrb[0].mxu0
    %10484 = vmatprep.mubr.bf16.mxu0 0
    %10485 = vmatmul.mubr.bf16.gmra.mrb[0].mxu0 %v9837
    %v10486 = vpop.f32.mrb[0].mxu0
    %v10487 = vadd.f32 0.0, %v10486
    %v10488 = vpop.f32.mrb[0].mxu0
    %v10489 = vpop.f32.mrb[0].mxu0
    %v10490 = vadd.f32 0.0, %v10489
    %v10491 = vpop.f32.mrb[0].mxu0
    %10492 = vdwg.mxu0
    %v10497 = vunpack.c.l.b16 %v8834
    %v10498 = vunpack.c.l.b16 %v8835
    %v10499 = vunpack.c.l.b16 %v8836
    %v10500 = vunpack.c.l.b16 %v8837
    %v10501 = vpack.c.b16 %v10498, %v10497
    %v10502 = vpack.c.b16 %v10500, %v10499
    %v10506 = vsel %vm8263, %v10178, 0
    %v10509 = vsel %vm8263, %v10179, 0
    %v10512 = vsel %vm8263, %v10180, 0
    %v10515 = vsel %vm8263, %v10181, 0
    %v10518 = vsel %vm8263, %v10182, 0
    %v10521 = vsel %vm8263, %v10183, 0
    %v10524 = vsel %vm8263, %v10184, 0
    %v10527 = vsel %vm8263, %v10185, 0
    %v10530 = vsel %vm8263, %v10186, 0
    %v10533 = vsel %vm8263, %v10187, 0
    %v10536 = vsel %vm8263, %v10188, 0
    %v10539 = vsel %vm8263, %v10189, 0
    %v10542 = vsel %vm8263, %v10190, 0
    %v10545 = vsel %vm8263, %v10191, 0
    %v10548 = vsel %vm8263, %v10192, 0
    %v10551 = vsel %vm8263, %v10193, 0
    %v10554 = vsel %vm8263, %v10194, 0
    %v10557 = vsel %vm8263, %v10195, 0
    %v10560 = vsel %vm8263, %v10196, 0
    %v10563 = vsel %vm8263, %v10197, 0
    %v10566 = vsel %vm8263, %v10198, 0
    %v10569 = vsel %vm8263, %v10199, 0
    %v10572 = vsel %vm8263, %v10200, 0
    %v10575 = vsel %vm8263, %v10201, 0
    %v10578 = vsel %vm8263, %v10202, 0
    %v10581 = vsel %vm8263, %v10203, 0
    %v10584 = vsel %vm8263, %v10204, 0
    %v10587 = vsel %vm8263, %v10205, 0
    %v10590 = vsel %vm8263, %v10206, 0
    %v10593 = vsel %vm8263, %v10207, 0
    %10595 = vmatprep.subr.bf16.mxu0 0
    %10596 = vmatpush1.bf16.msra.mxu0 %v10501
    %10597 = vmatprep.subr.bf16.mxu0 0
    %10598 = vmatpush1.bf16.msra.mxu0 %v10502
    %10599 = vmatprep.subr.bf16.mxu0 0
    %10600 = vmatpush1.bf16.msra.mxu0 0
    %10601 = vmatprep.subr.bf16.mxu0 0
    %10602 = vmatpush1.bf16.msra.mxu0 0
    %10603 = vmatprep.subr.bf16.mxu0 0
    %10604 = vmatpush1.bf16.msra.mxu0 0
    %10605 = vmatprep.subr.bf16.mxu0 0
    %10606 = vmatpush1.bf16.msra.mxu0 0
    %10607 = vmatprep.subr.bf16.mxu0 0
    %10608 = vmatpush1.bf16.msra.mxu0 0
    %10609 = vmatprep.subr.bf16.mxu0 0
    %10610 = vmatpush1.bf16.msra.mxu0 0
    %10611 = vmatprep.subr.bf16.mxu0 0
    %10612 = vmatpush1.bf16.msra.mxu0 0
    %10613 = vmatprep.subr.bf16.mxu0 0
    %10614 = vmatpush1.bf16.msra.mxu0 0
    %10615 = vmatprep.subr.bf16.mxu0 0
    %10616 = vmatpush1.bf16.msra.mxu0 0
    %10617 = vmatprep.subr.bf16.mxu0 0
    %10618 = vmatpush1.bf16.msra.mxu0 0
    %10619 = vmatprep.subr.bf16.mxu0 0
    %10620 = vmatpush1.bf16.msra.mxu0 0
    %10621 = vmatprep.subr.bf16.mxu0 0
    %10622 = vmatpush1.bf16.msra.mxu0 0
    %10623 = vmatprep.subr.bf16.mxu0 0
    %10624 = vmatpush1.bf16.msra.mxu0 0
    %10625 = vmatprep.subr.bf16.mxu0 0
    %10626 = vmatpush1.bf16.msra.mxu0 0
    %10627 = vmatprep.mubr.bf16.mxu0 0
    %10628 = vmatmul.mubr.bf16.gmra.mrb[0].mxu0 %v10506
    %v10629 = vpop.f32.mrb[0].mxu0
    %v10630 = vadd.f32 %v10255, %v10629
    %v10631 = vpop.f32.mrb[0].mxu0
    %v10632 = vpop.f32.mrb[0].mxu0
    %v10633 = vadd.f32 %v10258, %v10632
    %v10634 = vpop.f32.mrb[0].mxu0
    %10635 = vmatprep.mubr.bf16.mxu0 0
    %10636 = vmatmul.mubr.bf16.gmra.mrb[0].mxu0 %v10509
    %v10637 = vpop.f32.mrb[0].mxu0
    %v10638 = vadd.f32 %v10263, %v10637
    %v10639 = vpop.f32.mrb[0].mxu0
    %v10640 = vpop.f32.mrb[0].mxu0
    %v10641 = vadd.f32 %v10266, %v10640
    %v10642 = vpop.f32.mrb[0].mxu0
    %10643 = vmatprep.mubr.bf16.mxu0 0
    %10644 = vmatmul.mubr.bf16.gmra.mrb[0].mxu0 %v10512
    %v10645 = vpop.f32.mrb[0].mxu0
    %v10646 = vadd.f32 %v10271, %v10645
    %v10647 = vpop.f32.mrb[0].mxu0
    %v10648 = vpop.f32.mrb[0].mxu0
    %v10649 = vadd.f32 %v10274, %v10648
    %v10650 = vpop.f32.mrb[0].mxu0
    %10651 = vmatprep.mubr.bf16.mxu0 0
    %10652 = vmatmul.mubr.bf16.gmra.mrb[0].mxu0 %v10515
    %v10653 = vpop.f32.mrb[0].mxu0
    %v10654 = vadd.f32 %v10279, %v10653
    %v10655 = vpop.f32.mrb[0].mxu0
    %v10656 = vpop.f32.mrb[0].mxu0
    %v10657 = vadd.f32 %v10282, %v10656
    %v10658 = vpop.f32.mrb[0].mxu0
    %10659 = vmatprep.mubr.bf16.mxu0 0
    %10660 = vmatmul.mubr.bf16.gmra.mrb[0].mxu0 %v10518
    %v10661 = vpop.f32.mrb[0].mxu0
    %v10662 = vadd.f32 %v10287, %v10661
    %v10663 = vpop.f32.mrb[0].mxu0
    %v10664 = vpop.f32.mrb[0].mxu0
    %v10665 = vadd.f32 %v10290, %v10664
    %v10666 = vpop.f32.mrb[0].mxu0
    %10667 = vmatprep.mubr.bf16.mxu0 0
    %10668 = vmatmul.mubr.bf16.gmra.mrb[0].mxu0 %v10521
    %v10669 = vpop.f32.mrb[0].mxu0
    %v10670 = vadd.f32 %v10295, %v10669
    %v10671 = vpop.f32.mrb[0].mxu0
    %v10672 = vpop.f32.mrb[0].mxu0
    %v10673 = vadd.f32 %v10298, %v10672
    %v10674 = vpop.f32.mrb[0].mxu0
    %10675 = vmatprep.mubr.bf16.mxu0 0
    %10676 = vmatmul.mubr.bf16.gmra.mrb[0].mxu0 %v10524
    %v10677 = vpop.f32.mrb[0].mxu0
    %v10678 = vadd.f32 %v10303, %v10677
    %v10679 = vpop.f32.mrb[0].mxu0
    %v10680 = vpop.f32.mrb[0].mxu0
    %v10681 = vadd.f32 %v10306, %v10680
    %v10682 = vpop.f32.mrb[0].mxu0
    %10683 = vmatprep.mubr.bf16.mxu0 0
    %10684 = vmatmul.mubr.bf16.gmra.mrb[0].mxu0 %v10527
    %v10685 = vpop.f32.mrb[0].mxu0
    %v10686 = vadd.f32 %v10311, %v10685
    %v10687 = vpop.f32.mrb[0].mxu0
    %v10688 = vpop.f32.mrb[0].mxu0
    %v10689 = vadd.f32 %v10314, %v10688
    %v10690 = vpop.f32.mrb[0].mxu0
    %10691 = vmatprep.mubr.bf16.mxu0 0
    %10692 = vmatmul.mubr.bf16.gmra.mrb[0].mxu0 %v10530
    %v10693 = vpop.f32.mrb[0].mxu0
    %v10694 = vadd.f32 %v10319, %v10693
    %v10695 = vpop.f32.mrb[0].mxu0
    %v10696 = vpop.f32.mrb[0].mxu0
    %v10697 = vadd.f32 %v10322, %v10696
    %v10698 = vpop.f32.mrb[0].mxu0
    %10699 = vmatprep.mubr.bf16.mxu0 0
    %10700 = vmatmul.mubr.bf16.gmra.mrb[0].mxu0 %v10533
    %v10701 = vpop.f32.mrb[0].mxu0
    %v10702 = vadd.f32 %v10327, %v10701
    %v10703 = vpop.f32.mrb[0].mxu0
    %v10704 = vpop.f32.mrb[0].mxu0
    %v10705 = vadd.f32 %v10330, %v10704
    %v10706 = vpop.f32.mrb[0].mxu0
    %10707 = vmatprep.mubr.bf16.mxu0 0
    %10708 = vmatmul.mubr.bf16.gmra.mrb[0].mxu0 %v10536
    %v10709 = vpop.f32.mrb[0].mxu0
    %v10710 = vadd.f32 %v10335, %v10709
    %v10711 = vpop.f32.mrb[0].mxu0
    %v10712 = vpop.f32.mrb[0].mxu0
    %v10713 = vadd.f32 %v10338, %v10712
    %v10714 = vpop.f32.mrb[0].mxu0
    %10715 = vmatprep.mubr.bf16.mxu0 0
    %10716 = vmatmul.mubr.bf16.gmra.mrb[0].mxu0 %v10539
    %v10717 = vpop.f32.mrb[0].mxu0
    %v10718 = vadd.f32 %v10343, %v10717
    %v10719 = vpop.f32.mrb[0].mxu0
    %v10720 = vpop.f32.mrb[0].mxu0
    %v10721 = vadd.f32 %v10346, %v10720
    %v10722 = vpop.f32.mrb[0].mxu0
    %10723 = vmatprep.mubr.bf16.mxu0 0
    %10724 = vmatmul.mubr.bf16.gmra.mrb[0].mxu0 %v10542
    %v10725 = vpop.f32.mrb[0].mxu0
    %v10726 = vadd.f32 %v10351, %v10725
    %v10727 = vpop.f32.mrb[0].mxu0
    %v10728 = vpop.f32.mrb[0].mxu0
    %v10729 = vadd.f32 %v10354, %v10728
    %v10730 = vpop.f32.mrb[0].mxu0
    %10731 = vmatprep.mubr.bf16.mxu0 0
    %10732 = vmatmul.mubr.bf16.gmra.mrb[0].mxu0 %v10545
    %v10733 = vpop.f32.mrb[0].mxu0
    %v10734 = vadd.f32 %v10359, %v10733
    %v10735 = vpop.f32.mrb[0].mxu0
    %v10736 = vpop.f32.mrb[0].mxu0
    %v10737 = vadd.f32 %v10362, %v10736
    %v10738 = vpop.f32.mrb[0].mxu0
    %10739 = vmatprep.mubr.bf16.mxu0 0
    %10740 = vmatmul.mubr.bf16.gmra.mrb[0].mxu0 %v10548
    %v10741 = vpop.f32.mrb[0].mxu0
    %v10742 = vadd.f32 %v10367, %v10741
    %v10743 = vpop.f32.mrb[0].mxu0
    %v10744 = vpop.f32.mrb[0].mxu0
    %v10745 = vadd.f32 %v10370, %v10744
    %v10746 = vpop.f32.mrb[0].mxu0
    %10747 = vmatprep.mubr.bf16.mxu0 0
    %10748 = vmatmul.mubr.bf16.gmra.mrb[0].mxu0 %v10551
    %v10749 = vpop.f32.mrb[0].mxu0
    %v10750 = vadd.f32 %v10375, %v10749
    %v10751 = vpop.f32.mrb[0].mxu0
    %v10752 = vpop.f32.mrb[0].mxu0
    %v10753 = vadd.f32 %v10378, %v10752
    %v10754 = vpop.f32.mrb[0].mxu0
    %10755 = vmatprep.mubr.bf16.mxu0 0
    %10756 = vmatmul.mubr.bf16.gmra.mrb[0].mxu0 %v10554
    %v10757 = vpop.f32.mrb[0].mxu0
    %v10758 = vadd.f32 %v10383, %v10757
    %v10759 = vpop.f32.mrb[0].mxu0
    %v10760 = vpop.f32.mrb[0].mxu0
    %v10761 = vadd.f32 %v10386, %v10760
    %v10762 = vpop.f32.mrb[0].mxu0
    %10763 = vmatprep.mubr.bf16.mxu0 0
    %10764 = vmatmul.mubr.bf16.gmra.mrb[0].mxu0 %v10557
    %v10765 = vpop.f32.mrb[0].mxu0
    %v10766 = vadd.f32 %v10391, %v10765
    %v10767 = vpop.f32.mrb[0].mxu0
    %v10768 = vpop.f32.mrb[0].mxu0
    %v10769 = vadd.f32 %v10394, %v10768
    %v10770 = vpop.f32.mrb[0].mxu0
    %10771 = vmatprep.mubr.bf16.mxu0 0
    %10772 = vmatmul.mubr.bf16.gmra.mrb[0].mxu0 %v10560
    %v10773 = vpop.f32.mrb[0].mxu0
    %v10774 = vadd.f32 %v10399, %v10773
    %v10775 = vpop.f32.mrb[0].mxu0
    %v10776 = vpop.f32.mrb[0].mxu0
    %v10777 = vadd.f32 %v10402, %v10776
    %v10778 = vpop.f32.mrb[0].mxu0
    %10779 = vmatprep.mubr.bf16.mxu0 0
    %10780 = vmatmul.mubr.bf16.gmra.mrb[0].mxu0 %v10563
    %v10781 = vpop.f32.mrb[0].mxu0
    %v10782 = vadd.f32 %v10407, %v10781
    %v10783 = vpop.f32.mrb[0].mxu0
    %v10784 = vpop.f32.mrb[0].mxu0
    %v10785 = vadd.f32 %v10410, %v10784
    %v10786 = vpop.f32.mrb[0].mxu0
    %10787 = vmatprep.mubr.bf16.mxu0 0
    %10788 = vmatmul.mubr.bf16.gmra.mrb[0].mxu0 %v10566
    %v10789 = vpop.f32.mrb[0].mxu0
    %v10790 = vadd.f32 %v10415, %v10789
    %v10791 = vpop.f32.mrb[0].mxu0
    %v10792 = vpop.f32.mrb[0].mxu0
    %v10793 = vadd.f32 %v10418, %v10792
    %v10794 = vpop.f32.mrb[0].mxu0
    %10795 = vmatprep.mubr.bf16.mxu0 0
    %10796 = vmatmul.mubr.bf16.gmra.mrb[0].mxu0 %v10569
    %v10797 = vpop.f32.mrb[0].mxu0
    %v10798 = vadd.f32 %v10423, %v10797
    %v10799 = vpop.f32.mrb[0].mxu0
    %v10800 = vpop.f32.mrb[0].mxu0
    %v10801 = vadd.f32 %v10426, %v10800
    %v10802 = vpop.f32.mrb[0].mxu0
    %10803 = vmatprep.mubr.bf16.mxu0 0
    %10804 = vmatmul.mubr.bf16.gmra.mrb[0].mxu0 %v10572
    %v10805 = vpop.f32.mrb[0].mxu0
    %v10806 = vadd.f32 %v10431, %v10805
    %v10807 = vpop.f32.mrb[0].mxu0
    %v10808 = vpop.f32.mrb[0].mxu0
    %v10809 = vadd.f32 %v10434, %v10808
    %v10810 = vpop.f32.mrb[0].mxu0
    %10811 = vmatprep.mubr.bf16.mxu0 0
    %10812 = vmatmul.mubr.bf16.gmra.mrb[0].mxu0 %v10575
    %v10813 = vpop.f32.mrb[0].mxu0
    %v10814 = vadd.f32 %v10439, %v10813
    %v10815 = vpop.f32.mrb[0].mxu0
    %v10816 = vpop.f32.mrb[0].mxu0
    %v10817 = vadd.f32 %v10442, %v10816
    %v10818 = vpop.f32.mrb[0].mxu0
    %10819 = vmatprep.mubr.bf16.mxu0 0
    %10820 = vmatmul.mubr.bf16.gmra.mrb[0].mxu0 %v10578
    %v10821 = vpop.f32.mrb[0].mxu0
    %v10822 = vadd.f32 %v10447, %v10821
    %v10823 = vpop.f32.mrb[0].mxu0
    %v10824 = vpop.f32.mrb[0].mxu0
    %v10825 = vadd.f32 %v10450, %v10824
    %v10826 = vpop.f32.mrb[0].mxu0
    %10827 = vmatprep.mubr.bf16.mxu0 0
    %10828 = vmatmul.mubr.bf16.gmra.mrb[0].mxu0 %v10581
    %v10829 = vpop.f32.mrb[0].mxu0
    %v10830 = vadd.f32 %v10455, %v10829
    %v10831 = vpop.f32.mrb[0].mxu0
    %v10832 = vpop.f32.mrb[0].mxu0
    %v10833 = vadd.f32 %v10458, %v10832
    %v10834 = vpop.f32.mrb[0].mxu0
    %10835 = vmatprep.mubr.bf16.mxu0 0
    %10836 = vmatmul.mubr.bf16.gmra.mrb[0].mxu0 %v10584
    %v10837 = vpop.f32.mrb[0].mxu0
    %v10838 = vadd.f32 %v10463, %v10837
    %v10839 = vpop.f32.mrb[0].mxu0
    %v10840 = vpop.f32.mrb[0].mxu0
    %v10841 = vadd.f32 %v10466, %v10840
    %v10842 = vpop.f32.mrb[0].mxu0
    %10843 = vmatprep.mubr.bf16.mxu0 0
    %10844 = vmatmul.mubr.bf16.gmra.mrb[0].mxu0 %v10587
    %v10845 = vpop.f32.mrb[0].mxu0
    %v10846 = vadd.f32 %v10471, %v10845
    %v10847 = vpop.f32.mrb[0].mxu0
    %v10848 = vpop.f32.mrb[0].mxu0
    %v10849 = vadd.f32 %v10474, %v10848
    %v10850 = vpop.f32.mrb[0].mxu0
    %10851 = vmatprep.mubr.bf16.mxu0 0
    %10852 = vmatmul.mubr.bf16.gmra.mrb[0].mxu0 %v10590
    %v10853 = vpop.f32.mrb[0].mxu0
    %v10854 = vadd.f32 %v10479, %v10853
    %v10855 = vpop.f32.mrb[0].mxu0
    %v10856 = vpop.f32.mrb[0].mxu0
    %v10857 = vadd.f32 %v10482, %v10856
    %v10858 = vpop.f32.mrb[0].mxu0
    %10859 = vmatprep.mubr.bf16.mxu0 0
    %10860 = vmatmul.mubr.bf16.gmra.mrb[0].mxu0 %v10593
    %v10861 = vpop.f32.mrb[0].mxu0
    %v10862 = vadd.f32 %v10487, %v10861
    %v10863 = vpop.f32.mrb[0].mxu0
    %v10864 = vpop.f32.mrb[0].mxu0
    %v10865 = vadd.f32 %v10490, %v10864
    %v10866 = vpop.f32.mrb[0].mxu0
    %10867 = vdwg.mxu0
    %v10868 = vadd.f32 %v10630, %v10116
    %v10869 = vadd.f32 %v10633, %v10116
    %v10870 = vadd.f32 %v10638, %v10116
    %v10871 = vadd.f32 %v10641, %v10116
    %v10872 = vadd.f32 %v10646, %v10116
    %v10873 = vadd.f32 %v10649, %v10116
    %v10874 = vadd.f32 %v10654, %v10116
    %v10875 = vadd.f32 %v10657, %v10116
    %v10876 = vadd.f32 %v10662, %v10116
    %v10877 = vadd.f32 %v10665, %v10116
    %v10878 = vadd.f32 %v10670, %v10116
    %v10879 = vadd.f32 %v10673, %v10116
    %v10880 = vadd.f32 %v10678, %v10116
    %v10881 = vadd.f32 %v10681, %v10116
    %v10882 = vadd.f32 %v10686, %v10116
    %v10883 = vadd.f32 %v10689, %v10116
    %v10884 = vadd.f32 %v10694, %v10116
    %v10885 = vadd.f32 %v10697, %v10116
    %v10886 = vadd.f32 %v10702, %v10116
    %v10887 = vadd.f32 %v10705, %v10116
    %v10888 = vadd.f32 %v10710, %v10116
    %v10889 = vadd.f32 %v10713, %v10116
    %v10890 = vadd.f32 %v10718, %v10116
    %v10891 = vadd.f32 %v10721, %v10116
    %v10892 = vadd.f32 %v10726, %v10116
    %v10893 = vadd.f32 %v10729, %v10116
    %v10894 = vadd.f32 %v10734, %v10116
    %v10895 = vadd.f32 %v10737, %v10116
    %v10896 = vadd.f32 %v10742, %v10116
    %v10897 = vadd.f32 %v10745, %v10116
    %v10898 = vadd.f32 %v10750, %v10116
    %v10899 = vadd.f32 %v10753, %v10116
    %v10900 = vadd.f32 %v10758, %v10116
    %v10901 = vadd.f32 %v10761, %v10116
    %v10902 = vadd.f32 %v10766, %v10116
    %v10903 = vadd.f32 %v10769, %v10116
    %v10904 = vadd.f32 %v10774, %v10116
    %v10905 = vadd.f32 %v10777, %v10116
    %v10906 = vadd.f32 %v10782, %v10116
    %v10907 = vadd.f32 %v10785, %v10116
    %v10908 = vadd.f32 %v10790, %v10116
    %v10909 = vadd.f32 %v10793, %v10116
    %v10910 = vadd.f32 %v10798, %v10116
    %v10911 = vadd.f32 %v10801, %v10116
    %v10912 = vadd.f32 %v10806, %v10116
    %v10913 = vadd.f32 %v10809, %v10116
    %v10914 = vadd.f32 %v10814, %v10116
    %v10915 = vadd.f32 %v10817, %v10116
    %v10916 = vadd.f32 %v10822, %v10116
    %v10917 = vadd.f32 %v10825, %v10116
    %v10918 = vadd.f32 %v10830, %v10116
    %v10919 = vadd.f32 %v10833, %v10116
    %v10920 = vadd.f32 %v10838, %v10116
    %v10921 = vadd.f32 %v10841, %v10116
    %v10922 = vadd.f32 %v10846, %v10116
    %v10923 = vadd.f32 %v10849, %v10116
    %v10924 = vadd.f32 %v10854, %v10116
    %v10925 = vadd.f32 %v10857, %v10116
    %v10926 = vadd.f32 %v10862, %v10116
    %v10927 = vadd.f32 %v10865, %v10116
    %v10928 = vtanh.pop %v10118
    %v10929 = vtanh.pop %v10119
    %v10930 = vtanh.pop %v10120
    %v10931 = vtanh.pop %v10121
    %v10932 = vtanh.pop %v10122
    %v10933 = vtanh.pop %v10123
    %v10934 = vtanh.pop %v10124
    %v10935 = vtanh.pop %v10125
    %v10936 = vtanh.pop %v10126
    %v10937 = vtanh.pop %v10127
    %v10938 = vtanh.pop %v10128
    %v10939 = vtanh.pop %v10129
    %v10940 = vtanh.pop %v10130
    %v10941 = vtanh.pop %v10131
    %v10942 = vtanh.pop %v10132
    %v10943 = vtanh.pop %v10133
    %v10944 = vtanh.pop %v10134
    %v10945 = vtanh.pop %v10135
    %v10946 = vtanh.pop %v10136
    %v10947 = vtanh.pop %v10137
    %v10948 = vtanh.pop %v10138
    %v10949 = vtanh.pop %v10139
    %v10950 = vtanh.pop %v10140
    %v10951 = vtanh.pop %v10141
    %v10952 = vtanh.pop %v10142
    %v10953 = vtanh.pop %v10143
    %v10954 = vtanh.pop %v10144
    %v10955 = vtanh.pop %v10145
    %v10956 = vtanh.pop %v10146
    %v10957 = vtanh.pop %v10147
    %v10958 = vtanh.pop %v10148
    %v10959 = vtanh.pop %v10149
    %v10960 = vtanh.pop %v10150
    %v10961 = vtanh.pop %v10151
    %v10962 = vtanh.pop %v10152
    %v10963 = vtanh.pop %v10153
    %v10964 = vtanh.pop %v10154
    %v10965 = vtanh.pop %v10155
    %v10966 = vtanh.pop %v10156
    %v10967 = vtanh.pop %v10157
    %v10968 = vtanh.pop %v10158
    %v10969 = vtanh.pop %v10159
    %v10970 = vtanh.pop %v10160
    %v10971 = vtanh.pop %v10161
    %v10972 = vtanh.pop %v10162
    %v10973 = vtanh.pop %v10163
    %v10974 = vtanh.pop %v10164
    %v10975 = vtanh.pop %v10165
    %v10976 = vtanh.pop %v10166
    %v10977 = vtanh.pop %v10167
    %v10978 = vtanh.pop %v10168
    %v10979 = vtanh.pop %v10169
    %v10980 = vtanh.pop %v10170
    %v10981 = vtanh.pop %v10171
    %v10982 = vtanh.pop %v10172
    %v10983 = vtanh.pop %v10173
    %v10984 = vtanh.pop %v10174
    %v10985 = vtanh.pop %v10175
    %v10986 = vtanh.pop %v10176
    %v10987 = vtanh.pop %v10177
    %vm10988 = vcmask 23552
    %10989 = vst.msk [vmem:[%s23] sm:$0xff] %vm10988, %v10928
    %10990 = vst.msk [vmem:[%s23 + $0x8] sm:$0xff] %vm10988, %v10929
    %10991 = vst.msk [vmem:[%s23 + $0x10] sm:$0xff] %vm10988, %v10930
    %10992 = vst.msk [vmem:[%s23 + $0x18] sm:$0xff] %vm10988, %v10931
    %10993 = vst.msk [vmem:[%s23 + $0x20] sm:$0xff] %vm10988, %v10932
    %10994 = vst.msk [vmem:[%s23 + $0x28] sm:$0xff] %vm10988, %v10933
    %10995 = vst.msk [vmem:[%s23 + $0x30] sm:$0xff] %vm10988, %v10934
    %10996 = vst.msk [vmem:[%s23 + $0x38] sm:$0xff] %vm10988, %v10935
    %10997 = vst.msk [vmem:[%s23 + $0x40] sm:$0xff] %vm10988, %v10936
    %10998 = vst.msk [vmem:[%s23 + $0x48] sm:$0xff] %vm10988, %v10937
    %10999 = vst.msk [vmem:[%s23 + $0x50] sm:$0xff] %vm10988, %v10938
    %11000 = vst.msk [vmem:[%s23 + $0x58] sm:$0xff] %vm10988, %v10939
    %11001 = vst.msk [vmem:[%s23 + $0x60] sm:$0xff] %vm10988, %v10940
    %11002 = vst.msk [vmem:[%s23 + $0x68] sm:$0xff] %vm10988, %v10941
    %11003 = vst.msk [vmem:[%s23 + $0x70] sm:$0xff] %vm10988, %v10942
    %11004 = vst.msk [vmem:[%s23 + $0x78] sm:$0xff] %vm10988, %v10943
    %11005 = vst.msk [vmem:[%s23 + $0x80] sm:$0xff] %vm10988, %v10944
    %11006 = vst.msk [vmem:[%s23 + $0x88] sm:$0xff] %vm10988, %v10945
    %11007 = vst.msk [vmem:[%s23 + $0x90] sm:$0xff] %vm10988, %v10946
    %11008 = vst.msk [vmem:[%s23 + $0x98] sm:$0xff] %vm10988, %v10947
    %11009 = vst.msk [vmem:[%s23 + $0xa0] sm:$0xff] %vm10988, %v10948
    %11010 = vst.msk [vmem:[%s23 + $0xa8] sm:$0xff] %vm10988, %v10949
    %11011 = vst.msk [vmem:[%s23 + $0xb0] sm:$0xff] %vm10988, %v10950
    %11012 = vst.msk [vmem:[%s23 + $0xb8] sm:$0xff] %vm10988, %v10951
    %11013 = vst.msk [vmem:[%s23 + $0xc0] sm:$0xff] %vm10988, %v10952
    %11014 = vst.msk [vmem:[%s23 + $0xc8] sm:$0xff] %vm10988, %v10953
    %11015 = vst.msk [vmem:[%s23 + $0xd0] sm:$0xff] %vm10988, %v10954
    %11016 = vst.msk [vmem:[%s23 + $0xd8] sm:$0xff] %vm10988, %v10955
    %11017 = vst.msk [vmem:[%s23 + $0xe0] sm:$0xff] %vm10988, %v10956
    %11018 = vst.msk [vmem:[%s23 + $0xe8] sm:$0xff] %vm10988, %v10957
    %11019 = vst.msk [vmem:[%s23 + $0xf0] sm:$0xff] %vm10988, %v10958
    %11020 = vst.msk [vmem:[%s23 + $0xf8] sm:$0xff] %vm10988, %v10959
    %11021 = vst.msk [vmem:[%s23 + $0x100] sm:$0xff] %vm10988, %v10960
    %11022 = vst.msk [vmem:[%s23 + $0x108] sm:$0xff] %vm10988, %v10961
    %11023 = vst.msk [vmem:[%s23 + $0x110] sm:$0xff] %vm10988, %v10962
    %11024 = vst.msk [vmem:[%s23 + $0x118] sm:$0xff] %vm10988, %v10963
    %11025 = vst.msk [vmem:[%s23 + $0x120] sm:$0xff] %vm10988, %v10964
    %11026 = vst.msk [vmem:[%s23 + $0x128] sm:$0xff] %vm10988, %v10965
    %11027 = vst.msk [vmem:[%s23 + $0x130] sm:$0xff] %vm10988, %v10966
    %11028 = vst.msk [vmem:[%s23 + $0x138] sm:$0xff] %vm10988, %v10967
    %11029 = vst.msk [vmem:[%s23 + $0x140] sm:$0xff] %vm10988, %v10968
    %11030 = vst.msk [vmem:[%s23 + $0x148] sm:$0xff] %vm10988, %v10969
    %11031 = vst.msk [vmem:[%s23 + $0x150] sm:$0xff] %vm10988, %v10970
    %11032 = vst.msk [vmem:[%s23 + $0x158] sm:$0xff] %vm10988, %v10971
    %11033 = vst.msk [vmem:[%s23 + $0x160] sm:$0xff] %vm10988, %v10972
    %11034 = vst.msk [vmem:[%s23 + $0x168] sm:$0xff] %vm10988, %v10973
    %11035 = vst.msk [vmem:[%s23 + $0x170] sm:$0xff] %vm10988, %v10974
    %11036 = vst.msk [vmem:[%s23 + $0x178] sm:$0xff] %vm10988, %v10975
    %11037 = vst.msk [vmem:[%s23 + $0x180] sm:$0xff] %vm10988, %v10976
    %11038 = vst.msk [vmem:[%s23 + $0x188] sm:$0xff] %vm10988, %v10977
    %11039 = vst.msk [vmem:[%s23 + $0x190] sm:$0xff] %vm10988, %v10978
    %11040 = vst.msk [vmem:[%s23 + $0x198] sm:$0xff] %vm10988, %v10979
    %11041 = vst.msk [vmem:[%s23 + $0x1a0] sm:$0xff] %vm10988, %v10980
    %11042 = vst.msk [vmem:[%s23 + $0x1a8] sm:$0xff] %vm10988, %v10981
    %11043 = vst.msk [vmem:[%s23 + $0x1b0] sm:$0xff] %vm10988, %v10982
    %11044 = vst.msk [vmem:[%s23 + $0x1b8] sm:$0xff] %vm10988, %v10983
    %11045 = vst.msk [vmem:[%s23 + $0x1c0] sm:$0xff] %vm10988, %v10984
    %11046 = vst.msk [vmem:[%s23 + $0x1c8] sm:$0xff] %vm10988, %v10985
    %11047 = vst.msk [vmem:[%s23 + $0x1d0] sm:$0xff] %vm10988, %v10986
    %11048 = vst.msk [vmem:[%s23 + $0x1d8] sm:$0xff] %vm10988, %v10987
    %v11049 = vtanh.pop %v10868
    %v11050 = vtanh.pop %v10869
    %v11051 = vtanh.pop %v10870
    %v11052 = vtanh.pop %v10871
    %v11053 = vtanh.pop %v10872
    %v11054 = vtanh.pop %v10873
    %v11055 = vtanh.pop %v10874
    %v11056 = vtanh.pop %v10875
    %v11057 = vtanh.pop %v10876
    %v11058 = vtanh.pop %v10877
    %v11059 = vtanh.pop %v10878
    %v11060 = vtanh.pop %v10879
    %v11061 = vtanh.pop %v10880
    %v11062 = vtanh.pop %v10881
    %v11063 = vtanh.pop %v10882
    %v11064 = vtanh.pop %v10883
    %v11065 = vtanh.pop %v10884
    %v11066 = vtanh.pop %v10885
    %v11067 = vtanh.pop %v10886
    %v11068 = vtanh.pop %v10887
    %v11069 = vtanh.pop %v10888
    %v11070 = vtanh.pop %v10889
    %v11071 = vtanh.pop %v10890
    %v11072 = vtanh.pop %v10891
    %v11073 = vtanh.pop %v10892
    %v11074 = vtanh.pop %v10893
    %v11075 = vtanh.pop %v10894
    %v11076 = vtanh.pop %v10895
    %v11077 = vtanh.pop %v10896
    %v11078 = vtanh.pop %v10897
    %v11079 = vtanh.pop %v10898
    %v11080 = vtanh.pop %v10899
    %v11081 = vtanh.pop %v10900
    %v11082 = vtanh.pop %v10901
    %v11083 = vtanh.pop %v10902
    %v11084 = vtanh.pop %v10903
    %v11085 = vtanh.pop %v10904
    %v11086 = vtanh.pop %v10905
    %v11087 = vtanh.pop %v10906
    %v11088 = vtanh.pop %v10907
    %v11089 = vtanh.pop %v10908
    %v11090 = vtanh.pop %v10909
    %v11091 = vtanh.pop %v10910
    %v11092 = vtanh.pop %v10911
    %v11093 = vtanh.pop %v10912
    %v11094 = vtanh.pop %v10913
    %v11095 = vtanh.pop %v10914
    %v11096 = vtanh.pop %v10915
    %v11097 = vtanh.pop %v10916
    %v11098 = vtanh.pop %v10917
    %v11099 = vtanh.pop %v10918
    %v11100 = vtanh.pop %v10919
    %v11101 = vtanh.pop %v10920
    %v11102 = vtanh.pop %v10921
    %v11103 = vtanh.pop %v10922
    %v11104 = vtanh.pop %v10923
    %v11105 = vtanh.pop %v10924
    %v11106 = vtanh.pop %v10925
    %v11107 = vtanh.pop %v10926
    %v11108 = vtanh.pop %v10927
    %s11109 = scalar_lea.vmem %s23, 480
    %11110 = vst.msk [vmem:[%s11109] sm:$0xff] %vm10988, %v11049
    %11111 = vst.msk [vmem:[%s11109 + $0x8] sm:$0xff] %vm10988, %v11050
    %11112 = vst.msk [vmem:[%s11109 + $0x10] sm:$0xff] %vm10988, %v11051
    %11113 = vst.msk [vmem:[%s11109 + $0x18] sm:$0xff] %vm10988, %v11052
    %11114 = vst.msk [vmem:[%s11109 + $0x20] sm:$0xff] %vm10988, %v11053
    %11115 = vst.msk [vmem:[%s11109 + $0x28] sm:$0xff] %vm10988, %v11054
    %11116 = vst.msk [vmem:[%s11109 + $0x30] sm:$0xff] %vm10988, %v11055
    %11117 = vst.msk [vmem:[%s11109 + $0x38] sm:$0xff] %vm10988, %v11056
    %11118 = vst.msk [vmem:[%s11109 + $0x40] sm:$0xff] %vm10988, %v11057
    %11119 = vst.msk [vmem:[%s11109 + $0x48] sm:$0xff] %vm10988, %v11058
    %11120 = vst.msk [vmem:[%s11109 + $0x50] sm:$0xff] %vm10988, %v11059
    %11121 = vst.msk [vmem:[%s11109 + $0x58] sm:$0xff] %vm10988, %v11060
    %11122 = vst.msk [vmem:[%s11109 + $0x60] sm:$0xff] %vm10988, %v11061
    %11123 = vst.msk [vmem:[%s11109 + $0x68] sm:$0xff] %vm10988, %v11062
    %11124 = vst.msk [vmem:[%s11109 + $0x70] sm:$0xff] %vm10988, %v11063
    %11125 = vst.msk [vmem:[%s11109 + $0x78] sm:$0xff] %vm10988, %v11064
    %11126 = vst.msk [vmem:[%s11109 + $0x80] sm:$0xff] %vm10988, %v11065
    %11127 = vst.msk [vmem:[%s11109 + $0x88] sm:$0xff] %vm10988, %v11066
    %11128 = vst.msk [vmem:[%s11109 + $0x90] sm:$0xff] %vm10988, %v11067
    %11129 = vst.msk [vmem:[%s11109 + $0x98] sm:$0xff] %vm10988, %v11068
    %11130 = vst.msk [vmem:[%s11109 + $0xa0] sm:$0xff] %vm10988, %v11069
    %11131 = vst.msk [vmem:[%s11109 + $0xa8] sm:$0xff] %vm10988, %v11070
    %11132 = vst.msk [vmem:[%s11109 + $0xb0] sm:$0xff] %vm10988, %v11071
    %11133 = vst.msk [vmem:[%s11109 + $0xb8] sm:$0xff] %vm10988, %v11072
    %11134 = vst.msk [vmem:[%s11109 + $0xc0] sm:$0xff] %vm10988, %v11073
    %11135 = vst.msk [vmem:[%s11109 + $0xc8] sm:$0xff] %vm10988, %v11074
    %11136 = vst.msk [vmem:[%s11109 + $0xd0] sm:$0xff] %vm10988, %v11075
    %11137 = vst.msk [vmem:[%s11109 + $0xd8] sm:$0xff] %vm10988, %v11076
    %11138 = vst.msk [vmem:[%s11109 + $0xe0] sm:$0xff] %vm10988, %v11077
    %11139 = vst.msk [vmem:[%s11109 + $0xe8] sm:$0xff] %vm10988, %v11078
    %11140 = vst.msk [vmem:[%s11109 + $0xf0] sm:$0xff] %vm10988, %v11079
    %11141 = vst.msk [vmem:[%s11109 + $0xf8] sm:$0xff] %vm10988, %v11080
    %11142 = vst.msk [vmem:[%s11109 + $0x100] sm:$0xff] %vm10988, %v11081
    %11143 = vst.msk [vmem:[%s11109 + $0x108] sm:$0xff] %vm10988, %v11082
    %11144 = vst.msk [vmem:[%s11109 + $0x110] sm:$0xff] %vm10988, %v11083
    %11145 = vst.msk [vmem:[%s11109 + $0x118] sm:$0xff] %vm10988, %v11084
    %11146 = vst.msk [vmem:[%s11109 + $0x120] sm:$0xff] %vm10988, %v11085
    %11147 = vst.msk [vmem:[%s11109 + $0x128] sm:$0xff] %vm10988, %v11086
    %11148 = vst.msk [vmem:[%s11109 + $0x130] sm:$0xff] %vm10988, %v11087
    %11149 = vst.msk [vmem:[%s11109 + $0x138] sm:$0xff] %vm10988, %v11088
    %11150 = vst.msk [vmem:[%s11109 + $0x140] sm:$0xff] %vm10988, %v11089
    %11151 = vst.msk [vmem:[%s11109 + $0x148] sm:$0xff] %vm10988, %v11090
    %11152 = vst.msk [vmem:[%s11109 + $0x150] sm:$0xff] %vm10988, %v11091
    %11153 = vst.msk [vmem:[%s11109 + $0x158] sm:$0xff] %vm10988, %v11092
    %11154 = vst.msk [vmem:[%s11109 + $0x160] sm:$0xff] %vm10988, %v11093
    %11155 = vst.msk [vmem:[%s11109 + $0x168] sm:$0xff] %vm10988, %v11094
    %11156 = vst.msk [vmem:[%s11109 + $0x170] sm:$0xff] %vm10988, %v11095
    %11157 = vst.msk [vmem:[%s11109 + $0x178] sm:$0xff] %vm10988, %v11096
    %11158 = vst.msk [vmem:[%s11109 + $0x180] sm:$0xff] %vm10988, %v11097
    %11159 = vst.msk [vmem:[%s11109 + $0x188] sm:$0xff] %vm10988, %v11098
    %11160 = vst.msk [vmem:[%s11109 + $0x190] sm:$0xff] %vm10988, %v11099
    %11161 = vst.msk [vmem:[%s11109 + $0x198] sm:$0xff] %vm10988, %v11100
    %11162 = vst.msk [vmem:[%s11109 + $0x1a0] sm:$0xff] %vm10988, %v11101
    %11163 = vst.msk [vmem:[%s11109 + $0x1a8] sm:$0xff] %vm10988, %v11102
    %11164 = vst.msk [vmem:[%s11109 + $0x1b0] sm:$0xff] %vm10988, %v11103
    %11165 = vst.msk [vmem:[%s11109 + $0x1b8] sm:$0xff] %vm10988, %v11104
    %11166 = vst.msk [vmem:[%s11109 + $0x1c0] sm:$0xff] %vm10988, %v11105
    %11167 = vst.msk [vmem:[%s11109 + $0x1c8] sm:$0xff] %vm10988, %v11106
    %11168 = vst.msk [vmem:[%s11109 + $0x1d0] sm:$0xff] %vm10988, %v11107
    %11169 = vst.msk [vmem:[%s11109 + $0x1d8] sm:$0xff] %vm10988, %v11108
    // Predicated region
    $region102: #{decoder1d_forward.1} parent=1 // pred_check
      _
    $region103: #{decoder1d_forward.1} parent=1 // pred_check_branch
      %11171 = sbr.rel (0) target = $region105
    $region104: #{decoder1d_forward.1} parent=1 // pred_region
      _
    $region105: #{decoder1d_forward.1} parent=1 // pred_fallthru
      _
    // Predicated region
    $region106: #{decoder1d_forward.1} parent=1 // pred_check
      _
    $region107: #{decoder1d_forward.1} parent=1 // pred_check_branch
      %11173 = sbr.rel (0) target = $region109
    $region108: #{decoder1d_forward.1} parent=1 // pred_region
      _
    $region109: #{decoder1d_forward.1} parent=1 // pred_fallthru
      _
    %11174 = vsyncpa [#allocation3], 1
    %11175 = vsyncpa [#allocation5], 1

</llo_original>
